<compile_context>
chip_gen: v5e
topology: v5e:2x2
jax: 0.10.0
libtpu: 0.0.40
codegen_flags: <defaults>
</compile_context>

<pallas_src>
import jax
import jax.numpy as jnp
from jax.experimental import pallas as pl
from jax.experimental.pallas import tpu as pltpu

DTYPE = jnp.float32
_EPS = 1e-5
_VMEM = pl.BlockSpec(memory_space=pltpu.MemorySpace.VMEM)


# ----------------------------------------------------------------------------
# Fused BRM kernel: BN1 -> ReLU -> conv3x3 -> BN2 -> ReLU -> conv3x3 -> +x
# ----------------------------------------------------------------------------
def _brm_kernel(x_ref, g1_ref, b1_ref, w1_ref, g2_ref, b2_ref, w2_ref,
                o_ref, pad_ref, patch_ref):
    # x_ref   : (N, H, W, C)      input, NHWC
    # g*/b*   : (1, C)            BN affine params
    # w*_ref  : (9*C, C)          conv weights, (dy, dx, cin) flattened on K
    # o_ref   : (N, H, W, C)      output
    # pad_ref : (N, H+2, W+2, C)  VMEM scratch (zero-padded activation)
    # patch_ref: (N*H*W, 9*C)     VMEM scratch (im2col patches)
    N, H, W, C = x_ref.shape
    M = N * H * W

    def bn_relu(v, g, b):
        # training-mode BatchNorm2d: stats over all N*H*W rows, biased variance
        mean = jnp.mean(v, axis=0, keepdims=True)
        var = jnp.mean(jnp.square(v - mean), axis=0, keepdims=True)
        y = (v - mean) * jax.lax.rsqrt(var + _EPS)
        return jnp.maximum(y * g + b, 0.0)

    def conv3x3(y_flat, w_ref_):
        # Scatter the activation into the centre of the zero-padded scratch.
        # (The border was zeroed once below and is never overwritten.)
        pad_ref[:, 1:H + 1, 1:W + 1, :] = y_flat.reshape(N, H, W, C)
        # im2col: pack all 9 taps into the contraction dimension (K = 9*C).
        for dy in range(3):
            for dx in range(3):
                t = dy * 3 + dx
                patch_ref[:, t * C:(t + 1) * C] = (
                    pad_ref[:, dy:dy + H, dx:dx + W, :].reshape(M, C))
        # One MXU matmul per conv instead of 9 narrow (K=C) ones.
        return jnp.dot(patch_ref[...], w_ref_[...],
                       preferred_element_type=jnp.float32)

    # zero the padded scratch once; both convs reuse the zero border
    pad_ref[...] = jnp.zeros_like(pad_ref)

    x_flat = x_ref[...].reshape(M, C).astype(jnp.float32)

    y1 = bn_relu(x_flat, g1_ref[...], b1_ref[...])
    c1 = conv3x3(y1, w1_ref)
    y2 = bn_relu(c1, g2_ref[...], b2_ref[...])
    c2 = conv3x3(y2, w2_ref)

    o_ref[...] = (x_flat + c2).reshape(N, H, W, C).astype(o_ref.dtype)


# ----------------------------------------------------------------------------
# Wrapper: one jit, one pallas_call for the whole module
# ----------------------------------------------------------------------------
@jax.jit
def brm_forward(x, g1, b1, w1, g2, b2, w2):
    N, H, W, C = x.shape
    M = N * H * W
    return pl.pallas_call(
        _brm_kernel,
        out_shape=jax.ShapeDtypeStruct((N, H, W, C), x.dtype),
        in_specs=[_VMEM] * 7,
        out_specs=_VMEM,
        scratch_shapes=[
            pltpu.VMEM((N, H + 2, W + 2, C), jnp.float32),   # padded activation
            pltpu.VMEM((M, 9 * C), jnp.float32),             # im2col patches
        ],
        compiler_params=pltpu.CompilerParams(
            vmem_limit_bytes=32 * 1024 * 1024),
    )(x, g1, b1, w1.reshape(9 * C, C), g2, b2, w2.reshape(9 * C, C))


# ----------------------------------------------------------------------------
# Pure-JAX reference (same training-mode BN semantics) for validation
# ----------------------------------------------------------------------------
@jax.jit
def brm_reference(x, g1, b1, w1, g2, b2, w2):
    def bn_relu(v, g, b):
        mean = jnp.mean(v, axis=(0, 1, 2), keepdims=True)
        var = jnp.mean(jnp.square(v - mean), axis=(0, 1, 2), keepdims=True)
        y = (v - mean) * jax.lax.rsqrt(var + _EPS)
        return jnp.maximum(y * g.reshape(1, 1, 1, -1) + b.reshape(1, 1, 1, -1),
                           0.0)

    def conv3(v, w):
        return jax.lax.conv_general_dilated(
            v, w, window_strides=(1, 1), padding=((1, 1), (1, 1)),
            dimension_numbers=("NHWC", "HWIO", "NHWC"),
            precision=jax.lax.Precision.HIGHEST)

    out = conv3(bn_relu(x, g1, b1), w1)
    out = conv3(bn_relu(out, g2, b2), w2)
    return x + out


# ----------------------------------------------------------------------------
if __name__ == "__main__":
    # Small, module-consistent shapes: batch=2, out_channel=32, 16x16 spatial.
    N, H, W, C = 2, 16, 16, 32

    key = jax.random.PRNGKey(0)
    kx, kw1, kw2, kg1, kb1, kg2, kb2 = jax.random.split(key, 7)

    x = jax.random.normal(kx, (N, H, W, C), DTYPE)           # NHWC
    w1 = 0.1 * jax.random.normal(kw1, (3, 3, C, C), DTYPE)   # HWIO, bias=False
    w2 = 0.1 * jax.random.normal(kw2, (3, 3, C, C), DTYPE)
    g1 = 1.0 + 0.1 * jax.random.normal(kg1, (1, C), DTYPE)
    b1 = 0.1 * jax.random.normal(kb1, (1, C), DTYPE)
    g2 = 1.0 + 0.1 * jax.random.normal(kg2, (1, C), DTYPE)
    b2 = 0.1 * jax.random.normal(kb2, (1, C), DTYPE)

    out = brm_forward(x, g1, b1, w1, g2, b2, w2)
    out = jax.block_until_ready(out)

    ref = brm_reference(x, g1, b1, w1, g2, b2, w2)
    ref = jax.block_until_ready(ref)

    assert out.shape == (N, H, W, C), out.shape
    assert bool(jnp.all(jnp.isfinite(out)))
    max_err = float(jnp.max(jnp.abs(out - ref)))
    assert max_err < 2e-3, f"mismatch vs reference: {max_err}"
    print("KERNEL_OK")
</pallas_src>

<mosaic_0001>
module attributes {stable_mosaic.version = 11 : i64} {
  func.func @_brm_kernel(%arg0: memref<2x16x16x32xf32, #tpu.memory_space<vmem>>, %arg1: memref<1x32xf32, #tpu.memory_space<vmem>>, %arg2: memref<1x32xf32, #tpu.memory_space<vmem>>, %arg3: memref<288x32xf32, #tpu.memory_space<vmem>>, %arg4: memref<1x32xf32, #tpu.memory_space<vmem>>, %arg5: memref<1x32xf32, #tpu.memory_space<vmem>>, %arg6: memref<288x32xf32, #tpu.memory_space<vmem>>, %arg7: memref<2x16x16x32xf32, #tpu.memory_space<vmem>>, %arg8: memref<2x18x18x32xf32, #tpu.memory_space<vmem>>, %arg9: memref<512x288xf32, #tpu.memory_space<vmem>>) attributes {dimension_semantics = [], scalar_prefetch = 0 : i64, scratch_operands = 2 : i64, tpu.core_type = #tpu.core_type<tc>} {
    %cst = arith.constant 0.000000e+00 : f32
    %0 = vector.broadcast %cst : f32 to vector<2x18x18x32xf32>
    %c0 = arith.constant 0 : index
    %c0_0 = arith.constant 0 : index
    %c0_1 = arith.constant 0 : index
    %c0_2 = arith.constant 0 : index
    %1 = vector.load %arg8[%c0, %c0_0, %c0_1, %c0_2] : memref<2x18x18x32xf32, #tpu.memory_space<vmem>>, vector<2x18x18x32xf32>
    tpu.vector_store %arg8[%c0, %c0_0, %c0_1, %c0_2], %0 {strides = array<i32>} : memref<2x18x18x32xf32, #tpu.memory_space<vmem>>, vector<2x18x18x32xf32>,
    %c0_3 = arith.constant 0 : index
    %c0_4 = arith.constant 0 : index
    %c0_5 = arith.constant 0 : index
    %c0_6 = arith.constant 0 : index
    %2 = vector.load %arg0[%c0_3, %c0_4, %c0_5, %c0_6] : memref<2x16x16x32xf32, #tpu.memory_space<vmem>>, vector<2x16x16x32xf32>
    %3 = vector.shape_cast %2 : vector<2x16x16x32xf32> to vector<512x32xf32>
    %c0_7 = arith.constant 0 : index
    %c0_8 = arith.constant 0 : index
    %4 = vector.load %arg1[%c0_7, %c0_8] : memref<1x32xf32, #tpu.memory_space<vmem>>, vector<1x32xf32>
    %c0_9 = arith.constant 0 : index
    %c0_10 = arith.constant 0 : index
    %5 = vector.load %arg2[%c0_9, %c0_10] : memref<1x32xf32, #tpu.memory_space<vmem>>, vector<1x32xf32>
    %cst_11 = arith.constant dense<0.000000e+00> : vector<32xf32>
    %6 = vector.multi_reduction <add>, %3, %cst_11 [0] : vector<512x32xf32> to vector<32xf32>
    %7 = vector.shape_cast %6 : vector<32xf32> to vector<1x32xf32>
    %cst_12 = arith.constant 5.120000e+02 : f32
    %8 = vector.broadcast %cst_12 : f32 to vector<1x32xf32>
    %9 = arith.divf %7, %8 : vector<1x32xf32>
    %10 = vector.broadcast %9 : vector<1x32xf32> to vector<512x32xf32>
    %11 = arith.subf %3, %10 : vector<512x32xf32>
    %12 = arith.mulf %11, %11 : vector<512x32xf32>
    %cst_13 = arith.constant dense<0.000000e+00> : vector<32xf32>
    %13 = vector.multi_reduction <add>, %12, %cst_13 [0] : vector<512x32xf32> to vector<32xf32>
    %14 = vector.shape_cast %13 : vector<32xf32> to vector<1x32xf32>
    %cst_14 = arith.constant 5.120000e+02 : f32
    %15 = vector.broadcast %cst_14 : f32 to vector<1x32xf32>
    %16 = arith.divf %14, %15 : vector<1x32xf32>
    %17 = vector.broadcast %9 : vector<1x32xf32> to vector<512x32xf32>
    %18 = arith.subf %3, %17 : vector<512x32xf32>
    %cst_15 = arith.constant 9.99999974E-6 : f32
    %19 = vector.broadcast %cst_15 : f32 to vector<1x32xf32>
    %20 = arith.addf %16, %19 : vector<1x32xf32>
    %21 = math.rsqrt %20 : vector<1x32xf32>
    %22 = vector.broadcast %21 : vector<1x32xf32> to vector<512x32xf32>
    %23 = arith.mulf %18, %22 : vector<512x32xf32>
    %24 = vector.broadcast %4 : vector<1x32xf32> to vector<512x32xf32>
    %25 = arith.mulf %23, %24 : vector<512x32xf32>
    %26 = vector.broadcast %5 : vector<1x32xf32> to vector<512x32xf32>
    %27 = arith.addf %25, %26 : vector<512x32xf32>
    %cst_16 = arith.constant 0.000000e+00 : f32
    %28 = vector.broadcast %cst_16 : f32 to vector<512x32xf32>
    %29 = arith.maximumf %27, %28 : vector<512x32xf32>
    %30 = vector.shape_cast %29 : vector<512x32xf32> to vector<2x16x16x32xf32>
    %c0_17 = arith.constant 0 : index
    %c1 = arith.constant 1 : index
    %c1_18 = arith.constant 1 : index
    %c0_19 = arith.constant 0 : index
    %31 = vector.load %arg8[%c0_17, %c1, %c1_18, %c0_19] : memref<2x18x18x32xf32, #tpu.memory_space<vmem>>, vector<2x16x16x32xf32>
    tpu.vector_store %arg8[%c0_17, %c1, %c1_18, %c0_19], %30 {strides = array<i32>} : memref<2x18x18x32xf32, #tpu.memory_space<vmem>>, vector<2x16x16x32xf32>,
    %c0_20 = arith.constant 0 : index
    %c0_21 = arith.constant 0 : index
    %c0_22 = arith.constant 0 : index
    %c0_23 = arith.constant 0 : index
    %32 = vector.load %arg8[%c0_20, %c0_21, %c0_22, %c0_23] : memref<2x18x18x32xf32, #tpu.memory_space<vmem>>, vector<2x16x16x32xf32>
    %33 = vector.shape_cast %32 : vector<2x16x16x32xf32> to vector<512x32xf32>
    %c0_24 = arith.constant 0 : index
    %c0_25 = arith.constant 0 : index
    %34 = vector.load %arg9[%c0_24, %c0_25] : memref<512x288xf32, #tpu.memory_space<vmem>>, vector<512x32xf32>
    tpu.vector_store %arg9[%c0_24, %c0_25], %33 {strides = array<i32>} : memref<512x288xf32, #tpu.memory_space<vmem>>, vector<512x32xf32>,
    %c0_26 = arith.constant 0 : index
    %c0_27 = arith.constant 0 : index
    %c1_28 = arith.constant 1 : index
    %c0_29 = arith.constant 0 : index
    %35 = vector.load %arg8[%c0_26, %c0_27, %c1_28, %c0_29] : memref<2x18x18x32xf32, #tpu.memory_space<vmem>>, vector<2x16x16x32xf32>
    %36 = vector.shape_cast %35 : vector<2x16x16x32xf32> to vector<512x32xf32>
    %c0_30 = arith.constant 0 : index
    %c32 = arith.constant 32 : index
    %37 = vector.load %arg9[%c0_30, %c32] : memref<512x288xf32, #tpu.memory_space<vmem>>, vector<512x32xf32>
    tpu.vector_store %arg9[%c0_30, %c32], %36 {strides = array<i32>} : memref<512x288xf32, #tpu.memory_space<vmem>>, vector<512x32xf32>,
    %c0_31 = arith.constant 0 : index
    %c0_32 = arith.constant 0 : index
    %c2 = arith.constant 2 : index
    %c0_33 = arith.constant 0 : index
    %38 = vector.load %arg8[%c0_31, %c0_32, %c2, %c0_33] : memref<2x18x18x32xf32, #tpu.memory_space<vmem>>, vector<2x16x16x32xf32>
    %39 = vector.shape_cast %38 : vector<2x16x16x32xf32> to vector<512x32xf32>
    %c0_34 = arith.constant 0 : index
    %c64 = arith.constant 64 : index
    %40 = vector.load %arg9[%c0_34, %c64] : memref<512x288xf32, #tpu.memory_space<vmem>>, vector<512x32xf32>
    tpu.vector_store %arg9[%c0_34, %c64], %39 {strides = array<i32>} : memref<512x288xf32, #tpu.memory_space<vmem>>, vector<512x32xf32>,
    %c0_35 = arith.constant 0 : index
    %c1_36 = arith.constant 1 : index
    %c0_37 = arith.constant 0 : index
    %c0_38 = arith.constant 0 : index
    %41 = vector.load %arg8[%c0_35, %c1_36, %c0_37, %c0_38] : memref<2x18x18x32xf32, #tpu.memory_space<vmem>>, vector<2x16x16x32xf32>
    %42 = vector.shape_cast %41 : vector<2x16x16x32xf32> to vector<512x32xf32>
    %c0_39 = arith.constant 0 : index
    %c96 = arith.constant 96 : index
    %43 = vector.load %arg9[%c0_39, %c96] : memref<512x288xf32, #tpu.memory_space<vmem>>, vector<512x32xf32>
    tpu.vector_store %arg9[%c0_39, %c96], %42 {strides = array<i32>} : memref<512x288xf32, #tpu.memory_space<vmem>>, vector<512x32xf32>,
    %c0_40 = arith.constant 0 : index
    %c1_41 = arith.constant 1 : index
    %c1_42 = arith.constant 1 : index
    %c0_43 = arith.constant 0 : index
    %44 = vector.load %arg8[%c0_40, %c1_41, %c1_42, %c0_43] : memref<2x18x18x32xf32, #tpu.memory_space<vmem>>, vector<2x16x16x32xf32>
    %45 = vector.shape_cast %44 : vector<2x16x16x32xf32> to vector<512x32xf32>
    %c0_44 = arith.constant 0 : index
    %c128 = arith.constant 128 : index
    %46 = vector.load %arg9[%c0_44, %c128] : memref<512x288xf32, #tpu.memory_space<vmem>>, vector<512x32xf32>
    tpu.vector_store %arg9[%c0_44, %c128], %45 {strides = array<i32>} : memref<512x288xf32, #tpu.memory_space<vmem>>, vector<512x32xf32>,
    %c0_45 = arith.constant 0 : index
    %c1_46 = arith.constant 1 : index
    %c2_47 = arith.constant 2 : index
    %c0_48 = arith.constant 0 : index
    %47 = vector.load %arg8[%c0_45, %c1_46, %c2_47, %c0_48] : memref<2x18x18x32xf32, #tpu.memory_space<vmem>>, vector<2x16x16x32xf32>
    %48 = vector.shape_cast %47 : vector<2x16x16x32xf32> to vector<512x32xf32>
    %c0_49 = arith.constant 0 : index
    %c160 = arith.constant 160 : index
    %49 = vector.load %arg9[%c0_49, %c160] : memref<512x288xf32, #tpu.memory_space<vmem>>, vector<512x32xf32>
    tpu.vector_store %arg9[%c0_49, %c160], %48 {strides = array<i32>} : memref<512x288xf32, #tpu.memory_space<vmem>>, vector<512x32xf32>,
    %c0_50 = arith.constant 0 : index
    %c2_51 = arith.constant 2 : index
    %c0_52 = arith.constant 0 : index
    %c0_53 = arith.constant 0 : index
    %50 = vector.load %arg8[%c0_50, %c2_51, %c0_52, %c0_53] : memref<2x18x18x32xf32, #tpu.memory_space<vmem>>, vector<2x16x16x32xf32>
    %51 = vector.shape_cast %50 : vector<2x16x16x32xf32> to vector<512x32xf32>
    %c0_54 = arith.constant 0 : index
    %c192 = arith.constant 192 : index
    %52 = vector.load %arg9[%c0_54, %c192] : memref<512x288xf32, #tpu.memory_space<vmem>>, vector<512x32xf32>
    tpu.vector_store %arg9[%c0_54, %c192], %51 {strides = array<i32>} : memref<512x288xf32, #tpu.memory_space<vmem>>, vector<512x32xf32>,
    %c0_55 = arith.constant 0 : index
    %c2_56 = arith.constant 2 : index
    %c1_57 = arith.constant 1 : index
    %c0_58 = arith.constant 0 : index
    %53 = vector.load %arg8[%c0_55, %c2_56, %c1_57, %c0_58] : memref<2x18x18x32xf32, #tpu.memory_space<vmem>>, vector<2x16x16x32xf32>
    %54 = vector.shape_cast %53 : vector<2x16x16x32xf32> to vector<512x32xf32>
    %c0_59 = arith.constant 0 : index
    %c224 = arith.constant 224 : index
    %55 = vector.load %arg9[%c0_59, %c224] : memref<512x288xf32, #tpu.memory_space<vmem>>, vector<512x32xf32>
    tpu.vector_store %arg9[%c0_59, %c224], %54 {strides = array<i32>} : memref<512x288xf32, #tpu.memory_space<vmem>>, vector<512x32xf32>,
    %c0_60 = arith.constant 0 : index
    %c2_61 = arith.constant 2 : index
    %c2_62 = arith.constant 2 : index
    %c0_63 = arith.constant 0 : index
    %56 = vector.load %arg8[%c0_60, %c2_61, %c2_62, %c0_63] : memref<2x18x18x32xf32, #tpu.memory_space<vmem>>, vector<2x16x16x32xf32>
    %57 = vector.shape_cast %56 : vector<2x16x16x32xf32> to vector<512x32xf32>
    %c0_64 = arith.constant 0 : index
    %c256 = arith.constant 256 : index
    %58 = vector.load %arg9[%c0_64, %c256] : memref<512x288xf32, #tpu.memory_space<vmem>>, vector<512x32xf32>
    tpu.vector_store %arg9[%c0_64, %c256], %57 {strides = array<i32>} : memref<512x288xf32, #tpu.memory_space<vmem>>, vector<512x32xf32>,
    %c0_65 = arith.constant 0 : index
    %c0_66 = arith.constant 0 : index
    %59 = vector.load %arg9[%c0_65, %c0_66] : memref<512x288xf32, #tpu.memory_space<vmem>>, vector<512x288xf32>
    %c0_67 = arith.constant 0 : index
    %c0_68 = arith.constant 0 : index
    %60 = vector.load %arg3[%c0_67, %c0_68] : memref<288x32xf32, #tpu.memory_space<vmem>>, vector<288x32xf32>
    %cst_69 = arith.constant dense<0.000000e+00> : vector<512x32xf32>
    %61 = tpu.matmul %59, %60, %cst_69 {dimension_numbers = #tpu.dot_dimension_numbers<[1], [0], [0], [1], [0, 0, 1, 1], [], []>} : vector<512x288xf32>, vector<288x32xf32>, vector<512x32xf32> -> vector<512x32xf32>
    %c0_70 = arith.constant 0 : index
    %c0_71 = arith.constant 0 : index
    %62 = vector.load %arg4[%c0_70, %c0_71] : memref<1x32xf32, #tpu.memory_space<vmem>>, vector<1x32xf32>
    %c0_72 = arith.constant 0 : index
    %c0_73 = arith.constant 0 : index
    %63 = vector.load %arg5[%c0_72, %c0_73] : memref<1x32xf32, #tpu.memory_space<vmem>>, vector<1x32xf32>
    %cst_74 = arith.constant dense<0.000000e+00> : vector<32xf32>
    %64 = vector.multi_reduction <add>, %61, %cst_74 [0] : vector<512x32xf32> to vector<32xf32>
    %65 = vector.shape_cast %64 : vector<32xf32> to vector<1x32xf32>
    %cst_75 = arith.constant 5.120000e+02 : f32
    %66 = vector.broadcast %cst_75 : f32 to vector<1x32xf32>
    %67 = arith.divf %65, %66 : vector<1x32xf32>
    %68 = vector.broadcast %67 : vector<1x32xf32> to vector<512x32xf32>
    %69 = arith.subf %61, %68 : vector<512x32xf32>
    %70 = arith.mulf %69, %69 : vector<512x32xf32>
    %cst_76 = arith.constant dense<0.000000e+00> : vector<32xf32>
    %71 = vector.multi_reduction <add>, %70, %cst_76 [0] : vector<512x32xf32> to vector<32xf32>
    %72 = vector.shape_cast %71 : vector<32xf32> to vector<1x32xf32>
    %cst_77 = arith.constant 5.120000e+02 : f32
    %73 = vector.broadcast %cst_77 : f32 to vector<1x32xf32>
    %74 = arith.divf %72, %73 : vector<1x32xf32>
    %75 = vector.broadcast %67 : vector<1x32xf32> to vector<512x32xf32>
    %76 = arith.subf %61, %75 : vector<512x32xf32>
    %cst_78 = arith.constant 9.99999974E-6 : f32
    %77 = vector.broadcast %cst_78 : f32 to vector<1x32xf32>
    %78 = arith.addf %74, %77 : vector<1x32xf32>
    %79 = math.rsqrt %78 : vector<1x32xf32>
    %80 = vector.broadcast %79 : vector<1x32xf32> to vector<512x32xf32>
    %81 = arith.mulf %76, %80 : vector<512x32xf32>
    %82 = vector.broadcast %62 : vector<1x32xf32> to vector<512x32xf32>
    %83 = arith.mulf %81, %82 : vector<512x32xf32>
    %84 = vector.broadcast %63 : vector<1x32xf32> to vector<512x32xf32>
    %85 = arith.addf %83, %84 : vector<512x32xf32>
    %cst_79 = arith.constant 0.000000e+00 : f32
    %86 = vector.broadcast %cst_79 : f32 to vector<512x32xf32>
    %87 = arith.maximumf %85, %86 : vector<512x32xf32>
    %88 = vector.shape_cast %87 : vector<512x32xf32> to vector<2x16x16x32xf32>
    %c0_80 = arith.constant 0 : index
    %c1_81 = arith.constant 1 : index
    %c1_82 = arith.constant 1 : index
    %c0_83 = arith.constant 0 : index
    %89 = vector.load %arg8[%c0_80, %c1_81, %c1_82, %c0_83] : memref<2x18x18x32xf32, #tpu.memory_space<vmem>>, vector<2x16x16x32xf32>
    tpu.vector_store %arg8[%c0_80, %c1_81, %c1_82, %c0_83], %88 {strides = array<i32>} : memref<2x18x18x32xf32, #tpu.memory_space<vmem>>, vector<2x16x16x32xf32>,
    %c0_84 = arith.constant 0 : index
    %c0_85 = arith.constant 0 : index
    %c0_86 = arith.constant 0 : index
    %c0_87 = arith.constant 0 : index
    %90 = vector.load %arg8[%c0_84, %c0_85, %c0_86, %c0_87] : memref<2x18x18x32xf32, #tpu.memory_space<vmem>>, vector<2x16x16x32xf32>
    %91 = vector.shape_cast %90 : vector<2x16x16x32xf32> to vector<512x32xf32>
    %c0_88 = arith.constant 0 : index
    %c0_89 = arith.constant 0 : index
    %92 = vector.load %arg9[%c0_88, %c0_89] : memref<512x288xf32, #tpu.memory_space<vmem>>, vector<512x32xf32>
    tpu.vector_store %arg9[%c0_88, %c0_89], %91 {strides = array<i32>} : memref<512x288xf32, #tpu.memory_space<vmem>>, vector<512x32xf32>,
    %c0_90 = arith.constant 0 : index
    %c0_91 = arith.constant 0 : index
    %c1_92 = arith.constant 1 : index
    %c0_93 = arith.constant 0 : index
    %93 = vector.load %arg8[%c0_90, %c0_91, %c1_92, %c0_93] : memref<2x18x18x32xf32, #tpu.memory_space<vmem>>, vector<2x16x16x32xf32>
    %94 = vector.shape_cast %93 : vector<2x16x16x32xf32> to vector<512x32xf32>
    %c0_94 = arith.constant 0 : index
    %c32_95 = arith.constant 32 : index
    %95 = vector.load %arg9[%c0_94, %c32_95] : memref<512x288xf32, #tpu.memory_space<vmem>>, vector<512x32xf32>
    tpu.vector_store %arg9[%c0_94, %c32_95], %94 {strides = array<i32>} : memref<512x288xf32, #tpu.memory_space<vmem>>, vector<512x32xf32>,
    %c0_96 = arith.constant 0 : index
    %c0_97 = arith.constant 0 : index
    %c2_98 = arith.constant 2 : index
    %c0_99 = arith.constant 0 : index
    %96 = vector.load %arg8[%c0_96, %c0_97, %c2_98, %c0_99] : memref<2x18x18x32xf32, #tpu.memory_space<vmem>>, vector<2x16x16x32xf32>
    %97 = vector.shape_cast %96 : vector<2x16x16x32xf32> to vector<512x32xf32>
    %c0_100 = arith.constant 0 : index
    %c64_101 = arith.constant 64 : index
    %98 = vector.load %arg9[%c0_100, %c64_101] : memref<512x288xf32, #tpu.memory_space<vmem>>, vector<512x32xf32>
    tpu.vector_store %arg9[%c0_100, %c64_101], %97 {strides = array<i32>} : memref<512x288xf32, #tpu.memory_space<vmem>>, vector<512x32xf32>,
    %c0_102 = arith.constant 0 : index
    %c1_103 = arith.constant 1 : index
    %c0_104 = arith.constant 0 : index
    %c0_105 = arith.constant 0 : index
    %99 = vector.load %arg8[%c0_102, %c1_103, %c0_104, %c0_105] : memref<2x18x18x32xf32, #tpu.memory_space<vmem>>, vector<2x16x16x32xf32>
    %100 = vector.shape_cast %99 : vector<2x16x16x32xf32> to vector<512x32xf32>
    %c0_106 = arith.constant 0 : index
    %c96_107 = arith.constant 96 : index
    %101 = vector.load %arg9[%c0_106, %c96_107] : memref<512x288xf32, #tpu.memory_space<vmem>>, vector<512x32xf32>
    tpu.vector_store %arg9[%c0_106, %c96_107], %100 {strides = array<i32>} : memref<512x288xf32, #tpu.memory_space<vmem>>, vector<512x32xf32>,
    %c0_108 = arith.constant 0 : index
    %c1_109 = arith.constant 1 : index
    %c1_110 = arith.constant 1 : index
    %c0_111 = arith.constant 0 : index
    %102 = vector.load %arg8[%c0_108, %c1_109, %c1_110, %c0_111] : memref<2x18x18x32xf32, #tpu.memory_space<vmem>>, vector<2x16x16x32xf32>
    %103 = vector.shape_cast %102 : vector<2x16x16x32xf32> to vector<512x32xf32>
    %c0_112 = arith.constant 0 : index
    %c128_113 = arith.constant 128 : index
    %104 = vector.load %arg9[%c0_112, %c128_113] : memref<512x288xf32, #tpu.memory_space<vmem>>, vector<512x32xf32>
    tpu.vector_store %arg9[%c0_112, %c128_113], %103 {strides = array<i32>} : memref<512x288xf32, #tpu.memory_space<vmem>>, vector<512x32xf32>,
    %c0_114 = arith.constant 0 : index
    %c1_115 = arith.constant 1 : index
    %c2_116 = arith.constant 2 : index
    %c0_117 = arith.constant 0 : index
    %105 = vector.load %arg8[%c0_114, %c1_115, %c2_116, %c0_117] : memref<2x18x18x32xf32, #tpu.memory_space<vmem>>, vector<2x16x16x32xf32>
    %106 = vector.shape_cast %105 : vector<2x16x16x32xf32> to vector<512x32xf32>
    %c0_118 = arith.constant 0 : index
    %c160_119 = arith.constant 160 : index
    %107 = vector.load %arg9[%c0_118, %c160_119] : memref<512x288xf32, #tpu.memory_space<vmem>>, vector<512x32xf32>
    tpu.vector_store %arg9[%c0_118, %c160_119], %106 {strides = array<i32>} : memref<512x288xf32, #tpu.memory_space<vmem>>, vector<512x32xf32>,
    %c0_120 = arith.constant 0 : index
    %c2_121 = arith.constant 2 : index
    %c0_122 = arith.constant 0 : index
    %c0_123 = arith.constant 0 : index
    %108 = vector.load %arg8[%c0_120, %c2_121, %c0_122, %c0_123] : memref<2x18x18x32xf32, #tpu.memory_space<vmem>>, vector<2x16x16x32xf32>
    %109 = vector.shape_cast %108 : vector<2x16x16x32xf32> to vector<512x32xf32>
    %c0_124 = arith.constant 0 : index
    %c192_125 = arith.constant 192 : index
    %110 = vector.load %arg9[%c0_124, %c192_125] : memref<512x288xf32, #tpu.memory_space<vmem>>, vector<512x32xf32>
    tpu.vector_store %arg9[%c0_124, %c192_125], %109 {strides = array<i32>} : memref<512x288xf32, #tpu.memory_space<vmem>>, vector<512x32xf32>,
    %c0_126 = arith.constant 0 : index
    %c2_127 = arith.constant 2 : index
    %c1_128 = arith.constant 1 : index
    %c0_129 = arith.constant 0 : index
    %111 = vector.load %arg8[%c0_126, %c2_127, %c1_128, %c0_129] : memref<2x18x18x32xf32, #tpu.memory_space<vmem>>, vector<2x16x16x32xf32>
    %112 = vector.shape_cast %111 : vector<2x16x16x32xf32> to vector<512x32xf32>
    %c0_130 = arith.constant 0 : index
    %c224_131 = arith.constant 224 : index
    %113 = vector.load %arg9[%c0_130, %c224_131] : memref<512x288xf32, #tpu.memory_space<vmem>>, vector<512x32xf32>
    tpu.vector_store %arg9[%c0_130, %c224_131], %112 {strides = array<i32>} : memref<512x288xf32, #tpu.memory_space<vmem>>, vector<512x32xf32>,
    %c0_132 = arith.constant 0 : index
    %c2_133 = arith.constant 2 : index
    %c2_134 = arith.constant 2 : index
    %c0_135 = arith.constant 0 : index
    %114 = vector.load %arg8[%c0_132, %c2_133, %c2_134, %c0_135] : memref<2x18x18x32xf32, #tpu.memory_space<vmem>>, vector<2x16x16x32xf32>
    %115 = vector.shape_cast %114 : vector<2x16x16x32xf32> to vector<512x32xf32>
    %c0_136 = arith.constant 0 : index
    %c256_137 = arith.constant 256 : index
    %116 = vector.load %arg9[%c0_136, %c256_137] : memref<512x288xf32, #tpu.memory_space<vmem>>, vector<512x32xf32>
    tpu.vector_store %arg9[%c0_136, %c256_137], %115 {strides = array<i32>} : memref<512x288xf32, #tpu.memory_space<vmem>>, vector<512x32xf32>,
    %c0_138 = arith.constant 0 : index
    %c0_139 = arith.constant 0 : index
    %117 = vector.load %arg9[%c0_138, %c0_139] : memref<512x288xf32, #tpu.memory_space<vmem>>, vector<512x288xf32>
    %c0_140 = arith.constant 0 : index
    %c0_141 = arith.constant 0 : index
    %118 = vector.load %arg6[%c0_140, %c0_141] : memref<288x32xf32, #tpu.memory_space<vmem>>, vector<288x32xf32>
    %cst_142 = arith.constant dense<0.000000e+00> : vector<512x32xf32>
    %119 = tpu.matmul %117, %118, %cst_142 {dimension_numbers = #tpu.dot_dimension_numbers<[1], [0], [0], [1], [0, 0, 1, 1], [], []>} : vector<512x288xf32>, vector<288x32xf32>, vector<512x32xf32> -> vector<512x32xf32>
    %120 = arith.addf %3, %119 : vector<512x32xf32>
    %121 = vector.shape_cast %120 : vector<512x32xf32> to vector<2x16x16x32xf32>
    %c0_143 = arith.constant 0 : index
    %c0_144 = arith.constant 0 : index
    %c0_145 = arith.constant 0 : index
    %c0_146 = arith.constant 0 : index
    %122 = vector.load %arg7[%c0_143, %c0_144, %c0_145, %c0_146] : memref<2x16x16x32xf32, #tpu.memory_space<vmem>>, vector<2x16x16x32xf32>
    tpu.vector_store %arg7[%c0_143, %c0_144, %c0_145, %c0_146], %121 {strides = array<i32>} : memref<2x16x16x32xf32, #tpu.memory_space<vmem>>, vector<2x16x16x32xf32>,
    return
  }
}

</mosaic_0001>

<llo_original>
// kernel: brm_forward.1
$region0: #{brm_forward.1}
  #allocation0 [shape = 'u32[]', space=smem, size = 0x4, offset = 0x4, fixed_abs, tag = 'smem constant byte address 0x4 - core index']
  #allocation1 [shape = 'u32[72,128]{1,0:T(1,128)}', space=vmem, size = 0x9000, scoped, tag = 'internal scratch']
  #allocation2 [shape = 'f32[2,18,18,32]{3,2,1,0:T(8,128)}', space=vmem, size = 0x6c000, scoped, tag = 'scratch operand']
  #allocation3 [shape = 'f32[512,288]{1,0:T(8,128)}', space=vmem, size = 0xc0000, scoped, tag = 'scratch operand']
  %s0 = inlined_call_operand.hbm [shape: f32[2,16,16,32], index: 0, kind: input, shape index: {}]
  %s1 = inlined_call_operand.vmem [shape: f32[1,32], index: 1, kind: input, shape index: {}]
  %s2 = inlined_call_operand.vmem [shape: f32[1,32], index: 2, kind: input, shape index: {}]
  %s3 = inlined_call_operand.hbm [shape: f32[288,32], index: 3, kind: input, shape index: {}]
  %s4 = inlined_call_operand.vmem [shape: f32[1,32], index: 4, kind: input, shape index: {}]
  %s5 = inlined_call_operand.vmem [shape: f32[1,32], index: 5, kind: input, shape index: {}]
  %s6 = inlined_call_operand.hbm [shape: f32[288,32], index: 6, kind: input, shape index: {}]
  %s7 = inlined_call_operand.hbm [shape: f32[2,16,16,32], index: 7, kind: output, shape index: {}]
  %s8 = sld [smem:[#allocation0]]
  $region50: #{brm_forward.1} parent=0
    _
  %s10 = ssub.s32 1, %s8
  %s11 = scalar_select 0, %s10, %s8
  $region1: #{brm_forward.1} parent=0
    #allocation4 [shape = 'u8[262144]{0}', space=vmem, size = 0x40000, scoped, tag = 'input window, operand 0, single buffered']
    #allocation5 [shape = 's32[1]{0}', space=sflag, size = 0x4, scoped, tag = 'scoped memory for brm_forward.1']
    #allocation6 [shape = 's32[1]{0}', space=sflag, size = 0x4, scoped, tag = 'scoped memory for brm_forward.1']
    #allocation7 [shape = 'u8[147456]{0}', space=vmem, size = 0x24000, scoped, tag = 'input window, operand 3, single buffered']
    #allocation8 [shape = 's32[1]{0}', space=sflag, size = 0x4, scoped, tag = 'scoped memory for brm_forward.1']
    #allocation9 [shape = 'u8[147456]{0}', space=vmem, size = 0x24000, scoped, tag = 'input window, operand 6, single buffered']
    #allocation10 [shape = 'u8[262144]{0}', space=vmem, size = 0x40000, scoped, tag = 'output window, operand 0, single buffered']
    %12 = vsyncpa [#allocation5], 0
    %13 = vsyncpa [#allocation8], 0
    %14 = vsyncpa [#allocation6], 0
    // Predicated region
    $region2: #{brm_forward.1} parent=1 // pred_check
      _
    $region3: #{brm_forward.1} parent=1 // pred_check_branch
      %16 = sbr.rel (0) target = $region5
    $region4: #{brm_forward.1} parent=1 // pred_region
      %18 = vsyncadd [#allocation5], 0
      %s19 = sshll.u32 %s0, 4
      %s20 = int_to_ptr.hbm [resolvable:$true] %s19
      %s21 = sshll.u32 [#allocation4], 4
      %s22 = int_to_ptr.vmem [resolvable:$true] %s21
      %27 = dma.hbm_to_vmem [thread:$0]  %s20, 8192, %s22, [#allocation5], 128, 128, 8
    $region5: #{brm_forward.1} parent=1 // pred_fallthru
      _
    // Predicated region
    $region6: #{brm_forward.1} parent=1 // pred_check
      _
    $region7: #{brm_forward.1} parent=1 // pred_check_branch
      %29 = sbr.rel (0) target = $region9
    $region8: #{brm_forward.1} parent=1 // pred_region
      _
    $region9: #{brm_forward.1} parent=1 // pred_fallthru
      _
    // Predicated region
    $region10: #{brm_forward.1} parent=1 // pred_check
      _
    $region11: #{brm_forward.1} parent=1 // pred_check_branch
      %31 = sbr.rel (0) target = $region13
    $region12: #{brm_forward.1} parent=1 // pred_region
      _
    $region13: #{brm_forward.1} parent=1 // pred_fallthru
      _
    // Predicated region
    $region14: #{brm_forward.1} parent=1 // pred_check
      _
    $region15: #{brm_forward.1} parent=1 // pred_check_branch
      %33 = sbr.rel (0) target = $region17
    $region16: #{brm_forward.1} parent=1 // pred_region
      %35 = vsyncadd [#allocation8], 0
      %s36 = sshll.u32 %s3, 4
      %s37 = int_to_ptr.hbm [resolvable:$true] %s36
      %s38 = sshll.u32 [#allocation7], 4
      %s39 = int_to_ptr.vmem [resolvable:$true] %s38
      %44 = dma.hbm_to_vmem [thread:$0]  %s37, 4608, %s39, [#allocation8], 128, 128, 8
    $region17: #{brm_forward.1} parent=1 // pred_fallthru
      _
    // Predicated region
    $region18: #{brm_forward.1} parent=1 // pred_check
      _
    $region19: #{brm_forward.1} parent=1 // pred_check_branch
      %46 = sbr.rel (0) target = $region21
    $region20: #{brm_forward.1} parent=1 // pred_region
      _
    $region21: #{brm_forward.1} parent=1 // pred_fallthru
      _
    // Predicated region
    $region22: #{brm_forward.1} parent=1 // pred_check
      _
    $region23: #{brm_forward.1} parent=1 // pred_check_branch
      %48 = sbr.rel (0) target = $region25
    $region24: #{brm_forward.1} parent=1 // pred_region
      _
    $region25: #{brm_forward.1} parent=1 // pred_fallthru
      _
    // Predicated region
    $region26: #{brm_forward.1} parent=1 // pred_check
      _
    $region27: #{brm_forward.1} parent=1 // pred_check_branch
      %50 = sbr.rel (0) target = $region29
    $region28: #{brm_forward.1} parent=1 // pred_region
      %52 = vsyncadd [#allocation8], 0
      %s53 = sshll.u32 %s6, 4
      %s54 = int_to_ptr.hbm [resolvable:$true] %s53
      %s55 = sshll.u32 [#allocation9], 4
      %s56 = int_to_ptr.vmem [resolvable:$true] %s55
      %61 = dma.hbm_to_vmem [thread:$0]  %s54, 4608, %s56, [#allocation8], 128, 128, 8
    $region29: #{brm_forward.1} parent=1 // pred_fallthru
      _
    // Predicated region
    $region30: #{brm_forward.1} parent=1 // pred_check
      _
    $region31: #{brm_forward.1} parent=1 // pred_check_branch
      %63 = sbr.rel (0) target = $region33
    $region32: #{brm_forward.1} parent=1 // pred_region
      %65 = dma.done [#allocation5], 8192
    $region33: #{brm_forward.1} parent=1 // pred_fallthru
      _
    // Predicated region
    $region34: #{brm_forward.1} parent=1 // pred_check
      _
    $region35: #{brm_forward.1} parent=1 // pred_check_branch
      %67 = sbr.rel (0) target = $region37
    $region36: #{brm_forward.1} parent=1 // pred_region
      %69 = dma.done [#allocation8], 4608
    $region37: #{brm_forward.1} parent=1 // pred_fallthru
      _
    // Predicated region
    $region38: #{brm_forward.1} parent=1 // pred_check
      _
    $region39: #{brm_forward.1} parent=1 // pred_check_branch
      %71 = sbr.rel (0) target = $region41
    $region40: #{brm_forward.1} parent=1 // pred_region
      %73 = dma.done [#allocation8], 4608
    $region41: #{brm_forward.1} parent=1 // pred_fallthru
      _
    %vm74 = vcmask 261120
    %75 = vst.msk [vmem:[#allocation2] sm:$0xff] %vm74, 0.0
    %76 = vst.msk [vmem:[#allocation2 + $0x8] sm:$0xff] %vm74, 0.0
    %vm77 = vcmask 254976
    %78 = vst.msk [vmem:[#allocation2 + $0x10] sm:$0x3] %vm77, 0.0
    %79 = vst.msk [vmem:[#allocation2 + $0x18] sm:$0xff] %vm74, 0.0
    %80 = vst.msk [vmem:[#allocation2 + $0x20] sm:$0xff] %vm74, 0.0
    %81 = vst.msk [vmem:[#allocation2 + $0x28] sm:$0x3] %vm77, 0.0
    %82 = vst.msk [vmem:[#allocation2 + $0x30] sm:$0xff] %vm74, 0.0
    %83 = vst.msk [vmem:[#allocation2 + $0x38] sm:$0xff] %vm74, 0.0
    %84 = vst.msk [vmem:[#allocation2 + $0x40] sm:$0x3] %vm77, 0.0
    %85 = vst.msk [vmem:[#allocation2 + $0x48] sm:$0xff] %vm74, 0.0
    %86 = vst.msk [vmem:[#allocation2 + $0x50] sm:$0xff] %vm74, 0.0
    %87 = vst.msk [vmem:[#allocation2 + $0x58] sm:$0x3] %vm77, 0.0
    %88 = vst.msk [vmem:[#allocation2 + $0x60] sm:$0xff] %vm74, 0.0
    %89 = vst.msk [vmem:[#allocation2 + $0x68] sm:$0xff] %vm74, 0.0
    %90 = vst.msk [vmem:[#allocation2 + $0x70] sm:$0x3] %vm77, 0.0
    %91 = vst.msk [vmem:[#allocation2 + $0x78] sm:$0xff] %vm74, 0.0
    %92 = vst.msk [vmem:[#allocation2 + $0x80] sm:$0xff] %vm74, 0.0
    %93 = vst.msk [vmem:[#allocation2 + $0x88] sm:$0x3] %vm77, 0.0
    %94 = vst.msk [vmem:[#allocation2 + $0x90] sm:$0xff] %vm74, 0.0
    %95 = vst.msk [vmem:[#allocation2 + $0x98] sm:$0xff] %vm74, 0.0
    %96 = vst.msk [vmem:[#allocation2 + $0xa0] sm:$0x3] %vm77, 0.0
    %97 = vst.msk [vmem:[#allocation2 + $0xa8] sm:$0xff] %vm74, 0.0
    %98 = vst.msk [vmem:[#allocation2 + $0xb0] sm:$0xff] %vm74, 0.0
    %99 = vst.msk [vmem:[#allocation2 + $0xb8] sm:$0x3] %vm77, 0.0
    %100 = vst.msk [vmem:[#allocation2 + $0xc0] sm:$0xff] %vm74, 0.0
    %101 = vst.msk [vmem:[#allocation2 + $0xc8] sm:$0xff] %vm74, 0.0
    %102 = vst.msk [vmem:[#allocation2 + $0xd0] sm:$0x3] %vm77, 0.0
    %103 = vst.msk [vmem:[#allocation2 + $0xd8] sm:$0xff] %vm74, 0.0
    %104 = vst.msk [vmem:[#allocation2 + $0xe0] sm:$0xff] %vm74, 0.0
    %105 = vst.msk [vmem:[#allocation2 + $0xe8] sm:$0x3] %vm77, 0.0
    %106 = vst.msk [vmem:[#allocation2 + $0xf0] sm:$0xff] %vm74, 0.0
    %107 = vst.msk [vmem:[#allocation2 + $0xf8] sm:$0xff] %vm74, 0.0
    %108 = vst.msk [vmem:[#allocation2 + $0x100] sm:$0x3] %vm77, 0.0
    %109 = vst.msk [vmem:[#allocation2 + $0x108] sm:$0xff] %vm74, 0.0
    %110 = vst.msk [vmem:[#allocation2 + $0x110] sm:$0xff] %vm74, 0.0
    %111 = vst.msk [vmem:[#allocation2 + $0x118] sm:$0x3] %vm77, 0.0
    %112 = vst.msk [vmem:[#allocation2 + $0x120] sm:$0xff] %vm74, 0.0
    %113 = vst.msk [vmem:[#allocation2 + $0x128] sm:$0xff] %vm74, 0.0
    %114 = vst.msk [vmem:[#allocation2 + $0x130] sm:$0x3] %vm77, 0.0
    %115 = vst.msk [vmem:[#allocation2 + $0x138] sm:$0xff] %vm74, 0.0
    %116 = vst.msk [vmem:[#allocation2 + $0x140] sm:$0xff] %vm74, 0.0
    %117 = vst.msk [vmem:[#allocation2 + $0x148] sm:$0x3] %vm77, 0.0
    %118 = vst.msk [vmem:[#allocation2 + $0x150] sm:$0xff] %vm74, 0.0
    %119 = vst.msk [vmem:[#allocation2 + $0x158] sm:$0xff] %vm74, 0.0
    %120 = vst.msk [vmem:[#allocation2 + $0x160] sm:$0x3] %vm77, 0.0
    %121 = vst.msk [vmem:[#allocation2 + $0x168] sm:$0xff] %vm74, 0.0
    %122 = vst.msk [vmem:[#allocation2 + $0x170] sm:$0xff] %vm74, 0.0
    %123 = vst.msk [vmem:[#allocation2 + $0x178] sm:$0x3] %vm77, 0.0
    %124 = vst.msk [vmem:[#allocation2 + $0x180] sm:$0xff] %vm74, 0.0
    %125 = vst.msk [vmem:[#allocation2 + $0x188] sm:$0xff] %vm74, 0.0
    %126 = vst.msk [vmem:[#allocation2 + $0x190] sm:$0x3] %vm77, 0.0
    %127 = vst.msk [vmem:[#allocation2 + $0x198] sm:$0xff] %vm74, 0.0
    %128 = vst.msk [vmem:[#allocation2 + $0x1a0] sm:$0xff] %vm74, 0.0
    %129 = vst.msk [vmem:[#allocation2 + $0x1a8] sm:$0x3] %vm77, 0.0
    %130 = vst.msk [vmem:[#allocation2 + $0x1b0] sm:$0xff] %vm74, 0.0
    %131 = vst.msk [vmem:[#allocation2 + $0x1b8] sm:$0xff] %vm74, 0.0
    %132 = vst.msk [vmem:[#allocation2 + $0x1c0] sm:$0x3] %vm77, 0.0
    %133 = vst.msk [vmem:[#allocation2 + $0x1c8] sm:$0xff] %vm74, 0.0
    %134 = vst.msk [vmem:[#allocation2 + $0x1d0] sm:$0xff] %vm74, 0.0
    %135 = vst.msk [vmem:[#allocation2 + $0x1d8] sm:$0x3] %vm77, 0.0
    %136 = vst.msk [vmem:[#allocation2 + $0x1e0] sm:$0xff] %vm74, 0.0
    %137 = vst.msk [vmem:[#allocation2 + $0x1e8] sm:$0xff] %vm74, 0.0
    %138 = vst.msk [vmem:[#allocation2 + $0x1f0] sm:$0x3] %vm77, 0.0
    %139 = vst.msk [vmem:[#allocation2 + $0x1f8] sm:$0xff] %vm74, 0.0
    %140 = vst.msk [vmem:[#allocation2 + $0x200] sm:$0xff] %vm74, 0.0
    %141 = vst.msk [vmem:[#allocation2 + $0x208] sm:$0x3] %vm77, 0.0
    %142 = vst.msk [vmem:[#allocation2 + $0x210] sm:$0xff] %vm74, 0.0
    %143 = vst.msk [vmem:[#allocation2 + $0x218] sm:$0xff] %vm74, 0.0
    %144 = vst.msk [vmem:[#allocation2 + $0x220] sm:$0x3] %vm77, 0.0
    %145 = vst.msk [vmem:[#allocation2 + $0x228] sm:$0xff] %vm74, 0.0
    %146 = vst.msk [vmem:[#allocation2 + $0x230] sm:$0xff] %vm74, 0.0
    %147 = vst.msk [vmem:[#allocation2 + $0x238] sm:$0x3] %vm77, 0.0
    %148 = vst.msk [vmem:[#allocation2 + $0x240] sm:$0xff] %vm74, 0.0
    %149 = vst.msk [vmem:[#allocation2 + $0x248] sm:$0xff] %vm74, 0.0
    %150 = vst.msk [vmem:[#allocation2 + $0x250] sm:$0x3] %vm77, 0.0
    %151 = vst.msk [vmem:[#allocation2 + $0x258] sm:$0xff] %vm74, 0.0
    %152 = vst.msk [vmem:[#allocation2 + $0x260] sm:$0xff] %vm74, 0.0
    %153 = vst.msk [vmem:[#allocation2 + $0x268] sm:$0x3] %vm77, 0.0
    %154 = vst.msk [vmem:[#allocation2 + $0x270] sm:$0xff] %vm74, 0.0
    %155 = vst.msk [vmem:[#allocation2 + $0x278] sm:$0xff] %vm74, 0.0
    %156 = vst.msk [vmem:[#allocation2 + $0x280] sm:$0x3] %vm77, 0.0
    %157 = vst.msk [vmem:[#allocation2 + $0x288] sm:$0xff] %vm74, 0.0
    %158 = vst.msk [vmem:[#allocation2 + $0x290] sm:$0xff] %vm74, 0.0
    %159 = vst.msk [vmem:[#allocation2 + $0x298] sm:$0x3] %vm77, 0.0
    %160 = vst.msk [vmem:[#allocation2 + $0x2a0] sm:$0xff] %vm74, 0.0
    %161 = vst.msk [vmem:[#allocation2 + $0x2a8] sm:$0xff] %vm74, 0.0
    %162 = vst.msk [vmem:[#allocation2 + $0x2b0] sm:$0x3] %vm77, 0.0
    %163 = vst.msk [vmem:[#allocation2 + $0x2b8] sm:$0xff] %vm74, 0.0
    %164 = vst.msk [vmem:[#allocation2 + $0x2c0] sm:$0xff] %vm74, 0.0
    %165 = vst.msk [vmem:[#allocation2 + $0x2c8] sm:$0x3] %vm77, 0.0
    %166 = vst.msk [vmem:[#allocation2 + $0x2d0] sm:$0xff] %vm74, 0.0
    %167 = vst.msk [vmem:[#allocation2 + $0x2d8] sm:$0xff] %vm74, 0.0
    %168 = vst.msk [vmem:[#allocation2 + $0x2e0] sm:$0x3] %vm77, 0.0
    %169 = vst.msk [vmem:[#allocation2 + $0x2e8] sm:$0xff] %vm74, 0.0
    %170 = vst.msk [vmem:[#allocation2 + $0x2f0] sm:$0xff] %vm74, 0.0
    %171 = vst.msk [vmem:[#allocation2 + $0x2f8] sm:$0x3] %vm77, 0.0
    %172 = vst.msk [vmem:[#allocation2 + $0x300] sm:$0xff] %vm74, 0.0
    %173 = vst.msk [vmem:[#allocation2 + $0x308] sm:$0xff] %vm74, 0.0
    %174 = vst.msk [vmem:[#allocation2 + $0x310] sm:$0x3] %vm77, 0.0
    %175 = vst.msk [vmem:[#allocation2 + $0x318] sm:$0xff] %vm74, 0.0
    %176 = vst.msk [vmem:[#allocation2 + $0x320] sm:$0xff] %vm74, 0.0
    %177 = vst.msk [vmem:[#allocation2 + $0x328] sm:$0x3] %vm77, 0.0
    %178 = vst.msk [vmem:[#allocation2 + $0x330] sm:$0xff] %vm74, 0.0
    %179 = vst.msk [vmem:[#allocation2 + $0x338] sm:$0xff] %vm74, 0.0
    %180 = vst.msk [vmem:[#allocation2 + $0x340] sm:$0x3] %vm77, 0.0
    %181 = vst.msk [vmem:[#allocation2 + $0x348] sm:$0xff] %vm74, 0.0
    %182 = vst.msk [vmem:[#allocation2 + $0x350] sm:$0xff] %vm74, 0.0
    %183 = vst.msk [vmem:[#allocation2 + $0x358] sm:$0x3] %vm77, 0.0
    %v184 = vld [vmem:[#allocation4] sm:$0xff]
    %v185 = vld [vmem:[#allocation4 + $0x8] sm:$0xff]
    %v186 = vld [vmem:[#allocation4 + $0x10] sm:$0xff]
    %v187 = vld [vmem:[#allocation4 + $0x18] sm:$0xff]
    %v188 = vld [vmem:[#allocation4 + $0x20] sm:$0xff]
    %v189 = vld [vmem:[#allocation4 + $0x28] sm:$0xff]
    %v190 = vld [vmem:[#allocation4 + $0x30] sm:$0xff]
    %v191 = vld [vmem:[#allocation4 + $0x38] sm:$0xff]
    %v192 = vld [vmem:[#allocation4 + $0x40] sm:$0xff]
    %v193 = vld [vmem:[#allocation4 + $0x48] sm:$0xff]
    %v194 = vld [vmem:[#allocation4 + $0x50] sm:$0xff]
    %v195 = vld [vmem:[#allocation4 + $0x58] sm:$0xff]
    %v196 = vld [vmem:[#allocation4 + $0x60] sm:$0xff]
    %v197 = vld [vmem:[#allocation4 + $0x68] sm:$0xff]
    %v198 = vld [vmem:[#allocation4 + $0x70] sm:$0xff]
    %v199 = vld [vmem:[#allocation4 + $0x78] sm:$0xff]
    %v200 = vld [vmem:[#allocation4 + $0x80] sm:$0xff]
    %v201 = vld [vmem:[#allocation4 + $0x88] sm:$0xff]
    %v202 = vld [vmem:[#allocation4 + $0x90] sm:$0xff]
    %v203 = vld [vmem:[#allocation4 + $0x98] sm:$0xff]
    %v204 = vld [vmem:[#allocation4 + $0xa0] sm:$0xff]
    %v205 = vld [vmem:[#allocation4 + $0xa8] sm:$0xff]
    %v206 = vld [vmem:[#allocation4 + $0xb0] sm:$0xff]
    %v207 = vld [vmem:[#allocation4 + $0xb8] sm:$0xff]
    %v208 = vld [vmem:[#allocation4 + $0xc0] sm:$0xff]
    %v209 = vld [vmem:[#allocation4 + $0xc8] sm:$0xff]
    %v210 = vld [vmem:[#allocation4 + $0xd0] sm:$0xff]
    %v211 = vld [vmem:[#allocation4 + $0xd8] sm:$0xff]
    %v212 = vld [vmem:[#allocation4 + $0xe0] sm:$0xff]
    %v213 = vld [vmem:[#allocation4 + $0xe8] sm:$0xff]
    %v214 = vld [vmem:[#allocation4 + $0xf0] sm:$0xff]
    %v215 = vld [vmem:[#allocation4 + $0xf8] sm:$0xff]
    %v216 = vld [vmem:[#allocation4 + $0x100] sm:$0xff]
    %v217 = vld [vmem:[#allocation4 + $0x108] sm:$0xff]
    %v218 = vld [vmem:[#allocation4 + $0x110] sm:$0xff]
    %v219 = vld [vmem:[#allocation4 + $0x118] sm:$0xff]
    %v220 = vld [vmem:[#allocation4 + $0x120] sm:$0xff]
    %v221 = vld [vmem:[#allocation4 + $0x128] sm:$0xff]
    %v222 = vld [vmem:[#allocation4 + $0x130] sm:$0xff]
    %v223 = vld [vmem:[#allocation4 + $0x138] sm:$0xff]
    %v224 = vld [vmem:[#allocation4 + $0x140] sm:$0xff]
    %v225 = vld [vmem:[#allocation4 + $0x148] sm:$0xff]
    %v226 = vld [vmem:[#allocation4 + $0x150] sm:$0xff]
    %v227 = vld [vmem:[#allocation4 + $0x158] sm:$0xff]
    %v228 = vld [vmem:[#allocation4 + $0x160] sm:$0xff]
    %v229 = vld [vmem:[#allocation4 + $0x168] sm:$0xff]
    %v230 = vld [vmem:[#allocation4 + $0x170] sm:$0xff]
    %v231 = vld [vmem:[#allocation4 + $0x178] sm:$0xff]
    %v232 = vld [vmem:[#allocation4 + $0x180] sm:$0xff]
    %v233 = vld [vmem:[#allocation4 + $0x188] sm:$0xff]
    %v234 = vld [vmem:[#allocation4 + $0x190] sm:$0xff]
    %v235 = vld [vmem:[#allocation4 + $0x198] sm:$0xff]
    %v236 = vld [vmem:[#allocation4 + $0x1a0] sm:$0xff]
    %v237 = vld [vmem:[#allocation4 + $0x1a8] sm:$0xff]
    %v238 = vld [vmem:[#allocation4 + $0x1b0] sm:$0xff]
    %v239 = vld [vmem:[#allocation4 + $0x1b8] sm:$0xff]
    %v240 = vld [vmem:[#allocation4 + $0x1c0] sm:$0xff]
    %v241 = vld [vmem:[#allocation4 + $0x1c8] sm:$0xff]
    %v242 = vld [vmem:[#allocation4 + $0x1d0] sm:$0xff]
    %v243 = vld [vmem:[#allocation4 + $0x1d8] sm:$0xff]
    %v244 = vld [vmem:[#allocation4 + $0x1e0] sm:$0xff]
    %v245 = vld [vmem:[#allocation4 + $0x1e8] sm:$0xff]
    %v246 = vld [vmem:[#allocation4 + $0x1f0] sm:$0xff]
    %v247 = vld [vmem:[#allocation4 + $0x1f8] sm:$0xff]
    %v248 = vld [vmem:[%s1] sm:$0x1]
    %v249 = vld [vmem:[%s2] sm:$0x1]
    %v250 = vsel %vm74, %v184, 0.0
    %v251 = vsel %vm74, %v185, 0.0
    %v252 = vadd.f32 %v250, %v251
    %v253 = vsel %vm74, %v186, 0.0
    %v254 = vadd.f32 %v252, %v253
    %v255 = vsel %vm74, %v187, 0.0
    %v256 = vadd.f32 %v254, %v255
    %v257 = vsel %vm74, %v188, 0.0
    %v258 = vadd.f32 %v256, %v257
    %v259 = vsel %vm74, %v189, 0.0
    %v260 = vadd.f32 %v258, %v259
    %v261 = vsel %vm74, %v190, 0.0
    %v262 = vadd.f32 %v260, %v261
    %v263 = vsel %vm74, %v191, 0.0
    %v264 = vadd.f32 %v262, %v263
    %v265 = vsel %vm74, %v192, 0.0
    %v266 = vadd.f32 %v264, %v265
    %v267 = vsel %vm74, %v193, 0.0
    %v268 = vadd.f32 %v266, %v267
    %v269 = vsel %vm74, %v194, 0.0
    %v270 = vadd.f32 %v268, %v269
    %v271 = vsel %vm74, %v195, 0.0
    %v272 = vadd.f32 %v270, %v271
    %v273 = vsel %vm74, %v196, 0.0
    %v274 = vadd.f32 %v272, %v273
    %v275 = vsel %vm74, %v197, 0.0
    %v276 = vadd.f32 %v274, %v275
    %v277 = vsel %vm74, %v198, 0.0
    %v278 = vadd.f32 %v276, %v277
    %v279 = vsel %vm74, %v199, 0.0
    %v280 = vadd.f32 %v278, %v279
    %v281 = vsel %vm74, %v200, 0.0
    %v282 = vadd.f32 %v280, %v281
    %v283 = vsel %vm74, %v201, 0.0
    %v284 = vadd.f32 %v282, %v283
    %v285 = vsel %vm74, %v202, 0.0
    %v286 = vadd.f32 %v284, %v285
    %v287 = vsel %vm74, %v203, 0.0
    %v288 = vadd.f32 %v286, %v287
    %v289 = vsel %vm74, %v204, 0.0
    %v290 = vadd.f32 %v288, %v289
    %v291 = vsel %vm74, %v205, 0.0
    %v292 = vadd.f32 %v290, %v291
    %v293 = vsel %vm74, %v206, 0.0
    %v294 = vadd.f32 %v292, %v293
    %v295 = vsel %vm74, %v207, 0.0
    %v296 = vadd.f32 %v294, %v295
    %v297 = vsel %vm74, %v208, 0.0
    %v298 = vadd.f32 %v296, %v297
    %v299 = vsel %vm74, %v209, 0.0
    %v300 = vadd.f32 %v298, %v299
    %v301 = vsel %vm74, %v210, 0.0
    %v302 = vadd.f32 %v300, %v301
    %v303 = vsel %vm74, %v211, 0.0
    %v304 = vadd.f32 %v302, %v303
    %v305 = vsel %vm74, %v212, 0.0
    %v306 = vadd.f32 %v304, %v305
    %v307 = vsel %vm74, %v213, 0.0
    %v308 = vadd.f32 %v306, %v307
    %v309 = vsel %vm74, %v214, 0.0
    %v310 = vadd.f32 %v308, %v309
    %v311 = vsel %vm74, %v215, 0.0
    %v312 = vadd.f32 %v310, %v311
    %v313 = vsel %vm74, %v216, 0.0
    %v314 = vadd.f32 %v312, %v313
    %v315 = vsel %vm74, %v217, 0.0
    %v316 = vadd.f32 %v314, %v315
    %v317 = vsel %vm74, %v218, 0.0
    %v318 = vadd.f32 %v316, %v317
    %v319 = vsel %vm74, %v219, 0.0
    %v320 = vadd.f32 %v318, %v319
    %v321 = vsel %vm74, %v220, 0.0
    %v322 = vadd.f32 %v320, %v321
    %v323 = vsel %vm74, %v221, 0.0
    %v324 = vadd.f32 %v322, %v323
    %v325 = vsel %vm74, %v222, 0.0
    %v326 = vadd.f32 %v324, %v325
    %v327 = vsel %vm74, %v223, 0.0
    %v328 = vadd.f32 %v326, %v327
    %v329 = vsel %vm74, %v224, 0.0
    %v330 = vadd.f32 %v328, %v329
    %v331 = vsel %vm74, %v225, 0.0
    %v332 = vadd.f32 %v330, %v331
    %v333 = vsel %vm74, %v226, 0.0
    %v334 = vadd.f32 %v332, %v333
    %v335 = vsel %vm74, %v227, 0.0
    %v336 = vadd.f32 %v334, %v335
    %v337 = vsel %vm74, %v228, 0.0
    %v338 = vadd.f32 %v336, %v337
    %v339 = vsel %vm74, %v229, 0.0
    %v340 = vadd.f32 %v338, %v339
    %v341 = vsel %vm74, %v230, 0.0
    %v342 = vadd.f32 %v340, %v341
    %v343 = vsel %vm74, %v231, 0.0
    %v344 = vadd.f32 %v342, %v343
    %v345 = vsel %vm74, %v232, 0.0
    %v346 = vadd.f32 %v344, %v345
    %v347 = vsel %vm74, %v233, 0.0
    %v348 = vadd.f32 %v346, %v347
    %v349 = vsel %vm74, %v234, 0.0
    %v350 = vadd.f32 %v348, %v349
    %v351 = vsel %vm74, %v235, 0.0
    %v352 = vadd.f32 %v350, %v351
    %v353 = vsel %vm74, %v236, 0.0
    %v354 = vadd.f32 %v352, %v353
    %v355 = vsel %vm74, %v237, 0.0
    %v356 = vadd.f32 %v354, %v355
    %v357 = vsel %vm74, %v238, 0.0
    %v358 = vadd.f32 %v356, %v357
    %v359 = vsel %vm74, %v239, 0.0
    %v360 = vadd.f32 %v358, %v359
    %v361 = vsel %vm74, %v240, 0.0
    %v362 = vadd.f32 %v360, %v361
    %v363 = vsel %vm74, %v241, 0.0
    %v364 = vadd.f32 %v362, %v363
    %v365 = vsel %vm74, %v242, 0.0
    %v366 = vadd.f32 %v364, %v365
    %v367 = vsel %vm74, %v243, 0.0
    %v368 = vadd.f32 %v366, %v367
    %v369 = vsel %vm74, %v244, 0.0
    %v370 = vadd.f32 %v368, %v369
    %v371 = vsel %vm74, %v245, 0.0
    %v372 = vadd.f32 %v370, %v371
    %v373 = vsel %vm74, %v246, 0.0
    %v374 = vadd.f32 %v372, %v373
    %v375 = vsel %vm74, %v247, 0.0
    %v376 = vadd.f32 %v374, %v375
    %v377 = vrot.slane %v376, 4
    %v378 = vadd.f32 %v376, %v377
    %v379 = vrot.slane %v378, 2
    %v380 = vadd.f32 %v378, %v379
    %v381 = vrot.slane %v380, 1
    %v382 = vadd.f32 %v380, %v381
    %v383 = vrcp.pop 512.0
    %v384 = vmul.f32 512.0, %v383
    %v385 = vsub.f32 1.0, %v384
    %v386 = vmul.f32 %v383, %v385
    %v387 = vadd.f32 %v383, %v386
    %vm388 = vweird.f32 %v383
    %v389 = vsel %vm388, %v383, %v387
    %v390 = vmul.f32 %v382, %v389
    %v391 = vsub.f32 %v184, %v390
    %v392 = vsub.f32 %v185, %v390
    %v393 = vsub.f32 %v186, %v390
    %v394 = vsub.f32 %v187, %v390
    %v395 = vsub.f32 %v188, %v390
    %v396 = vsub.f32 %v189, %v390
    %v397 = vsub.f32 %v190, %v390
    %v398 = vsub.f32 %v191, %v390
    %v399 = vsub.f32 %v192, %v390
    %v400 = vsub.f32 %v193, %v390
    %v401 = vsub.f32 %v194, %v390
    %v402 = vsub.f32 %v195, %v390
    %v403 = vsub.f32 %v196, %v390
    %v404 = vsub.f32 %v197, %v390
    %v405 = vsub.f32 %v198, %v390
    %v406 = vsub.f32 %v199, %v390
    %v407 = vsub.f32 %v200, %v390
    %v408 = vsub.f32 %v201, %v390
    %v409 = vsub.f32 %v202, %v390
    %v410 = vsub.f32 %v203, %v390
    %v411 = vsub.f32 %v204, %v390
    %v412 = vsub.f32 %v205, %v390
    %v413 = vsub.f32 %v206, %v390
    %v414 = vsub.f32 %v207, %v390
    %v415 = vsub.f32 %v208, %v390
    %v416 = vsub.f32 %v209, %v390
    %v417 = vsub.f32 %v210, %v390
    %v418 = vsub.f32 %v211, %v390
    %v419 = vsub.f32 %v212, %v390
    %v420 = vsub.f32 %v213, %v390
    %v421 = vsub.f32 %v214, %v390
    %v422 = vsub.f32 %v215, %v390
    %v423 = vsub.f32 %v216, %v390
    %v424 = vsub.f32 %v217, %v390
    %v425 = vsub.f32 %v218, %v390
    %v426 = vsub.f32 %v219, %v390
    %v427 = vsub.f32 %v220, %v390
    %v428 = vsub.f32 %v221, %v390
    %v429 = vsub.f32 %v222, %v390
    %v430 = vsub.f32 %v223, %v390
    %v431 = vsub.f32 %v224, %v390
    %v432 = vsub.f32 %v225, %v390
    %v433 = vsub.f32 %v226, %v390
    %v434 = vsub.f32 %v227, %v390
    %v435 = vsub.f32 %v228, %v390
    %v436 = vsub.f32 %v229, %v390
    %v437 = vsub.f32 %v230, %v390
    %v438 = vsub.f32 %v231, %v390
    %v439 = vsub.f32 %v232, %v390
    %v440 = vsub.f32 %v233, %v390
    %v441 = vsub.f32 %v234, %v390
    %v442 = vsub.f32 %v235, %v390
    %v443 = vsub.f32 %v236, %v390
    %v444 = vsub.f32 %v237, %v390
    %v445 = vsub.f32 %v238, %v390
    %v446 = vsub.f32 %v239, %v390
    %v447 = vsub.f32 %v240, %v390
    %v448 = vsub.f32 %v241, %v390
    %v449 = vsub.f32 %v242, %v390
    %v450 = vsub.f32 %v243, %v390
    %v451 = vsub.f32 %v244, %v390
    %v452 = vsub.f32 %v245, %v390
    %v453 = vsub.f32 %v246, %v390
    %v454 = vsub.f32 %v247, %v390
    %v455 = vmul.f32 %v391, %v391
    %v456 = vmul.f32 %v392, %v392
    %v457 = vmul.f32 %v393, %v393
    %v458 = vmul.f32 %v394, %v394
    %v459 = vmul.f32 %v395, %v395
    %v460 = vmul.f32 %v396, %v396
    %v461 = vmul.f32 %v397, %v397
    %v462 = vmul.f32 %v398, %v398
    %v463 = vmul.f32 %v399, %v399
    %v464 = vmul.f32 %v400, %v400
    %v465 = vmul.f32 %v401, %v401
    %v466 = vmul.f32 %v402, %v402
    %v467 = vmul.f32 %v403, %v403
    %v468 = vmul.f32 %v404, %v404
    %v469 = vmul.f32 %v405, %v405
    %v470 = vmul.f32 %v406, %v406
    %v471 = vmul.f32 %v407, %v407
    %v472 = vmul.f32 %v408, %v408
    %v473 = vmul.f32 %v409, %v409
    %v474 = vmul.f32 %v410, %v410
    %v475 = vmul.f32 %v411, %v411
    %v476 = vmul.f32 %v412, %v412
    %v477 = vmul.f32 %v413, %v413
    %v478 = vmul.f32 %v414, %v414
    %v479 = vmul.f32 %v415, %v415
    %v480 = vmul.f32 %v416, %v416
    %v481 = vmul.f32 %v417, %v417
    %v482 = vmul.f32 %v418, %v418
    %v483 = vmul.f32 %v419, %v419
    %v484 = vmul.f32 %v420, %v420
    %v485 = vmul.f32 %v421, %v421
    %v486 = vmul.f32 %v422, %v422
    %v487 = vmul.f32 %v423, %v423
    %v488 = vmul.f32 %v424, %v424
    %v489 = vmul.f32 %v425, %v425
    %v490 = vmul.f32 %v426, %v426
    %v491 = vmul.f32 %v427, %v427
    %v492 = vmul.f32 %v428, %v428
    %v493 = vmul.f32 %v429, %v429
    %v494 = vmul.f32 %v430, %v430
    %v495 = vmul.f32 %v431, %v431
    %v496 = vmul.f32 %v432, %v432
    %v497 = vmul.f32 %v433, %v433
    %v498 = vmul.f32 %v434, %v434
    %v499 = vmul.f32 %v435, %v435
    %v500 = vmul.f32 %v436, %v436
    %v501 = vmul.f32 %v437, %v437
    %v502 = vmul.f32 %v438, %v438
    %v503 = vmul.f32 %v439, %v439
    %v504 = vmul.f32 %v440, %v440
    %v505 = vmul.f32 %v441, %v441
    %v506 = vmul.f32 %v442, %v442
    %v507 = vmul.f32 %v443, %v443
    %v508 = vmul.f32 %v444, %v444
    %v509 = vmul.f32 %v445, %v445
    %v510 = vmul.f32 %v446, %v446
    %v511 = vmul.f32 %v447, %v447
    %v512 = vmul.f32 %v448, %v448
    %v513 = vmul.f32 %v449, %v449
    %v514 = vmul.f32 %v450, %v450
    %v515 = vmul.f32 %v451, %v451
    %v516 = vmul.f32 %v452, %v452
    %v517 = vmul.f32 %v453, %v453
    %v518 = vmul.f32 %v454, %v454
    %v519 = vsel %vm74, %v455, 0.0
    %v520 = vsel %vm74, %v456, 0.0
    %v521 = vadd.f32 %v519, %v520
    %v522 = vsel %vm74, %v457, 0.0
    %v523 = vadd.f32 %v521, %v522
    %v524 = vsel %vm74, %v458, 0.0
    %v525 = vadd.f32 %v523, %v524
    %v526 = vsel %vm74, %v459, 0.0
    %v527 = vadd.f32 %v525, %v526
    %v528 = vsel %vm74, %v460, 0.0
    %v529 = vadd.f32 %v527, %v528
    %v530 = vsel %vm74, %v461, 0.0
    %v531 = vadd.f32 %v529, %v530
    %v532 = vsel %vm74, %v462, 0.0
    %v533 = vadd.f32 %v531, %v532
    %v534 = vsel %vm74, %v463, 0.0
    %v535 = vadd.f32 %v533, %v534
    %v536 = vsel %vm74, %v464, 0.0
    %v537 = vadd.f32 %v535, %v536
    %v538 = vsel %vm74, %v465, 0.0
    %v539 = vadd.f32 %v537, %v538
    %v540 = vsel %vm74, %v466, 0.0
    %v541 = vadd.f32 %v539, %v540
    %v542 = vsel %vm74, %v467, 0.0
    %v543 = vadd.f32 %v541, %v542
    %v544 = vsel %vm74, %v468, 0.0
    %v545 = vadd.f32 %v543, %v544
    %v546 = vsel %vm74, %v469, 0.0
    %v547 = vadd.f32 %v545, %v546
    %v548 = vsel %vm74, %v470, 0.0
    %v549 = vadd.f32 %v547, %v548
    %v550 = vsel %vm74, %v471, 0.0
    %v551 = vadd.f32 %v549, %v550
    %v552 = vsel %vm74, %v472, 0.0
    %v553 = vadd.f32 %v551, %v552
    %v554 = vsel %vm74, %v473, 0.0
    %v555 = vadd.f32 %v553, %v554
    %v556 = vsel %vm74, %v474, 0.0
    %v557 = vadd.f32 %v555, %v556
    %v558 = vsel %vm74, %v475, 0.0
    %v559 = vadd.f32 %v557, %v558
    %v560 = vsel %vm74, %v476, 0.0
    %v561 = vadd.f32 %v559, %v560
    %v562 = vsel %vm74, %v477, 0.0
    %v563 = vadd.f32 %v561, %v562
    %v564 = vsel %vm74, %v478, 0.0
    %v565 = vadd.f32 %v563, %v564
    %v566 = vsel %vm74, %v479, 0.0
    %v567 = vadd.f32 %v565, %v566
    %v568 = vsel %vm74, %v480, 0.0
    %v569 = vadd.f32 %v567, %v568
    %v570 = vsel %vm74, %v481, 0.0
    %v571 = vadd.f32 %v569, %v570
    %v572 = vsel %vm74, %v482, 0.0
    %v573 = vadd.f32 %v571, %v572
    %v574 = vsel %vm74, %v483, 0.0
    %v575 = vadd.f32 %v573, %v574
    %v576 = vsel %vm74, %v484, 0.0
    %v577 = vadd.f32 %v575, %v576
    %v578 = vsel %vm74, %v485, 0.0
    %v579 = vadd.f32 %v577, %v578
    %v580 = vsel %vm74, %v486, 0.0
    %v581 = vadd.f32 %v579, %v580
    %v582 = vsel %vm74, %v487, 0.0
    %v583 = vadd.f32 %v581, %v582
    %v584 = vsel %vm74, %v488, 0.0
    %v585 = vadd.f32 %v583, %v584
    %v586 = vsel %vm74, %v489, 0.0
    %v587 = vadd.f32 %v585, %v586
    %v588 = vsel %vm74, %v490, 0.0
    %v589 = vadd.f32 %v587, %v588
    %v590 = vsel %vm74, %v491, 0.0
    %v591 = vadd.f32 %v589, %v590
    %v592 = vsel %vm74, %v492, 0.0
    %v593 = vadd.f32 %v591, %v592
    %v594 = vsel %vm74, %v493, 0.0
    %v595 = vadd.f32 %v593, %v594
    %v596 = vsel %vm74, %v494, 0.0
    %v597 = vadd.f32 %v595, %v596
    %v598 = vsel %vm74, %v495, 0.0
    %v599 = vadd.f32 %v597, %v598
    %v600 = vsel %vm74, %v496, 0.0
    %v601 = vadd.f32 %v599, %v600
    %v602 = vsel %vm74, %v497, 0.0
    %v603 = vadd.f32 %v601, %v602
    %v604 = vsel %vm74, %v498, 0.0
    %v605 = vadd.f32 %v603, %v604
    %v606 = vsel %vm74, %v499, 0.0
    %v607 = vadd.f32 %v605, %v606
    %v608 = vsel %vm74, %v500, 0.0
    %v609 = vadd.f32 %v607, %v608
    %v610 = vsel %vm74, %v501, 0.0
    %v611 = vadd.f32 %v609, %v610
    %v612 = vsel %vm74, %v502, 0.0
    %v613 = vadd.f32 %v611, %v612
    %v614 = vsel %vm74, %v503, 0.0
    %v615 = vadd.f32 %v613, %v614
    %v616 = vsel %vm74, %v504, 0.0
    %v617 = vadd.f32 %v615, %v616
    %v618 = vsel %vm74, %v505, 0.0
    %v619 = vadd.f32 %v617, %v618
    %v620 = vsel %vm74, %v506, 0.0
    %v621 = vadd.f32 %v619, %v620
    %v622 = vsel %vm74, %v507, 0.0
    %v623 = vadd.f32 %v621, %v622
    %v624 = vsel %vm74, %v508, 0.0
    %v625 = vadd.f32 %v623, %v624
    %v626 = vsel %vm74, %v509, 0.0
    %v627 = vadd.f32 %v625, %v626
    %v628 = vsel %vm74, %v510, 0.0
    %v629 = vadd.f32 %v627, %v628
    %v630 = vsel %vm74, %v511, 0.0
    %v631 = vadd.f32 %v629, %v630
    %v632 = vsel %vm74, %v512, 0.0
    %v633 = vadd.f32 %v631, %v632
    %v634 = vsel %vm74, %v513, 0.0
    %v635 = vadd.f32 %v633, %v634
    %v636 = vsel %vm74, %v514, 0.0
    %v637 = vadd.f32 %v635, %v636
    %v638 = vsel %vm74, %v515, 0.0
    %v639 = vadd.f32 %v637, %v638
    %v640 = vsel %vm74, %v516, 0.0
    %v641 = vadd.f32 %v639, %v640
    %v642 = vsel %vm74, %v517, 0.0
    %v643 = vadd.f32 %v641, %v642
    %v644 = vsel %vm74, %v518, 0.0
    %v645 = vadd.f32 %v643, %v644
    %v646 = vrot.slane %v645, 4
    %v647 = vadd.f32 %v645, %v646
    %v648 = vrot.slane %v647, 2
    %v649 = vadd.f32 %v647, %v648
    %v650 = vrot.slane %v649, 1
    %v651 = vadd.f32 %v649, %v650
    %v652 = vmul.f32 %v651, %v389
    %v653 = vadd.f32 %v652, 1e-05
    %v654 = vrsqrt.pop %v653
    %v655 = vmul.f32 %v654, %v653
    %v656 = vmul.f32 %v655, %v654
    %v657 = vmul.f32 0.5, %v656
    %v658 = vsub.f32 1.5, %v657
    %v659 = vmul.f32 %v654, %v658
    %vm660 = vweird.f32 %v653
    %vm661 = vweird.f32 %v654
    %vm662 = vmor %vm660, %vm661
    %v663 = vsel %vm662, %v654, %v659
    %v664 = vmul.f32 %v391, %v663
    %v665 = vmul.f32 %v392, %v663
    %v666 = vmul.f32 %v393, %v663
    %v667 = vmul.f32 %v394, %v663
    %v668 = vmul.f32 %v395, %v663
    %v669 = vmul.f32 %v396, %v663
    %v670 = vmul.f32 %v397, %v663
    %v671 = vmul.f32 %v398, %v663
    %v672 = vmul.f32 %v399, %v663
    %v673 = vmul.f32 %v400, %v663
    %v674 = vmul.f32 %v401, %v663
    %v675 = vmul.f32 %v402, %v663
    %v676 = vmul.f32 %v403, %v663
    %v677 = vmul.f32 %v404, %v663
    %v678 = vmul.f32 %v405, %v663
    %v679 = vmul.f32 %v406, %v663
    %v680 = vmul.f32 %v407, %v663
    %v681 = vmul.f32 %v408, %v663
    %v682 = vmul.f32 %v409, %v663
    %v683 = vmul.f32 %v410, %v663
    %v684 = vmul.f32 %v411, %v663
    %v685 = vmul.f32 %v412, %v663
    %v686 = vmul.f32 %v413, %v663
    %v687 = vmul.f32 %v414, %v663
    %v688 = vmul.f32 %v415, %v663
    %v689 = vmul.f32 %v416, %v663
    %v690 = vmul.f32 %v417, %v663
    %v691 = vmul.f32 %v418, %v663
    %v692 = vmul.f32 %v419, %v663
    %v693 = vmul.f32 %v420, %v663
    %v694 = vmul.f32 %v421, %v663
    %v695 = vmul.f32 %v422, %v663
    %v696 = vmul.f32 %v423, %v663
    %v697 = vmul.f32 %v424, %v663
    %v698 = vmul.f32 %v425, %v663
    %v699 = vmul.f32 %v426, %v663
    %v700 = vmul.f32 %v427, %v663
    %v701 = vmul.f32 %v428, %v663
    %v702 = vmul.f32 %v429, %v663
    %v703 = vmul.f32 %v430, %v663
    %v704 = vmul.f32 %v431, %v663
    %v705 = vmul.f32 %v432, %v663
    %v706 = vmul.f32 %v433, %v663
    %v707 = vmul.f32 %v434, %v663
    %v708 = vmul.f32 %v435, %v663
    %v709 = vmul.f32 %v436, %v663
    %v710 = vmul.f32 %v437, %v663
    %v711 = vmul.f32 %v438, %v663
    %v712 = vmul.f32 %v439, %v663
    %v713 = vmul.f32 %v440, %v663
    %v714 = vmul.f32 %v441, %v663
    %v715 = vmul.f32 %v442, %v663
    %v716 = vmul.f32 %v443, %v663
    %v717 = vmul.f32 %v444, %v663
    %v718 = vmul.f32 %v445, %v663
    %v719 = vmul.f32 %v446, %v663
    %v720 = vmul.f32 %v447, %v663
    %v721 = vmul.f32 %v448, %v663
    %v722 = vmul.f32 %v449, %v663
    %v723 = vmul.f32 %v450, %v663
    %v724 = vmul.f32 %v451, %v663
    %v725 = vmul.f32 %v452, %v663
    %v726 = vmul.f32 %v453, %v663
    %v727 = vmul.f32 %v454, %v663
    %v729 = vperm.slane %v248, 0
    %v731 = vmul.f32 %v664, %v729
    %v732 = vmul.f32 %v665, %v729
    %v733 = vmul.f32 %v666, %v729
    %v734 = vmul.f32 %v667, %v729
    %v735 = vmul.f32 %v668, %v729
    %v736 = vmul.f32 %v669, %v729
    %v737 = vmul.f32 %v670, %v729
    %v738 = vmul.f32 %v671, %v729
    %v739 = vmul.f32 %v672, %v729
    %v740 = vmul.f32 %v673, %v729
    %v741 = vmul.f32 %v674, %v729
    %v742 = vmul.f32 %v675, %v729
    %v743 = vmul.f32 %v676, %v729
    %v744 = vmul.f32 %v677, %v729
    %v745 = vmul.f32 %v678, %v729
    %v746 = vmul.f32 %v679, %v729
    %v747 = vmul.f32 %v680, %v729
    %v748 = vmul.f32 %v681, %v729
    %v749 = vmul.f32 %v682, %v729
    %v750 = vmul.f32 %v683, %v729
    %v751 = vmul.f32 %v684, %v729
    %v752 = vmul.f32 %v685, %v729
    %v753 = vmul.f32 %v686, %v729
    %v754 = vmul.f32 %v687, %v729
    %v755 = vmul.f32 %v688, %v729
    %v756 = vmul.f32 %v689, %v729
    %v757 = vmul.f32 %v690, %v729
    %v758 = vmul.f32 %v691, %v729
    %v759 = vmul.f32 %v692, %v729
    %v760 = vmul.f32 %v693, %v729
    %v761 = vmul.f32 %v694, %v729
    %v762 = vmul.f32 %v695, %v729
    %v763 = vmul.f32 %v696, %v729
    %v764 = vmul.f32 %v697, %v729
    %v765 = vmul.f32 %v698, %v729
    %v766 = vmul.f32 %v699, %v729
    %v767 = vmul.f32 %v700, %v729
    %v768 = vmul.f32 %v701, %v729
    %v769 = vmul.f32 %v702, %v729
    %v770 = vmul.f32 %v703, %v729
    %v771 = vmul.f32 %v704, %v729
    %v772 = vmul.f32 %v705, %v729
    %v773 = vmul.f32 %v706, %v729
    %v774 = vmul.f32 %v707, %v729
    %v775 = vmul.f32 %v708, %v729
    %v776 = vmul.f32 %v709, %v729
    %v777 = vmul.f32 %v710, %v729
    %v778 = vmul.f32 %v711, %v729
    %v779 = vmul.f32 %v712, %v729
    %v780 = vmul.f32 %v713, %v729
    %v781 = vmul.f32 %v714, %v729
    %v782 = vmul.f32 %v715, %v729
    %v783 = vmul.f32 %v716, %v729
    %v784 = vmul.f32 %v717, %v729
    %v785 = vmul.f32 %v718, %v729
    %v786 = vmul.f32 %v719, %v729
    %v787 = vmul.f32 %v720, %v729
    %v788 = vmul.f32 %v721, %v729
    %v789 = vmul.f32 %v722, %v729
    %v790 = vmul.f32 %v723, %v729
    %v791 = vmul.f32 %v724, %v729
    %v792 = vmul.f32 %v725, %v729
    %v793 = vmul.f32 %v726, %v729
    %v794 = vmul.f32 %v727, %v729
    %v796 = vperm.slane %v249, 0
    %v798 = vadd.f32 %v731, %v796
    %v799 = vadd.f32 %v732, %v796
    %v800 = vadd.f32 %v733, %v796
    %v801 = vadd.f32 %v734, %v796
    %v802 = vadd.f32 %v735, %v796
    %v803 = vadd.f32 %v736, %v796
    %v804 = vadd.f32 %v737, %v796
    %v805 = vadd.f32 %v738, %v796
    %v806 = vadd.f32 %v739, %v796
    %v807 = vadd.f32 %v740, %v796
    %v808 = vadd.f32 %v741, %v796
    %v809 = vadd.f32 %v742, %v796
    %v810 = vadd.f32 %v743, %v796
    %v811 = vadd.f32 %v744, %v796
    %v812 = vadd.f32 %v745, %v796
    %v813 = vadd.f32 %v746, %v796
    %v814 = vadd.f32 %v747, %v796
    %v815 = vadd.f32 %v748, %v796
    %v816 = vadd.f32 %v749, %v796
    %v817 = vadd.f32 %v750, %v796
    %v818 = vadd.f32 %v751, %v796
    %v819 = vadd.f32 %v752, %v796
    %v820 = vadd.f32 %v753, %v796
    %v821 = vadd.f32 %v754, %v796
    %v822 = vadd.f32 %v755, %v796
    %v823 = vadd.f32 %v756, %v796
    %v824 = vadd.f32 %v757, %v796
    %v825 = vadd.f32 %v758, %v796
    %v826 = vadd.f32 %v759, %v796
    %v827 = vadd.f32 %v760, %v796
    %v828 = vadd.f32 %v761, %v796
    %v829 = vadd.f32 %v762, %v796
    %v830 = vadd.f32 %v763, %v796
    %v831 = vadd.f32 %v764, %v796
    %v832 = vadd.f32 %v765, %v796
    %v833 = vadd.f32 %v766, %v796
    %v834 = vadd.f32 %v767, %v796
    %v835 = vadd.f32 %v768, %v796
    %v836 = vadd.f32 %v769, %v796
    %v837 = vadd.f32 %v770, %v796
    %v838 = vadd.f32 %v771, %v796
    %v839 = vadd.f32 %v772, %v796
    %v840 = vadd.f32 %v773, %v796
    %v841 = vadd.f32 %v774, %v796
    %v842 = vadd.f32 %v775, %v796
    %v843 = vadd.f32 %v776, %v796
    %v844 = vadd.f32 %v777, %v796
    %v845 = vadd.f32 %v778, %v796
    %v846 = vadd.f32 %v779, %v796
    %v847 = vadd.f32 %v780, %v796
    %v848 = vadd.f32 %v781, %v796
    %v849 = vadd.f32 %v782, %v796
    %v850 = vadd.f32 %v783, %v796
    %v851 = vadd.f32 %v784, %v796
    %v852 = vadd.f32 %v785, %v796
    %v853 = vadd.f32 %v786, %v796
    %v854 = vadd.f32 %v787, %v796
    %v855 = vadd.f32 %v788, %v796
    %v856 = vadd.f32 %v789, %v796
    %v857 = vadd.f32 %v790, %v796
    %v858 = vadd.f32 %v791, %v796
    %v859 = vadd.f32 %v792, %v796
    %v860 = vadd.f32 %v793, %v796
    %v861 = vadd.f32 %v794, %v796
    %v862 = vmax.f32 %v798, 0.0
    %v863 = vmax.f32 %v799, 0.0
    %v864 = vmax.f32 %v800, 0.0
    %v865 = vmax.f32 %v801, 0.0
    %v866 = vmax.f32 %v802, 0.0
    %v867 = vmax.f32 %v803, 0.0
    %v868 = vmax.f32 %v804, 0.0
    %v869 = vmax.f32 %v805, 0.0
    %v870 = vmax.f32 %v806, 0.0
    %v871 = vmax.f32 %v807, 0.0
    %v872 = vmax.f32 %v808, 0.0
    %v873 = vmax.f32 %v809, 0.0
    %v874 = vmax.f32 %v810, 0.0
    %v875 = vmax.f32 %v811, 0.0
    %v876 = vmax.f32 %v812, 0.0
    %v877 = vmax.f32 %v813, 0.0
    %v878 = vmax.f32 %v814, 0.0
    %v879 = vmax.f32 %v815, 0.0
    %v880 = vmax.f32 %v816, 0.0
    %v881 = vmax.f32 %v817, 0.0
    %v882 = vmax.f32 %v818, 0.0
    %v883 = vmax.f32 %v819, 0.0
    %v884 = vmax.f32 %v820, 0.0
    %v885 = vmax.f32 %v821, 0.0
    %v886 = vmax.f32 %v822, 0.0
    %v887 = vmax.f32 %v823, 0.0
    %v888 = vmax.f32 %v824, 0.0
    %v889 = vmax.f32 %v825, 0.0
    %v890 = vmax.f32 %v826, 0.0
    %v891 = vmax.f32 %v827, 0.0
    %v892 = vmax.f32 %v828, 0.0
    %v893 = vmax.f32 %v829, 0.0
    %v894 = vmax.f32 %v830, 0.0
    %v895 = vmax.f32 %v831, 0.0
    %v896 = vmax.f32 %v832, 0.0
    %v897 = vmax.f32 %v833, 0.0
    %v898 = vmax.f32 %v834, 0.0
    %v899 = vmax.f32 %v835, 0.0
    %v900 = vmax.f32 %v836, 0.0
    %v901 = vmax.f32 %v837, 0.0
    %v902 = vmax.f32 %v838, 0.0
    %v903 = vmax.f32 %v839, 0.0
    %v904 = vmax.f32 %v840, 0.0
    %v905 = vmax.f32 %v841, 0.0
    %v906 = vmax.f32 %v842, 0.0
    %v907 = vmax.f32 %v843, 0.0
    %v908 = vmax.f32 %v844, 0.0
    %v909 = vmax.f32 %v845, 0.0
    %v910 = vmax.f32 %v846, 0.0
    %v911 = vmax.f32 %v847, 0.0
    %v912 = vmax.f32 %v848, 0.0
    %v913 = vmax.f32 %v849, 0.0
    %v914 = vmax.f32 %v850, 0.0
    %v915 = vmax.f32 %v851, 0.0
    %v916 = vmax.f32 %v852, 0.0
    %v917 = vmax.f32 %v853, 0.0
    %v918 = vmax.f32 %v854, 0.0
    %v919 = vmax.f32 %v855, 0.0
    %v920 = vmax.f32 %v856, 0.0
    %v921 = vmax.f32 %v857, 0.0
    %v922 = vmax.f32 %v858, 0.0
    %v923 = vmax.f32 %v859, 0.0
    %v924 = vmax.f32 %v860, 0.0
    %v925 = vmax.f32 %v861, 0.0
    %s926 = scalar_lea.vmem [#allocation2], 24
    %927 = vst.msk [vmem:[%s926 + $0x1] sm:$0xff] %vm74, %v862
    %928 = vst.msk [vmem:[%s926 + $0x9] sm:$0xff] %vm74, %v863
    %929 = vst.msk [vmem:[%s926 + $0x19] sm:$0xff] %vm74, %v864
    %930 = vst.msk [vmem:[%s926 + $0x21] sm:$0xff] %vm74, %v865
    %931 = vst.msk [vmem:[%s926 + $0x31] sm:$0xff] %vm74, %v866
    %932 = vst.msk [vmem:[%s926 + $0x39] sm:$0xff] %vm74, %v867
    %933 = vst.msk [vmem:[%s926 + $0x49] sm:$0xff] %vm74, %v868
    %934 = vst.msk [vmem:[%s926 + $0x51] sm:$0xff] %vm74, %v869
    %935 = vst.msk [vmem:[%s926 + $0x61] sm:$0xff] %vm74, %v870
    %936 = vst.msk [vmem:[%s926 + $0x69] sm:$0xff] %vm74, %v871
    %937 = vst.msk [vmem:[%s926 + $0x79] sm:$0xff] %vm74, %v872
    %938 = vst.msk [vmem:[%s926 + $0x81] sm:$0xff] %vm74, %v873
    %939 = vst.msk [vmem:[%s926 + $0x91] sm:$0xff] %vm74, %v874
    %940 = vst.msk [vmem:[%s926 + $0x99] sm:$0xff] %vm74, %v875
    %941 = vst.msk [vmem:[%s926 + $0xa9] sm:$0xff] %vm74, %v876
    %942 = vst.msk [vmem:[%s926 + $0xb1] sm:$0xff] %vm74, %v877
    %943 = vst.msk [vmem:[%s926 + $0xc1] sm:$0xff] %vm74, %v878
    %944 = vst.msk [vmem:[%s926 + $0xc9] sm:$0xff] %vm74, %v879
    %945 = vst.msk [vmem:[%s926 + $0xd9] sm:$0xff] %vm74, %v880
    %946 = vst.msk [vmem:[%s926 + $0xe1] sm:$0xff] %vm74, %v881
    %947 = vst.msk [vmem:[%s926 + $0xf1] sm:$0xff] %vm74, %v882
    %948 = vst.msk [vmem:[%s926 + $0xf9] sm:$0xff] %vm74, %v883
    %949 = vst.msk [vmem:[%s926 + $0x109] sm:$0xff] %vm74, %v884
    %950 = vst.msk [vmem:[%s926 + $0x111] sm:$0xff] %vm74, %v885
    %951 = vst.msk [vmem:[%s926 + $0x121] sm:$0xff] %vm74, %v886
    %952 = vst.msk [vmem:[%s926 + $0x129] sm:$0xff] %vm74, %v887
    %953 = vst.msk [vmem:[%s926 + $0x139] sm:$0xff] %vm74, %v888
    %954 = vst.msk [vmem:[%s926 + $0x141] sm:$0xff] %vm74, %v889
    %955 = vst.msk [vmem:[%s926 + $0x151] sm:$0xff] %vm74, %v890
    %956 = vst.msk [vmem:[%s926 + $0x159] sm:$0xff] %vm74, %v891
    %957 = vst.msk [vmem:[%s926 + $0x169] sm:$0xff] %vm74, %v892
    %958 = vst.msk [vmem:[%s926 + $0x171] sm:$0xff] %vm74, %v893
    %959 = vst.msk [vmem:[%s926 + $0x1b1] sm:$0xff] %vm74, %v894
    %960 = vst.msk [vmem:[%s926 + $0x1b9] sm:$0xff] %vm74, %v895
    %961 = vst.msk [vmem:[%s926 + $0x1c9] sm:$0xff] %vm74, %v896
    %962 = vst.msk [vmem:[%s926 + $0x1d1] sm:$0xff] %vm74, %v897
    %963 = vst.msk [vmem:[%s926 + $0x1e1] sm:$0xff] %vm74, %v898
    %964 = vst.msk [vmem:[%s926 + $0x1e9] sm:$0xff] %vm74, %v899
    %965 = vst.msk [vmem:[%s926 + $0x1f9] sm:$0xff] %vm74, %v900
    %966 = vst.msk [vmem:[%s926 + $0x201] sm:$0xff] %vm74, %v901
    %967 = vst.msk [vmem:[%s926 + $0x211] sm:$0xff] %vm74, %v902
    %968 = vst.msk [vmem:[%s926 + $0x219] sm:$0xff] %vm74, %v903
    %969 = vst.msk [vmem:[%s926 + $0x229] sm:$0xff] %vm74, %v904
    %970 = vst.msk [vmem:[%s926 + $0x231] sm:$0xff] %vm74, %v905
    %971 = vst.msk [vmem:[%s926 + $0x241] sm:$0xff] %vm74, %v906
    %972 = vst.msk [vmem:[%s926 + $0x249] sm:$0xff] %vm74, %v907
    %973 = vst.msk [vmem:[%s926 + $0x259] sm:$0xff] %vm74, %v908
    %974 = vst.msk [vmem:[%s926 + $0x261] sm:$0xff] %vm74, %v909
    %975 = vst.msk [vmem:[%s926 + $0x271] sm:$0xff] %vm74, %v910
    %976 = vst.msk [vmem:[%s926 + $0x279] sm:$0xff] %vm74, %v911
    %977 = vst.msk [vmem:[%s926 + $0x289] sm:$0xff] %vm74, %v912
    %978 = vst.msk [vmem:[%s926 + $0x291] sm:$0xff] %vm74, %v913
    %979 = vst.msk [vmem:[%s926 + $0x2a1] sm:$0xff] %vm74, %v914
    %980 = vst.msk [vmem:[%s926 + $0x2a9] sm:$0xff] %vm74, %v915
    %981 = vst.msk [vmem:[%s926 + $0x2b9] sm:$0xff] %vm74, %v916
    %982 = vst.msk [vmem:[%s926 + $0x2c1] sm:$0xff] %vm74, %v917
    %983 = vst.msk [vmem:[%s926 + $0x2d1] sm:$0xff] %vm74, %v918
    %984 = vst.msk [vmem:[%s926 + $0x2d9] sm:$0xff] %vm74, %v919
    %985 = vst.msk [vmem:[%s926 + $0x2e9] sm:$0xff] %vm74, %v920
    %986 = vst.msk [vmem:[%s926 + $0x2f1] sm:$0xff] %vm74, %v921
    %987 = vst.msk [vmem:[%s926 + $0x301] sm:$0xff] %vm74, %v922
    %988 = vst.msk [vmem:[%s926 + $0x309] sm:$0xff] %vm74, %v923
    %989 = vst.msk [vmem:[%s926 + $0x319] sm:$0xff] %vm74, %v924
    %990 = vst.msk [vmem:[%s926 + $0x321] sm:$0xff] %vm74, %v925
    %v991 = vld [vmem:[#allocation2] sm:$0xff]
    %v992 = vld [vmem:[#allocation2 + $0x8] sm:$0xff]
    %v993 = vld [vmem:[#allocation2 + $0x18] sm:$0xff]
    %v994 = vld [vmem:[#allocation2 + $0x20] sm:$0xff]
    %v995 = vld [vmem:[#allocation2 + $0x30] sm:$0xff]
    %v996 = vld [vmem:[#allocation2 + $0x38] sm:$0xff]
    %v997 = vld [vmem:[#allocation2 + $0x48] sm:$0xff]
    %v998 = vld [vmem:[#allocation2 + $0x50] sm:$0xff]
    %v999 = vld [vmem:[#allocation2 + $0x60] sm:$0xff]
    %v1000 = vld [vmem:[#allocation2 + $0x68] sm:$0xff]
    %v1001 = vld [vmem:[#allocation2 + $0x78] sm:$0xff]
    %v1002 = vld [vmem:[#allocation2 + $0x80] sm:$0xff]
    %v1003 = vld [vmem:[#allocation2 + $0x90] sm:$0xff]
    %v1004 = vld [vmem:[#allocation2 + $0x98] sm:$0xff]
    %v1005 = vld [vmem:[#allocation2 + $0xa8] sm:$0xff]
    %v1006 = vld [vmem:[#allocation2 + $0xb0] sm:$0xff]
    %v1007 = vld [vmem:[#allocation2 + $0xc0] sm:$0xff]
    %v1008 = vld [vmem:[#allocation2 + $0xc8] sm:$0xff]
    %v1009 = vld [vmem:[#allocation2 + $0xd8] sm:$0xff]
    %v1010 = vld [vmem:[#allocation2 + $0xe0] sm:$0xff]
    %v1011 = vld [vmem:[#allocation2 + $0xf0] sm:$0xff]
    %v1012 = vld [vmem:[#allocation2 + $0xf8] sm:$0xff]
    %v1013 = vld [vmem:[#allocation2 + $0x108] sm:$0xff]
    %v1014 = vld [vmem:[#allocation2 + $0x110] sm:$0xff]
    %v1015 = vld [vmem:[#allocation2 + $0x120] sm:$0xff]
    %v1016 = vld [vmem:[#allocation2 + $0x128] sm:$0xff]
    %v1017 = vld [vmem:[#allocation2 + $0x138] sm:$0xff]
    %v1018 = vld [vmem:[#allocation2 + $0x140] sm:$0xff]
    %v1019 = vld [vmem:[#allocation2 + $0x150] sm:$0xff]
    %v1020 = vld [vmem:[#allocation2 + $0x158] sm:$0xff]
    %v1021 = vld [vmem:[#allocation2 + $0x168] sm:$0xff]
    %v1022 = vld [vmem:[#allocation2 + $0x170] sm:$0xff]
    %v1023 = vld [vmem:[#allocation2 + $0x1b0] sm:$0xff]
    %v1024 = vld [vmem:[#allocation2 + $0x1b8] sm:$0xff]
    %v1025 = vld [vmem:[#allocation2 + $0x1c8] sm:$0xff]
    %v1026 = vld [vmem:[#allocation2 + $0x1d0] sm:$0xff]
    %v1027 = vld [vmem:[#allocation2 + $0x1e0] sm:$0xff]
    %v1028 = vld [vmem:[#allocation2 + $0x1e8] sm:$0xff]
    %v1029 = vld [vmem:[#allocation2 + $0x1f8] sm:$0xff]
    %v1030 = vld [vmem:[#allocation2 + $0x200] sm:$0xff]
    %v1031 = vld [vmem:[#allocation2 + $0x210] sm:$0xff]
    %v1032 = vld [vmem:[#allocation2 + $0x218] sm:$0xff]
    %v1033 = vld [vmem:[#allocation2 + $0x228] sm:$0xff]
    %v1034 = vld [vmem:[#allocation2 + $0x230] sm:$0xff]
    %v1035 = vld [vmem:[#allocation2 + $0x240] sm:$0xff]
    %v1036 = vld [vmem:[#allocation2 + $0x248] sm:$0xff]
    %v1037 = vld [vmem:[#allocation2 + $0x258] sm:$0xff]
    %v1038 = vld [vmem:[#allocation2 + $0x260] sm:$0xff]
    %v1039 = vld [vmem:[#allocation2 + $0x270] sm:$0xff]
    %v1040 = vld [vmem:[#allocation2 + $0x278] sm:$0xff]
    %v1041 = vld [vmem:[#allocation2 + $0x288] sm:$0xff]
    %v1042 = vld [vmem:[#allocation2 + $0x290] sm:$0xff]
    %v1043 = vld [vmem:[#allocation2 + $0x2a0] sm:$0xff]
    %v1044 = vld [vmem:[#allocation2 + $0x2a8] sm:$0xff]
    %v1045 = vld [vmem:[#allocation2 + $0x2b8] sm:$0xff]
    %v1046 = vld [vmem:[#allocation2 + $0x2c0] sm:$0xff]
    %v1047 = vld [vmem:[#allocation2 + $0x2d0] sm:$0xff]
    %v1048 = vld [vmem:[#allocation2 + $0x2d8] sm:$0xff]
    %v1049 = vld [vmem:[#allocation2 + $0x2e8] sm:$0xff]
    %v1050 = vld [vmem:[#allocation2 + $0x2f0] sm:$0xff]
    %v1051 = vld [vmem:[#allocation2 + $0x300] sm:$0xff]
    %v1052 = vld [vmem:[#allocation2 + $0x308] sm:$0xff]
    %v1053 = vld [vmem:[#allocation2 + $0x318] sm:$0xff]
    %v1054 = vld [vmem:[#allocation2 + $0x320] sm:$0xff]
    %1055 = vst.msk [vmem:[#allocation3] sm:$0xff] %vm74, %v991
    %1056 = vst.msk [vmem:[#allocation3 + $0x18] sm:$0xff] %vm74, %v992
    %1057 = vst.msk [vmem:[#allocation3 + $0x30] sm:$0xff] %vm74, %v993
    %1058 = vst.msk [vmem:[#allocation3 + $0x48] sm:$0xff] %vm74, %v994
    %1059 = vst.msk [vmem:[#allocation3 + $0x60] sm:$0xff] %vm74, %v995
    %1060 = vst.msk [vmem:[#allocation3 + $0x78] sm:$0xff] %vm74, %v996
    %1061 = vst.msk [vmem:[#allocation3 + $0x90] sm:$0xff] %vm74, %v997
    %1062 = vst.msk [vmem:[#allocation3 + $0xa8] sm:$0xff] %vm74, %v998
    %1063 = vst.msk [vmem:[#allocation3 + $0xc0] sm:$0xff] %vm74, %v999
    %1064 = vst.msk [vmem:[#allocation3 + $0xd8] sm:$0xff] %vm74, %v1000
    %1065 = vst.msk [vmem:[#allocation3 + $0xf0] sm:$0xff] %vm74, %v1001
    %1066 = vst.msk [vmem:[#allocation3 + $0x108] sm:$0xff] %vm74, %v1002
    %1067 = vst.msk [vmem:[#allocation3 + $0x120] sm:$0xff] %vm74, %v1003
    %1068 = vst.msk [vmem:[#allocation3 + $0x138] sm:$0xff] %vm74, %v1004
    %1069 = vst.msk [vmem:[#allocation3 + $0x150] sm:$0xff] %vm74, %v1005
    %1070 = vst.msk [vmem:[#allocation3 + $0x168] sm:$0xff] %vm74, %v1006
    %1071 = vst.msk [vmem:[#allocation3 + $0x180] sm:$0xff] %vm74, %v1007
    %1072 = vst.msk [vmem:[#allocation3 + $0x198] sm:$0xff] %vm74, %v1008
    %1073 = vst.msk [vmem:[#allocation3 + $0x1b0] sm:$0xff] %vm74, %v1009
    %1074 = vst.msk [vmem:[#allocation3 + $0x1c8] sm:$0xff] %vm74, %v1010
    %1075 = vst.msk [vmem:[#allocation3 + $0x1e0] sm:$0xff] %vm74, %v1011
    %1076 = vst.msk [vmem:[#allocation3 + $0x1f8] sm:$0xff] %vm74, %v1012
    %1077 = vst.msk [vmem:[#allocation3 + $0x210] sm:$0xff] %vm74, %v1013
    %1078 = vst.msk [vmem:[#allocation3 + $0x228] sm:$0xff] %vm74, %v1014
    %1079 = vst.msk [vmem:[#allocation3 + $0x240] sm:$0xff] %vm74, %v1015
    %1080 = vst.msk [vmem:[#allocation3 + $0x258] sm:$0xff] %vm74, %v1016
    %1081 = vst.msk [vmem:[#allocation3 + $0x270] sm:$0xff] %vm74, %v1017
    %1082 = vst.msk [vmem:[#allocation3 + $0x288] sm:$0xff] %vm74, %v1018
    %1083 = vst.msk [vmem:[#allocation3 + $0x2a0] sm:$0xff] %vm74, %v1019
    %1084 = vst.msk [vmem:[#allocation3 + $0x2b8] sm:$0xff] %vm74, %v1020
    %1085 = vst.msk [vmem:[#allocation3 + $0x2d0] sm:$0xff] %vm74, %v1021
    %1086 = vst.msk [vmem:[#allocation3 + $0x2e8] sm:$0xff] %vm74, %v1022
    %1087 = vst.msk [vmem:[#allocation3 + $0x300] sm:$0xff] %vm74, %v1023
    %1088 = vst.msk [vmem:[#allocation3 + $0x318] sm:$0xff] %vm74, %v1024
    %1089 = vst.msk [vmem:[#allocation3 + $0x330] sm:$0xff] %vm74, %v1025
    %1090 = vst.msk [vmem:[#allocation3 + $0x348] sm:$0xff] %vm74, %v1026
    %1091 = vst.msk [vmem:[#allocation3 + $0x360] sm:$0xff] %vm74, %v1027
    %1092 = vst.msk [vmem:[#allocation3 + $0x378] sm:$0xff] %vm74, %v1028
    %1093 = vst.msk [vmem:[#allocation3 + $0x390] sm:$0xff] %vm74, %v1029
    %1094 = vst.msk [vmem:[#allocation3 + $0x3a8] sm:$0xff] %vm74, %v1030
    %1095 = vst.msk [vmem:[#allocation3 + $0x3c0] sm:$0xff] %vm74, %v1031
    %1096 = vst.msk [vmem:[#allocation3 + $0x3d8] sm:$0xff] %vm74, %v1032
    %1097 = vst.msk [vmem:[#allocation3 + $0x3f0] sm:$0xff] %vm74, %v1033
    %1098 = vst.msk [vmem:[#allocation3 + $0x408] sm:$0xff] %vm74, %v1034
    %1099 = vst.msk [vmem:[#allocation3 + $0x420] sm:$0xff] %vm74, %v1035
    %1100 = vst.msk [vmem:[#allocation3 + $0x438] sm:$0xff] %vm74, %v1036
    %1101 = vst.msk [vmem:[#allocation3 + $0x450] sm:$0xff] %vm74, %v1037
    %1102 = vst.msk [vmem:[#allocation3 + $0x468] sm:$0xff] %vm74, %v1038
    %1103 = vst.msk [vmem:[#allocation3 + $0x480] sm:$0xff] %vm74, %v1039
    %1104 = vst.msk [vmem:[#allocation3 + $0x498] sm:$0xff] %vm74, %v1040
    %1105 = vst.msk [vmem:[#allocation3 + $0x4b0] sm:$0xff] %vm74, %v1041
    %1106 = vst.msk [vmem:[#allocation3 + $0x4c8] sm:$0xff] %vm74, %v1042
    %1107 = vst.msk [vmem:[#allocation3 + $0x4e0] sm:$0xff] %vm74, %v1043
    %1108 = vst.msk [vmem:[#allocation3 + $0x4f8] sm:$0xff] %vm74, %v1044
    %1109 = vst.msk [vmem:[#allocation3 + $0x510] sm:$0xff] %vm74, %v1045
    %1110 = vst.msk [vmem:[#allocation3 + $0x528] sm:$0xff] %vm74, %v1046
    %1111 = vst.msk [vmem:[#allocation3 + $0x540] sm:$0xff] %vm74, %v1047
    %1112 = vst.msk [vmem:[#allocation3 + $0x558] sm:$0xff] %vm74, %v1048
    %1113 = vst.msk [vmem:[#allocation3 + $0x570] sm:$0xff] %vm74, %v1049
    %1114 = vst.msk [vmem:[#allocation3 + $0x588] sm:$0xff] %vm74, %v1050
    %1115 = vst.msk [vmem:[#allocation3 + $0x5a0] sm:$0xff] %vm74, %v1051
    %1116 = vst.msk [vmem:[#allocation3 + $0x5b8] sm:$0xff] %vm74, %v1052
    %1117 = vst.msk [vmem:[#allocation3 + $0x5d0] sm:$0xff] %vm74, %v1053
    %1118 = vst.msk [vmem:[#allocation3 + $0x5e8] sm:$0xff] %vm74, %v1054
    %v1119 = vld [vmem:[#allocation2 + $0x1] sm:$0xff]
    %v1120 = vld [vmem:[#allocation2 + $0x9] sm:$0xff]
    %v1121 = vld [vmem:[#allocation2 + $0x19] sm:$0xff]
    %v1122 = vld [vmem:[#allocation2 + $0x21] sm:$0xff]
    %v1123 = vld [vmem:[#allocation2 + $0x31] sm:$0xff]
    %v1124 = vld [vmem:[#allocation2 + $0x39] sm:$0xff]
    %v1125 = vld [vmem:[#allocation2 + $0x49] sm:$0xff]
    %v1126 = vld [vmem:[#allocation2 + $0x51] sm:$0xff]
    %v1127 = vld [vmem:[#allocation2 + $0x61] sm:$0xff]
    %v1128 = vld [vmem:[#allocation2 + $0x69] sm:$0xff]
    %v1129 = vld [vmem:[#allocation2 + $0x79] sm:$0xff]
    %v1130 = vld [vmem:[#allocation2 + $0x81] sm:$0xff]
    %v1131 = vld [vmem:[#allocation2 + $0x91] sm:$0xff]
    %v1132 = vld [vmem:[#allocation2 + $0x99] sm:$0xff]
    %v1133 = vld [vmem:[#allocation2 + $0xa9] sm:$0xff]
    %v1134 = vld [vmem:[#allocation2 + $0xb1] sm:$0xff]
    %v1135 = vld [vmem:[#allocation2 + $0xc1] sm:$0xff]
    %v1136 = vld [vmem:[#allocation2 + $0xc9] sm:$0xff]
    %v1137 = vld [vmem:[#allocation2 + $0xd9] sm:$0xff]
    %v1138 = vld [vmem:[#allocation2 + $0xe1] sm:$0xff]
    %v1139 = vld [vmem:[#allocation2 + $0xf1] sm:$0xff]
    %v1140 = vld [vmem:[#allocation2 + $0xf9] sm:$0xff]
    %v1141 = vld [vmem:[#allocation2 + $0x109] sm:$0xff]
    %v1142 = vld [vmem:[#allocation2 + $0x111] sm:$0xff]
    %v1143 = vld [vmem:[#allocation2 + $0x121] sm:$0xff]
    %v1144 = vld [vmem:[#allocation2 + $0x129] sm:$0xff]
    %v1145 = vld [vmem:[#allocation2 + $0x139] sm:$0xff]
    %v1146 = vld [vmem:[#allocation2 + $0x141] sm:$0xff]
    %v1147 = vld [vmem:[#allocation2 + $0x151] sm:$0xff]
    %v1148 = vld [vmem:[#allocation2 + $0x159] sm:$0xff]
    %v1149 = vld [vmem:[#allocation2 + $0x169] sm:$0xff]
    %v1150 = vld [vmem:[#allocation2 + $0x171] sm:$0xff]
    %v1151 = vld [vmem:[#allocation2 + $0x1b1] sm:$0xff]
    %v1152 = vld [vmem:[#allocation2 + $0x1b9] sm:$0xff]
    %v1153 = vld [vmem:[#allocation2 + $0x1c9] sm:$0xff]
    %v1154 = vld [vmem:[#allocation2 + $0x1d1] sm:$0xff]
    %v1155 = vld [vmem:[#allocation2 + $0x1e1] sm:$0xff]
    %v1156 = vld [vmem:[#allocation2 + $0x1e9] sm:$0xff]
    %v1157 = vld [vmem:[#allocation2 + $0x1f9] sm:$0xff]
    %v1158 = vld [vmem:[#allocation2 + $0x201] sm:$0xff]
    %v1159 = vld [vmem:[#allocation2 + $0x211] sm:$0xff]
    %v1160 = vld [vmem:[#allocation2 + $0x219] sm:$0xff]
    %v1161 = vld [vmem:[#allocation2 + $0x229] sm:$0xff]
    %v1162 = vld [vmem:[#allocation2 + $0x231] sm:$0xff]
    %v1163 = vld [vmem:[#allocation2 + $0x241] sm:$0xff]
    %v1164 = vld [vmem:[#allocation2 + $0x249] sm:$0xff]
    %v1165 = vld [vmem:[#allocation2 + $0x259] sm:$0xff]
    %v1166 = vld [vmem:[#allocation2 + $0x261] sm:$0xff]
    %v1167 = vld [vmem:[#allocation2 + $0x271] sm:$0xff]
    %v1168 = vld [vmem:[#allocation2 + $0x279] sm:$0xff]
    %v1169 = vld [vmem:[#allocation2 + $0x289] sm:$0xff]
    %v1170 = vld [vmem:[#allocation2 + $0x291] sm:$0xff]
    %v1171 = vld [vmem:[#allocation2 + $0x2a1] sm:$0xff]
    %v1172 = vld [vmem:[#allocation2 + $0x2a9] sm:$0xff]
    %v1173 = vld [vmem:[#allocation2 + $0x2b9] sm:$0xff]
    %v1174 = vld [vmem:[#allocation2 + $0x2c1] sm:$0xff]
    %v1175 = vld [vmem:[#allocation2 + $0x2d1] sm:$0xff]
    %v1176 = vld [vmem:[#allocation2 + $0x2d9] sm:$0xff]
    %v1177 = vld [vmem:[#allocation2 + $0x2e9] sm:$0xff]
    %v1178 = vld [vmem:[#allocation2 + $0x2f1] sm:$0xff]
    %v1179 = vld [vmem:[#allocation2 + $0x301] sm:$0xff]
    %v1180 = vld [vmem:[#allocation2 + $0x309] sm:$0xff]
    %v1181 = vld [vmem:[#allocation2 + $0x319] sm:$0xff]
    %v1182 = vld [vmem:[#allocation2 + $0x321] sm:$0xff]
    %1247 = vrot.lane.b32.xlu0 %v1119, 32
    %v1248 = vpop.permute.xlu0 %1247
    %1249 = vrot.lane.b32.xlu0 %v1120, 32
    %v1250 = vpop.permute.xlu0 %1249
    %1251 = vrot.lane.b32.xlu0 %v1121, 32
    %v1252 = vpop.permute.xlu0 %1251
    %1253 = vrot.lane.b32.xlu0 %v1122, 32
    %v1254 = vpop.permute.xlu0 %1253
    %1255 = vrot.lane.b32.xlu0 %v1123, 32
    %v1256 = vpop.permute.xlu0 %1255
    %1257 = vrot.lane.b32.xlu0 %v1124, 32
    %v1258 = vpop.permute.xlu0 %1257
    %1259 = vrot.lane.b32.xlu0 %v1125, 32
    %v1260 = vpop.permute.xlu0 %1259
    %1261 = vrot.lane.b32.xlu0 %v1126, 32
    %v1262 = vpop.permute.xlu0 %1261
    %1263 = vrot.lane.b32.xlu0 %v1127, 32
    %v1264 = vpop.permute.xlu0 %1263
    %1265 = vrot.lane.b32.xlu0 %v1128, 32
    %v1266 = vpop.permute.xlu0 %1265
    %1267 = vrot.lane.b32.xlu0 %v1129, 32
    %v1268 = vpop.permute.xlu0 %1267
    %1269 = vrot.lane.b32.xlu0 %v1130, 32
    %v1270 = vpop.permute.xlu0 %1269
    %1271 = vrot.lane.b32.xlu0 %v1131, 32
    %v1272 = vpop.permute.xlu0 %1271
    %1273 = vrot.lane.b32.xlu0 %v1132, 32
    %v1274 = vpop.permute.xlu0 %1273
    %1275 = vrot.lane.b32.xlu0 %v1133, 32
    %v1276 = vpop.permute.xlu0 %1275
    %1277 = vrot.lane.b32.xlu0 %v1134, 32
    %v1278 = vpop.permute.xlu0 %1277
    %1279 = vrot.lane.b32.xlu0 %v1135, 32
    %v1280 = vpop.permute.xlu0 %1279
    %1281 = vrot.lane.b32.xlu0 %v1136, 32
    %v1282 = vpop.permute.xlu0 %1281
    %1283 = vrot.lane.b32.xlu0 %v1137, 32
    %v1284 = vpop.permute.xlu0 %1283
    %1285 = vrot.lane.b32.xlu0 %v1138, 32
    %v1286 = vpop.permute.xlu0 %1285
    %1287 = vrot.lane.b32.xlu0 %v1139, 32
    %v1288 = vpop.permute.xlu0 %1287
    %1289 = vrot.lane.b32.xlu0 %v1140, 32
    %v1290 = vpop.permute.xlu0 %1289
    %1291 = vrot.lane.b32.xlu0 %v1141, 32
    %v1292 = vpop.permute.xlu0 %1291
    %1293 = vrot.lane.b32.xlu0 %v1142, 32
    %v1294 = vpop.permute.xlu0 %1293
    %1295 = vrot.lane.b32.xlu0 %v1143, 32
    %v1296 = vpop.permute.xlu0 %1295
    %1297 = vrot.lane.b32.xlu0 %v1144, 32
    %v1298 = vpop.permute.xlu0 %1297
    %1299 = vrot.lane.b32.xlu0 %v1145, 32
    %v1300 = vpop.permute.xlu0 %1299
    %1301 = vrot.lane.b32.xlu0 %v1146, 32
    %v1302 = vpop.permute.xlu0 %1301
    %1303 = vrot.lane.b32.xlu0 %v1147, 32
    %v1304 = vpop.permute.xlu0 %1303
    %1305 = vrot.lane.b32.xlu0 %v1148, 32
    %v1306 = vpop.permute.xlu0 %1305
    %1307 = vrot.lane.b32.xlu0 %v1149, 32
    %v1308 = vpop.permute.xlu0 %1307
    %1309 = vrot.lane.b32.xlu0 %v1150, 32
    %v1310 = vpop.permute.xlu0 %1309
    %1311 = vrot.lane.b32.xlu0 %v1151, 32
    %v1312 = vpop.permute.xlu0 %1311
    %1313 = vrot.lane.b32.xlu0 %v1152, 32
    %v1314 = vpop.permute.xlu0 %1313
    %1315 = vrot.lane.b32.xlu0 %v1153, 32
    %v1316 = vpop.permute.xlu0 %1315
    %1317 = vrot.lane.b32.xlu0 %v1154, 32
    %v1318 = vpop.permute.xlu0 %1317
    %1319 = vrot.lane.b32.xlu0 %v1155, 32
    %v1320 = vpop.permute.xlu0 %1319
    %1321 = vrot.lane.b32.xlu0 %v1156, 32
    %v1322 = vpop.permute.xlu0 %1321
    %1323 = vrot.lane.b32.xlu0 %v1157, 32
    %v1324 = vpop.permute.xlu0 %1323
    %1325 = vrot.lane.b32.xlu0 %v1158, 32
    %v1326 = vpop.permute.xlu0 %1325
    %1327 = vrot.lane.b32.xlu0 %v1159, 32
    %v1328 = vpop.permute.xlu0 %1327
    %1329 = vrot.lane.b32.xlu0 %v1160, 32
    %v1330 = vpop.permute.xlu0 %1329
    %1331 = vrot.lane.b32.xlu0 %v1161, 32
    %v1332 = vpop.permute.xlu0 %1331
    %1333 = vrot.lane.b32.xlu0 %v1162, 32
    %v1334 = vpop.permute.xlu0 %1333
    %1335 = vrot.lane.b32.xlu0 %v1163, 32
    %v1336 = vpop.permute.xlu0 %1335
    %1337 = vrot.lane.b32.xlu0 %v1164, 32
    %v1338 = vpop.permute.xlu0 %1337
    %1339 = vrot.lane.b32.xlu0 %v1165, 32
    %v1340 = vpop.permute.xlu0 %1339
    %1341 = vrot.lane.b32.xlu0 %v1166, 32
    %v1342 = vpop.permute.xlu0 %1341
    %1343 = vrot.lane.b32.xlu0 %v1167, 32
    %v1344 = vpop.permute.xlu0 %1343
    %1345 = vrot.lane.b32.xlu0 %v1168, 32
    %v1346 = vpop.permute.xlu0 %1345
    %1347 = vrot.lane.b32.xlu0 %v1169, 32
    %v1348 = vpop.permute.xlu0 %1347
    %1349 = vrot.lane.b32.xlu0 %v1170, 32
    %v1350 = vpop.permute.xlu0 %1349
    %1351 = vrot.lane.b32.xlu0 %v1171, 32
    %v1352 = vpop.permute.xlu0 %1351
    %1353 = vrot.lane.b32.xlu0 %v1172, 32
    %v1354 = vpop.permute.xlu0 %1353
    %1355 = vrot.lane.b32.xlu0 %v1173, 32
    %v1356 = vpop.permute.xlu0 %1355
    %1357 = vrot.lane.b32.xlu0 %v1174, 32
    %v1358 = vpop.permute.xlu0 %1357
    %1359 = vrot.lane.b32.xlu0 %v1175, 32
    %v1360 = vpop.permute.xlu0 %1359
    %1361 = vrot.lane.b32.xlu0 %v1176, 32
    %v1362 = vpop.permute.xlu0 %1361
    %1363 = vrot.lane.b32.xlu0 %v1177, 32
    %v1364 = vpop.permute.xlu0 %1363
    %1365 = vrot.lane.b32.xlu0 %v1178, 32
    %v1366 = vpop.permute.xlu0 %1365
    %1367 = vrot.lane.b32.xlu0 %v1179, 32
    %v1368 = vpop.permute.xlu0 %1367
    %1369 = vrot.lane.b32.xlu0 %v1180, 32
    %v1370 = vpop.permute.xlu0 %1369
    %1371 = vrot.lane.b32.xlu0 %v1181, 32
    %v1372 = vpop.permute.xlu0 %1371
    %1373 = vrot.lane.b32.xlu0 %v1182, 32
    %v1374 = vpop.permute.xlu0 %1373
    %vm1439 = vcmask 523520
    %1440 = vst.msk [vmem:[#allocation3] sm:$0xff] %vm1439, %v1248
    %1441 = vst.msk [vmem:[#allocation3 + $0x18] sm:$0xff] %vm1439, %v1250
    %1442 = vst.msk [vmem:[#allocation3 + $0x30] sm:$0xff] %vm1439, %v1252
    %1443 = vst.msk [vmem:[#allocation3 + $0x48] sm:$0xff] %vm1439, %v1254
    %1444 = vst.msk [vmem:[#allocation3 + $0x60] sm:$0xff] %vm1439, %v1256
    %1445 = vst.msk [vmem:[#allocation3 + $0x78] sm:$0xff] %vm1439, %v1258
    %1446 = vst.msk [vmem:[#allocation3 + $0x90] sm:$0xff] %vm1439, %v1260
    %1447 = vst.msk [vmem:[#allocation3 + $0xa8] sm:$0xff] %vm1439, %v1262
    %1448 = vst.msk [vmem:[#allocation3 + $0xc0] sm:$0xff] %vm1439, %v1264
    %1449 = vst.msk [vmem:[#allocation3 + $0xd8] sm:$0xff] %vm1439, %v1266
    %1450 = vst.msk [vmem:[#allocation3 + $0xf0] sm:$0xff] %vm1439, %v1268
    %1451 = vst.msk [vmem:[#allocation3 + $0x108] sm:$0xff] %vm1439, %v1270
    %1452 = vst.msk [vmem:[#allocation3 + $0x120] sm:$0xff] %vm1439, %v1272
    %1453 = vst.msk [vmem:[#allocation3 + $0x138] sm:$0xff] %vm1439, %v1274
    %1454 = vst.msk [vmem:[#allocation3 + $0x150] sm:$0xff] %vm1439, %v1276
    %1455 = vst.msk [vmem:[#allocation3 + $0x168] sm:$0xff] %vm1439, %v1278
    %1456 = vst.msk [vmem:[#allocation3 + $0x180] sm:$0xff] %vm1439, %v1280
    %1457 = vst.msk [vmem:[#allocation3 + $0x198] sm:$0xff] %vm1439, %v1282
    %1458 = vst.msk [vmem:[#allocation3 + $0x1b0] sm:$0xff] %vm1439, %v1284
    %1459 = vst.msk [vmem:[#allocation3 + $0x1c8] sm:$0xff] %vm1439, %v1286
    %1460 = vst.msk [vmem:[#allocation3 + $0x1e0] sm:$0xff] %vm1439, %v1288
    %1461 = vst.msk [vmem:[#allocation3 + $0x1f8] sm:$0xff] %vm1439, %v1290
    %1462 = vst.msk [vmem:[#allocation3 + $0x210] sm:$0xff] %vm1439, %v1292
    %1463 = vst.msk [vmem:[#allocation3 + $0x228] sm:$0xff] %vm1439, %v1294
    %1464 = vst.msk [vmem:[#allocation3 + $0x240] sm:$0xff] %vm1439, %v1296
    %1465 = vst.msk [vmem:[#allocation3 + $0x258] sm:$0xff] %vm1439, %v1298
    %1466 = vst.msk [vmem:[#allocation3 + $0x270] sm:$0xff] %vm1439, %v1300
    %1467 = vst.msk [vmem:[#allocation3 + $0x288] sm:$0xff] %vm1439, %v1302
    %1468 = vst.msk [vmem:[#allocation3 + $0x2a0] sm:$0xff] %vm1439, %v1304
    %1469 = vst.msk [vmem:[#allocation3 + $0x2b8] sm:$0xff] %vm1439, %v1306
    %1470 = vst.msk [vmem:[#allocation3 + $0x2d0] sm:$0xff] %vm1439, %v1308
    %1471 = vst.msk [vmem:[#allocation3 + $0x2e8] sm:$0xff] %vm1439, %v1310
    %1472 = vst.msk [vmem:[#allocation3 + $0x300] sm:$0xff] %vm1439, %v1312
    %1473 = vst.msk [vmem:[#allocation3 + $0x318] sm:$0xff] %vm1439, %v1314
    %1474 = vst.msk [vmem:[#allocation3 + $0x330] sm:$0xff] %vm1439, %v1316
    %1475 = vst.msk [vmem:[#allocation3 + $0x348] sm:$0xff] %vm1439, %v1318
    %1476 = vst.msk [vmem:[#allocation3 + $0x360] sm:$0xff] %vm1439, %v1320
    %1477 = vst.msk [vmem:[#allocation3 + $0x378] sm:$0xff] %vm1439, %v1322
    %1478 = vst.msk [vmem:[#allocation3 + $0x390] sm:$0xff] %vm1439, %v1324
    %1479 = vst.msk [vmem:[#allocation3 + $0x3a8] sm:$0xff] %vm1439, %v1326
    %1480 = vst.msk [vmem:[#allocation3 + $0x3c0] sm:$0xff] %vm1439, %v1328
    %1481 = vst.msk [vmem:[#allocation3 + $0x3d8] sm:$0xff] %vm1439, %v1330
    %1482 = vst.msk [vmem:[#allocation3 + $0x3f0] sm:$0xff] %vm1439, %v1332
    %1483 = vst.msk [vmem:[#allocation3 + $0x408] sm:$0xff] %vm1439, %v1334
    %1484 = vst.msk [vmem:[#allocation3 + $0x420] sm:$0xff] %vm1439, %v1336
    %1485 = vst.msk [vmem:[#allocation3 + $0x438] sm:$0xff] %vm1439, %v1338
    %1486 = vst.msk [vmem:[#allocation3 + $0x450] sm:$0xff] %vm1439, %v1340
    %1487 = vst.msk [vmem:[#allocation3 + $0x468] sm:$0xff] %vm1439, %v1342
    %1488 = vst.msk [vmem:[#allocation3 + $0x480] sm:$0xff] %vm1439, %v1344
    %1489 = vst.msk [vmem:[#allocation3 + $0x498] sm:$0xff] %vm1439, %v1346
    %1490 = vst.msk [vmem:[#allocation3 + $0x4b0] sm:$0xff] %vm1439, %v1348
    %1491 = vst.msk [vmem:[#allocation3 + $0x4c8] sm:$0xff] %vm1439, %v1350
    %1492 = vst.msk [vmem:[#allocation3 + $0x4e0] sm:$0xff] %vm1439, %v1352
    %1493 = vst.msk [vmem:[#allocation3 + $0x4f8] sm:$0xff] %vm1439, %v1354
    %1494 = vst.msk [vmem:[#allocation3 + $0x510] sm:$0xff] %vm1439, %v1356
    %1495 = vst.msk [vmem:[#allocation3 + $0x528] sm:$0xff] %vm1439, %v1358
    %1496 = vst.msk [vmem:[#allocation3 + $0x540] sm:$0xff] %vm1439, %v1360
    %1497 = vst.msk [vmem:[#allocation3 + $0x558] sm:$0xff] %vm1439, %v1362
    %1498 = vst.msk [vmem:[#allocation3 + $0x570] sm:$0xff] %vm1439, %v1364
    %1499 = vst.msk [vmem:[#allocation3 + $0x588] sm:$0xff] %vm1439, %v1366
    %1500 = vst.msk [vmem:[#allocation3 + $0x5a0] sm:$0xff] %vm1439, %v1368
    %1501 = vst.msk [vmem:[#allocation3 + $0x5b8] sm:$0xff] %vm1439, %v1370
    %1502 = vst.msk [vmem:[#allocation3 + $0x5d0] sm:$0xff] %vm1439, %v1372
    %1503 = vst.msk [vmem:[#allocation3 + $0x5e8] sm:$0xff] %vm1439, %v1374
    %v1504 = vld [vmem:[#allocation2 + $0x2] sm:$0xff]
    %v1505 = vld [vmem:[#allocation2 + $0xa] sm:$0xff]
    %v1506 = vld [vmem:[#allocation2 + $0x1a] sm:$0xff]
    %v1507 = vld [vmem:[#allocation2 + $0x22] sm:$0xff]
    %v1508 = vld [vmem:[#allocation2 + $0x32] sm:$0xff]
    %v1509 = vld [vmem:[#allocation2 + $0x3a] sm:$0xff]
    %v1510 = vld [vmem:[#allocation2 + $0x4a] sm:$0xff]
    %v1511 = vld [vmem:[#allocation2 + $0x52] sm:$0xff]
    %v1512 = vld [vmem:[#allocation2 + $0x62] sm:$0xff]
    %v1513 = vld [vmem:[#allocation2 + $0x6a] sm:$0xff]
    %v1514 = vld [vmem:[#allocation2 + $0x7a] sm:$0xff]
    %v1515 = vld [vmem:[#allocation2 + $0x82] sm:$0xff]
    %v1516 = vld [vmem:[#allocation2 + $0x92] sm:$0xff]
    %v1517 = vld [vmem:[#allocation2 + $0x9a] sm:$0xff]
    %v1518 = vld [vmem:[#allocation2 + $0xaa] sm:$0xff]
    %v1519 = vld [vmem:[#allocation2 + $0xb2] sm:$0xff]
    %v1520 = vld [vmem:[#allocation2 + $0xc2] sm:$0xff]
    %v1521 = vld [vmem:[#allocation2 + $0xca] sm:$0xff]
    %v1522 = vld [vmem:[#allocation2 + $0xda] sm:$0xff]
    %v1523 = vld [vmem:[#allocation2 + $0xe2] sm:$0xff]
    %v1524 = vld [vmem:[#allocation2 + $0xf2] sm:$0xff]
    %v1525 = vld [vmem:[#allocation2 + $0xfa] sm:$0xff]
    %v1526 = vld [vmem:[#allocation2 + $0x10a] sm:$0xff]
    %v1527 = vld [vmem:[#allocation2 + $0x112] sm:$0xff]
    %v1528 = vld [vmem:[#allocation2 + $0x122] sm:$0xff]
    %v1529 = vld [vmem:[#allocation2 + $0x12a] sm:$0xff]
    %v1530 = vld [vmem:[#allocation2 + $0x13a] sm:$0xff]
    %v1531 = vld [vmem:[#allocation2 + $0x142] sm:$0xff]
    %v1532 = vld [vmem:[#allocation2 + $0x152] sm:$0xff]
    %v1533 = vld [vmem:[#allocation2 + $0x15a] sm:$0xff]
    %v1534 = vld [vmem:[#allocation2 + $0x16a] sm:$0xff]
    %v1535 = vld [vmem:[#allocation2 + $0x172] sm:$0xff]
    %v1536 = vld [vmem:[#allocation2 + $0x1b2] sm:$0xff]
    %v1537 = vld [vmem:[#allocation2 + $0x1ba] sm:$0xff]
    %v1538 = vld [vmem:[#allocation2 + $0x1ca] sm:$0xff]
    %v1539 = vld [vmem:[#allocation2 + $0x1d2] sm:$0xff]
    %v1540 = vld [vmem:[#allocation2 + $0x1e2] sm:$0xff]
    %v1541 = vld [vmem:[#allocation2 + $0x1ea] sm:$0xff]
    %v1542 = vld [vmem:[#allocation2 + $0x1fa] sm:$0xff]
    %v1543 = vld [vmem:[#allocation2 + $0x202] sm:$0xff]
    %v1544 = vld [vmem:[#allocation2 + $0x212] sm:$0xff]
    %v1545 = vld [vmem:[#allocation2 + $0x21a] sm:$0xff]
    %v1546 = vld [vmem:[#allocation2 + $0x22a] sm:$0xff]
    %v1547 = vld [vmem:[#allocation2 + $0x232] sm:$0xff]
    %v1548 = vld [vmem:[#allocation2 + $0x242] sm:$0xff]
    %v1549 = vld [vmem:[#allocation2 + $0x24a] sm:$0xff]
    %v1550 = vld [vmem:[#allocation2 + $0x25a] sm:$0xff]
    %v1551 = vld [vmem:[#allocation2 + $0x262] sm:$0xff]
    %v1552 = vld [vmem:[#allocation2 + $0x272] sm:$0xff]
    %v1553 = vld [vmem:[#allocation2 + $0x27a] sm:$0xff]
    %v1554 = vld [vmem:[#allocation2 + $0x28a] sm:$0xff]
    %v1555 = vld [vmem:[#allocation2 + $0x292] sm:$0xff]
    %v1556 = vld [vmem:[#allocation2 + $0x2a2] sm:$0xff]
    %v1557 = vld [vmem:[#allocation2 + $0x2aa] sm:$0xff]
    %v1558 = vld [vmem:[#allocation2 + $0x2ba] sm:$0xff]
    %v1559 = vld [vmem:[#allocation2 + $0x2c2] sm:$0xff]
    %v1560 = vld [vmem:[#allocation2 + $0x2d2] sm:$0xff]
    %v1561 = vld [vmem:[#allocation2 + $0x2da] sm:$0xff]
    %v1562 = vld [vmem:[#allocation2 + $0x2ea] sm:$0xff]
    %v1563 = vld [vmem:[#allocation2 + $0x2f2] sm:$0xff]
    %v1564 = vld [vmem:[#allocation2 + $0x302] sm:$0xff]
    %v1565 = vld [vmem:[#allocation2 + $0x30a] sm:$0xff]
    %v1566 = vld [vmem:[#allocation2 + $0x31a] sm:$0xff]
    %v1567 = vld [vmem:[#allocation2 + $0x322] sm:$0xff]
    %1632 = vrot.lane.b32.xlu0 %v1504, 64
    %v1633 = vpop.permute.xlu0 %1632
    %1634 = vrot.lane.b32.xlu0 %v1505, 64
    %v1635 = vpop.permute.xlu0 %1634
    %1636 = vrot.lane.b32.xlu0 %v1506, 64
    %v1637 = vpop.permute.xlu0 %1636
    %1638 = vrot.lane.b32.xlu0 %v1507, 64
    %v1639 = vpop.permute.xlu0 %1638
    %1640 = vrot.lane.b32.xlu0 %v1508, 64
    %v1641 = vpop.permute.xlu0 %1640
    %1642 = vrot.lane.b32.xlu0 %v1509, 64
    %v1643 = vpop.permute.xlu0 %1642
    %1644 = vrot.lane.b32.xlu0 %v1510, 64
    %v1645 = vpop.permute.xlu0 %1644
    %1646 = vrot.lane.b32.xlu0 %v1511, 64
    %v1647 = vpop.permute.xlu0 %1646
    %1648 = vrot.lane.b32.xlu0 %v1512, 64
    %v1649 = vpop.permute.xlu0 %1648
    %1650 = vrot.lane.b32.xlu0 %v1513, 64
    %v1651 = vpop.permute.xlu0 %1650
    %1652 = vrot.lane.b32.xlu0 %v1514, 64
    %v1653 = vpop.permute.xlu0 %1652
    %1654 = vrot.lane.b32.xlu0 %v1515, 64
    %v1655 = vpop.permute.xlu0 %1654
    %1656 = vrot.lane.b32.xlu0 %v1516, 64
    %v1657 = vpop.permute.xlu0 %1656
    %1658 = vrot.lane.b32.xlu0 %v1517, 64
    %v1659 = vpop.permute.xlu0 %1658
    %1660 = vrot.lane.b32.xlu0 %v1518, 64
    %v1661 = vpop.permute.xlu0 %1660
    %1662 = vrot.lane.b32.xlu0 %v1519, 64
    %v1663 = vpop.permute.xlu0 %1662
    %1664 = vrot.lane.b32.xlu0 %v1520, 64
    %v1665 = vpop.permute.xlu0 %1664
    %1666 = vrot.lane.b32.xlu0 %v1521, 64
    %v1667 = vpop.permute.xlu0 %1666
    %1668 = vrot.lane.b32.xlu0 %v1522, 64
    %v1669 = vpop.permute.xlu0 %1668
    %1670 = vrot.lane.b32.xlu0 %v1523, 64
    %v1671 = vpop.permute.xlu0 %1670
    %1672 = vrot.lane.b32.xlu0 %v1524, 64
    %v1673 = vpop.permute.xlu0 %1672
    %1674 = vrot.lane.b32.xlu0 %v1525, 64
    %v1675 = vpop.permute.xlu0 %1674
    %1676 = vrot.lane.b32.xlu0 %v1526, 64
    %v1677 = vpop.permute.xlu0 %1676
    %1678 = vrot.lane.b32.xlu0 %v1527, 64
    %v1679 = vpop.permute.xlu0 %1678
    %1680 = vrot.lane.b32.xlu0 %v1528, 64
    %v1681 = vpop.permute.xlu0 %1680
    %1682 = vrot.lane.b32.xlu0 %v1529, 64
    %v1683 = vpop.permute.xlu0 %1682
    %1684 = vrot.lane.b32.xlu0 %v1530, 64
    %v1685 = vpop.permute.xlu0 %1684
    %1686 = vrot.lane.b32.xlu0 %v1531, 64
    %v1687 = vpop.permute.xlu0 %1686
    %1688 = vrot.lane.b32.xlu0 %v1532, 64
    %v1689 = vpop.permute.xlu0 %1688
    %1690 = vrot.lane.b32.xlu0 %v1533, 64
    %v1691 = vpop.permute.xlu0 %1690
    %1692 = vrot.lane.b32.xlu0 %v1534, 64
    %v1693 = vpop.permute.xlu0 %1692
    %1694 = vrot.lane.b32.xlu0 %v1535, 64
    %v1695 = vpop.permute.xlu0 %1694
    %1696 = vrot.lane.b32.xlu0 %v1536, 64
    %v1697 = vpop.permute.xlu0 %1696
    %1698 = vrot.lane.b32.xlu0 %v1537, 64
    %v1699 = vpop.permute.xlu0 %1698
    %1700 = vrot.lane.b32.xlu0 %v1538, 64
    %v1701 = vpop.permute.xlu0 %1700
    %1702 = vrot.lane.b32.xlu0 %v1539, 64
    %v1703 = vpop.permute.xlu0 %1702
    %1704 = vrot.lane.b32.xlu0 %v1540, 64
    %v1705 = vpop.permute.xlu0 %1704
    %1706 = vrot.lane.b32.xlu0 %v1541, 64
    %v1707 = vpop.permute.xlu0 %1706
    %1708 = vrot.lane.b32.xlu0 %v1542, 64
    %v1709 = vpop.permute.xlu0 %1708
    %1710 = vrot.lane.b32.xlu0 %v1543, 64
    %v1711 = vpop.permute.xlu0 %1710
    %1712 = vrot.lane.b32.xlu0 %v1544, 64
    %v1713 = vpop.permute.xlu0 %1712
    %1714 = vrot.lane.b32.xlu0 %v1545, 64
    %v1715 = vpop.permute.xlu0 %1714
    %1716 = vrot.lane.b32.xlu0 %v1546, 64
    %v1717 = vpop.permute.xlu0 %1716
    %1718 = vrot.lane.b32.xlu0 %v1547, 64
    %v1719 = vpop.permute.xlu0 %1718
    %1720 = vrot.lane.b32.xlu0 %v1548, 64
    %v1721 = vpop.permute.xlu0 %1720
    %1722 = vrot.lane.b32.xlu0 %v1549, 64
    %v1723 = vpop.permute.xlu0 %1722
    %1724 = vrot.lane.b32.xlu0 %v1550, 64
    %v1725 = vpop.permute.xlu0 %1724
    %1726 = vrot.lane.b32.xlu0 %v1551, 64
    %v1727 = vpop.permute.xlu0 %1726
    %1728 = vrot.lane.b32.xlu0 %v1552, 64
    %v1729 = vpop.permute.xlu0 %1728
    %1730 = vrot.lane.b32.xlu0 %v1553, 64
    %v1731 = vpop.permute.xlu0 %1730
    %1732 = vrot.lane.b32.xlu0 %v1554, 64
    %v1733 = vpop.permute.xlu0 %1732
    %1734 = vrot.lane.b32.xlu0 %v1555, 64
    %v1735 = vpop.permute.xlu0 %1734
    %1736 = vrot.lane.b32.xlu0 %v1556, 64
    %v1737 = vpop.permute.xlu0 %1736
    %1738 = vrot.lane.b32.xlu0 %v1557, 64
    %v1739 = vpop.permute.xlu0 %1738
    %1740 = vrot.lane.b32.xlu0 %v1558, 64
    %v1741 = vpop.permute.xlu0 %1740
    %1742 = vrot.lane.b32.xlu0 %v1559, 64
    %v1743 = vpop.permute.xlu0 %1742
    %1744 = vrot.lane.b32.xlu0 %v1560, 64
    %v1745 = vpop.permute.xlu0 %1744
    %1746 = vrot.lane.b32.xlu0 %v1561, 64
    %v1747 = vpop.permute.xlu0 %1746
    %1748 = vrot.lane.b32.xlu0 %v1562, 64
    %v1749 = vpop.permute.xlu0 %1748
    %1750 = vrot.lane.b32.xlu0 %v1563, 64
    %v1751 = vpop.permute.xlu0 %1750
    %1752 = vrot.lane.b32.xlu0 %v1564, 64
    %v1753 = vpop.permute.xlu0 %1752
    %1754 = vrot.lane.b32.xlu0 %v1565, 64
    %v1755 = vpop.permute.xlu0 %1754
    %1756 = vrot.lane.b32.xlu0 %v1566, 64
    %v1757 = vpop.permute.xlu0 %1756
    %1758 = vrot.lane.b32.xlu0 %v1567, 64
    %v1759 = vpop.permute.xlu0 %1758
    %vm1824 = vcmask 785920
    %1825 = vst.msk [vmem:[#allocation3] sm:$0xff] %vm1824, %v1633
    %1826 = vst.msk [vmem:[#allocation3 + $0x18] sm:$0xff] %vm1824, %v1635
    %1827 = vst.msk [vmem:[#allocation3 + $0x30] sm:$0xff] %vm1824, %v1637
    %1828 = vst.msk [vmem:[#allocation3 + $0x48] sm:$0xff] %vm1824, %v1639
    %1829 = vst.msk [vmem:[#allocation3 + $0x60] sm:$0xff] %vm1824, %v1641
    %1830 = vst.msk [vmem:[#allocation3 + $0x78] sm:$0xff] %vm1824, %v1643
    %1831 = vst.msk [vmem:[#allocation3 + $0x90] sm:$0xff] %vm1824, %v1645
    %1832 = vst.msk [vmem:[#allocation3 + $0xa8] sm:$0xff] %vm1824, %v1647
    %1833 = vst.msk [vmem:[#allocation3 + $0xc0] sm:$0xff] %vm1824, %v1649
    %1834 = vst.msk [vmem:[#allocation3 + $0xd8] sm:$0xff] %vm1824, %v1651
    %1835 = vst.msk [vmem:[#allocation3 + $0xf0] sm:$0xff] %vm1824, %v1653
    %1836 = vst.msk [vmem:[#allocation3 + $0x108] sm:$0xff] %vm1824, %v1655
    %1837 = vst.msk [vmem:[#allocation3 + $0x120] sm:$0xff] %vm1824, %v1657
    %1838 = vst.msk [vmem:[#allocation3 + $0x138] sm:$0xff] %vm1824, %v1659
    %1839 = vst.msk [vmem:[#allocation3 + $0x150] sm:$0xff] %vm1824, %v1661
    %1840 = vst.msk [vmem:[#allocation3 + $0x168] sm:$0xff] %vm1824, %v1663
    %1841 = vst.msk [vmem:[#allocation3 + $0x180] sm:$0xff] %vm1824, %v1665
    %1842 = vst.msk [vmem:[#allocation3 + $0x198] sm:$0xff] %vm1824, %v1667
    %1843 = vst.msk [vmem:[#allocation3 + $0x1b0] sm:$0xff] %vm1824, %v1669
    %1844 = vst.msk [vmem:[#allocation3 + $0x1c8] sm:$0xff] %vm1824, %v1671
    %1845 = vst.msk [vmem:[#allocation3 + $0x1e0] sm:$0xff] %vm1824, %v1673
    %1846 = vst.msk [vmem:[#allocation3 + $0x1f8] sm:$0xff] %vm1824, %v1675
    %1847 = vst.msk [vmem:[#allocation3 + $0x210] sm:$0xff] %vm1824, %v1677
    %1848 = vst.msk [vmem:[#allocation3 + $0x228] sm:$0xff] %vm1824, %v1679
    %1849 = vst.msk [vmem:[#allocation3 + $0x240] sm:$0xff] %vm1824, %v1681
    %1850 = vst.msk [vmem:[#allocation3 + $0x258] sm:$0xff] %vm1824, %v1683
    %1851 = vst.msk [vmem:[#allocation3 + $0x270] sm:$0xff] %vm1824, %v1685
    %1852 = vst.msk [vmem:[#allocation3 + $0x288] sm:$0xff] %vm1824, %v1687
    %1853 = vst.msk [vmem:[#allocation3 + $0x2a0] sm:$0xff] %vm1824, %v1689
    %1854 = vst.msk [vmem:[#allocation3 + $0x2b8] sm:$0xff] %vm1824, %v1691
    %1855 = vst.msk [vmem:[#allocation3 + $0x2d0] sm:$0xff] %vm1824, %v1693
    %1856 = vst.msk [vmem:[#allocation3 + $0x2e8] sm:$0xff] %vm1824, %v1695
    %1857 = vst.msk [vmem:[#allocation3 + $0x300] sm:$0xff] %vm1824, %v1697
    %1858 = vst.msk [vmem:[#allocation3 + $0x318] sm:$0xff] %vm1824, %v1699
    %1859 = vst.msk [vmem:[#allocation3 + $0x330] sm:$0xff] %vm1824, %v1701
    %1860 = vst.msk [vmem:[#allocation3 + $0x348] sm:$0xff] %vm1824, %v1703
    %1861 = vst.msk [vmem:[#allocation3 + $0x360] sm:$0xff] %vm1824, %v1705
    %1862 = vst.msk [vmem:[#allocation3 + $0x378] sm:$0xff] %vm1824, %v1707
    %1863 = vst.msk [vmem:[#allocation3 + $0x390] sm:$0xff] %vm1824, %v1709
    %1864 = vst.msk [vmem:[#allocation3 + $0x3a8] sm:$0xff] %vm1824, %v1711
    %1865 = vst.msk [vmem:[#allocation3 + $0x3c0] sm:$0xff] %vm1824, %v1713
    %1866 = vst.msk [vmem:[#allocation3 + $0x3d8] sm:$0xff] %vm1824, %v1715
    %1867 = vst.msk [vmem:[#allocation3 + $0x3f0] sm:$0xff] %vm1824, %v1717
    %1868 = vst.msk [vmem:[#allocation3 + $0x408] sm:$0xff] %vm1824, %v1719
    %1869 = vst.msk [vmem:[#allocation3 + $0x420] sm:$0xff] %vm1824, %v1721
    %1870 = vst.msk [vmem:[#allocation3 + $0x438] sm:$0xff] %vm1824, %v1723
    %1871 = vst.msk [vmem:[#allocation3 + $0x450] sm:$0xff] %vm1824, %v1725
    %1872 = vst.msk [vmem:[#allocation3 + $0x468] sm:$0xff] %vm1824, %v1727
    %1873 = vst.msk [vmem:[#allocation3 + $0x480] sm:$0xff] %vm1824, %v1729
    %1874 = vst.msk [vmem:[#allocation3 + $0x498] sm:$0xff] %vm1824, %v1731
    %1875 = vst.msk [vmem:[#allocation3 + $0x4b0] sm:$0xff] %vm1824, %v1733
    %1876 = vst.msk [vmem:[#allocation3 + $0x4c8] sm:$0xff] %vm1824, %v1735
    %1877 = vst.msk [vmem:[#allocation3 + $0x4e0] sm:$0xff] %vm1824, %v1737
    %1878 = vst.msk [vmem:[#allocation3 + $0x4f8] sm:$0xff] %vm1824, %v1739
    %1879 = vst.msk [vmem:[#allocation3 + $0x510] sm:$0xff] %vm1824, %v1741
    %1880 = vst.msk [vmem:[#allocation3 + $0x528] sm:$0xff] %vm1824, %v1743
    %1881 = vst.msk [vmem:[#allocation3 + $0x540] sm:$0xff] %vm1824, %v1745
    %1882 = vst.msk [vmem:[#allocation3 + $0x558] sm:$0xff] %vm1824, %v1747
    %1883 = vst.msk [vmem:[#allocation3 + $0x570] sm:$0xff] %vm1824, %v1749
    %1884 = vst.msk [vmem:[#allocation3 + $0x588] sm:$0xff] %vm1824, %v1751
    %1885 = vst.msk [vmem:[#allocation3 + $0x5a0] sm:$0xff] %vm1824, %v1753
    %1886 = vst.msk [vmem:[#allocation3 + $0x5b8] sm:$0xff] %vm1824, %v1755
    %1887 = vst.msk [vmem:[#allocation3 + $0x5d0] sm:$0xff] %vm1824, %v1757
    %1888 = vst.msk [vmem:[#allocation3 + $0x5e8] sm:$0xff] %vm1824, %v1759
    %v1889 = vld [vmem:[%s926] sm:$0xff]
    %v1890 = vld [vmem:[%s926 + $0x8] sm:$0xff]
    %v1891 = vld [vmem:[%s926 + $0x18] sm:$0xff]
    %v1892 = vld [vmem:[%s926 + $0x20] sm:$0xff]
    %v1893 = vld [vmem:[%s926 + $0x30] sm:$0xff]
    %v1894 = vld [vmem:[%s926 + $0x38] sm:$0xff]
    %v1895 = vld [vmem:[%s926 + $0x48] sm:$0xff]
    %v1896 = vld [vmem:[%s926 + $0x50] sm:$0xff]
    %v1897 = vld [vmem:[%s926 + $0x60] sm:$0xff]
    %v1898 = vld [vmem:[%s926 + $0x68] sm:$0xff]
    %v1899 = vld [vmem:[%s926 + $0x78] sm:$0xff]
    %v1900 = vld [vmem:[%s926 + $0x80] sm:$0xff]
    %v1901 = vld [vmem:[%s926 + $0x90] sm:$0xff]
    %v1902 = vld [vmem:[%s926 + $0x98] sm:$0xff]
    %v1903 = vld [vmem:[%s926 + $0xa8] sm:$0xff]
    %v1904 = vld [vmem:[%s926 + $0xb0] sm:$0xff]
    %v1905 = vld [vmem:[%s926 + $0xc0] sm:$0xff]
    %v1906 = vld [vmem:[%s926 + $0xc8] sm:$0xff]
    %v1907 = vld [vmem:[%s926 + $0xd8] sm:$0xff]
    %v1908 = vld [vmem:[%s926 + $0xe0] sm:$0xff]
    %v1909 = vld [vmem:[%s926 + $0xf0] sm:$0xff]
    %v1910 = vld [vmem:[%s926 + $0xf8] sm:$0xff]
    %v1911 = vld [vmem:[%s926 + $0x108] sm:$0xff]
    %v1912 = vld [vmem:[%s926 + $0x110] sm:$0xff]
    %v1913 = vld [vmem:[%s926 + $0x120] sm:$0xff]
    %v1914 = vld [vmem:[%s926 + $0x128] sm:$0xff]
    %v1915 = vld [vmem:[%s926 + $0x138] sm:$0xff]
    %v1916 = vld [vmem:[%s926 + $0x140] sm:$0xff]
    %v1917 = vld [vmem:[%s926 + $0x150] sm:$0xff]
    %v1918 = vld [vmem:[%s926 + $0x158] sm:$0xff]
    %v1919 = vld [vmem:[%s926 + $0x168] sm:$0xff]
    %v1920 = vld [vmem:[%s926 + $0x170] sm:$0xff]
    %v1921 = vld [vmem:[%s926 + $0x1b0] sm:$0xff]
    %v1922 = vld [vmem:[%s926 + $0x1b8] sm:$0xff]
    %v1923 = vld [vmem:[%s926 + $0x1c8] sm:$0xff]
    %v1924 = vld [vmem:[%s926 + $0x1d0] sm:$0xff]
    %v1925 = vld [vmem:[%s926 + $0x1e0] sm:$0xff]
    %v1926 = vld [vmem:[%s926 + $0x1e8] sm:$0xff]
    %v1927 = vld [vmem:[%s926 + $0x1f8] sm:$0xff]
    %v1928 = vld [vmem:[%s926 + $0x200] sm:$0xff]
    %v1929 = vld [vmem:[%s926 + $0x210] sm:$0xff]
    %v1930 = vld [vmem:[%s926 + $0x218] sm:$0xff]
    %v1931 = vld [vmem:[%s926 + $0x228] sm:$0xff]
    %v1932 = vld [vmem:[%s926 + $0x230] sm:$0xff]
    %v1933 = vld [vmem:[%s926 + $0x240] sm:$0xff]
    %v1934 = vld [vmem:[%s926 + $0x248] sm:$0xff]
    %v1935 = vld [vmem:[%s926 + $0x258] sm:$0xff]
    %v1936 = vld [vmem:[%s926 + $0x260] sm:$0xff]
    %v1937 = vld [vmem:[%s926 + $0x270] sm:$0xff]
    %v1938 = vld [vmem:[%s926 + $0x278] sm:$0xff]
    %v1939 = vld [vmem:[%s926 + $0x288] sm:$0xff]
    %v1940 = vld [vmem:[%s926 + $0x290] sm:$0xff]
    %v1941 = vld [vmem:[%s926 + $0x2a0] sm:$0xff]
    %v1942 = vld [vmem:[%s926 + $0x2a8] sm:$0xff]
    %v1943 = vld [vmem:[%s926 + $0x2b8] sm:$0xff]
    %v1944 = vld [vmem:[%s926 + $0x2c0] sm:$0xff]
    %v1945 = vld [vmem:[%s926 + $0x2d0] sm:$0xff]
    %v1946 = vld [vmem:[%s926 + $0x2d8] sm:$0xff]
    %v1947 = vld [vmem:[%s926 + $0x2e8] sm:$0xff]
    %v1948 = vld [vmem:[%s926 + $0x2f0] sm:$0xff]
    %v1949 = vld [vmem:[%s926 + $0x300] sm:$0xff]
    %v1950 = vld [vmem:[%s926 + $0x308] sm:$0xff]
    %v1951 = vld [vmem:[%s926 + $0x318] sm:$0xff]
    %v1952 = vld [vmem:[%s926 + $0x320] sm:$0xff]
    %2017 = vrot.lane.b32.xlu0 %v1889, 96
    %v2018 = vpop.permute.xlu0 %2017
    %2019 = vrot.lane.b32.xlu0 %v1890, 96
    %v2020 = vpop.permute.xlu0 %2019
    %2021 = vrot.lane.b32.xlu0 %v1891, 96
    %v2022 = vpop.permute.xlu0 %2021
    %2023 = vrot.lane.b32.xlu0 %v1892, 96
    %v2024 = vpop.permute.xlu0 %2023
    %2025 = vrot.lane.b32.xlu0 %v1893, 96
    %v2026 = vpop.permute.xlu0 %2025
    %2027 = vrot.lane.b32.xlu0 %v1894, 96
    %v2028 = vpop.permute.xlu0 %2027
    %2029 = vrot.lane.b32.xlu0 %v1895, 96
    %v2030 = vpop.permute.xlu0 %2029
    %2031 = vrot.lane.b32.xlu0 %v1896, 96
    %v2032 = vpop.permute.xlu0 %2031
    %2033 = vrot.lane.b32.xlu0 %v1897, 96
    %v2034 = vpop.permute.xlu0 %2033
    %2035 = vrot.lane.b32.xlu0 %v1898, 96
    %v2036 = vpop.permute.xlu0 %2035
    %2037 = vrot.lane.b32.xlu0 %v1899, 96
    %v2038 = vpop.permute.xlu0 %2037
    %2039 = vrot.lane.b32.xlu0 %v1900, 96
    %v2040 = vpop.permute.xlu0 %2039
    %2041 = vrot.lane.b32.xlu0 %v1901, 96
    %v2042 = vpop.permute.xlu0 %2041
    %2043 = vrot.lane.b32.xlu0 %v1902, 96
    %v2044 = vpop.permute.xlu0 %2043
    %2045 = vrot.lane.b32.xlu0 %v1903, 96
    %v2046 = vpop.permute.xlu0 %2045
    %2047 = vrot.lane.b32.xlu0 %v1904, 96
    %v2048 = vpop.permute.xlu0 %2047
    %2049 = vrot.lane.b32.xlu0 %v1905, 96
    %v2050 = vpop.permute.xlu0 %2049
    %2051 = vrot.lane.b32.xlu0 %v1906, 96
    %v2052 = vpop.permute.xlu0 %2051
    %2053 = vrot.lane.b32.xlu0 %v1907, 96
    %v2054 = vpop.permute.xlu0 %2053
    %2055 = vrot.lane.b32.xlu0 %v1908, 96
    %v2056 = vpop.permute.xlu0 %2055
    %2057 = vrot.lane.b32.xlu0 %v1909, 96
    %v2058 = vpop.permute.xlu0 %2057
    %2059 = vrot.lane.b32.xlu0 %v1910, 96
    %v2060 = vpop.permute.xlu0 %2059
    %2061 = vrot.lane.b32.xlu0 %v1911, 96
    %v2062 = vpop.permute.xlu0 %2061
    %2063 = vrot.lane.b32.xlu0 %v1912, 96
    %v2064 = vpop.permute.xlu0 %2063
    %2065 = vrot.lane.b32.xlu0 %v1913, 96
    %v2066 = vpop.permute.xlu0 %2065
    %2067 = vrot.lane.b32.xlu0 %v1914, 96
    %v2068 = vpop.permute.xlu0 %2067
    %2069 = vrot.lane.b32.xlu0 %v1915, 96
    %v2070 = vpop.permute.xlu0 %2069
    %2071 = vrot.lane.b32.xlu0 %v1916, 96
    %v2072 = vpop.permute.xlu0 %2071
    %2073 = vrot.lane.b32.xlu0 %v1917, 96
    %v2074 = vpop.permute.xlu0 %2073
    %2075 = vrot.lane.b32.xlu0 %v1918, 96
    %v2076 = vpop.permute.xlu0 %2075
    %2077 = vrot.lane.b32.xlu0 %v1919, 96
    %v2078 = vpop.permute.xlu0 %2077
    %2079 = vrot.lane.b32.xlu0 %v1920, 96
    %v2080 = vpop.permute.xlu0 %2079
    %2081 = vrot.lane.b32.xlu0 %v1921, 96
    %v2082 = vpop.permute.xlu0 %2081
    %2083 = vrot.lane.b32.xlu0 %v1922, 96
    %v2084 = vpop.permute.xlu0 %2083
    %2085 = vrot.lane.b32.xlu0 %v1923, 96
    %v2086 = vpop.permute.xlu0 %2085
    %2087 = vrot.lane.b32.xlu0 %v1924, 96
    %v2088 = vpop.permute.xlu0 %2087
    %2089 = vrot.lane.b32.xlu0 %v1925, 96
    %v2090 = vpop.permute.xlu0 %2089
    %2091 = vrot.lane.b32.xlu0 %v1926, 96
    %v2092 = vpop.permute.xlu0 %2091
    %2093 = vrot.lane.b32.xlu0 %v1927, 96
    %v2094 = vpop.permute.xlu0 %2093
    %2095 = vrot.lane.b32.xlu0 %v1928, 96
    %v2096 = vpop.permute.xlu0 %2095
    %2097 = vrot.lane.b32.xlu0 %v1929, 96
    %v2098 = vpop.permute.xlu0 %2097
    %2099 = vrot.lane.b32.xlu0 %v1930, 96
    %v2100 = vpop.permute.xlu0 %2099
    %2101 = vrot.lane.b32.xlu0 %v1931, 96
    %v2102 = vpop.permute.xlu0 %2101
    %2103 = vrot.lane.b32.xlu0 %v1932, 96
    %v2104 = vpop.permute.xlu0 %2103
    %2105 = vrot.lane.b32.xlu0 %v1933, 96
    %v2106 = vpop.permute.xlu0 %2105
    %2107 = vrot.lane.b32.xlu0 %v1934, 96
    %v2108 = vpop.permute.xlu0 %2107
    %2109 = vrot.lane.b32.xlu0 %v1935, 96
    %v2110 = vpop.permute.xlu0 %2109
    %2111 = vrot.lane.b32.xlu0 %v1936, 96
    %v2112 = vpop.permute.xlu0 %2111
    %2113 = vrot.lane.b32.xlu0 %v1937, 96
    %v2114 = vpop.permute.xlu0 %2113
    %2115 = vrot.lane.b32.xlu0 %v1938, 96
    %v2116 = vpop.permute.xlu0 %2115
    %2117 = vrot.lane.b32.xlu0 %v1939, 96
    %v2118 = vpop.permute.xlu0 %2117
    %2119 = vrot.lane.b32.xlu0 %v1940, 96
    %v2120 = vpop.permute.xlu0 %2119
    %2121 = vrot.lane.b32.xlu0 %v1941, 96
    %v2122 = vpop.permute.xlu0 %2121
    %2123 = vrot.lane.b32.xlu0 %v1942, 96
    %v2124 = vpop.permute.xlu0 %2123
    %2125 = vrot.lane.b32.xlu0 %v1943, 96
    %v2126 = vpop.permute.xlu0 %2125
    %2127 = vrot.lane.b32.xlu0 %v1944, 96
    %v2128 = vpop.permute.xlu0 %2127
    %2129 = vrot.lane.b32.xlu0 %v1945, 96
    %v2130 = vpop.permute.xlu0 %2129
    %2131 = vrot.lane.b32.xlu0 %v1946, 96
    %v2132 = vpop.permute.xlu0 %2131
    %2133 = vrot.lane.b32.xlu0 %v1947, 96
    %v2134 = vpop.permute.xlu0 %2133
    %2135 = vrot.lane.b32.xlu0 %v1948, 96
    %v2136 = vpop.permute.xlu0 %2135
    %2137 = vrot.lane.b32.xlu0 %v1949, 96
    %v2138 = vpop.permute.xlu0 %2137
    %2139 = vrot.lane.b32.xlu0 %v1950, 96
    %v2140 = vpop.permute.xlu0 %2139
    %2141 = vrot.lane.b32.xlu0 %v1951, 96
    %v2142 = vpop.permute.xlu0 %2141
    %2143 = vrot.lane.b32.xlu0 %v1952, 96
    %v2144 = vpop.permute.xlu0 %2143
    %vm2209 = vcmask 1048320
    %2210 = vst.msk [vmem:[#allocation3] sm:$0xff] %vm2209, %v2018
    %2211 = vst.msk [vmem:[#allocation3 + $0x18] sm:$0xff] %vm2209, %v2020
    %2212 = vst.msk [vmem:[#allocation3 + $0x30] sm:$0xff] %vm2209, %v2022
    %2213 = vst.msk [vmem:[#allocation3 + $0x48] sm:$0xff] %vm2209, %v2024
    %2214 = vst.msk [vmem:[#allocation3 + $0x60] sm:$0xff] %vm2209, %v2026
    %2215 = vst.msk [vmem:[#allocation3 + $0x78] sm:$0xff] %vm2209, %v2028
    %2216 = vst.msk [vmem:[#allocation3 + $0x90] sm:$0xff] %vm2209, %v2030
    %2217 = vst.msk [vmem:[#allocation3 + $0xa8] sm:$0xff] %vm2209, %v2032
    %2218 = vst.msk [vmem:[#allocation3 + $0xc0] sm:$0xff] %vm2209, %v2034
    %2219 = vst.msk [vmem:[#allocation3 + $0xd8] sm:$0xff] %vm2209, %v2036
    %2220 = vst.msk [vmem:[#allocation3 + $0xf0] sm:$0xff] %vm2209, %v2038
    %2221 = vst.msk [vmem:[#allocation3 + $0x108] sm:$0xff] %vm2209, %v2040
    %2222 = vst.msk [vmem:[#allocation3 + $0x120] sm:$0xff] %vm2209, %v2042
    %2223 = vst.msk [vmem:[#allocation3 + $0x138] sm:$0xff] %vm2209, %v2044
    %2224 = vst.msk [vmem:[#allocation3 + $0x150] sm:$0xff] %vm2209, %v2046
    %2225 = vst.msk [vmem:[#allocation3 + $0x168] sm:$0xff] %vm2209, %v2048
    %2226 = vst.msk [vmem:[#allocation3 + $0x180] sm:$0xff] %vm2209, %v2050
    %2227 = vst.msk [vmem:[#allocation3 + $0x198] sm:$0xff] %vm2209, %v2052
    %2228 = vst.msk [vmem:[#allocation3 + $0x1b0] sm:$0xff] %vm2209, %v2054
    %2229 = vst.msk [vmem:[#allocation3 + $0x1c8] sm:$0xff] %vm2209, %v2056
    %2230 = vst.msk [vmem:[#allocation3 + $0x1e0] sm:$0xff] %vm2209, %v2058
    %2231 = vst.msk [vmem:[#allocation3 + $0x1f8] sm:$0xff] %vm2209, %v2060
    %2232 = vst.msk [vmem:[#allocation3 + $0x210] sm:$0xff] %vm2209, %v2062
    %2233 = vst.msk [vmem:[#allocation3 + $0x228] sm:$0xff] %vm2209, %v2064
    %2234 = vst.msk [vmem:[#allocation3 + $0x240] sm:$0xff] %vm2209, %v2066
    %2235 = vst.msk [vmem:[#allocation3 + $0x258] sm:$0xff] %vm2209, %v2068
    %2236 = vst.msk [vmem:[#allocation3 + $0x270] sm:$0xff] %vm2209, %v2070
    %2237 = vst.msk [vmem:[#allocation3 + $0x288] sm:$0xff] %vm2209, %v2072
    %2238 = vst.msk [vmem:[#allocation3 + $0x2a0] sm:$0xff] %vm2209, %v2074
    %2239 = vst.msk [vmem:[#allocation3 + $0x2b8] sm:$0xff] %vm2209, %v2076
    %2240 = vst.msk [vmem:[#allocation3 + $0x2d0] sm:$0xff] %vm2209, %v2078
    %2241 = vst.msk [vmem:[#allocation3 + $0x2e8] sm:$0xff] %vm2209, %v2080
    %2242 = vst.msk [vmem:[#allocation3 + $0x300] sm:$0xff] %vm2209, %v2082
    %2243 = vst.msk [vmem:[#allocation3 + $0x318] sm:$0xff] %vm2209, %v2084
    %2244 = vst.msk [vmem:[#allocation3 + $0x330] sm:$0xff] %vm2209, %v2086
    %2245 = vst.msk [vmem:[#allocation3 + $0x348] sm:$0xff] %vm2209, %v2088
    %2246 = vst.msk [vmem:[#allocation3 + $0x360] sm:$0xff] %vm2209, %v2090
    %2247 = vst.msk [vmem:[#allocation3 + $0x378] sm:$0xff] %vm2209, %v2092
    %2248 = vst.msk [vmem:[#allocation3 + $0x390] sm:$0xff] %vm2209, %v2094
    %2249 = vst.msk [vmem:[#allocation3 + $0x3a8] sm:$0xff] %vm2209, %v2096
    %2250 = vst.msk [vmem:[#allocation3 + $0x3c0] sm:$0xff] %vm2209, %v2098
    %2251 = vst.msk [vmem:[#allocation3 + $0x3d8] sm:$0xff] %vm2209, %v2100
    %2252 = vst.msk [vmem:[#allocation3 + $0x3f0] sm:$0xff] %vm2209, %v2102
    %2253 = vst.msk [vmem:[#allocation3 + $0x408] sm:$0xff] %vm2209, %v2104
    %2254 = vst.msk [vmem:[#allocation3 + $0x420] sm:$0xff] %vm2209, %v2106
    %2255 = vst.msk [vmem:[#allocation3 + $0x438] sm:$0xff] %vm2209, %v2108
    %2256 = vst.msk [vmem:[#allocation3 + $0x450] sm:$0xff] %vm2209, %v2110
    %2257 = vst.msk [vmem:[#allocation3 + $0x468] sm:$0xff] %vm2209, %v2112
    %2258 = vst.msk [vmem:[#allocation3 + $0x480] sm:$0xff] %vm2209, %v2114
    %2259 = vst.msk [vmem:[#allocation3 + $0x498] sm:$0xff] %vm2209, %v2116
    %2260 = vst.msk [vmem:[#allocation3 + $0x4b0] sm:$0xff] %vm2209, %v2118
    %2261 = vst.msk [vmem:[#allocation3 + $0x4c8] sm:$0xff] %vm2209, %v2120
    %2262 = vst.msk [vmem:[#allocation3 + $0x4e0] sm:$0xff] %vm2209, %v2122
    %2263 = vst.msk [vmem:[#allocation3 + $0x4f8] sm:$0xff] %vm2209, %v2124
    %2264 = vst.msk [vmem:[#allocation3 + $0x510] sm:$0xff] %vm2209, %v2126
    %2265 = vst.msk [vmem:[#allocation3 + $0x528] sm:$0xff] %vm2209, %v2128
    %2266 = vst.msk [vmem:[#allocation3 + $0x540] sm:$0xff] %vm2209, %v2130
    %2267 = vst.msk [vmem:[#allocation3 + $0x558] sm:$0xff] %vm2209, %v2132
    %2268 = vst.msk [vmem:[#allocation3 + $0x570] sm:$0xff] %vm2209, %v2134
    %2269 = vst.msk [vmem:[#allocation3 + $0x588] sm:$0xff] %vm2209, %v2136
    %2270 = vst.msk [vmem:[#allocation3 + $0x5a0] sm:$0xff] %vm2209, %v2138
    %2271 = vst.msk [vmem:[#allocation3 + $0x5b8] sm:$0xff] %vm2209, %v2140
    %2272 = vst.msk [vmem:[#allocation3 + $0x5d0] sm:$0xff] %vm2209, %v2142
    %2273 = vst.msk [vmem:[#allocation3 + $0x5e8] sm:$0xff] %vm2209, %v2144
    %v2274 = vld [vmem:[%s926 + $0x1] sm:$0xff]
    %v2275 = vld [vmem:[%s926 + $0x9] sm:$0xff]
    %v2276 = vld [vmem:[%s926 + $0x19] sm:$0xff]
    %v2277 = vld [vmem:[%s926 + $0x21] sm:$0xff]
    %v2278 = vld [vmem:[%s926 + $0x31] sm:$0xff]
    %v2279 = vld [vmem:[%s926 + $0x39] sm:$0xff]
    %v2280 = vld [vmem:[%s926 + $0x49] sm:$0xff]
    %v2281 = vld [vmem:[%s926 + $0x51] sm:$0xff]
    %v2282 = vld [vmem:[%s926 + $0x61] sm:$0xff]
    %v2283 = vld [vmem:[%s926 + $0x69] sm:$0xff]
    %v2284 = vld [vmem:[%s926 + $0x79] sm:$0xff]
    %v2285 = vld [vmem:[%s926 + $0x81] sm:$0xff]
    %v2286 = vld [vmem:[%s926 + $0x91] sm:$0xff]
    %v2287 = vld [vmem:[%s926 + $0x99] sm:$0xff]
    %v2288 = vld [vmem:[%s926 + $0xa9] sm:$0xff]
    %v2289 = vld [vmem:[%s926 + $0xb1] sm:$0xff]
    %v2290 = vld [vmem:[%s926 + $0xc1] sm:$0xff]
    %v2291 = vld [vmem:[%s926 + $0xc9] sm:$0xff]
    %v2292 = vld [vmem:[%s926 + $0xd9] sm:$0xff]
    %v2293 = vld [vmem:[%s926 + $0xe1] sm:$0xff]
    %v2294 = vld [vmem:[%s926 + $0xf1] sm:$0xff]
    %v2295 = vld [vmem:[%s926 + $0xf9] sm:$0xff]
    %v2296 = vld [vmem:[%s926 + $0x109] sm:$0xff]
    %v2297 = vld [vmem:[%s926 + $0x111] sm:$0xff]
    %v2298 = vld [vmem:[%s926 + $0x121] sm:$0xff]
    %v2299 = vld [vmem:[%s926 + $0x129] sm:$0xff]
    %v2300 = vld [vmem:[%s926 + $0x139] sm:$0xff]
    %v2301 = vld [vmem:[%s926 + $0x141] sm:$0xff]
    %v2302 = vld [vmem:[%s926 + $0x151] sm:$0xff]
    %v2303 = vld [vmem:[%s926 + $0x159] sm:$0xff]
    %v2304 = vld [vmem:[%s926 + $0x169] sm:$0xff]
    %v2305 = vld [vmem:[%s926 + $0x171] sm:$0xff]
    %v2306 = vld [vmem:[%s926 + $0x1b1] sm:$0xff]
    %v2307 = vld [vmem:[%s926 + $0x1b9] sm:$0xff]
    %v2308 = vld [vmem:[%s926 + $0x1c9] sm:$0xff]
    %v2309 = vld [vmem:[%s926 + $0x1d1] sm:$0xff]
    %v2310 = vld [vmem:[%s926 + $0x1e1] sm:$0xff]
    %v2311 = vld [vmem:[%s926 + $0x1e9] sm:$0xff]
    %v2312 = vld [vmem:[%s926 + $0x1f9] sm:$0xff]
    %v2313 = vld [vmem:[%s926 + $0x201] sm:$0xff]
    %v2314 = vld [vmem:[%s926 + $0x211] sm:$0xff]
    %v2315 = vld [vmem:[%s926 + $0x219] sm:$0xff]
    %v2316 = vld [vmem:[%s926 + $0x229] sm:$0xff]
    %v2317 = vld [vmem:[%s926 + $0x231] sm:$0xff]
    %v2318 = vld [vmem:[%s926 + $0x241] sm:$0xff]
    %v2319 = vld [vmem:[%s926 + $0x249] sm:$0xff]
    %v2320 = vld [vmem:[%s926 + $0x259] sm:$0xff]
    %v2321 = vld [vmem:[%s926 + $0x261] sm:$0xff]
    %v2322 = vld [vmem:[%s926 + $0x271] sm:$0xff]
    %v2323 = vld [vmem:[%s926 + $0x279] sm:$0xff]
    %v2324 = vld [vmem:[%s926 + $0x289] sm:$0xff]
    %v2325 = vld [vmem:[%s926 + $0x291] sm:$0xff]
    %v2326 = vld [vmem:[%s926 + $0x2a1] sm:$0xff]
    %v2327 = vld [vmem:[%s926 + $0x2a9] sm:$0xff]
    %v2328 = vld [vmem:[%s926 + $0x2b9] sm:$0xff]
    %v2329 = vld [vmem:[%s926 + $0x2c1] sm:$0xff]
    %v2330 = vld [vmem:[%s926 + $0x2d1] sm:$0xff]
    %v2331 = vld [vmem:[%s926 + $0x2d9] sm:$0xff]
    %v2332 = vld [vmem:[%s926 + $0x2e9] sm:$0xff]
    %v2333 = vld [vmem:[%s926 + $0x2f1] sm:$0xff]
    %v2334 = vld [vmem:[%s926 + $0x301] sm:$0xff]
    %v2335 = vld [vmem:[%s926 + $0x309] sm:$0xff]
    %v2336 = vld [vmem:[%s926 + $0x319] sm:$0xff]
    %v2337 = vld [vmem:[%s926 + $0x321] sm:$0xff]
    %2338 = vst.msk [vmem:[#allocation3 + $0x8] sm:$0xff] %vm74, %v2274
    %2339 = vst.msk [vmem:[#allocation3 + $0x20] sm:$0xff] %vm74, %v2275
    %2340 = vst.msk [vmem:[#allocation3 + $0x38] sm:$0xff] %vm74, %v2276
    %2341 = vst.msk [vmem:[#allocation3 + $0x50] sm:$0xff] %vm74, %v2277
    %2342 = vst.msk [vmem:[#allocation3 + $0x68] sm:$0xff] %vm74, %v2278
    %2343 = vst.msk [vmem:[#allocation3 + $0x80] sm:$0xff] %vm74, %v2279
    %2344 = vst.msk [vmem:[#allocation3 + $0x98] sm:$0xff] %vm74, %v2280
    %2345 = vst.msk [vmem:[#allocation3 + $0xb0] sm:$0xff] %vm74, %v2281
    %2346 = vst.msk [vmem:[#allocation3 + $0xc8] sm:$0xff] %vm74, %v2282
    %2347 = vst.msk [vmem:[#allocation3 + $0xe0] sm:$0xff] %vm74, %v2283
    %2348 = vst.msk [vmem:[#allocation3 + $0xf8] sm:$0xff] %vm74, %v2284
    %2349 = vst.msk [vmem:[#allocation3 + $0x110] sm:$0xff] %vm74, %v2285
    %2350 = vst.msk [vmem:[#allocation3 + $0x128] sm:$0xff] %vm74, %v2286
    %2351 = vst.msk [vmem:[#allocation3 + $0x140] sm:$0xff] %vm74, %v2287
    %2352 = vst.msk [vmem:[#allocation3 + $0x158] sm:$0xff] %vm74, %v2288
    %2353 = vst.msk [vmem:[#allocation3 + $0x170] sm:$0xff] %vm74, %v2289
    %2354 = vst.msk [vmem:[#allocation3 + $0x188] sm:$0xff] %vm74, %v2290
    %2355 = vst.msk [vmem:[#allocation3 + $0x1a0] sm:$0xff] %vm74, %v2291
    %2356 = vst.msk [vmem:[#allocation3 + $0x1b8] sm:$0xff] %vm74, %v2292
    %2357 = vst.msk [vmem:[#allocation3 + $0x1d0] sm:$0xff] %vm74, %v2293
    %2358 = vst.msk [vmem:[#allocation3 + $0x1e8] sm:$0xff] %vm74, %v2294
    %2359 = vst.msk [vmem:[#allocation3 + $0x200] sm:$0xff] %vm74, %v2295
    %2360 = vst.msk [vmem:[#allocation3 + $0x218] sm:$0xff] %vm74, %v2296
    %2361 = vst.msk [vmem:[#allocation3 + $0x230] sm:$0xff] %vm74, %v2297
    %2362 = vst.msk [vmem:[#allocation3 + $0x248] sm:$0xff] %vm74, %v2298
    %2363 = vst.msk [vmem:[#allocation3 + $0x260] sm:$0xff] %vm74, %v2299
    %2364 = vst.msk [vmem:[#allocation3 + $0x278] sm:$0xff] %vm74, %v2300
    %2365 = vst.msk [vmem:[#allocation3 + $0x290] sm:$0xff] %vm74, %v2301
    %2366 = vst.msk [vmem:[#allocation3 + $0x2a8] sm:$0xff] %vm74, %v2302
    %2367 = vst.msk [vmem:[#allocation3 + $0x2c0] sm:$0xff] %vm74, %v2303
    %2368 = vst.msk [vmem:[#allocation3 + $0x2d8] sm:$0xff] %vm74, %v2304
    %2369 = vst.msk [vmem:[#allocation3 + $0x2f0] sm:$0xff] %vm74, %v2305
    %2370 = vst.msk [vmem:[#allocation3 + $0x308] sm:$0xff] %vm74, %v2306
    %2371 = vst.msk [vmem:[#allocation3 + $0x320] sm:$0xff] %vm74, %v2307
    %2372 = vst.msk [vmem:[#allocation3 + $0x338] sm:$0xff] %vm74, %v2308
    %2373 = vst.msk [vmem:[#allocation3 + $0x350] sm:$0xff] %vm74, %v2309
    %2374 = vst.msk [vmem:[#allocation3 + $0x368] sm:$0xff] %vm74, %v2310
    %2375 = vst.msk [vmem:[#allocation3 + $0x380] sm:$0xff] %vm74, %v2311
    %2376 = vst.msk [vmem:[#allocation3 + $0x398] sm:$0xff] %vm74, %v2312
    %2377 = vst.msk [vmem:[#allocation3 + $0x3b0] sm:$0xff] %vm74, %v2313
    %2378 = vst.msk [vmem:[#allocation3 + $0x3c8] sm:$0xff] %vm74, %v2314
    %2379 = vst.msk [vmem:[#allocation3 + $0x3e0] sm:$0xff] %vm74, %v2315
    %2380 = vst.msk [vmem:[#allocation3 + $0x3f8] sm:$0xff] %vm74, %v2316
    %2381 = vst.msk [vmem:[#allocation3 + $0x410] sm:$0xff] %vm74, %v2317
    %2382 = vst.msk [vmem:[#allocation3 + $0x428] sm:$0xff] %vm74, %v2318
    %2383 = vst.msk [vmem:[#allocation3 + $0x440] sm:$0xff] %vm74, %v2319
    %2384 = vst.msk [vmem:[#allocation3 + $0x458] sm:$0xff] %vm74, %v2320
    %2385 = vst.msk [vmem:[#allocation3 + $0x470] sm:$0xff] %vm74, %v2321
    %2386 = vst.msk [vmem:[#allocation3 + $0x488] sm:$0xff] %vm74, %v2322
    %2387 = vst.msk [vmem:[#allocation3 + $0x4a0] sm:$0xff] %vm74, %v2323
    %2388 = vst.msk [vmem:[#allocation3 + $0x4b8] sm:$0xff] %vm74, %v2324
    %2389 = vst.msk [vmem:[#allocation3 + $0x4d0] sm:$0xff] %vm74, %v2325
    %2390 = vst.msk [vmem:[#allocation3 + $0x4e8] sm:$0xff] %vm74, %v2326
    %2391 = vst.msk [vmem:[#allocation3 + $0x500] sm:$0xff] %vm74, %v2327
    %2392 = vst.msk [vmem:[#allocation3 + $0x518] sm:$0xff] %vm74, %v2328
    %2393 = vst.msk [vmem:[#allocation3 + $0x530] sm:$0xff] %vm74, %v2329
    %2394 = vst.msk [vmem:[#allocation3 + $0x548] sm:$0xff] %vm74, %v2330
    %2395 = vst.msk [vmem:[#allocation3 + $0x560] sm:$0xff] %vm74, %v2331
    %2396 = vst.msk [vmem:[#allocation3 + $0x578] sm:$0xff] %vm74, %v2332
    %2397 = vst.msk [vmem:[#allocation3 + $0x590] sm:$0xff] %vm74, %v2333
    %2398 = vst.msk [vmem:[#allocation3 + $0x5a8] sm:$0xff] %vm74, %v2334
    %2399 = vst.msk [vmem:[#allocation3 + $0x5c0] sm:$0xff] %vm74, %v2335
    %2400 = vst.msk [vmem:[#allocation3 + $0x5d8] sm:$0xff] %vm74, %v2336
    %2401 = vst.msk [vmem:[#allocation3 + $0x5f0] sm:$0xff] %vm74, %v2337
    %v2402 = vld [vmem:[%s926 + $0x2] sm:$0xff]
    %v2403 = vld [vmem:[%s926 + $0xa] sm:$0xff]
    %v2404 = vld [vmem:[%s926 + $0x1a] sm:$0xff]
    %v2405 = vld [vmem:[%s926 + $0x22] sm:$0xff]
    %v2406 = vld [vmem:[%s926 + $0x32] sm:$0xff]
    %v2407 = vld [vmem:[%s926 + $0x3a] sm:$0xff]
    %v2408 = vld [vmem:[%s926 + $0x4a] sm:$0xff]
    %v2409 = vld [vmem:[%s926 + $0x52] sm:$0xff]
    %v2410 = vld [vmem:[%s926 + $0x62] sm:$0xff]
    %v2411 = vld [vmem:[%s926 + $0x6a] sm:$0xff]
    %v2412 = vld [vmem:[%s926 + $0x7a] sm:$0xff]
    %v2413 = vld [vmem:[%s926 + $0x82] sm:$0xff]
    %v2414 = vld [vmem:[%s926 + $0x92] sm:$0xff]
    %v2415 = vld [vmem:[%s926 + $0x9a] sm:$0xff]
    %v2416 = vld [vmem:[%s926 + $0xaa] sm:$0xff]
    %v2417 = vld [vmem:[%s926 + $0xb2] sm:$0xff]
    %v2418 = vld [vmem:[%s926 + $0xc2] sm:$0xff]
    %v2419 = vld [vmem:[%s926 + $0xca] sm:$0xff]
    %v2420 = vld [vmem:[%s926 + $0xda] sm:$0xff]
    %v2421 = vld [vmem:[%s926 + $0xe2] sm:$0xff]
    %v2422 = vld [vmem:[%s926 + $0xf2] sm:$0xff]
    %v2423 = vld [vmem:[%s926 + $0xfa] sm:$0xff]
    %v2424 = vld [vmem:[%s926 + $0x10a] sm:$0xff]
    %v2425 = vld [vmem:[%s926 + $0x112] sm:$0xff]
    %v2426 = vld [vmem:[%s926 + $0x122] sm:$0xff]
    %v2427 = vld [vmem:[%s926 + $0x12a] sm:$0xff]
    %v2428 = vld [vmem:[%s926 + $0x13a] sm:$0xff]
    %v2429 = vld [vmem:[%s926 + $0x142] sm:$0xff]
    %v2430 = vld [vmem:[%s926 + $0x152] sm:$0xff]
    %v2431 = vld [vmem:[%s926 + $0x15a] sm:$0xff]
    %v2432 = vld [vmem:[%s926 + $0x16a] sm:$0xff]
    %v2433 = vld [vmem:[%s926 + $0x172] sm:$0xff]
    %v2434 = vld [vmem:[%s926 + $0x1b2] sm:$0xff]
    %v2435 = vld [vmem:[%s926 + $0x1ba] sm:$0xff]
    %v2436 = vld [vmem:[%s926 + $0x1ca] sm:$0xff]
    %v2437 = vld [vmem:[%s926 + $0x1d2] sm:$0xff]
    %v2438 = vld [vmem:[%s926 + $0x1e2] sm:$0xff]
    %v2439 = vld [vmem:[%s926 + $0x1ea] sm:$0xff]
    %v2440 = vld [vmem:[%s926 + $0x1fa] sm:$0xff]
    %v2441 = vld [vmem:[%s926 + $0x202] sm:$0xff]
    %v2442 = vld [vmem:[%s926 + $0x212] sm:$0xff]
    %v2443 = vld [vmem:[%s926 + $0x21a] sm:$0xff]
    %v2444 = vld [vmem:[%s926 + $0x22a] sm:$0xff]
    %v2445 = vld [vmem:[%s926 + $0x232] sm:$0xff]
    %v2446 = vld [vmem:[%s926 + $0x242] sm:$0xff]
    %v2447 = vld [vmem:[%s926 + $0x24a] sm:$0xff]
    %v2448 = vld [vmem:[%s926 + $0x25a] sm:$0xff]
    %v2449 = vld [vmem:[%s926 + $0x262] sm:$0xff]
    %v2450 = vld [vmem:[%s926 + $0x272] sm:$0xff]
    %v2451 = vld [vmem:[%s926 + $0x27a] sm:$0xff]
    %v2452 = vld [vmem:[%s926 + $0x28a] sm:$0xff]
    %v2453 = vld [vmem:[%s926 + $0x292] sm:$0xff]
    %v2454 = vld [vmem:[%s926 + $0x2a2] sm:$0xff]
    %v2455 = vld [vmem:[%s926 + $0x2aa] sm:$0xff]
    %v2456 = vld [vmem:[%s926 + $0x2ba] sm:$0xff]
    %v2457 = vld [vmem:[%s926 + $0x2c2] sm:$0xff]
    %v2458 = vld [vmem:[%s926 + $0x2d2] sm:$0xff]
    %v2459 = vld [vmem:[%s926 + $0x2da] sm:$0xff]
    %v2460 = vld [vmem:[%s926 + $0x2ea] sm:$0xff]
    %v2461 = vld [vmem:[%s926 + $0x2f2] sm:$0xff]
    %v2462 = vld [vmem:[%s926 + $0x302] sm:$0xff]
    %v2463 = vld [vmem:[%s926 + $0x30a] sm:$0xff]
    %v2464 = vld [vmem:[%s926 + $0x31a] sm:$0xff]
    %v2465 = vld [vmem:[%s926 + $0x322] sm:$0xff]
    %2530 = vrot.lane.b32.xlu0 %v2402, 32
    %v2531 = vpop.permute.xlu0 %2530
    %2532 = vrot.lane.b32.xlu0 %v2403, 32
    %v2533 = vpop.permute.xlu0 %2532
    %2534 = vrot.lane.b32.xlu0 %v2404, 32
    %v2535 = vpop.permute.xlu0 %2534
    %2536 = vrot.lane.b32.xlu0 %v2405, 32
    %v2537 = vpop.permute.xlu0 %2536
    %2538 = vrot.lane.b32.xlu0 %v2406, 32
    %v2539 = vpop.permute.xlu0 %2538
    %2540 = vrot.lane.b32.xlu0 %v2407, 32
    %v2541 = vpop.permute.xlu0 %2540
    %2542 = vrot.lane.b32.xlu0 %v2408, 32
    %v2543 = vpop.permute.xlu0 %2542
    %2544 = vrot.lane.b32.xlu0 %v2409, 32
    %v2545 = vpop.permute.xlu0 %2544
    %2546 = vrot.lane.b32.xlu0 %v2410, 32
    %v2547 = vpop.permute.xlu0 %2546
    %2548 = vrot.lane.b32.xlu0 %v2411, 32
    %v2549 = vpop.permute.xlu0 %2548
    %2550 = vrot.lane.b32.xlu0 %v2412, 32
    %v2551 = vpop.permute.xlu0 %2550
    %2552 = vrot.lane.b32.xlu0 %v2413, 32
    %v2553 = vpop.permute.xlu0 %2552
    %2554 = vrot.lane.b32.xlu0 %v2414, 32
    %v2555 = vpop.permute.xlu0 %2554
    %2556 = vrot.lane.b32.xlu0 %v2415, 32
    %v2557 = vpop.permute.xlu0 %2556
    %2558 = vrot.lane.b32.xlu0 %v2416, 32
    %v2559 = vpop.permute.xlu0 %2558
    %2560 = vrot.lane.b32.xlu0 %v2417, 32
    %v2561 = vpop.permute.xlu0 %2560
    %2562 = vrot.lane.b32.xlu0 %v2418, 32
    %v2563 = vpop.permute.xlu0 %2562
    %2564 = vrot.lane.b32.xlu0 %v2419, 32
    %v2565 = vpop.permute.xlu0 %2564
    %2566 = vrot.lane.b32.xlu0 %v2420, 32
    %v2567 = vpop.permute.xlu0 %2566
    %2568 = vrot.lane.b32.xlu0 %v2421, 32
    %v2569 = vpop.permute.xlu0 %2568
    %2570 = vrot.lane.b32.xlu0 %v2422, 32
    %v2571 = vpop.permute.xlu0 %2570
    %2572 = vrot.lane.b32.xlu0 %v2423, 32
    %v2573 = vpop.permute.xlu0 %2572
    %2574 = vrot.lane.b32.xlu0 %v2424, 32
    %v2575 = vpop.permute.xlu0 %2574
    %2576 = vrot.lane.b32.xlu0 %v2425, 32
    %v2577 = vpop.permute.xlu0 %2576
    %2578 = vrot.lane.b32.xlu0 %v2426, 32
    %v2579 = vpop.permute.xlu0 %2578
    %2580 = vrot.lane.b32.xlu0 %v2427, 32
    %v2581 = vpop.permute.xlu0 %2580
    %2582 = vrot.lane.b32.xlu0 %v2428, 32
    %v2583 = vpop.permute.xlu0 %2582
    %2584 = vrot.lane.b32.xlu0 %v2429, 32
    %v2585 = vpop.permute.xlu0 %2584
    %2586 = vrot.lane.b32.xlu0 %v2430, 32
    %v2587 = vpop.permute.xlu0 %2586
    %2588 = vrot.lane.b32.xlu0 %v2431, 32
    %v2589 = vpop.permute.xlu0 %2588
    %2590 = vrot.lane.b32.xlu0 %v2432, 32
    %v2591 = vpop.permute.xlu0 %2590
    %2592 = vrot.lane.b32.xlu0 %v2433, 32
    %v2593 = vpop.permute.xlu0 %2592
    %2594 = vrot.lane.b32.xlu0 %v2434, 32
    %v2595 = vpop.permute.xlu0 %2594
    %2596 = vrot.lane.b32.xlu0 %v2435, 32
    %v2597 = vpop.permute.xlu0 %2596
    %2598 = vrot.lane.b32.xlu0 %v2436, 32
    %v2599 = vpop.permute.xlu0 %2598
    %2600 = vrot.lane.b32.xlu0 %v2437, 32
    %v2601 = vpop.permute.xlu0 %2600
    %2602 = vrot.lane.b32.xlu0 %v2438, 32
    %v2603 = vpop.permute.xlu0 %2602
    %2604 = vrot.lane.b32.xlu0 %v2439, 32
    %v2605 = vpop.permute.xlu0 %2604
    %2606 = vrot.lane.b32.xlu0 %v2440, 32
    %v2607 = vpop.permute.xlu0 %2606
    %2608 = vrot.lane.b32.xlu0 %v2441, 32
    %v2609 = vpop.permute.xlu0 %2608
    %2610 = vrot.lane.b32.xlu0 %v2442, 32
    %v2611 = vpop.permute.xlu0 %2610
    %2612 = vrot.lane.b32.xlu0 %v2443, 32
    %v2613 = vpop.permute.xlu0 %2612
    %2614 = vrot.lane.b32.xlu0 %v2444, 32
    %v2615 = vpop.permute.xlu0 %2614
    %2616 = vrot.lane.b32.xlu0 %v2445, 32
    %v2617 = vpop.permute.xlu0 %2616
    %2618 = vrot.lane.b32.xlu0 %v2446, 32
    %v2619 = vpop.permute.xlu0 %2618
    %2620 = vrot.lane.b32.xlu0 %v2447, 32
    %v2621 = vpop.permute.xlu0 %2620
    %2622 = vrot.lane.b32.xlu0 %v2448, 32
    %v2623 = vpop.permute.xlu0 %2622
    %2624 = vrot.lane.b32.xlu0 %v2449, 32
    %v2625 = vpop.permute.xlu0 %2624
    %2626 = vrot.lane.b32.xlu0 %v2450, 32
    %v2627 = vpop.permute.xlu0 %2626
    %2628 = vrot.lane.b32.xlu0 %v2451, 32
    %v2629 = vpop.permute.xlu0 %2628
    %2630 = vrot.lane.b32.xlu0 %v2452, 32
    %v2631 = vpop.permute.xlu0 %2630
    %2632 = vrot.lane.b32.xlu0 %v2453, 32
    %v2633 = vpop.permute.xlu0 %2632
    %2634 = vrot.lane.b32.xlu0 %v2454, 32
    %v2635 = vpop.permute.xlu0 %2634
    %2636 = vrot.lane.b32.xlu0 %v2455, 32
    %v2637 = vpop.permute.xlu0 %2636
    %2638 = vrot.lane.b32.xlu0 %v2456, 32
    %v2639 = vpop.permute.xlu0 %2638
    %2640 = vrot.lane.b32.xlu0 %v2457, 32
    %v2641 = vpop.permute.xlu0 %2640
    %2642 = vrot.lane.b32.xlu0 %v2458, 32
    %v2643 = vpop.permute.xlu0 %2642
    %2644 = vrot.lane.b32.xlu0 %v2459, 32
    %v2645 = vpop.permute.xlu0 %2644
    %2646 = vrot.lane.b32.xlu0 %v2460, 32
    %v2647 = vpop.permute.xlu0 %2646
    %2648 = vrot.lane.b32.xlu0 %v2461, 32
    %v2649 = vpop.permute.xlu0 %2648
    %2650 = vrot.lane.b32.xlu0 %v2462, 32
    %v2651 = vpop.permute.xlu0 %2650
    %2652 = vrot.lane.b32.xlu0 %v2463, 32
    %v2653 = vpop.permute.xlu0 %2652
    %2654 = vrot.lane.b32.xlu0 %v2464, 32
    %v2655 = vpop.permute.xlu0 %2654
    %2656 = vrot.lane.b32.xlu0 %v2465, 32
    %v2657 = vpop.permute.xlu0 %2656
    %2722 = vst.msk [vmem:[#allocation3 + $0x8] sm:$0xff] %vm1439, %v2531
    %2723 = vst.msk [vmem:[#allocation3 + $0x20] sm:$0xff] %vm1439, %v2533
    %2724 = vst.msk [vmem:[#allocation3 + $0x38] sm:$0xff] %vm1439, %v2535
    %2725 = vst.msk [vmem:[#allocation3 + $0x50] sm:$0xff] %vm1439, %v2537
    %2726 = vst.msk [vmem:[#allocation3 + $0x68] sm:$0xff] %vm1439, %v2539
    %2727 = vst.msk [vmem:[#allocation3 + $0x80] sm:$0xff] %vm1439, %v2541
    %2728 = vst.msk [vmem:[#allocation3 + $0x98] sm:$0xff] %vm1439, %v2543
    %2729 = vst.msk [vmem:[#allocation3 + $0xb0] sm:$0xff] %vm1439, %v2545
    %2730 = vst.msk [vmem:[#allocation3 + $0xc8] sm:$0xff] %vm1439, %v2547
    %2731 = vst.msk [vmem:[#allocation3 + $0xe0] sm:$0xff] %vm1439, %v2549
    %2732 = vst.msk [vmem:[#allocation3 + $0xf8] sm:$0xff] %vm1439, %v2551
    %2733 = vst.msk [vmem:[#allocation3 + $0x110] sm:$0xff] %vm1439, %v2553
    %2734 = vst.msk [vmem:[#allocation3 + $0x128] sm:$0xff] %vm1439, %v2555
    %2735 = vst.msk [vmem:[#allocation3 + $0x140] sm:$0xff] %vm1439, %v2557
    %2736 = vst.msk [vmem:[#allocation3 + $0x158] sm:$0xff] %vm1439, %v2559
    %2737 = vst.msk [vmem:[#allocation3 + $0x170] sm:$0xff] %vm1439, %v2561
    %2738 = vst.msk [vmem:[#allocation3 + $0x188] sm:$0xff] %vm1439, %v2563
    %2739 = vst.msk [vmem:[#allocation3 + $0x1a0] sm:$0xff] %vm1439, %v2565
    %2740 = vst.msk [vmem:[#allocation3 + $0x1b8] sm:$0xff] %vm1439, %v2567
    %2741 = vst.msk [vmem:[#allocation3 + $0x1d0] sm:$0xff] %vm1439, %v2569
    %2742 = vst.msk [vmem:[#allocation3 + $0x1e8] sm:$0xff] %vm1439, %v2571
    %2743 = vst.msk [vmem:[#allocation3 + $0x200] sm:$0xff] %vm1439, %v2573
    %2744 = vst.msk [vmem:[#allocation3 + $0x218] sm:$0xff] %vm1439, %v2575
    %2745 = vst.msk [vmem:[#allocation3 + $0x230] sm:$0xff] %vm1439, %v2577
    %2746 = vst.msk [vmem:[#allocation3 + $0x248] sm:$0xff] %vm1439, %v2579
    %2747 = vst.msk [vmem:[#allocation3 + $0x260] sm:$0xff] %vm1439, %v2581
    %2748 = vst.msk [vmem:[#allocation3 + $0x278] sm:$0xff] %vm1439, %v2583
    %2749 = vst.msk [vmem:[#allocation3 + $0x290] sm:$0xff] %vm1439, %v2585
    %2750 = vst.msk [vmem:[#allocation3 + $0x2a8] sm:$0xff] %vm1439, %v2587
    %2751 = vst.msk [vmem:[#allocation3 + $0x2c0] sm:$0xff] %vm1439, %v2589
    %2752 = vst.msk [vmem:[#allocation3 + $0x2d8] sm:$0xff] %vm1439, %v2591
    %2753 = vst.msk [vmem:[#allocation3 + $0x2f0] sm:$0xff] %vm1439, %v2593
    %2754 = vst.msk [vmem:[#allocation3 + $0x308] sm:$0xff] %vm1439, %v2595
    %2755 = vst.msk [vmem:[#allocation3 + $0x320] sm:$0xff] %vm1439, %v2597
    %2756 = vst.msk [vmem:[#allocation3 + $0x338] sm:$0xff] %vm1439, %v2599
    %2757 = vst.msk [vmem:[#allocation3 + $0x350] sm:$0xff] %vm1439, %v2601
    %2758 = vst.msk [vmem:[#allocation3 + $0x368] sm:$0xff] %vm1439, %v2603
    %2759 = vst.msk [vmem:[#allocation3 + $0x380] sm:$0xff] %vm1439, %v2605
    %2760 = vst.msk [vmem:[#allocation3 + $0x398] sm:$0xff] %vm1439, %v2607
    %2761 = vst.msk [vmem:[#allocation3 + $0x3b0] sm:$0xff] %vm1439, %v2609
    %2762 = vst.msk [vmem:[#allocation3 + $0x3c8] sm:$0xff] %vm1439, %v2611
    %2763 = vst.msk [vmem:[#allocation3 + $0x3e0] sm:$0xff] %vm1439, %v2613
    %2764 = vst.msk [vmem:[#allocation3 + $0x3f8] sm:$0xff] %vm1439, %v2615
    %2765 = vst.msk [vmem:[#allocation3 + $0x410] sm:$0xff] %vm1439, %v2617
    %2766 = vst.msk [vmem:[#allocation3 + $0x428] sm:$0xff] %vm1439, %v2619
    %2767 = vst.msk [vmem:[#allocation3 + $0x440] sm:$0xff] %vm1439, %v2621
    %2768 = vst.msk [vmem:[#allocation3 + $0x458] sm:$0xff] %vm1439, %v2623
    %2769 = vst.msk [vmem:[#allocation3 + $0x470] sm:$0xff] %vm1439, %v2625
    %2770 = vst.msk [vmem:[#allocation3 + $0x488] sm:$0xff] %vm1439, %v2627
    %2771 = vst.msk [vmem:[#allocation3 + $0x4a0] sm:$0xff] %vm1439, %v2629
    %2772 = vst.msk [vmem:[#allocation3 + $0x4b8] sm:$0xff] %vm1439, %v2631
    %2773 = vst.msk [vmem:[#allocation3 + $0x4d0] sm:$0xff] %vm1439, %v2633
    %2774 = vst.msk [vmem:[#allocation3 + $0x4e8] sm:$0xff] %vm1439, %v2635
    %2775 = vst.msk [vmem:[#allocation3 + $0x500] sm:$0xff] %vm1439, %v2637
    %2776 = vst.msk [vmem:[#allocation3 + $0x518] sm:$0xff] %vm1439, %v2639
    %2777 = vst.msk [vmem:[#allocation3 + $0x530] sm:$0xff] %vm1439, %v2641
    %2778 = vst.msk [vmem:[#allocation3 + $0x548] sm:$0xff] %vm1439, %v2643
    %2779 = vst.msk [vmem:[#allocation3 + $0x560] sm:$0xff] %vm1439, %v2645
    %2780 = vst.msk [vmem:[#allocation3 + $0x578] sm:$0xff] %vm1439, %v2647
    %2781 = vst.msk [vmem:[#allocation3 + $0x590] sm:$0xff] %vm1439, %v2649
    %2782 = vst.msk [vmem:[#allocation3 + $0x5a8] sm:$0xff] %vm1439, %v2651
    %2783 = vst.msk [vmem:[#allocation3 + $0x5c0] sm:$0xff] %vm1439, %v2653
    %2784 = vst.msk [vmem:[#allocation3 + $0x5d8] sm:$0xff] %vm1439, %v2655
    %2785 = vst.msk [vmem:[#allocation3 + $0x5f0] sm:$0xff] %vm1439, %v2657
    %s2786 = scalar_lea.vmem [#allocation2], 48
    %v2787 = vld [vmem:[%s2786] sm:$0xff]
    %v2788 = vld [vmem:[%s2786 + $0x8] sm:$0xff]
    %v2789 = vld [vmem:[%s2786 + $0x18] sm:$0xff]
    %v2790 = vld [vmem:[%s2786 + $0x20] sm:$0xff]
    %v2791 = vld [vmem:[%s2786 + $0x30] sm:$0xff]
    %v2792 = vld [vmem:[%s2786 + $0x38] sm:$0xff]
    %v2793 = vld [vmem:[%s2786 + $0x48] sm:$0xff]
    %v2794 = vld [vmem:[%s2786 + $0x50] sm:$0xff]
    %v2795 = vld [vmem:[%s2786 + $0x60] sm:$0xff]
    %v2796 = vld [vmem:[%s2786 + $0x68] sm:$0xff]
    %v2797 = vld [vmem:[%s2786 + $0x78] sm:$0xff]
    %v2798 = vld [vmem:[%s2786 + $0x80] sm:$0xff]
    %v2799 = vld [vmem:[%s2786 + $0x90] sm:$0xff]
    %v2800 = vld [vmem:[%s2786 + $0x98] sm:$0xff]
    %v2801 = vld [vmem:[%s2786 + $0xa8] sm:$0xff]
    %v2802 = vld [vmem:[%s2786 + $0xb0] sm:$0xff]
    %v2803 = vld [vmem:[%s2786 + $0xc0] sm:$0xff]
    %v2804 = vld [vmem:[%s2786 + $0xc8] sm:$0xff]
    %v2805 = vld [vmem:[%s2786 + $0xd8] sm:$0xff]
    %v2806 = vld [vmem:[%s2786 + $0xe0] sm:$0xff]
    %v2807 = vld [vmem:[%s2786 + $0xf0] sm:$0xff]
    %v2808 = vld [vmem:[%s2786 + $0xf8] sm:$0xff]
    %v2809 = vld [vmem:[%s2786 + $0x108] sm:$0xff]
    %v2810 = vld [vmem:[%s2786 + $0x110] sm:$0xff]
    %v2811 = vld [vmem:[%s2786 + $0x120] sm:$0xff]
    %v2812 = vld [vmem:[%s2786 + $0x128] sm:$0xff]
    %v2813 = vld [vmem:[%s2786 + $0x138] sm:$0xff]
    %v2814 = vld [vmem:[%s2786 + $0x140] sm:$0xff]
    %v2815 = vld [vmem:[%s2786 + $0x150] sm:$0xff]
    %v2816 = vld [vmem:[%s2786 + $0x158] sm:$0xff]
    %v2817 = vld [vmem:[%s2786 + $0x168] sm:$0xff]
    %v2818 = vld [vmem:[%s2786 + $0x170] sm:$0xff]
    %v2819 = vld [vmem:[%s2786 + $0x1b0] sm:$0xff]
    %v2820 = vld [vmem:[%s2786 + $0x1b8] sm:$0xff]
    %v2821 = vld [vmem:[%s2786 + $0x1c8] sm:$0xff]
    %v2822 = vld [vmem:[%s2786 + $0x1d0] sm:$0xff]
    %v2823 = vld [vmem:[%s2786 + $0x1e0] sm:$0xff]
    %v2824 = vld [vmem:[%s2786 + $0x1e8] sm:$0xff]
    %v2825 = vld [vmem:[%s2786 + $0x1f8] sm:$0xff]
    %v2826 = vld [vmem:[%s2786 + $0x200] sm:$0xff]
    %v2827 = vld [vmem:[%s2786 + $0x210] sm:$0xff]
    %v2828 = vld [vmem:[%s2786 + $0x218] sm:$0xff]
    %v2829 = vld [vmem:[%s2786 + $0x228] sm:$0xff]
    %v2830 = vld [vmem:[%s2786 + $0x230] sm:$0xff]
    %v2831 = vld [vmem:[%s2786 + $0x240] sm:$0xff]
    %v2832 = vld [vmem:[%s2786 + $0x248] sm:$0xff]
    %v2833 = vld [vmem:[%s2786 + $0x258] sm:$0xff]
    %v2834 = vld [vmem:[%s2786 + $0x260] sm:$0xff]
    %v2835 = vld [vmem:[%s2786 + $0x270] sm:$0xff]
    %v2836 = vld [vmem:[%s2786 + $0x278] sm:$0xff]
    %v2837 = vld [vmem:[%s2786 + $0x288] sm:$0xff]
    %v2838 = vld [vmem:[%s2786 + $0x290] sm:$0xff]
    %v2839 = vld [vmem:[%s2786 + $0x2a0] sm:$0xff]
    %v2840 = vld [vmem:[%s2786 + $0x2a8] sm:$0xff]
    %v2841 = vld [vmem:[%s2786 + $0x2b8] sm:$0xff]
    %v2842 = vld [vmem:[%s2786 + $0x2c0] sm:$0xff]
    %v2843 = vld [vmem:[%s2786 + $0x2d0] sm:$0xff]
    %v2844 = vld [vmem:[%s2786 + $0x2d8] sm:$0xff]
    %v2845 = vld [vmem:[%s2786 + $0x2e8] sm:$0xff]
    %v2846 = vld [vmem:[%s2786 + $0x2f0] sm:$0xff]
    %v2847 = vld [vmem:[%s2786 + $0x300] sm:$0xff]
    %v2848 = vld [vmem:[%s2786 + $0x308] sm:$0xff]
    %v2849 = vld [vmem:[%s2786 + $0x318] sm:$0xff]
    %v2850 = vld [vmem:[%s2786 + $0x320] sm:$0xff]
    %2915 = vrot.lane.b32.xlu0 %v2787, 64
    %v2916 = vpop.permute.xlu0 %2915
    %2917 = vrot.lane.b32.xlu0 %v2788, 64
    %v2918 = vpop.permute.xlu0 %2917
    %2919 = vrot.lane.b32.xlu0 %v2789, 64
    %v2920 = vpop.permute.xlu0 %2919
    %2921 = vrot.lane.b32.xlu0 %v2790, 64
    %v2922 = vpop.permute.xlu0 %2921
    %2923 = vrot.lane.b32.xlu0 %v2791, 64
    %v2924 = vpop.permute.xlu0 %2923
    %2925 = vrot.lane.b32.xlu0 %v2792, 64
    %v2926 = vpop.permute.xlu0 %2925
    %2927 = vrot.lane.b32.xlu0 %v2793, 64
    %v2928 = vpop.permute.xlu0 %2927
    %2929 = vrot.lane.b32.xlu0 %v2794, 64
    %v2930 = vpop.permute.xlu0 %2929
    %2931 = vrot.lane.b32.xlu0 %v2795, 64
    %v2932 = vpop.permute.xlu0 %2931
    %2933 = vrot.lane.b32.xlu0 %v2796, 64
    %v2934 = vpop.permute.xlu0 %2933
    %2935 = vrot.lane.b32.xlu0 %v2797, 64
    %v2936 = vpop.permute.xlu0 %2935
    %2937 = vrot.lane.b32.xlu0 %v2798, 64
    %v2938 = vpop.permute.xlu0 %2937
    %2939 = vrot.lane.b32.xlu0 %v2799, 64
    %v2940 = vpop.permute.xlu0 %2939
    %2941 = vrot.lane.b32.xlu0 %v2800, 64
    %v2942 = vpop.permute.xlu0 %2941
    %2943 = vrot.lane.b32.xlu0 %v2801, 64
    %v2944 = vpop.permute.xlu0 %2943
    %2945 = vrot.lane.b32.xlu0 %v2802, 64
    %v2946 = vpop.permute.xlu0 %2945
    %2947 = vrot.lane.b32.xlu0 %v2803, 64
    %v2948 = vpop.permute.xlu0 %2947
    %2949 = vrot.lane.b32.xlu0 %v2804, 64
    %v2950 = vpop.permute.xlu0 %2949
    %2951 = vrot.lane.b32.xlu0 %v2805, 64
    %v2952 = vpop.permute.xlu0 %2951
    %2953 = vrot.lane.b32.xlu0 %v2806, 64
    %v2954 = vpop.permute.xlu0 %2953
    %2955 = vrot.lane.b32.xlu0 %v2807, 64
    %v2956 = vpop.permute.xlu0 %2955
    %2957 = vrot.lane.b32.xlu0 %v2808, 64
    %v2958 = vpop.permute.xlu0 %2957
    %2959 = vrot.lane.b32.xlu0 %v2809, 64
    %v2960 = vpop.permute.xlu0 %2959
    %2961 = vrot.lane.b32.xlu0 %v2810, 64
    %v2962 = vpop.permute.xlu0 %2961
    %2963 = vrot.lane.b32.xlu0 %v2811, 64
    %v2964 = vpop.permute.xlu0 %2963
    %2965 = vrot.lane.b32.xlu0 %v2812, 64
    %v2966 = vpop.permute.xlu0 %2965
    %2967 = vrot.lane.b32.xlu0 %v2813, 64
    %v2968 = vpop.permute.xlu0 %2967
    %2969 = vrot.lane.b32.xlu0 %v2814, 64
    %v2970 = vpop.permute.xlu0 %2969
    %2971 = vrot.lane.b32.xlu0 %v2815, 64
    %v2972 = vpop.permute.xlu0 %2971
    %2973 = vrot.lane.b32.xlu0 %v2816, 64
    %v2974 = vpop.permute.xlu0 %2973
    %2975 = vrot.lane.b32.xlu0 %v2817, 64
    %v2976 = vpop.permute.xlu0 %2975
    %2977 = vrot.lane.b32.xlu0 %v2818, 64
    %v2978 = vpop.permute.xlu0 %2977
    %2979 = vrot.lane.b32.xlu0 %v2819, 64
    %v2980 = vpop.permute.xlu0 %2979
    %2981 = vrot.lane.b32.xlu0 %v2820, 64
    %v2982 = vpop.permute.xlu0 %2981
    %2983 = vrot.lane.b32.xlu0 %v2821, 64
    %v2984 = vpop.permute.xlu0 %2983
    %2985 = vrot.lane.b32.xlu0 %v2822, 64
    %v2986 = vpop.permute.xlu0 %2985
    %2987 = vrot.lane.b32.xlu0 %v2823, 64
    %v2988 = vpop.permute.xlu0 %2987
    %2989 = vrot.lane.b32.xlu0 %v2824, 64
    %v2990 = vpop.permute.xlu0 %2989
    %2991 = vrot.lane.b32.xlu0 %v2825, 64
    %v2992 = vpop.permute.xlu0 %2991
    %2993 = vrot.lane.b32.xlu0 %v2826, 64
    %v2994 = vpop.permute.xlu0 %2993
    %2995 = vrot.lane.b32.xlu0 %v2827, 64
    %v2996 = vpop.permute.xlu0 %2995
    %2997 = vrot.lane.b32.xlu0 %v2828, 64
    %v2998 = vpop.permute.xlu0 %2997
    %2999 = vrot.lane.b32.xlu0 %v2829, 64
    %v3000 = vpop.permute.xlu0 %2999
    %3001 = vrot.lane.b32.xlu0 %v2830, 64
    %v3002 = vpop.permute.xlu0 %3001
    %3003 = vrot.lane.b32.xlu0 %v2831, 64
    %v3004 = vpop.permute.xlu0 %3003
    %3005 = vrot.lane.b32.xlu0 %v2832, 64
    %v3006 = vpop.permute.xlu0 %3005
    %3007 = vrot.lane.b32.xlu0 %v2833, 64
    %v3008 = vpop.permute.xlu0 %3007
    %3009 = vrot.lane.b32.xlu0 %v2834, 64
    %v3010 = vpop.permute.xlu0 %3009
    %3011 = vrot.lane.b32.xlu0 %v2835, 64
    %v3012 = vpop.permute.xlu0 %3011
    %3013 = vrot.lane.b32.xlu0 %v2836, 64
    %v3014 = vpop.permute.xlu0 %3013
    %3015 = vrot.lane.b32.xlu0 %v2837, 64
    %v3016 = vpop.permute.xlu0 %3015
    %3017 = vrot.lane.b32.xlu0 %v2838, 64
    %v3018 = vpop.permute.xlu0 %3017
    %3019 = vrot.lane.b32.xlu0 %v2839, 64
    %v3020 = vpop.permute.xlu0 %3019
    %3021 = vrot.lane.b32.xlu0 %v2840, 64
    %v3022 = vpop.permute.xlu0 %3021
    %3023 = vrot.lane.b32.xlu0 %v2841, 64
    %v3024 = vpop.permute.xlu0 %3023
    %3025 = vrot.lane.b32.xlu0 %v2842, 64
    %v3026 = vpop.permute.xlu0 %3025
    %3027 = vrot.lane.b32.xlu0 %v2843, 64
    %v3028 = vpop.permute.xlu0 %3027
    %3029 = vrot.lane.b32.xlu0 %v2844, 64
    %v3030 = vpop.permute.xlu0 %3029
    %3031 = vrot.lane.b32.xlu0 %v2845, 64
    %v3032 = vpop.permute.xlu0 %3031
    %3033 = vrot.lane.b32.xlu0 %v2846, 64
    %v3034 = vpop.permute.xlu0 %3033
    %3035 = vrot.lane.b32.xlu0 %v2847, 64
    %v3036 = vpop.permute.xlu0 %3035
    %3037 = vrot.lane.b32.xlu0 %v2848, 64
    %v3038 = vpop.permute.xlu0 %3037
    %3039 = vrot.lane.b32.xlu0 %v2849, 64
    %v3040 = vpop.permute.xlu0 %3039
    %3041 = vrot.lane.b32.xlu0 %v2850, 64
    %v3042 = vpop.permute.xlu0 %3041
    %3107 = vst.msk [vmem:[#allocation3 + $0x8] sm:$0xff] %vm1824, %v2916
    %3108 = vst.msk [vmem:[#allocation3 + $0x20] sm:$0xff] %vm1824, %v2918
    %3109 = vst.msk [vmem:[#allocation3 + $0x38] sm:$0xff] %vm1824, %v2920
    %3110 = vst.msk [vmem:[#allocation3 + $0x50] sm:$0xff] %vm1824, %v2922
    %3111 = vst.msk [vmem:[#allocation3 + $0x68] sm:$0xff] %vm1824, %v2924
    %3112 = vst.msk [vmem:[#allocation3 + $0x80] sm:$0xff] %vm1824, %v2926
    %3113 = vst.msk [vmem:[#allocation3 + $0x98] sm:$0xff] %vm1824, %v2928
    %3114 = vst.msk [vmem:[#allocation3 + $0xb0] sm:$0xff] %vm1824, %v2930
    %3115 = vst.msk [vmem:[#allocation3 + $0xc8] sm:$0xff] %vm1824, %v2932
    %3116 = vst.msk [vmem:[#allocation3 + $0xe0] sm:$0xff] %vm1824, %v2934
    %3117 = vst.msk [vmem:[#allocation3 + $0xf8] sm:$0xff] %vm1824, %v2936
    %3118 = vst.msk [vmem:[#allocation3 + $0x110] sm:$0xff] %vm1824, %v2938
    %3119 = vst.msk [vmem:[#allocation3 + $0x128] sm:$0xff] %vm1824, %v2940
    %3120 = vst.msk [vmem:[#allocation3 + $0x140] sm:$0xff] %vm1824, %v2942
    %3121 = vst.msk [vmem:[#allocation3 + $0x158] sm:$0xff] %vm1824, %v2944
    %3122 = vst.msk [vmem:[#allocation3 + $0x170] sm:$0xff] %vm1824, %v2946
    %3123 = vst.msk [vmem:[#allocation3 + $0x188] sm:$0xff] %vm1824, %v2948
    %3124 = vst.msk [vmem:[#allocation3 + $0x1a0] sm:$0xff] %vm1824, %v2950
    %3125 = vst.msk [vmem:[#allocation3 + $0x1b8] sm:$0xff] %vm1824, %v2952
    %3126 = vst.msk [vmem:[#allocation3 + $0x1d0] sm:$0xff] %vm1824, %v2954
    %3127 = vst.msk [vmem:[#allocation3 + $0x1e8] sm:$0xff] %vm1824, %v2956
    %3128 = vst.msk [vmem:[#allocation3 + $0x200] sm:$0xff] %vm1824, %v2958
    %3129 = vst.msk [vmem:[#allocation3 + $0x218] sm:$0xff] %vm1824, %v2960
    %3130 = vst.msk [vmem:[#allocation3 + $0x230] sm:$0xff] %vm1824, %v2962
    %3131 = vst.msk [vmem:[#allocation3 + $0x248] sm:$0xff] %vm1824, %v2964
    %3132 = vst.msk [vmem:[#allocation3 + $0x260] sm:$0xff] %vm1824, %v2966
    %3133 = vst.msk [vmem:[#allocation3 + $0x278] sm:$0xff] %vm1824, %v2968
    %3134 = vst.msk [vmem:[#allocation3 + $0x290] sm:$0xff] %vm1824, %v2970
    %3135 = vst.msk [vmem:[#allocation3 + $0x2a8] sm:$0xff] %vm1824, %v2972
    %3136 = vst.msk [vmem:[#allocation3 + $0x2c0] sm:$0xff] %vm1824, %v2974
    %3137 = vst.msk [vmem:[#allocation3 + $0x2d8] sm:$0xff] %vm1824, %v2976
    %3138 = vst.msk [vmem:[#allocation3 + $0x2f0] sm:$0xff] %vm1824, %v2978
    %3139 = vst.msk [vmem:[#allocation3 + $0x308] sm:$0xff] %vm1824, %v2980
    %3140 = vst.msk [vmem:[#allocation3 + $0x320] sm:$0xff] %vm1824, %v2982
    %3141 = vst.msk [vmem:[#allocation3 + $0x338] sm:$0xff] %vm1824, %v2984
    %3142 = vst.msk [vmem:[#allocation3 + $0x350] sm:$0xff] %vm1824, %v2986
    %3143 = vst.msk [vmem:[#allocation3 + $0x368] sm:$0xff] %vm1824, %v2988
    %3144 = vst.msk [vmem:[#allocation3 + $0x380] sm:$0xff] %vm1824, %v2990
    %3145 = vst.msk [vmem:[#allocation3 + $0x398] sm:$0xff] %vm1824, %v2992
    %3146 = vst.msk [vmem:[#allocation3 + $0x3b0] sm:$0xff] %vm1824, %v2994
    %3147 = vst.msk [vmem:[#allocation3 + $0x3c8] sm:$0xff] %vm1824, %v2996
    %3148 = vst.msk [vmem:[#allocation3 + $0x3e0] sm:$0xff] %vm1824, %v2998
    %3149 = vst.msk [vmem:[#allocation3 + $0x3f8] sm:$0xff] %vm1824, %v3000
    %3150 = vst.msk [vmem:[#allocation3 + $0x410] sm:$0xff] %vm1824, %v3002
    %3151 = vst.msk [vmem:[#allocation3 + $0x428] sm:$0xff] %vm1824, %v3004
    %3152 = vst.msk [vmem:[#allocation3 + $0x440] sm:$0xff] %vm1824, %v3006
    %3153 = vst.msk [vmem:[#allocation3 + $0x458] sm:$0xff] %vm1824, %v3008
    %3154 = vst.msk [vmem:[#allocation3 + $0x470] sm:$0xff] %vm1824, %v3010
    %3155 = vst.msk [vmem:[#allocation3 + $0x488] sm:$0xff] %vm1824, %v3012
    %3156 = vst.msk [vmem:[#allocation3 + $0x4a0] sm:$0xff] %vm1824, %v3014
    %3157 = vst.msk [vmem:[#allocation3 + $0x4b8] sm:$0xff] %vm1824, %v3016
    %3158 = vst.msk [vmem:[#allocation3 + $0x4d0] sm:$0xff] %vm1824, %v3018
    %3159 = vst.msk [vmem:[#allocation3 + $0x4e8] sm:$0xff] %vm1824, %v3020
    %3160 = vst.msk [vmem:[#allocation3 + $0x500] sm:$0xff] %vm1824, %v3022
    %3161 = vst.msk [vmem:[#allocation3 + $0x518] sm:$0xff] %vm1824, %v3024
    %3162 = vst.msk [vmem:[#allocation3 + $0x530] sm:$0xff] %vm1824, %v3026
    %3163 = vst.msk [vmem:[#allocation3 + $0x548] sm:$0xff] %vm1824, %v3028
    %3164 = vst.msk [vmem:[#allocation3 + $0x560] sm:$0xff] %vm1824, %v3030
    %3165 = vst.msk [vmem:[#allocation3 + $0x578] sm:$0xff] %vm1824, %v3032
    %3166 = vst.msk [vmem:[#allocation3 + $0x590] sm:$0xff] %vm1824, %v3034
    %3167 = vst.msk [vmem:[#allocation3 + $0x5a8] sm:$0xff] %vm1824, %v3036
    %3168 = vst.msk [vmem:[#allocation3 + $0x5c0] sm:$0xff] %vm1824, %v3038
    %3169 = vst.msk [vmem:[#allocation3 + $0x5d8] sm:$0xff] %vm1824, %v3040
    %3170 = vst.msk [vmem:[#allocation3 + $0x5f0] sm:$0xff] %vm1824, %v3042
    %v3171 = vld [vmem:[%s2786 + $0x1] sm:$0xff]
    %v3172 = vld [vmem:[%s2786 + $0x9] sm:$0xff]
    %v3173 = vld [vmem:[%s2786 + $0x19] sm:$0xff]
    %v3174 = vld [vmem:[%s2786 + $0x21] sm:$0xff]
    %v3175 = vld [vmem:[%s2786 + $0x31] sm:$0xff]
    %v3176 = vld [vmem:[%s2786 + $0x39] sm:$0xff]
    %v3177 = vld [vmem:[%s2786 + $0x49] sm:$0xff]
    %v3178 = vld [vmem:[%s2786 + $0x51] sm:$0xff]
    %v3179 = vld [vmem:[%s2786 + $0x61] sm:$0xff]
    %v3180 = vld [vmem:[%s2786 + $0x69] sm:$0xff]
    %v3181 = vld [vmem:[%s2786 + $0x79] sm:$0xff]
    %v3182 = vld [vmem:[%s2786 + $0x81] sm:$0xff]
    %v3183 = vld [vmem:[%s2786 + $0x91] sm:$0xff]
    %v3184 = vld [vmem:[%s2786 + $0x99] sm:$0xff]
    %v3185 = vld [vmem:[%s2786 + $0xa9] sm:$0xff]
    %v3186 = vld [vmem:[%s2786 + $0xb1] sm:$0xff]
    %v3187 = vld [vmem:[%s2786 + $0xc1] sm:$0xff]
    %v3188 = vld [vmem:[%s2786 + $0xc9] sm:$0xff]
    %v3189 = vld [vmem:[%s2786 + $0xd9] sm:$0xff]
    %v3190 = vld [vmem:[%s2786 + $0xe1] sm:$0xff]
    %v3191 = vld [vmem:[%s2786 + $0xf1] sm:$0xff]
    %v3192 = vld [vmem:[%s2786 + $0xf9] sm:$0xff]
    %v3193 = vld [vmem:[%s2786 + $0x109] sm:$0xff]
    %v3194 = vld [vmem:[%s2786 + $0x111] sm:$0xff]
    %v3195 = vld [vmem:[%s2786 + $0x121] sm:$0xff]
    %v3196 = vld [vmem:[%s2786 + $0x129] sm:$0xff]
    %v3197 = vld [vmem:[%s2786 + $0x139] sm:$0xff]
    %v3198 = vld [vmem:[%s2786 + $0x141] sm:$0xff]
    %v3199 = vld [vmem:[%s2786 + $0x151] sm:$0xff]
    %v3200 = vld [vmem:[%s2786 + $0x159] sm:$0xff]
    %v3201 = vld [vmem:[%s2786 + $0x169] sm:$0xff]
    %v3202 = vld [vmem:[%s2786 + $0x171] sm:$0xff]
    %v3203 = vld [vmem:[%s2786 + $0x1b1] sm:$0xff]
    %v3204 = vld [vmem:[%s2786 + $0x1b9] sm:$0xff]
    %v3205 = vld [vmem:[%s2786 + $0x1c9] sm:$0xff]
    %v3206 = vld [vmem:[%s2786 + $0x1d1] sm:$0xff]
    %v3207 = vld [vmem:[%s2786 + $0x1e1] sm:$0xff]
    %v3208 = vld [vmem:[%s2786 + $0x1e9] sm:$0xff]
    %v3209 = vld [vmem:[%s2786 + $0x1f9] sm:$0xff]
    %v3210 = vld [vmem:[%s2786 + $0x201] sm:$0xff]
    %v3211 = vld [vmem:[%s2786 + $0x211] sm:$0xff]
    %v3212 = vld [vmem:[%s2786 + $0x219] sm:$0xff]
    %v3213 = vld [vmem:[%s2786 + $0x229] sm:$0xff]
    %v3214 = vld [vmem:[%s2786 + $0x231] sm:$0xff]
    %v3215 = vld [vmem:[%s2786 + $0x241] sm:$0xff]
    %v3216 = vld [vmem:[%s2786 + $0x249] sm:$0xff]
    %v3217 = vld [vmem:[%s2786 + $0x259] sm:$0xff]
    %v3218 = vld [vmem:[%s2786 + $0x261] sm:$0xff]
    %v3219 = vld [vmem:[%s2786 + $0x271] sm:$0xff]
    %v3220 = vld [vmem:[%s2786 + $0x279] sm:$0xff]
    %v3221 = vld [vmem:[%s2786 + $0x289] sm:$0xff]
    %v3222 = vld [vmem:[%s2786 + $0x291] sm:$0xff]
    %v3223 = vld [vmem:[%s2786 + $0x2a1] sm:$0xff]
    %v3224 = vld [vmem:[%s2786 + $0x2a9] sm:$0xff]
    %v3225 = vld [vmem:[%s2786 + $0x2b9] sm:$0xff]
    %v3226 = vld [vmem:[%s2786 + $0x2c1] sm:$0xff]
    %v3227 = vld [vmem:[%s2786 + $0x2d1] sm:$0xff]
    %v3228 = vld [vmem:[%s2786 + $0x2d9] sm:$0xff]
    %v3229 = vld [vmem:[%s2786 + $0x2e9] sm:$0xff]
    %v3230 = vld [vmem:[%s2786 + $0x2f1] sm:$0xff]
    %v3231 = vld [vmem:[%s2786 + $0x301] sm:$0xff]
    %v3232 = vld [vmem:[%s2786 + $0x309] sm:$0xff]
    %v3233 = vld [vmem:[%s2786 + $0x319] sm:$0xff]
    %v3234 = vld [vmem:[%s2786 + $0x321] sm:$0xff]
    %3299 = vrot.lane.b32.xlu0 %v3171, 96
    %v3300 = vpop.permute.xlu0 %3299
    %3301 = vrot.lane.b32.xlu0 %v3172, 96
    %v3302 = vpop.permute.xlu0 %3301
    %3303 = vrot.lane.b32.xlu0 %v3173, 96
    %v3304 = vpop.permute.xlu0 %3303
    %3305 = vrot.lane.b32.xlu0 %v3174, 96
    %v3306 = vpop.permute.xlu0 %3305
    %3307 = vrot.lane.b32.xlu0 %v3175, 96
    %v3308 = vpop.permute.xlu0 %3307
    %3309 = vrot.lane.b32.xlu0 %v3176, 96
    %v3310 = vpop.permute.xlu0 %3309
    %3311 = vrot.lane.b32.xlu0 %v3177, 96
    %v3312 = vpop.permute.xlu0 %3311
    %3313 = vrot.lane.b32.xlu0 %v3178, 96
    %v3314 = vpop.permute.xlu0 %3313
    %3315 = vrot.lane.b32.xlu0 %v3179, 96
    %v3316 = vpop.permute.xlu0 %3315
    %3317 = vrot.lane.b32.xlu0 %v3180, 96
    %v3318 = vpop.permute.xlu0 %3317
    %3319 = vrot.lane.b32.xlu0 %v3181, 96
    %v3320 = vpop.permute.xlu0 %3319
    %3321 = vrot.lane.b32.xlu0 %v3182, 96
    %v3322 = vpop.permute.xlu0 %3321
    %3323 = vrot.lane.b32.xlu0 %v3183, 96
    %v3324 = vpop.permute.xlu0 %3323
    %3325 = vrot.lane.b32.xlu0 %v3184, 96
    %v3326 = vpop.permute.xlu0 %3325
    %3327 = vrot.lane.b32.xlu0 %v3185, 96
    %v3328 = vpop.permute.xlu0 %3327
    %3329 = vrot.lane.b32.xlu0 %v3186, 96
    %v3330 = vpop.permute.xlu0 %3329
    %3331 = vrot.lane.b32.xlu0 %v3187, 96
    %v3332 = vpop.permute.xlu0 %3331
    %3333 = vrot.lane.b32.xlu0 %v3188, 96
    %v3334 = vpop.permute.xlu0 %3333
    %3335 = vrot.lane.b32.xlu0 %v3189, 96
    %v3336 = vpop.permute.xlu0 %3335
    %3337 = vrot.lane.b32.xlu0 %v3190, 96
    %v3338 = vpop.permute.xlu0 %3337
    %3339 = vrot.lane.b32.xlu0 %v3191, 96
    %v3340 = vpop.permute.xlu0 %3339
    %3341 = vrot.lane.b32.xlu0 %v3192, 96
    %v3342 = vpop.permute.xlu0 %3341
    %3343 = vrot.lane.b32.xlu0 %v3193, 96
    %v3344 = vpop.permute.xlu0 %3343
    %3345 = vrot.lane.b32.xlu0 %v3194, 96
    %v3346 = vpop.permute.xlu0 %3345
    %3347 = vrot.lane.b32.xlu0 %v3195, 96
    %v3348 = vpop.permute.xlu0 %3347
    %3349 = vrot.lane.b32.xlu0 %v3196, 96
    %v3350 = vpop.permute.xlu0 %3349
    %3351 = vrot.lane.b32.xlu0 %v3197, 96
    %v3352 = vpop.permute.xlu0 %3351
    %3353 = vrot.lane.b32.xlu0 %v3198, 96
    %v3354 = vpop.permute.xlu0 %3353
    %3355 = vrot.lane.b32.xlu0 %v3199, 96
    %v3356 = vpop.permute.xlu0 %3355
    %3357 = vrot.lane.b32.xlu0 %v3200, 96
    %v3358 = vpop.permute.xlu0 %3357
    %3359 = vrot.lane.b32.xlu0 %v3201, 96
    %v3360 = vpop.permute.xlu0 %3359
    %3361 = vrot.lane.b32.xlu0 %v3202, 96
    %v3362 = vpop.permute.xlu0 %3361
    %3363 = vrot.lane.b32.xlu0 %v3203, 96
    %v3364 = vpop.permute.xlu0 %3363
    %3365 = vrot.lane.b32.xlu0 %v3204, 96
    %v3366 = vpop.permute.xlu0 %3365
    %3367 = vrot.lane.b32.xlu0 %v3205, 96
    %v3368 = vpop.permute.xlu0 %3367
    %3369 = vrot.lane.b32.xlu0 %v3206, 96
    %v3370 = vpop.permute.xlu0 %3369
    %3371 = vrot.lane.b32.xlu0 %v3207, 96
    %v3372 = vpop.permute.xlu0 %3371
    %3373 = vrot.lane.b32.xlu0 %v3208, 96
    %v3374 = vpop.permute.xlu0 %3373
    %3375 = vrot.lane.b32.xlu0 %v3209, 96
    %v3376 = vpop.permute.xlu0 %3375
    %3377 = vrot.lane.b32.xlu0 %v3210, 96
    %v3378 = vpop.permute.xlu0 %3377
    %3379 = vrot.lane.b32.xlu0 %v3211, 96
    %v3380 = vpop.permute.xlu0 %3379
    %3381 = vrot.lane.b32.xlu0 %v3212, 96
    %v3382 = vpop.permute.xlu0 %3381
    %3383 = vrot.lane.b32.xlu0 %v3213, 96
    %v3384 = vpop.permute.xlu0 %3383
    %3385 = vrot.lane.b32.xlu0 %v3214, 96
    %v3386 = vpop.permute.xlu0 %3385
    %3387 = vrot.lane.b32.xlu0 %v3215, 96
    %v3388 = vpop.permute.xlu0 %3387
    %3389 = vrot.lane.b32.xlu0 %v3216, 96
    %v3390 = vpop.permute.xlu0 %3389
    %3391 = vrot.lane.b32.xlu0 %v3217, 96
    %v3392 = vpop.permute.xlu0 %3391
    %3393 = vrot.lane.b32.xlu0 %v3218, 96
    %v3394 = vpop.permute.xlu0 %3393
    %3395 = vrot.lane.b32.xlu0 %v3219, 96
    %v3396 = vpop.permute.xlu0 %3395
    %3397 = vrot.lane.b32.xlu0 %v3220, 96
    %v3398 = vpop.permute.xlu0 %3397
    %3399 = vrot.lane.b32.xlu0 %v3221, 96
    %v3400 = vpop.permute.xlu0 %3399
    %3401 = vrot.lane.b32.xlu0 %v3222, 96
    %v3402 = vpop.permute.xlu0 %3401
    %3403 = vrot.lane.b32.xlu0 %v3223, 96
    %v3404 = vpop.permute.xlu0 %3403
    %3405 = vrot.lane.b32.xlu0 %v3224, 96
    %v3406 = vpop.permute.xlu0 %3405
    %3407 = vrot.lane.b32.xlu0 %v3225, 96
    %v3408 = vpop.permute.xlu0 %3407
    %3409 = vrot.lane.b32.xlu0 %v3226, 96
    %v3410 = vpop.permute.xlu0 %3409
    %3411 = vrot.lane.b32.xlu0 %v3227, 96
    %v3412 = vpop.permute.xlu0 %3411
    %3413 = vrot.lane.b32.xlu0 %v3228, 96
    %v3414 = vpop.permute.xlu0 %3413
    %3415 = vrot.lane.b32.xlu0 %v3229, 96
    %v3416 = vpop.permute.xlu0 %3415
    %3417 = vrot.lane.b32.xlu0 %v3230, 96
    %v3418 = vpop.permute.xlu0 %3417
    %3419 = vrot.lane.b32.xlu0 %v3231, 96
    %v3420 = vpop.permute.xlu0 %3419
    %3421 = vrot.lane.b32.xlu0 %v3232, 96
    %v3422 = vpop.permute.xlu0 %3421
    %3423 = vrot.lane.b32.xlu0 %v3233, 96
    %v3424 = vpop.permute.xlu0 %3423
    %3425 = vrot.lane.b32.xlu0 %v3234, 96
    %v3426 = vpop.permute.xlu0 %3425
    %3491 = vst.msk [vmem:[#allocation3 + $0x8] sm:$0xff] %vm2209, %v3300
    %3492 = vst.msk [vmem:[#allocation3 + $0x20] sm:$0xff] %vm2209, %v3302
    %3493 = vst.msk [vmem:[#allocation3 + $0x38] sm:$0xff] %vm2209, %v3304
    %3494 = vst.msk [vmem:[#allocation3 + $0x50] sm:$0xff] %vm2209, %v3306
    %3495 = vst.msk [vmem:[#allocation3 + $0x68] sm:$0xff] %vm2209, %v3308
    %3496 = vst.msk [vmem:[#allocation3 + $0x80] sm:$0xff] %vm2209, %v3310
    %3497 = vst.msk [vmem:[#allocation3 + $0x98] sm:$0xff] %vm2209, %v3312
    %3498 = vst.msk [vmem:[#allocation3 + $0xb0] sm:$0xff] %vm2209, %v3314
    %3499 = vst.msk [vmem:[#allocation3 + $0xc8] sm:$0xff] %vm2209, %v3316
    %3500 = vst.msk [vmem:[#allocation3 + $0xe0] sm:$0xff] %vm2209, %v3318
    %3501 = vst.msk [vmem:[#allocation3 + $0xf8] sm:$0xff] %vm2209, %v3320
    %3502 = vst.msk [vmem:[#allocation3 + $0x110] sm:$0xff] %vm2209, %v3322
    %3503 = vst.msk [vmem:[#allocation3 + $0x128] sm:$0xff] %vm2209, %v3324
    %3504 = vst.msk [vmem:[#allocation3 + $0x140] sm:$0xff] %vm2209, %v3326
    %3505 = vst.msk [vmem:[#allocation3 + $0x158] sm:$0xff] %vm2209, %v3328
    %3506 = vst.msk [vmem:[#allocation3 + $0x170] sm:$0xff] %vm2209, %v3330
    %3507 = vst.msk [vmem:[#allocation3 + $0x188] sm:$0xff] %vm2209, %v3332
    %3508 = vst.msk [vmem:[#allocation3 + $0x1a0] sm:$0xff] %vm2209, %v3334
    %3509 = vst.msk [vmem:[#allocation3 + $0x1b8] sm:$0xff] %vm2209, %v3336
    %3510 = vst.msk [vmem:[#allocation3 + $0x1d0] sm:$0xff] %vm2209, %v3338
    %3511 = vst.msk [vmem:[#allocation3 + $0x1e8] sm:$0xff] %vm2209, %v3340
    %3512 = vst.msk [vmem:[#allocation3 + $0x200] sm:$0xff] %vm2209, %v3342
    %3513 = vst.msk [vmem:[#allocation3 + $0x218] sm:$0xff] %vm2209, %v3344
    %3514 = vst.msk [vmem:[#allocation3 + $0x230] sm:$0xff] %vm2209, %v3346
    %3515 = vst.msk [vmem:[#allocation3 + $0x248] sm:$0xff] %vm2209, %v3348
    %3516 = vst.msk [vmem:[#allocation3 + $0x260] sm:$0xff] %vm2209, %v3350
    %3517 = vst.msk [vmem:[#allocation3 + $0x278] sm:$0xff] %vm2209, %v3352
    %3518 = vst.msk [vmem:[#allocation3 + $0x290] sm:$0xff] %vm2209, %v3354
    %3519 = vst.msk [vmem:[#allocation3 + $0x2a8] sm:$0xff] %vm2209, %v3356
    %3520 = vst.msk [vmem:[#allocation3 + $0x2c0] sm:$0xff] %vm2209, %v3358
    %3521 = vst.msk [vmem:[#allocation3 + $0x2d8] sm:$0xff] %vm2209, %v3360
    %3522 = vst.msk [vmem:[#allocation3 + $0x2f0] sm:$0xff] %vm2209, %v3362
    %3523 = vst.msk [vmem:[#allocation3 + $0x308] sm:$0xff] %vm2209, %v3364
    %3524 = vst.msk [vmem:[#allocation3 + $0x320] sm:$0xff] %vm2209, %v3366
    %3525 = vst.msk [vmem:[#allocation3 + $0x338] sm:$0xff] %vm2209, %v3368
    %3526 = vst.msk [vmem:[#allocation3 + $0x350] sm:$0xff] %vm2209, %v3370
    %3527 = vst.msk [vmem:[#allocation3 + $0x368] sm:$0xff] %vm2209, %v3372
    %3528 = vst.msk [vmem:[#allocation3 + $0x380] sm:$0xff] %vm2209, %v3374
    %3529 = vst.msk [vmem:[#allocation3 + $0x398] sm:$0xff] %vm2209, %v3376
    %3530 = vst.msk [vmem:[#allocation3 + $0x3b0] sm:$0xff] %vm2209, %v3378
    %3531 = vst.msk [vmem:[#allocation3 + $0x3c8] sm:$0xff] %vm2209, %v3380
    %3532 = vst.msk [vmem:[#allocation3 + $0x3e0] sm:$0xff] %vm2209, %v3382
    %3533 = vst.msk [vmem:[#allocation3 + $0x3f8] sm:$0xff] %vm2209, %v3384
    %3534 = vst.msk [vmem:[#allocation3 + $0x410] sm:$0xff] %vm2209, %v3386
    %3535 = vst.msk [vmem:[#allocation3 + $0x428] sm:$0xff] %vm2209, %v3388
    %3536 = vst.msk [vmem:[#allocation3 + $0x440] sm:$0xff] %vm2209, %v3390
    %3537 = vst.msk [vmem:[#allocation3 + $0x458] sm:$0xff] %vm2209, %v3392
    %3538 = vst.msk [vmem:[#allocation3 + $0x470] sm:$0xff] %vm2209, %v3394
    %3539 = vst.msk [vmem:[#allocation3 + $0x488] sm:$0xff] %vm2209, %v3396
    %3540 = vst.msk [vmem:[#allocation3 + $0x4a0] sm:$0xff] %vm2209, %v3398
    %3541 = vst.msk [vmem:[#allocation3 + $0x4b8] sm:$0xff] %vm2209, %v3400
    %3542 = vst.msk [vmem:[#allocation3 + $0x4d0] sm:$0xff] %vm2209, %v3402
    %3543 = vst.msk [vmem:[#allocation3 + $0x4e8] sm:$0xff] %vm2209, %v3404
    %3544 = vst.msk [vmem:[#allocation3 + $0x500] sm:$0xff] %vm2209, %v3406
    %3545 = vst.msk [vmem:[#allocation3 + $0x518] sm:$0xff] %vm2209, %v3408
    %3546 = vst.msk [vmem:[#allocation3 + $0x530] sm:$0xff] %vm2209, %v3410
    %3547 = vst.msk [vmem:[#allocation3 + $0x548] sm:$0xff] %vm2209, %v3412
    %3548 = vst.msk [vmem:[#allocation3 + $0x560] sm:$0xff] %vm2209, %v3414
    %3549 = vst.msk [vmem:[#allocation3 + $0x578] sm:$0xff] %vm2209, %v3416
    %3550 = vst.msk [vmem:[#allocation3 + $0x590] sm:$0xff] %vm2209, %v3418
    %3551 = vst.msk [vmem:[#allocation3 + $0x5a8] sm:$0xff] %vm2209, %v3420
    %3552 = vst.msk [vmem:[#allocation3 + $0x5c0] sm:$0xff] %vm2209, %v3422
    %3553 = vst.msk [vmem:[#allocation3 + $0x5d8] sm:$0xff] %vm2209, %v3424
    %3554 = vst.msk [vmem:[#allocation3 + $0x5f0] sm:$0xff] %vm2209, %v3426
    %v3555 = vld [vmem:[%s2786 + $0x2] sm:$0xff]
    %v3556 = vld [vmem:[%s2786 + $0xa] sm:$0xff]
    %v3557 = vld [vmem:[%s2786 + $0x1a] sm:$0xff]
    %v3558 = vld [vmem:[%s2786 + $0x22] sm:$0xff]
    %v3559 = vld [vmem:[%s2786 + $0x32] sm:$0xff]
    %v3560 = vld [vmem:[%s2786 + $0x3a] sm:$0xff]
    %v3561 = vld [vmem:[%s2786 + $0x4a] sm:$0xff]
    %v3562 = vld [vmem:[%s2786 + $0x52] sm:$0xff]
    %v3563 = vld [vmem:[%s2786 + $0x62] sm:$0xff]
    %v3564 = vld [vmem:[%s2786 + $0x6a] sm:$0xff]
    %v3565 = vld [vmem:[%s2786 + $0x7a] sm:$0xff]
    %v3566 = vld [vmem:[%s2786 + $0x82] sm:$0xff]
    %v3567 = vld [vmem:[%s2786 + $0x92] sm:$0xff]
    %v3568 = vld [vmem:[%s2786 + $0x9a] sm:$0xff]
    %v3569 = vld [vmem:[%s2786 + $0xaa] sm:$0xff]
    %v3570 = vld [vmem:[%s2786 + $0xb2] sm:$0xff]
    %v3571 = vld [vmem:[%s2786 + $0xc2] sm:$0xff]
    %v3572 = vld [vmem:[%s2786 + $0xca] sm:$0xff]
    %v3573 = vld [vmem:[%s2786 + $0xda] sm:$0xff]
    %v3574 = vld [vmem:[%s2786 + $0xe2] sm:$0xff]
    %v3575 = vld [vmem:[%s2786 + $0xf2] sm:$0xff]
    %v3576 = vld [vmem:[%s2786 + $0xfa] sm:$0xff]
    %v3577 = vld [vmem:[%s2786 + $0x10a] sm:$0xff]
    %v3578 = vld [vmem:[%s2786 + $0x112] sm:$0xff]
    %v3579 = vld [vmem:[%s2786 + $0x122] sm:$0xff]
    %v3580 = vld [vmem:[%s2786 + $0x12a] sm:$0xff]
    %v3581 = vld [vmem:[%s2786 + $0x13a] sm:$0xff]
    %v3582 = vld [vmem:[%s2786 + $0x142] sm:$0xff]
    %v3583 = vld [vmem:[%s2786 + $0x152] sm:$0xff]
    %v3584 = vld [vmem:[%s2786 + $0x15a] sm:$0xff]
    %v3585 = vld [vmem:[%s2786 + $0x16a] sm:$0xff]
    %v3586 = vld [vmem:[%s2786 + $0x172] sm:$0xff]
    %v3587 = vld [vmem:[%s2786 + $0x1b2] sm:$0xff]
    %v3588 = vld [vmem:[%s2786 + $0x1ba] sm:$0xff]
    %v3589 = vld [vmem:[%s2786 + $0x1ca] sm:$0xff]
    %v3590 = vld [vmem:[%s2786 + $0x1d2] sm:$0xff]
    %v3591 = vld [vmem:[%s2786 + $0x1e2] sm:$0xff]
    %v3592 = vld [vmem:[%s2786 + $0x1ea] sm:$0xff]
    %v3593 = vld [vmem:[%s2786 + $0x1fa] sm:$0xff]
    %v3594 = vld [vmem:[%s2786 + $0x202] sm:$0xff]
    %v3595 = vld [vmem:[%s2786 + $0x212] sm:$0xff]
    %v3596 = vld [vmem:[%s2786 + $0x21a] sm:$0xff]
    %v3597 = vld [vmem:[%s2786 + $0x22a] sm:$0xff]
    %v3598 = vld [vmem:[%s2786 + $0x232] sm:$0xff]
    %v3599 = vld [vmem:[%s2786 + $0x242] sm:$0xff]
    %v3600 = vld [vmem:[%s2786 + $0x24a] sm:$0xff]
    %v3601 = vld [vmem:[%s2786 + $0x25a] sm:$0xff]
    %v3602 = vld [vmem:[%s2786 + $0x262] sm:$0xff]
    %v3603 = vld [vmem:[%s2786 + $0x272] sm:$0xff]
    %v3604 = vld [vmem:[%s2786 + $0x27a] sm:$0xff]
    %v3605 = vld [vmem:[%s2786 + $0x28a] sm:$0xff]
    %v3606 = vld [vmem:[%s2786 + $0x292] sm:$0xff]
    %v3607 = vld [vmem:[%s2786 + $0x2a2] sm:$0xff]
    %v3608 = vld [vmem:[%s2786 + $0x2aa] sm:$0xff]
    %v3609 = vld [vmem:[%s2786 + $0x2ba] sm:$0xff]
    %v3610 = vld [vmem:[%s2786 + $0x2c2] sm:$0xff]
    %v3611 = vld [vmem:[%s2786 + $0x2d2] sm:$0xff]
    %v3612 = vld [vmem:[%s2786 + $0x2da] sm:$0xff]
    %v3613 = vld [vmem:[%s2786 + $0x2ea] sm:$0xff]
    %v3614 = vld [vmem:[%s2786 + $0x2f2] sm:$0xff]
    %v3615 = vld [vmem:[%s2786 + $0x302] sm:$0xff]
    %v3616 = vld [vmem:[%s2786 + $0x30a] sm:$0xff]
    %v3617 = vld [vmem:[%s2786 + $0x31a] sm:$0xff]
    %v3618 = vld [vmem:[%s2786 + $0x322] sm:$0xff]
    %3619 = vst.msk [vmem:[#allocation3 + $0x10] sm:$0xff] %vm74, %v3555
    %3620 = vst.msk [vmem:[#allocation3 + $0x28] sm:$0xff] %vm74, %v3556
    %3621 = vst.msk [vmem:[#allocation3 + $0x40] sm:$0xff] %vm74, %v3557
    %3622 = vst.msk [vmem:[#allocation3 + $0x58] sm:$0xff] %vm74, %v3558
    %3623 = vst.msk [vmem:[#allocation3 + $0x70] sm:$0xff] %vm74, %v3559
    %3624 = vst.msk [vmem:[#allocation3 + $0x88] sm:$0xff] %vm74, %v3560
    %3625 = vst.msk [vmem:[#allocation3 + $0xa0] sm:$0xff] %vm74, %v3561
    %3626 = vst.msk [vmem:[#allocation3 + $0xb8] sm:$0xff] %vm74, %v3562
    %3627 = vst.msk [vmem:[#allocation3 + $0xd0] sm:$0xff] %vm74, %v3563
    %3628 = vst.msk [vmem:[#allocation3 + $0xe8] sm:$0xff] %vm74, %v3564
    %3629 = vst.msk [vmem:[#allocation3 + $0x100] sm:$0xff] %vm74, %v3565
    %3630 = vst.msk [vmem:[#allocation3 + $0x118] sm:$0xff] %vm74, %v3566
    %3631 = vst.msk [vmem:[#allocation3 + $0x130] sm:$0xff] %vm74, %v3567
    %3632 = vst.msk [vmem:[#allocation3 + $0x148] sm:$0xff] %vm74, %v3568
    %3633 = vst.msk [vmem:[#allocation3 + $0x160] sm:$0xff] %vm74, %v3569
    %3634 = vst.msk [vmem:[#allocation3 + $0x178] sm:$0xff] %vm74, %v3570
    %3635 = vst.msk [vmem:[#allocation3 + $0x190] sm:$0xff] %vm74, %v3571
    %3636 = vst.msk [vmem:[#allocation3 + $0x1a8] sm:$0xff] %vm74, %v3572
    %3637 = vst.msk [vmem:[#allocation3 + $0x1c0] sm:$0xff] %vm74, %v3573
    %3638 = vst.msk [vmem:[#allocation3 + $0x1d8] sm:$0xff] %vm74, %v3574
    %3639 = vst.msk [vmem:[#allocation3 + $0x1f0] sm:$0xff] %vm74, %v3575
    %3640 = vst.msk [vmem:[#allocation3 + $0x208] sm:$0xff] %vm74, %v3576
    %3641 = vst.msk [vmem:[#allocation3 + $0x220] sm:$0xff] %vm74, %v3577
    %3642 = vst.msk [vmem:[#allocation3 + $0x238] sm:$0xff] %vm74, %v3578
    %3643 = vst.msk [vmem:[#allocation3 + $0x250] sm:$0xff] %vm74, %v3579
    %3644 = vst.msk [vmem:[#allocation3 + $0x268] sm:$0xff] %vm74, %v3580
    %3645 = vst.msk [vmem:[#allocation3 + $0x280] sm:$0xff] %vm74, %v3581
    %3646 = vst.msk [vmem:[#allocation3 + $0x298] sm:$0xff] %vm74, %v3582
    %3647 = vst.msk [vmem:[#allocation3 + $0x2b0] sm:$0xff] %vm74, %v3583
    %3648 = vst.msk [vmem:[#allocation3 + $0x2c8] sm:$0xff] %vm74, %v3584
    %3649 = vst.msk [vmem:[#allocation3 + $0x2e0] sm:$0xff] %vm74, %v3585
    %3650 = vst.msk [vmem:[#allocation3 + $0x2f8] sm:$0xff] %vm74, %v3586
    %3651 = vst.msk [vmem:[#allocation3 + $0x310] sm:$0xff] %vm74, %v3587
    %3652 = vst.msk [vmem:[#allocation3 + $0x328] sm:$0xff] %vm74, %v3588
    %3653 = vst.msk [vmem:[#allocation3 + $0x340] sm:$0xff] %vm74, %v3589
    %3654 = vst.msk [vmem:[#allocation3 + $0x358] sm:$0xff] %vm74, %v3590
    %3655 = vst.msk [vmem:[#allocation3 + $0x370] sm:$0xff] %vm74, %v3591
    %3656 = vst.msk [vmem:[#allocation3 + $0x388] sm:$0xff] %vm74, %v3592
    %3657 = vst.msk [vmem:[#allocation3 + $0x3a0] sm:$0xff] %vm74, %v3593
    %3658 = vst.msk [vmem:[#allocation3 + $0x3b8] sm:$0xff] %vm74, %v3594
    %3659 = vst.msk [vmem:[#allocation3 + $0x3d0] sm:$0xff] %vm74, %v3595
    %3660 = vst.msk [vmem:[#allocation3 + $0x3e8] sm:$0xff] %vm74, %v3596
    %3661 = vst.msk [vmem:[#allocation3 + $0x400] sm:$0xff] %vm74, %v3597
    %3662 = vst.msk [vmem:[#allocation3 + $0x418] sm:$0xff] %vm74, %v3598
    %3663 = vst.msk [vmem:[#allocation3 + $0x430] sm:$0xff] %vm74, %v3599
    %3664 = vst.msk [vmem:[#allocation3 + $0x448] sm:$0xff] %vm74, %v3600
    %3665 = vst.msk [vmem:[#allocation3 + $0x460] sm:$0xff] %vm74, %v3601
    %3666 = vst.msk [vmem:[#allocation3 + $0x478] sm:$0xff] %vm74, %v3602
    %3667 = vst.msk [vmem:[#allocation3 + $0x490] sm:$0xff] %vm74, %v3603
    %3668 = vst.msk [vmem:[#allocation3 + $0x4a8] sm:$0xff] %vm74, %v3604
    %3669 = vst.msk [vmem:[#allocation3 + $0x4c0] sm:$0xff] %vm74, %v3605
    %3670 = vst.msk [vmem:[#allocation3 + $0x4d8] sm:$0xff] %vm74, %v3606
    %3671 = vst.msk [vmem:[#allocation3 + $0x4f0] sm:$0xff] %vm74, %v3607
    %3672 = vst.msk [vmem:[#allocation3 + $0x508] sm:$0xff] %vm74, %v3608
    %3673 = vst.msk [vmem:[#allocation3 + $0x520] sm:$0xff] %vm74, %v3609
    %3674 = vst.msk [vmem:[#allocation3 + $0x538] sm:$0xff] %vm74, %v3610
    %3675 = vst.msk [vmem:[#allocation3 + $0x550] sm:$0xff] %vm74, %v3611
    %3676 = vst.msk [vmem:[#allocation3 + $0x568] sm:$0xff] %vm74, %v3612
    %3677 = vst.msk [vmem:[#allocation3 + $0x580] sm:$0xff] %vm74, %v3613
    %3678 = vst.msk [vmem:[#allocation3 + $0x598] sm:$0xff] %vm74, %v3614
    %3679 = vst.msk [vmem:[#allocation3 + $0x5b0] sm:$0xff] %vm74, %v3615
    %3680 = vst.msk [vmem:[#allocation3 + $0x5c8] sm:$0xff] %vm74, %v3616
    %3681 = vst.msk [vmem:[#allocation3 + $0x5e0] sm:$0xff] %vm74, %v3617
    %3682 = vst.msk [vmem:[#allocation3 + $0x5f8] sm:$0xff] %vm74, %v3618
    %v3683 = vld [vmem:[#allocation3] sm:$0xff]
    %v3684 = vld [vmem:[#allocation3 + $0x8] sm:$0xff]
    %v3685 = vld [vmem:[#allocation3 + $0x10] sm:$0xff]
    %v3686 = vld [vmem:[#allocation3 + $0x18] sm:$0xff]
    %v3687 = vld [vmem:[#allocation3 + $0x20] sm:$0xff]
    %v3688 = vld [vmem:[#allocation3 + $0x28] sm:$0xff]
    %v3689 = vld [vmem:[#allocation3 + $0x30] sm:$0xff]
    %v3690 = vld [vmem:[#allocation3 + $0x38] sm:$0xff]
    %v3691 = vld [vmem:[#allocation3 + $0x40] sm:$0xff]
    %v3692 = vld [vmem:[#allocation3 + $0x48] sm:$0xff]
    %v3693 = vld [vmem:[#allocation3 + $0x50] sm:$0xff]
    %v3694 = vld [vmem:[#allocation3 + $0x58] sm:$0xff]
    %v3695 = vld [vmem:[#allocation3 + $0x60] sm:$0xff]
    %v3696 = vld [vmem:[#allocation3 + $0x68] sm:$0xff]
    %v3697 = vld [vmem:[#allocation3 + $0x70] sm:$0xff]
    %v3698 = vld [vmem:[#allocation3 + $0x78] sm:$0xff]
    %v3699 = vld [vmem:[#allocation3 + $0x80] sm:$0xff]
    %v3700 = vld [vmem:[#allocation3 + $0x88] sm:$0xff]
    %v3701 = vld [vmem:[#allocation3 + $0x90] sm:$0xff]
    %v3702 = vld [vmem:[#allocation3 + $0x98] sm:$0xff]
    %v3703 = vld [vmem:[#allocation3 + $0xa0] sm:$0xff]
    %v3704 = vld [vmem:[#allocation3 + $0xa8] sm:$0xff]
    %v3705 = vld [vmem:[#allocation3 + $0xb0] sm:$0xff]
    %v3706 = vld [vmem:[#allocation3 + $0xb8] sm:$0xff]
    %v3707 = vld [vmem:[#allocation3 + $0xc0] sm:$0xff]
    %v3708 = vld [vmem:[#allocation3 + $0xc8] sm:$0xff]
    %v3709 = vld [vmem:[#allocation3 + $0xd0] sm:$0xff]
    %v3710 = vld [vmem:[#allocation3 + $0xd8] sm:$0xff]
    %v3711 = vld [vmem:[#allocation3 + $0xe0] sm:$0xff]
    %v3712 = vld [vmem:[#allocation3 + $0xe8] sm:$0xff]
    %v3713 = vld [vmem:[#allocation3 + $0xf0] sm:$0xff]
    %v3714 = vld [vmem:[#allocation3 + $0xf8] sm:$0xff]
    %v3715 = vld [vmem:[#allocation3 + $0x100] sm:$0xff]
    %v3716 = vld [vmem:[#allocation3 + $0x108] sm:$0xff]
    %v3717 = vld [vmem:[#allocation3 + $0x110] sm:$0xff]
    %v3718 = vld [vmem:[#allocation3 + $0x118] sm:$0xff]
    %v3719 = vld [vmem:[#allocation3 + $0x120] sm:$0xff]
    %v3720 = vld [vmem:[#allocation3 + $0x128] sm:$0xff]
    %v3721 = vld [vmem:[#allocation3 + $0x130] sm:$0xff]
    %v3722 = vld [vmem:[#allocation3 + $0x138] sm:$0xff]
    %v3723 = vld [vmem:[#allocation3 + $0x140] sm:$0xff]
    %v3724 = vld [vmem:[#allocation3 + $0x148] sm:$0xff]
    %v3725 = vld [vmem:[#allocation3 + $0x150] sm:$0xff]
    %v3726 = vld [vmem:[#allocation3 + $0x158] sm:$0xff]
    %v3727 = vld [vmem:[#allocation3 + $0x160] sm:$0xff]
    %v3728 = vld [vmem:[#allocation3 + $0x168] sm:$0xff]
    %v3729 = vld [vmem:[#allocation3 + $0x170] sm:$0xff]
    %v3730 = vld [vmem:[#allocation3 + $0x178] sm:$0xff]
    %v3731 = vld [vmem:[#allocation3 + $0x180] sm:$0xff]
    %v3732 = vld [vmem:[#allocation3 + $0x188] sm:$0xff]
    %v3733 = vld [vmem:[#allocation3 + $0x190] sm:$0xff]
    %v3734 = vld [vmem:[#allocation3 + $0x198] sm:$0xff]
    %v3735 = vld [vmem:[#allocation3 + $0x1a0] sm:$0xff]
    %v3736 = vld [vmem:[#allocation3 + $0x1a8] sm:$0xff]
    %v3737 = vld [vmem:[#allocation3 + $0x1b0] sm:$0xff]
    %v3738 = vld [vmem:[#allocation3 + $0x1b8] sm:$0xff]
    %v3739 = vld [vmem:[#allocation3 + $0x1c0] sm:$0xff]
    %v3740 = vld [vmem:[#allocation3 + $0x1c8] sm:$0xff]
    %v3741 = vld [vmem:[#allocation3 + $0x1d0] sm:$0xff]
    %v3742 = vld [vmem:[#allocation3 + $0x1d8] sm:$0xff]
    %v3743 = vld [vmem:[#allocation3 + $0x1e0] sm:$0xff]
    %v3744 = vld [vmem:[#allocation3 + $0x1e8] sm:$0xff]
    %v3745 = vld [vmem:[#allocation3 + $0x1f0] sm:$0xff]
    %v3746 = vld [vmem:[#allocation3 + $0x1f8] sm:$0xff]
    %v3747 = vld [vmem:[#allocation3 + $0x200] sm:$0xff]
    %v3748 = vld [vmem:[#allocation3 + $0x208] sm:$0xff]
    %v3749 = vld [vmem:[#allocation3 + $0x210] sm:$0xff]
    %v3750 = vld [vmem:[#allocation3 + $0x218] sm:$0xff]
    %v3751 = vld [vmem:[#allocation3 + $0x220] sm:$0xff]
    %v3752 = vld [vmem:[#allocation3 + $0x228] sm:$0xff]
    %v3753 = vld [vmem:[#allocation3 + $0x230] sm:$0xff]
    %v3754 = vld [vmem:[#allocation3 + $0x238] sm:$0xff]
    %v3755 = vld [vmem:[#allocation3 + $0x240] sm:$0xff]
    %v3756 = vld [vmem:[#allocation3 + $0x248] sm:$0xff]
    %v3757 = vld [vmem:[#allocation3 + $0x250] sm:$0xff]
    %v3758 = vld [vmem:[#allocation3 + $0x258] sm:$0xff]
    %v3759 = vld [vmem:[#allocation3 + $0x260] sm:$0xff]
    %v3760 = vld [vmem:[#allocation3 + $0x268] sm:$0xff]
    %v3761 = vld [vmem:[#allocation3 + $0x270] sm:$0xff]
    %v3762 = vld [vmem:[#allocation3 + $0x278] sm:$0xff]
    %v3763 = vld [vmem:[#allocation3 + $0x280] sm:$0xff]
    %v3764 = vld [vmem:[#allocation3 + $0x288] sm:$0xff]
    %v3765 = vld [vmem:[#allocation3 + $0x290] sm:$0xff]
    %v3766 = vld [vmem:[#allocation3 + $0x298] sm:$0xff]
    %v3767 = vld [vmem:[#allocation3 + $0x2a0] sm:$0xff]
    %v3768 = vld [vmem:[#allocation3 + $0x2a8] sm:$0xff]
    %v3769 = vld [vmem:[#allocation3 + $0x2b0] sm:$0xff]
    %v3770 = vld [vmem:[#allocation3 + $0x2b8] sm:$0xff]
    %v3771 = vld [vmem:[#allocation3 + $0x2c0] sm:$0xff]
    %v3772 = vld [vmem:[#allocation3 + $0x2c8] sm:$0xff]
    %v3773 = vld [vmem:[#allocation3 + $0x2d0] sm:$0xff]
    %v3774 = vld [vmem:[#allocation3 + $0x2d8] sm:$0xff]
    %v3775 = vld [vmem:[#allocation3 + $0x2e0] sm:$0xff]
    %v3776 = vld [vmem:[#allocation3 + $0x2e8] sm:$0xff]
    %v3777 = vld [vmem:[#allocation3 + $0x2f0] sm:$0xff]
    %v3778 = vld [vmem:[#allocation3 + $0x2f8] sm:$0xff]
    %v3779 = vld [vmem:[#allocation3 + $0x300] sm:$0xff]
    %v3780 = vld [vmem:[#allocation3 + $0x308] sm:$0xff]
    %v3781 = vld [vmem:[#allocation3 + $0x310] sm:$0xff]
    %v3782 = vld [vmem:[#allocation3 + $0x318] sm:$0xff]
    %v3783 = vld [vmem:[#allocation3 + $0x320] sm:$0xff]
    %v3784 = vld [vmem:[#allocation3 + $0x328] sm:$0xff]
    %v3785 = vld [vmem:[#allocation3 + $0x330] sm:$0xff]
    %v3786 = vld [vmem:[#allocation3 + $0x338] sm:$0xff]
    %v3787 = vld [vmem:[#allocation3 + $0x340] sm:$0xff]
    %v3788 = vld [vmem:[#allocation3 + $0x348] sm:$0xff]
    %v3789 = vld [vmem:[#allocation3 + $0x350] sm:$0xff]
    %v3790 = vld [vmem:[#allocation3 + $0x358] sm:$0xff]
    %v3791 = vld [vmem:[#allocation3 + $0x360] sm:$0xff]
    %v3792 = vld [vmem:[#allocation3 + $0x368] sm:$0xff]
    %v3793 = vld [vmem:[#allocation3 + $0x370] sm:$0xff]
    %v3794 = vld [vmem:[#allocation3 + $0x378] sm:$0xff]
    %v3795 = vld [vmem:[#allocation3 + $0x380] sm:$0xff]
    %v3796 = vld [vmem:[#allocation3 + $0x388] sm:$0xff]
    %v3797 = vld [vmem:[#allocation3 + $0x390] sm:$0xff]
    %v3798 = vld [vmem:[#allocation3 + $0x398] sm:$0xff]
    %v3799 = vld [vmem:[#allocation3 + $0x3a0] sm:$0xff]
    %v3800 = vld [vmem:[#allocation3 + $0x3a8] sm:$0xff]
    %v3801 = vld [vmem:[#allocation3 + $0x3b0] sm:$0xff]
    %v3802 = vld [vmem:[#allocation3 + $0x3b8] sm:$0xff]
    %v3803 = vld [vmem:[#allocation3 + $0x3c0] sm:$0xff]
    %v3804 = vld [vmem:[#allocation3 + $0x3c8] sm:$0xff]
    %v3805 = vld [vmem:[#allocation3 + $0x3d0] sm:$0xff]
    %v3806 = vld [vmem:[#allocation3 + $0x3d8] sm:$0xff]
    %v3807 = vld [vmem:[#allocation3 + $0x3e0] sm:$0xff]
    %v3808 = vld [vmem:[#allocation3 + $0x3e8] sm:$0xff]
    %v3809 = vld [vmem:[#allocation3 + $0x3f0] sm:$0xff]
    %v3810 = vld [vmem:[#allocation3 + $0x3f8] sm:$0xff]
    %v3811 = vld [vmem:[#allocation3 + $0x400] sm:$0xff]
    %v3812 = vld [vmem:[#allocation3 + $0x408] sm:$0xff]
    %v3813 = vld [vmem:[#allocation3 + $0x410] sm:$0xff]
    %v3814 = vld [vmem:[#allocation3 + $0x418] sm:$0xff]
    %v3815 = vld [vmem:[#allocation3 + $0x420] sm:$0xff]
    %v3816 = vld [vmem:[#allocation3 + $0x428] sm:$0xff]
    %v3817 = vld [vmem:[#allocation3 + $0x430] sm:$0xff]
    %v3818 = vld [vmem:[#allocation3 + $0x438] sm:$0xff]
    %v3819 = vld [vmem:[#allocation3 + $0x440] sm:$0xff]
    %v3820 = vld [vmem:[#allocation3 + $0x448] sm:$0xff]
    %v3821 = vld [vmem:[#allocation3 + $0x450] sm:$0xff]
    %v3822 = vld [vmem:[#allocation3 + $0x458] sm:$0xff]
    %v3823 = vld [vmem:[#allocation3 + $0x460] sm:$0xff]
    %v3824 = vld [vmem:[#allocation3 + $0x468] sm:$0xff]
    %v3825 = vld [vmem:[#allocation3 + $0x470] sm:$0xff]
    %v3826 = vld [vmem:[#allocation3 + $0x478] sm:$0xff]
    %v3827 = vld [vmem:[#allocation3 + $0x480] sm:$0xff]
    %v3828 = vld [vmem:[#allocation3 + $0x488] sm:$0xff]
    %v3829 = vld [vmem:[#allocation3 + $0x490] sm:$0xff]
    %v3830 = vld [vmem:[#allocation3 + $0x498] sm:$0xff]
    %v3831 = vld [vmem:[#allocation3 + $0x4a0] sm:$0xff]
    %v3832 = vld [vmem:[#allocation3 + $0x4a8] sm:$0xff]
    %v3833 = vld [vmem:[#allocation3 + $0x4b0] sm:$0xff]
    %v3834 = vld [vmem:[#allocation3 + $0x4b8] sm:$0xff]
    %v3835 = vld [vmem:[#allocation3 + $0x4c0] sm:$0xff]
    %v3836 = vld [vmem:[#allocation3 + $0x4c8] sm:$0xff]
    %v3837 = vld [vmem:[#allocation3 + $0x4d0] sm:$0xff]
    %v3838 = vld [vmem:[#allocation3 + $0x4d8] sm:$0xff]
    %v3839 = vld [vmem:[#allocation3 + $0x4e0] sm:$0xff]
    %v3840 = vld [vmem:[#allocation3 + $0x4e8] sm:$0xff]
    %v3841 = vld [vmem:[#allocation3 + $0x4f0] sm:$0xff]
    %v3842 = vld [vmem:[#allocation3 + $0x4f8] sm:$0xff]
    %v3843 = vld [vmem:[#allocation3 + $0x500] sm:$0xff]
    %v3844 = vld [vmem:[#allocation3 + $0x508] sm:$0xff]
    %v3845 = vld [vmem:[#allocation3 + $0x510] sm:$0xff]
    %v3846 = vld [vmem:[#allocation3 + $0x518] sm:$0xff]
    %v3847 = vld [vmem:[#allocation3 + $0x520] sm:$0xff]
    %v3848 = vld [vmem:[#allocation3 + $0x528] sm:$0xff]
    %v3849 = vld [vmem:[#allocation3 + $0x530] sm:$0xff]
    %v3850 = vld [vmem:[#allocation3 + $0x538] sm:$0xff]
    %v3851 = vld [vmem:[#allocation3 + $0x540] sm:$0xff]
    %v3852 = vld [vmem:[#allocation3 + $0x548] sm:$0xff]
    %v3853 = vld [vmem:[#allocation3 + $0x550] sm:$0xff]
    %v3854 = vld [vmem:[#allocation3 + $0x558] sm:$0xff]
    %v3855 = vld [vmem:[#allocation3 + $0x560] sm:$0xff]
    %v3856 = vld [vmem:[#allocation3 + $0x568] sm:$0xff]
    %v3857 = vld [vmem:[#allocation3 + $0x570] sm:$0xff]
    %v3858 = vld [vmem:[#allocation3 + $0x578] sm:$0xff]
    %v3859 = vld [vmem:[#allocation3 + $0x580] sm:$0xff]
    %v3860 = vld [vmem:[#allocation3 + $0x588] sm:$0xff]
    %v3861 = vld [vmem:[#allocation3 + $0x590] sm:$0xff]
    %v3862 = vld [vmem:[#allocation3 + $0x598] sm:$0xff]
    %v3863 = vld [vmem:[#allocation3 + $0x5a0] sm:$0xff]
    %v3864 = vld [vmem:[#allocation3 + $0x5a8] sm:$0xff]
    %v3865 = vld [vmem:[#allocation3 + $0x5b0] sm:$0xff]
    %v3866 = vld [vmem:[#allocation3 + $0x5b8] sm:$0xff]
    %v3867 = vld [vmem:[#allocation3 + $0x5c0] sm:$0xff]
    %v3868 = vld [vmem:[#allocation3 + $0x5c8] sm:$0xff]
    %v3869 = vld [vmem:[#allocation3 + $0x5d0] sm:$0xff]
    %v3870 = vld [vmem:[#allocation3 + $0x5d8] sm:$0xff]
    %v3871 = vld [vmem:[#allocation3 + $0x5e0] sm:$0xff]
    %v3872 = vld [vmem:[#allocation3 + $0x5e8] sm:$0xff]
    %v3873 = vld [vmem:[#allocation3 + $0x5f0] sm:$0xff]
    %v3874 = vld [vmem:[#allocation3 + $0x5f8] sm:$0xff]
    %v3875 = vld [vmem:[#allocation7] sm:$0xff]
    %v3876 = vld [vmem:[#allocation7 + $0x8] sm:$0xff]
    %v3877 = vld [vmem:[#allocation7 + $0x10] sm:$0xff]
    %v3878 = vld [vmem:[#allocation7 + $0x18] sm:$0xff]
    %v3879 = vld [vmem:[#allocation7 + $0x20] sm:$0xff]
    %v3880 = vld [vmem:[#allocation7 + $0x28] sm:$0xff]
    %v3881 = vld [vmem:[#allocation7 + $0x30] sm:$0xff]
    %v3882 = vld [vmem:[#allocation7 + $0x38] sm:$0xff]
    %v3883 = vld [vmem:[#allocation7 + $0x40] sm:$0xff]
    %v3884 = vld [vmem:[#allocation7 + $0x48] sm:$0xff]
    %v3885 = vld [vmem:[#allocation7 + $0x50] sm:$0xff]
    %v3886 = vld [vmem:[#allocation7 + $0x58] sm:$0xff]
    %v3887 = vld [vmem:[#allocation7 + $0x60] sm:$0xff]
    %v3888 = vld [vmem:[#allocation7 + $0x68] sm:$0xff]
    %v3889 = vld [vmem:[#allocation7 + $0x70] sm:$0xff]
    %v3890 = vld [vmem:[#allocation7 + $0x78] sm:$0xff]
    %v3891 = vld [vmem:[#allocation7 + $0x80] sm:$0xff]
    %v3892 = vld [vmem:[#allocation7 + $0x88] sm:$0xff]
    %v3893 = vld [vmem:[#allocation7 + $0x90] sm:$0xff]
    %v3894 = vld [vmem:[#allocation7 + $0x98] sm:$0xff]
    %v3895 = vld [vmem:[#allocation7 + $0xa0] sm:$0xff]
    %v3896 = vld [vmem:[#allocation7 + $0xa8] sm:$0xff]
    %v3897 = vld [vmem:[#allocation7 + $0xb0] sm:$0xff]
    %v3898 = vld [vmem:[#allocation7 + $0xb8] sm:$0xff]
    %v3899 = vld [vmem:[#allocation7 + $0xc0] sm:$0xff]
    %v3900 = vld [vmem:[#allocation7 + $0xc8] sm:$0xff]
    %v3901 = vld [vmem:[#allocation7 + $0xd0] sm:$0xff]
    %v3902 = vld [vmem:[#allocation7 + $0xd8] sm:$0xff]
    %v3903 = vld [vmem:[#allocation7 + $0xe0] sm:$0xff]
    %v3904 = vld [vmem:[#allocation7 + $0xe8] sm:$0xff]
    %v3905 = vld [vmem:[#allocation7 + $0xf0] sm:$0xff]
    %v3906 = vld [vmem:[#allocation7 + $0xf8] sm:$0xff]
    %v3907 = vld [vmem:[#allocation7 + $0x100] sm:$0xff]
    %v3908 = vld [vmem:[#allocation7 + $0x108] sm:$0xff]
    %v3909 = vld [vmem:[#allocation7 + $0x110] sm:$0xff]
    %v3910 = vld [vmem:[#allocation7 + $0x118] sm:$0xff]
    %v3912 = vsel %vm74, %v3685, 0
    %v3915 = vsel %vm74, %v3688, 0
    %v3918 = vsel %vm74, %v3691, 0
    %v3921 = vsel %vm74, %v3694, 0
    %v3924 = vsel %vm74, %v3697, 0
    %v3927 = vsel %vm74, %v3700, 0
    %v3930 = vsel %vm74, %v3703, 0
    %v3933 = vsel %vm74, %v3706, 0
    %v3936 = vsel %vm74, %v3709, 0
    %v3939 = vsel %vm74, %v3712, 0
    %v3942 = vsel %vm74, %v3715, 0
    %v3945 = vsel %vm74, %v3718, 0
    %v3948 = vsel %vm74, %v3721, 0
    %v3951 = vsel %vm74, %v3724, 0
    %v3954 = vsel %vm74, %v3727, 0
    %v3957 = vsel %vm74, %v3730, 0
    %v3960 = vsel %vm74, %v3733, 0
    %v3963 = vsel %vm74, %v3736, 0
    %v3966 = vsel %vm74, %v3739, 0
    %v3969 = vsel %vm74, %v3742, 0
    %v3972 = vsel %vm74, %v3745, 0
    %v3975 = vsel %vm74, %v3748, 0
    %v3978 = vsel %vm74, %v3751, 0
    %v3981 = vsel %vm74, %v3754, 0
    %v3984 = vsel %vm74, %v3757, 0
    %v3987 = vsel %vm74, %v3760, 0
    %v3990 = vsel %vm74, %v3763, 0
    %v3993 = vsel %vm74, %v3766, 0
    %v3996 = vsel %vm74, %v3769, 0
    %v3999 = vsel %vm74, %v3772, 0
    %v4002 = vsel %vm74, %v3775, 0
    %v4005 = vsel %vm74, %v3778, 0
    %v4008 = vsel %vm74, %v3781, 0
    %v4011 = vsel %vm74, %v3784, 0
    %v4014 = vsel %vm74, %v3787, 0
    %v4017 = vsel %vm74, %v3790, 0
    %v4020 = vsel %vm74, %v3793, 0
    %v4023 = vsel %vm74, %v3796, 0
    %v4026 = vsel %vm74, %v3799, 0
    %v4029 = vsel %vm74, %v3802, 0
    %v4032 = vsel %vm74, %v3805, 0
    %v4035 = vsel %vm74, %v3808, 0
    %v4038 = vsel %vm74, %v3811, 0
    %v4041 = vsel %vm74, %v3814, 0
    %v4044 = vsel %vm74, %v3817, 0
    %v4047 = vsel %vm74, %v3820, 0
    %v4050 = vsel %vm74, %v3823, 0
    %v4053 = vsel %vm74, %v3826, 0
    %v4056 = vsel %vm74, %v3829, 0
    %v4059 = vsel %vm74, %v3832, 0
    %v4062 = vsel %vm74, %v3835, 0
    %v4065 = vsel %vm74, %v3838, 0
    %v4068 = vsel %vm74, %v3841, 0
    %v4071 = vsel %vm74, %v3844, 0
    %v4074 = vsel %vm74, %v3847, 0
    %v4077 = vsel %vm74, %v3850, 0
    %v4080 = vsel %vm74, %v3853, 0
    %v4083 = vsel %vm74, %v3856, 0
    %v4086 = vsel %vm74, %v3859, 0
    %v4089 = vsel %vm74, %v3862, 0
    %v4092 = vsel %vm74, %v3865, 0
    %v4095 = vsel %vm74, %v3868, 0
    %v4098 = vsel %vm74, %v3871, 0
    %v4101 = vsel %vm74, %v3874, 0
    %4103 = vmatpush.msra.mxu0 %v3890
    %4104 = vmatpush.msra.mxu0 %v3889
    %4105 = vmatpush.msra.mxu0 %v3888
    %4106 = vmatpush.msra.mxu0 %v3887
    %4107 = vmatpush.msra.mxu0 %v3886
    %4108 = vmatpush.msra.mxu0 %v3885
    %4109 = vmatpush.msra.mxu0 %v3884
    %4110 = vmatpush.msra.mxu0 %v3883
    %4111 = vmatpush.msra.mxu0 %v3882
    %4112 = vmatpush.msra.mxu0 %v3881
    %4113 = vmatpush.msra.mxu0 %v3880
    %4114 = vmatpush.msra.mxu0 %v3879
    %4115 = vmatpush.msra.mxu0 %v3878
    %4116 = vmatpush.msra.mxu0 %v3877
    %4117 = vmatpush.msra.mxu0 %v3876
    %4118 = vmatpush.msra.mxu0 %v3875
    %4119 = vmatmul.f32.gmra.mxu0 %v3683
    %v4120 = vpop.f32.mrf.mxu0
    %v4121 = vadd.f32 0.0, %v4120
    %4122 = vmatmul.f32.gmra.mxu0 %v3686
    %v4123 = vpop.f32.mrf.mxu0
    %v4124 = vadd.f32 0.0, %v4123
    %4125 = vmatmul.f32.gmra.mxu0 %v3689
    %v4126 = vpop.f32.mrf.mxu0
    %v4127 = vadd.f32 0.0, %v4126
    %4128 = vmatmul.f32.gmra.mxu0 %v3692
    %v4129 = vpop.f32.mrf.mxu0
    %v4130 = vadd.f32 0.0, %v4129
    %4131 = vmatmul.f32.gmra.mxu0 %v3695
    %v4132 = vpop.f32.mrf.mxu0
    %v4133 = vadd.f32 0.0, %v4132
    %4134 = vmatmul.f32.gmra.mxu0 %v3698
    %v4135 = vpop.f32.mrf.mxu0
    %v4136 = vadd.f32 0.0, %v4135
    %4137 = vmatmul.f32.gmra.mxu0 %v3701
    %v4138 = vpop.f32.mrf.mxu0
    %v4139 = vadd.f32 0.0, %v4138
    %4140 = vmatmul.f32.gmra.mxu0 %v3704
    %v4141 = vpop.f32.mrf.mxu0
    %v4142 = vadd.f32 0.0, %v4141
    %4143 = vmatmul.f32.gmra.mxu0 %v3707
    %v4144 = vpop.f32.mrf.mxu0
    %v4145 = vadd.f32 0.0, %v4144
    %4146 = vmatmul.f32.gmra.mxu0 %v3710
    %v4147 = vpop.f32.mrf.mxu0
    %v4148 = vadd.f32 0.0, %v4147
    %4149 = vmatmul.f32.gmra.mxu0 %v3713
    %v4150 = vpop.f32.mrf.mxu0
    %v4151 = vadd.f32 0.0, %v4150
    %4152 = vmatmul.f32.gmra.mxu0 %v3716
    %v4153 = vpop.f32.mrf.mxu0
    %v4154 = vadd.f32 0.0, %v4153
    %4155 = vmatmul.f32.gmra.mxu0 %v3719
    %v4156 = vpop.f32.mrf.mxu0
    %v4157 = vadd.f32 0.0, %v4156
    %4158 = vmatmul.f32.gmra.mxu0 %v3722
    %v4159 = vpop.f32.mrf.mxu0
    %v4160 = vadd.f32 0.0, %v4159
    %4161 = vmatmul.f32.gmra.mxu0 %v3725
    %v4162 = vpop.f32.mrf.mxu0
    %v4163 = vadd.f32 0.0, %v4162
    %4164 = vmatmul.f32.gmra.mxu0 %v3728
    %v4165 = vpop.f32.mrf.mxu0
    %v4166 = vadd.f32 0.0, %v4165
    %4167 = vmatmul.f32.gmra.mxu0 %v3731
    %v4168 = vpop.f32.mrf.mxu0
    %v4169 = vadd.f32 0.0, %v4168
    %4170 = vmatmul.f32.gmra.mxu0 %v3734
    %v4171 = vpop.f32.mrf.mxu0
    %v4172 = vadd.f32 0.0, %v4171
    %4173 = vmatmul.f32.gmra.mxu0 %v3737
    %v4174 = vpop.f32.mrf.mxu0
    %v4175 = vadd.f32 0.0, %v4174
    %4176 = vmatmul.f32.gmra.mxu0 %v3740
    %v4177 = vpop.f32.mrf.mxu0
    %v4178 = vadd.f32 0.0, %v4177
    %4179 = vmatmul.f32.gmra.mxu0 %v3743
    %v4180 = vpop.f32.mrf.mxu0
    %v4181 = vadd.f32 0.0, %v4180
    %4182 = vmatmul.f32.gmra.mxu0 %v3746
    %v4183 = vpop.f32.mrf.mxu0
    %v4184 = vadd.f32 0.0, %v4183
    %4185 = vmatmul.f32.gmra.mxu0 %v3749
    %v4186 = vpop.f32.mrf.mxu0
    %v4187 = vadd.f32 0.0, %v4186
    %4188 = vmatmul.f32.gmra.mxu0 %v3752
    %v4189 = vpop.f32.mrf.mxu0
    %v4190 = vadd.f32 0.0, %v4189
    %4191 = vmatmul.f32.gmra.mxu0 %v3755
    %v4192 = vpop.f32.mrf.mxu0
    %v4193 = vadd.f32 0.0, %v4192
    %4194 = vmatmul.f32.gmra.mxu0 %v3758
    %v4195 = vpop.f32.mrf.mxu0
    %v4196 = vadd.f32 0.0, %v4195
    %4197 = vmatmul.f32.gmra.mxu0 %v3761
    %v4198 = vpop.f32.mrf.mxu0
    %v4199 = vadd.f32 0.0, %v4198
    %4200 = vmatmul.f32.gmra.mxu0 %v3764
    %v4201 = vpop.f32.mrf.mxu0
    %v4202 = vadd.f32 0.0, %v4201
    %4203 = vmatmul.f32.gmra.mxu0 %v3767
    %v4204 = vpop.f32.mrf.mxu0
    %v4205 = vadd.f32 0.0, %v4204
    %4206 = vmatmul.f32.gmra.mxu0 %v3770
    %v4207 = vpop.f32.mrf.mxu0
    %v4208 = vadd.f32 0.0, %v4207
    %4209 = vmatmul.f32.gmra.mxu0 %v3773
    %v4210 = vpop.f32.mrf.mxu0
    %v4211 = vadd.f32 0.0, %v4210
    %4212 = vmatmul.f32.gmra.mxu0 %v3776
    %v4213 = vpop.f32.mrf.mxu0
    %v4214 = vadd.f32 0.0, %v4213
    %4215 = vmatmul.f32.gmra.mxu0 %v3779
    %v4216 = vpop.f32.mrf.mxu0
    %v4217 = vadd.f32 0.0, %v4216
    %4218 = vmatmul.f32.gmra.mxu0 %v3782
    %v4219 = vpop.f32.mrf.mxu0
    %v4220 = vadd.f32 0.0, %v4219
    %4221 = vmatmul.f32.gmra.mxu0 %v3785
    %v4222 = vpop.f32.mrf.mxu0
    %v4223 = vadd.f32 0.0, %v4222
    %4224 = vmatmul.f32.gmra.mxu0 %v3788
    %v4225 = vpop.f32.mrf.mxu0
    %v4226 = vadd.f32 0.0, %v4225
    %4227 = vmatmul.f32.gmra.mxu0 %v3791
    %v4228 = vpop.f32.mrf.mxu0
    %v4229 = vadd.f32 0.0, %v4228
    %4230 = vmatmul.f32.gmra.mxu0 %v3794
    %v4231 = vpop.f32.mrf.mxu0
    %v4232 = vadd.f32 0.0, %v4231
    %4233 = vmatmul.f32.gmra.mxu0 %v3797
    %v4234 = vpop.f32.mrf.mxu0
    %v4235 = vadd.f32 0.0, %v4234
    %4236 = vmatmul.f32.gmra.mxu0 %v3800
    %v4237 = vpop.f32.mrf.mxu0
    %v4238 = vadd.f32 0.0, %v4237
    %4239 = vmatmul.f32.gmra.mxu0 %v3803
    %v4240 = vpop.f32.mrf.mxu0
    %v4241 = vadd.f32 0.0, %v4240
    %4242 = vmatmul.f32.gmra.mxu0 %v3806
    %v4243 = vpop.f32.mrf.mxu0
    %v4244 = vadd.f32 0.0, %v4243
    %4245 = vmatmul.f32.gmra.mxu0 %v3809
    %v4246 = vpop.f32.mrf.mxu0
    %v4247 = vadd.f32 0.0, %v4246
    %4248 = vmatmul.f32.gmra.mxu0 %v3812
    %v4249 = vpop.f32.mrf.mxu0
    %v4250 = vadd.f32 0.0, %v4249
    %4251 = vmatmul.f32.gmra.mxu0 %v3815
    %v4252 = vpop.f32.mrf.mxu0
    %v4253 = vadd.f32 0.0, %v4252
    %4254 = vmatmul.f32.gmra.mxu0 %v3818
    %v4255 = vpop.f32.mrf.mxu0
    %v4256 = vadd.f32 0.0, %v4255
    %4257 = vmatmul.f32.gmra.mxu0 %v3821
    %v4258 = vpop.f32.mrf.mxu0
    %v4259 = vadd.f32 0.0, %v4258
    %4260 = vmatmul.f32.gmra.mxu0 %v3824
    %v4261 = vpop.f32.mrf.mxu0
    %v4262 = vadd.f32 0.0, %v4261
    %4263 = vmatmul.f32.gmra.mxu0 %v3827
    %v4264 = vpop.f32.mrf.mxu0
    %v4265 = vadd.f32 0.0, %v4264
    %4266 = vmatmul.f32.gmra.mxu0 %v3830
    %v4267 = vpop.f32.mrf.mxu0
    %v4268 = vadd.f32 0.0, %v4267
    %4269 = vmatmul.f32.gmra.mxu0 %v3833
    %v4270 = vpop.f32.mrf.mxu0
    %v4271 = vadd.f32 0.0, %v4270
    %4272 = vmatmul.f32.gmra.mxu0 %v3836
    %v4273 = vpop.f32.mrf.mxu0
    %v4274 = vadd.f32 0.0, %v4273
    %4275 = vmatmul.f32.gmra.mxu0 %v3839
    %v4276 = vpop.f32.mrf.mxu0
    %v4277 = vadd.f32 0.0, %v4276
    %4278 = vmatmul.f32.gmra.mxu0 %v3842
    %v4279 = vpop.f32.mrf.mxu0
    %v4280 = vadd.f32 0.0, %v4279
    %4281 = vmatmul.f32.gmra.mxu0 %v3845
    %v4282 = vpop.f32.mrf.mxu0
    %v4283 = vadd.f32 0.0, %v4282
    %4284 = vmatmul.f32.gmra.mxu0 %v3848
    %v4285 = vpop.f32.mrf.mxu0
    %v4286 = vadd.f32 0.0, %v4285
    %4287 = vmatmul.f32.gmra.mxu0 %v3851
    %v4288 = vpop.f32.mrf.mxu0
    %v4289 = vadd.f32 0.0, %v4288
    %4290 = vmatmul.f32.gmra.mxu0 %v3854
    %v4291 = vpop.f32.mrf.mxu0
    %v4292 = vadd.f32 0.0, %v4291
    %4293 = vmatmul.f32.gmra.mxu0 %v3857
    %v4294 = vpop.f32.mrf.mxu0
    %v4295 = vadd.f32 0.0, %v4294
    %4296 = vmatmul.f32.gmra.mxu0 %v3860
    %v4297 = vpop.f32.mrf.mxu0
    %v4298 = vadd.f32 0.0, %v4297
    %4299 = vmatmul.f32.gmra.mxu0 %v3863
    %v4300 = vpop.f32.mrf.mxu0
    %v4301 = vadd.f32 0.0, %v4300
    %4302 = vmatmul.f32.gmra.mxu0 %v3866
    %v4303 = vpop.f32.mrf.mxu0
    %v4304 = vadd.f32 0.0, %v4303
    %4305 = vmatmul.f32.gmra.mxu0 %v3869
    %v4306 = vpop.f32.mrf.mxu0
    %v4307 = vadd.f32 0.0, %v4306
    %4308 = vmatmul.f32.gmra.mxu0 %v3872
    %v4309 = vpop.f32.mrf.mxu0
    %v4310 = vadd.f32 0.0, %v4309
    %4311 = vdwg.mxu0
    %4312 = vmatpush.msra.mxu0 %v3906
    %4313 = vmatpush.msra.mxu0 %v3905
    %4314 = vmatpush.msra.mxu0 %v3904
    %4315 = vmatpush.msra.mxu0 %v3903
    %4316 = vmatpush.msra.mxu0 %v3902
    %4317 = vmatpush.msra.mxu0 %v3901
    %4318 = vmatpush.msra.mxu0 %v3900
    %4319 = vmatpush.msra.mxu0 %v3899
    %4320 = vmatpush.msra.mxu0 %v3898
    %4321 = vmatpush.msra.mxu0 %v3897
    %4322 = vmatpush.msra.mxu0 %v3896
    %4323 = vmatpush.msra.mxu0 %v3895
    %4324 = vmatpush.msra.mxu0 %v3894
    %4325 = vmatpush.msra.mxu0 %v3893
    %4326 = vmatpush.msra.mxu0 %v3892
    %4327 = vmatpush.msra.mxu0 %v3891
    %4328 = vmatmul.f32.gmra.mxu0 %v3684
    %v4329 = vpop.f32.mrf.mxu0
    %v4330 = vadd.f32 %v4121, %v4329
    %4331 = vmatmul.f32.gmra.mxu0 %v3687
    %v4332 = vpop.f32.mrf.mxu0
    %v4333 = vadd.f32 %v4124, %v4332
    %4334 = vmatmul.f32.gmra.mxu0 %v3690
    %v4335 = vpop.f32.mrf.mxu0
    %v4336 = vadd.f32 %v4127, %v4335
    %4337 = vmatmul.f32.gmra.mxu0 %v3693
    %v4338 = vpop.f32.mrf.mxu0
    %v4339 = vadd.f32 %v4130, %v4338
    %4340 = vmatmul.f32.gmra.mxu0 %v3696
    %v4341 = vpop.f32.mrf.mxu0
    %v4342 = vadd.f32 %v4133, %v4341
    %4343 = vmatmul.f32.gmra.mxu0 %v3699
    %v4344 = vpop.f32.mrf.mxu0
    %v4345 = vadd.f32 %v4136, %v4344
    %4346 = vmatmul.f32.gmra.mxu0 %v3702
    %v4347 = vpop.f32.mrf.mxu0
    %v4348 = vadd.f32 %v4139, %v4347
    %4349 = vmatmul.f32.gmra.mxu0 %v3705
    %v4350 = vpop.f32.mrf.mxu0
    %v4351 = vadd.f32 %v4142, %v4350
    %4352 = vmatmul.f32.gmra.mxu0 %v3708
    %v4353 = vpop.f32.mrf.mxu0
    %v4354 = vadd.f32 %v4145, %v4353
    %4355 = vmatmul.f32.gmra.mxu0 %v3711
    %v4356 = vpop.f32.mrf.mxu0
    %v4357 = vadd.f32 %v4148, %v4356
    %4358 = vmatmul.f32.gmra.mxu0 %v3714
    %v4359 = vpop.f32.mrf.mxu0
    %v4360 = vadd.f32 %v4151, %v4359
    %4361 = vmatmul.f32.gmra.mxu0 %v3717
    %v4362 = vpop.f32.mrf.mxu0
    %v4363 = vadd.f32 %v4154, %v4362
    %4364 = vmatmul.f32.gmra.mxu0 %v3720
    %v4365 = vpop.f32.mrf.mxu0
    %v4366 = vadd.f32 %v4157, %v4365
    %4367 = vmatmul.f32.gmra.mxu0 %v3723
    %v4368 = vpop.f32.mrf.mxu0
    %v4369 = vadd.f32 %v4160, %v4368
    %4370 = vmatmul.f32.gmra.mxu0 %v3726
    %v4371 = vpop.f32.mrf.mxu0
    %v4372 = vadd.f32 %v4163, %v4371
    %4373 = vmatmul.f32.gmra.mxu0 %v3729
    %v4374 = vpop.f32.mrf.mxu0
    %v4375 = vadd.f32 %v4166, %v4374
    %4376 = vmatmul.f32.gmra.mxu0 %v3732
    %v4377 = vpop.f32.mrf.mxu0
    %v4378 = vadd.f32 %v4169, %v4377
    %4379 = vmatmul.f32.gmra.mxu0 %v3735
    %v4380 = vpop.f32.mrf.mxu0
    %v4381 = vadd.f32 %v4172, %v4380
    %4382 = vmatmul.f32.gmra.mxu0 %v3738
    %v4383 = vpop.f32.mrf.mxu0
    %v4384 = vadd.f32 %v4175, %v4383
    %4385 = vmatmul.f32.gmra.mxu0 %v3741
    %v4386 = vpop.f32.mrf.mxu0
    %v4387 = vadd.f32 %v4178, %v4386
    %4388 = vmatmul.f32.gmra.mxu0 %v3744
    %v4389 = vpop.f32.mrf.mxu0
    %v4390 = vadd.f32 %v4181, %v4389
    %4391 = vmatmul.f32.gmra.mxu0 %v3747
    %v4392 = vpop.f32.mrf.mxu0
    %v4393 = vadd.f32 %v4184, %v4392
    %4394 = vmatmul.f32.gmra.mxu0 %v3750
    %v4395 = vpop.f32.mrf.mxu0
    %v4396 = vadd.f32 %v4187, %v4395
    %4397 = vmatmul.f32.gmra.mxu0 %v3753
    %v4398 = vpop.f32.mrf.mxu0
    %v4399 = vadd.f32 %v4190, %v4398
    %4400 = vmatmul.f32.gmra.mxu0 %v3756
    %v4401 = vpop.f32.mrf.mxu0
    %v4402 = vadd.f32 %v4193, %v4401
    %4403 = vmatmul.f32.gmra.mxu0 %v3759
    %v4404 = vpop.f32.mrf.mxu0
    %v4405 = vadd.f32 %v4196, %v4404
    %4406 = vmatmul.f32.gmra.mxu0 %v3762
    %v4407 = vpop.f32.mrf.mxu0
    %v4408 = vadd.f32 %v4199, %v4407
    %4409 = vmatmul.f32.gmra.mxu0 %v3765
    %v4410 = vpop.f32.mrf.mxu0
    %v4411 = vadd.f32 %v4202, %v4410
    %4412 = vmatmul.f32.gmra.mxu0 %v3768
    %v4413 = vpop.f32.mrf.mxu0
    %v4414 = vadd.f32 %v4205, %v4413
    %4415 = vmatmul.f32.gmra.mxu0 %v3771
    %v4416 = vpop.f32.mrf.mxu0
    %v4417 = vadd.f32 %v4208, %v4416
    %4418 = vmatmul.f32.gmra.mxu0 %v3774
    %v4419 = vpop.f32.mrf.mxu0
    %v4420 = vadd.f32 %v4211, %v4419
    %4421 = vmatmul.f32.gmra.mxu0 %v3777
    %v4422 = vpop.f32.mrf.mxu0
    %v4423 = vadd.f32 %v4214, %v4422
    %4424 = vmatmul.f32.gmra.mxu0 %v3780
    %v4425 = vpop.f32.mrf.mxu0
    %v4426 = vadd.f32 %v4217, %v4425
    %4427 = vmatmul.f32.gmra.mxu0 %v3783
    %v4428 = vpop.f32.mrf.mxu0
    %v4429 = vadd.f32 %v4220, %v4428
    %4430 = vmatmul.f32.gmra.mxu0 %v3786
    %v4431 = vpop.f32.mrf.mxu0
    %v4432 = vadd.f32 %v4223, %v4431
    %4433 = vmatmul.f32.gmra.mxu0 %v3789
    %v4434 = vpop.f32.mrf.mxu0
    %v4435 = vadd.f32 %v4226, %v4434
    %4436 = vmatmul.f32.gmra.mxu0 %v3792
    %v4437 = vpop.f32.mrf.mxu0
    %v4438 = vadd.f32 %v4229, %v4437
    %4439 = vmatmul.f32.gmra.mxu0 %v3795
    %v4440 = vpop.f32.mrf.mxu0
    %v4441 = vadd.f32 %v4232, %v4440
    %4442 = vmatmul.f32.gmra.mxu0 %v3798
    %v4443 = vpop.f32.mrf.mxu0
    %v4444 = vadd.f32 %v4235, %v4443
    %4445 = vmatmul.f32.gmra.mxu0 %v3801
    %v4446 = vpop.f32.mrf.mxu0
    %v4447 = vadd.f32 %v4238, %v4446
    %4448 = vmatmul.f32.gmra.mxu0 %v3804
    %v4449 = vpop.f32.mrf.mxu0
    %v4450 = vadd.f32 %v4241, %v4449
    %4451 = vmatmul.f32.gmra.mxu0 %v3807
    %v4452 = vpop.f32.mrf.mxu0
    %v4453 = vadd.f32 %v4244, %v4452
    %4454 = vmatmul.f32.gmra.mxu0 %v3810
    %v4455 = vpop.f32.mrf.mxu0
    %v4456 = vadd.f32 %v4247, %v4455
    %4457 = vmatmul.f32.gmra.mxu0 %v3813
    %v4458 = vpop.f32.mrf.mxu0
    %v4459 = vadd.f32 %v4250, %v4458
    %4460 = vmatmul.f32.gmra.mxu0 %v3816
    %v4461 = vpop.f32.mrf.mxu0
    %v4462 = vadd.f32 %v4253, %v4461
    %4463 = vmatmul.f32.gmra.mxu0 %v3819
    %v4464 = vpop.f32.mrf.mxu0
    %v4465 = vadd.f32 %v4256, %v4464
    %4466 = vmatmul.f32.gmra.mxu0 %v3822
    %v4467 = vpop.f32.mrf.mxu0
    %v4468 = vadd.f32 %v4259, %v4467
    %4469 = vmatmul.f32.gmra.mxu0 %v3825
    %v4470 = vpop.f32.mrf.mxu0
    %v4471 = vadd.f32 %v4262, %v4470
    %4472 = vmatmul.f32.gmra.mxu0 %v3828
    %v4473 = vpop.f32.mrf.mxu0
    %v4474 = vadd.f32 %v4265, %v4473
    %4475 = vmatmul.f32.gmra.mxu0 %v3831
    %v4476 = vpop.f32.mrf.mxu0
    %v4477 = vadd.f32 %v4268, %v4476
    %4478 = vmatmul.f32.gmra.mxu0 %v3834
    %v4479 = vpop.f32.mrf.mxu0
    %v4480 = vadd.f32 %v4271, %v4479
    %4481 = vmatmul.f32.gmra.mxu0 %v3837
    %v4482 = vpop.f32.mrf.mxu0
    %v4483 = vadd.f32 %v4274, %v4482
    %4484 = vmatmul.f32.gmra.mxu0 %v3840
    %v4485 = vpop.f32.mrf.mxu0
    %v4486 = vadd.f32 %v4277, %v4485
    %4487 = vmatmul.f32.gmra.mxu0 %v3843
    %v4488 = vpop.f32.mrf.mxu0
    %v4489 = vadd.f32 %v4280, %v4488
    %4490 = vmatmul.f32.gmra.mxu0 %v3846
    %v4491 = vpop.f32.mrf.mxu0
    %v4492 = vadd.f32 %v4283, %v4491
    %4493 = vmatmul.f32.gmra.mxu0 %v3849
    %v4494 = vpop.f32.mrf.mxu0
    %v4495 = vadd.f32 %v4286, %v4494
    %4496 = vmatmul.f32.gmra.mxu0 %v3852
    %v4497 = vpop.f32.mrf.mxu0
    %v4498 = vadd.f32 %v4289, %v4497
    %4499 = vmatmul.f32.gmra.mxu0 %v3855
    %v4500 = vpop.f32.mrf.mxu0
    %v4501 = vadd.f32 %v4292, %v4500
    %4502 = vmatmul.f32.gmra.mxu0 %v3858
    %v4503 = vpop.f32.mrf.mxu0
    %v4504 = vadd.f32 %v4295, %v4503
    %4505 = vmatmul.f32.gmra.mxu0 %v3861
    %v4506 = vpop.f32.mrf.mxu0
    %v4507 = vadd.f32 %v4298, %v4506
    %4508 = vmatmul.f32.gmra.mxu0 %v3864
    %v4509 = vpop.f32.mrf.mxu0
    %v4510 = vadd.f32 %v4301, %v4509
    %4511 = vmatmul.f32.gmra.mxu0 %v3867
    %v4512 = vpop.f32.mrf.mxu0
    %v4513 = vadd.f32 %v4304, %v4512
    %4514 = vmatmul.f32.gmra.mxu0 %v3870
    %v4515 = vpop.f32.mrf.mxu0
    %v4516 = vadd.f32 %v4307, %v4515
    %4517 = vmatmul.f32.gmra.mxu0 %v3873
    %v4518 = vpop.f32.mrf.mxu0
    %v4519 = vadd.f32 %v4310, %v4518
    %4520 = vdwg.mxu0
    %4521 = vmatpush.msra.mxu0 0.0
    %4522 = vmatpush.msra.mxu0 0.0
    %4523 = vmatpush.msra.mxu0 0.0
    %4524 = vmatpush.msra.mxu0 0.0
    %4525 = vmatpush.msra.mxu0 0.0
    %4526 = vmatpush.msra.mxu0 0.0
    %4527 = vmatpush.msra.mxu0 0.0
    %4528 = vmatpush.msra.mxu0 0.0
    %4529 = vmatpush.msra.mxu0 0.0
    %4530 = vmatpush.msra.mxu0 0.0
    %4531 = vmatpush.msra.mxu0 0.0
    %4532 = vmatpush.msra.mxu0 0.0
    %4533 = vmatpush.msra.mxu0 %v3910
    %4534 = vmatpush.msra.mxu0 %v3909
    %4535 = vmatpush.msra.mxu0 %v3908
    %4536 = vmatpush.msra.mxu0 %v3907
    %4537 = vmatmul.f32.gmra.mxu0 %v3912
    %v4538 = vpop.f32.mrf.mxu0
    %v4539 = vadd.f32 %v4330, %v4538
    %4540 = vmatmul.f32.gmra.mxu0 %v3915
    %v4541 = vpop.f32.mrf.mxu0
    %v4542 = vadd.f32 %v4333, %v4541
    %4543 = vmatmul.f32.gmra.mxu0 %v3918
    %v4544 = vpop.f32.mrf.mxu0
    %v4545 = vadd.f32 %v4336, %v4544
    %4546 = vmatmul.f32.gmra.mxu0 %v3921
    %v4547 = vpop.f32.mrf.mxu0
    %v4548 = vadd.f32 %v4339, %v4547
    %4549 = vmatmul.f32.gmra.mxu0 %v3924
    %v4550 = vpop.f32.mrf.mxu0
    %v4551 = vadd.f32 %v4342, %v4550
    %4552 = vmatmul.f32.gmra.mxu0 %v3927
    %v4553 = vpop.f32.mrf.mxu0
    %v4554 = vadd.f32 %v4345, %v4553
    %4555 = vmatmul.f32.gmra.mxu0 %v3930
    %v4556 = vpop.f32.mrf.mxu0
    %v4557 = vadd.f32 %v4348, %v4556
    %4558 = vmatmul.f32.gmra.mxu0 %v3933
    %v4559 = vpop.f32.mrf.mxu0
    %v4560 = vadd.f32 %v4351, %v4559
    %4561 = vmatmul.f32.gmra.mxu0 %v3936
    %v4562 = vpop.f32.mrf.mxu0
    %v4563 = vadd.f32 %v4354, %v4562
    %4564 = vmatmul.f32.gmra.mxu0 %v3939
    %v4565 = vpop.f32.mrf.mxu0
    %v4566 = vadd.f32 %v4357, %v4565
    %4567 = vmatmul.f32.gmra.mxu0 %v3942
    %v4568 = vpop.f32.mrf.mxu0
    %v4569 = vadd.f32 %v4360, %v4568
    %4570 = vmatmul.f32.gmra.mxu0 %v3945
    %v4571 = vpop.f32.mrf.mxu0
    %v4572 = vadd.f32 %v4363, %v4571
    %4573 = vmatmul.f32.gmra.mxu0 %v3948
    %v4574 = vpop.f32.mrf.mxu0
    %v4575 = vadd.f32 %v4366, %v4574
    %4576 = vmatmul.f32.gmra.mxu0 %v3951
    %v4577 = vpop.f32.mrf.mxu0
    %v4578 = vadd.f32 %v4369, %v4577
    %4579 = vmatmul.f32.gmra.mxu0 %v3954
    %v4580 = vpop.f32.mrf.mxu0
    %v4581 = vadd.f32 %v4372, %v4580
    %4582 = vmatmul.f32.gmra.mxu0 %v3957
    %v4583 = vpop.f32.mrf.mxu0
    %v4584 = vadd.f32 %v4375, %v4583
    %4585 = vmatmul.f32.gmra.mxu0 %v3960
    %v4586 = vpop.f32.mrf.mxu0
    %v4587 = vadd.f32 %v4378, %v4586
    %4588 = vmatmul.f32.gmra.mxu0 %v3963
    %v4589 = vpop.f32.mrf.mxu0
    %v4590 = vadd.f32 %v4381, %v4589
    %4591 = vmatmul.f32.gmra.mxu0 %v3966
    %v4592 = vpop.f32.mrf.mxu0
    %v4593 = vadd.f32 %v4384, %v4592
    %4594 = vmatmul.f32.gmra.mxu0 %v3969
    %v4595 = vpop.f32.mrf.mxu0
    %v4596 = vadd.f32 %v4387, %v4595
    %4597 = vmatmul.f32.gmra.mxu0 %v3972
    %v4598 = vpop.f32.mrf.mxu0
    %v4599 = vadd.f32 %v4390, %v4598
    %4600 = vmatmul.f32.gmra.mxu0 %v3975
    %v4601 = vpop.f32.mrf.mxu0
    %v4602 = vadd.f32 %v4393, %v4601
    %4603 = vmatmul.f32.gmra.mxu0 %v3978
    %v4604 = vpop.f32.mrf.mxu0
    %v4605 = vadd.f32 %v4396, %v4604
    %4606 = vmatmul.f32.gmra.mxu0 %v3981
    %v4607 = vpop.f32.mrf.mxu0
    %v4608 = vadd.f32 %v4399, %v4607
    %4609 = vmatmul.f32.gmra.mxu0 %v3984
    %v4610 = vpop.f32.mrf.mxu0
    %v4611 = vadd.f32 %v4402, %v4610
    %4612 = vmatmul.f32.gmra.mxu0 %v3987
    %v4613 = vpop.f32.mrf.mxu0
    %v4614 = vadd.f32 %v4405, %v4613
    %4615 = vmatmul.f32.gmra.mxu0 %v3990
    %v4616 = vpop.f32.mrf.mxu0
    %v4617 = vadd.f32 %v4408, %v4616
    %4618 = vmatmul.f32.gmra.mxu0 %v3993
    %v4619 = vpop.f32.mrf.mxu0
    %v4620 = vadd.f32 %v4411, %v4619
    %4621 = vmatmul.f32.gmra.mxu0 %v3996
    %v4622 = vpop.f32.mrf.mxu0
    %v4623 = vadd.f32 %v4414, %v4622
    %4624 = vmatmul.f32.gmra.mxu0 %v3999
    %v4625 = vpop.f32.mrf.mxu0
    %v4626 = vadd.f32 %v4417, %v4625
    %4627 = vmatmul.f32.gmra.mxu0 %v4002
    %v4628 = vpop.f32.mrf.mxu0
    %v4629 = vadd.f32 %v4420, %v4628
    %4630 = vmatmul.f32.gmra.mxu0 %v4005
    %v4631 = vpop.f32.mrf.mxu0
    %v4632 = vadd.f32 %v4423, %v4631
    %4633 = vmatmul.f32.gmra.mxu0 %v4008
    %v4634 = vpop.f32.mrf.mxu0
    %v4635 = vadd.f32 %v4426, %v4634
    %4636 = vmatmul.f32.gmra.mxu0 %v4011
    %v4637 = vpop.f32.mrf.mxu0
    %v4638 = vadd.f32 %v4429, %v4637
    %4639 = vmatmul.f32.gmra.mxu0 %v4014
    %v4640 = vpop.f32.mrf.mxu0
    %v4641 = vadd.f32 %v4432, %v4640
    %4642 = vmatmul.f32.gmra.mxu0 %v4017
    %v4643 = vpop.f32.mrf.mxu0
    %v4644 = vadd.f32 %v4435, %v4643
    %4645 = vmatmul.f32.gmra.mxu0 %v4020
    %v4646 = vpop.f32.mrf.mxu0
    %v4647 = vadd.f32 %v4438, %v4646
    %4648 = vmatmul.f32.gmra.mxu0 %v4023
    %v4649 = vpop.f32.mrf.mxu0
    %v4650 = vadd.f32 %v4441, %v4649
    %4651 = vmatmul.f32.gmra.mxu0 %v4026
    %v4652 = vpop.f32.mrf.mxu0
    %v4653 = vadd.f32 %v4444, %v4652
    %4654 = vmatmul.f32.gmra.mxu0 %v4029
    %v4655 = vpop.f32.mrf.mxu0
    %v4656 = vadd.f32 %v4447, %v4655
    %4657 = vmatmul.f32.gmra.mxu0 %v4032
    %v4658 = vpop.f32.mrf.mxu0
    %v4659 = vadd.f32 %v4450, %v4658
    %4660 = vmatmul.f32.gmra.mxu0 %v4035
    %v4661 = vpop.f32.mrf.mxu0
    %v4662 = vadd.f32 %v4453, %v4661
    %4663 = vmatmul.f32.gmra.mxu0 %v4038
    %v4664 = vpop.f32.mrf.mxu0
    %v4665 = vadd.f32 %v4456, %v4664
    %4666 = vmatmul.f32.gmra.mxu0 %v4041
    %v4667 = vpop.f32.mrf.mxu0
    %v4668 = vadd.f32 %v4459, %v4667
    %4669 = vmatmul.f32.gmra.mxu0 %v4044
    %v4670 = vpop.f32.mrf.mxu0
    %v4671 = vadd.f32 %v4462, %v4670
    %4672 = vmatmul.f32.gmra.mxu0 %v4047
    %v4673 = vpop.f32.mrf.mxu0
    %v4674 = vadd.f32 %v4465, %v4673
    %4675 = vmatmul.f32.gmra.mxu0 %v4050
    %v4676 = vpop.f32.mrf.mxu0
    %v4677 = vadd.f32 %v4468, %v4676
    %4678 = vmatmul.f32.gmra.mxu0 %v4053
    %v4679 = vpop.f32.mrf.mxu0
    %v4680 = vadd.f32 %v4471, %v4679
    %4681 = vmatmul.f32.gmra.mxu0 %v4056
    %v4682 = vpop.f32.mrf.mxu0
    %v4683 = vadd.f32 %v4474, %v4682
    %4684 = vmatmul.f32.gmra.mxu0 %v4059
    %v4685 = vpop.f32.mrf.mxu0
    %v4686 = vadd.f32 %v4477, %v4685
    %4687 = vmatmul.f32.gmra.mxu0 %v4062
    %v4688 = vpop.f32.mrf.mxu0
    %v4689 = vadd.f32 %v4480, %v4688
    %4690 = vmatmul.f32.gmra.mxu0 %v4065
    %v4691 = vpop.f32.mrf.mxu0
    %v4692 = vadd.f32 %v4483, %v4691
    %4693 = vmatmul.f32.gmra.mxu0 %v4068
    %v4694 = vpop.f32.mrf.mxu0
    %v4695 = vadd.f32 %v4486, %v4694
    %4696 = vmatmul.f32.gmra.mxu0 %v4071
    %v4697 = vpop.f32.mrf.mxu0
    %v4698 = vadd.f32 %v4489, %v4697
    %4699 = vmatmul.f32.gmra.mxu0 %v4074
    %v4700 = vpop.f32.mrf.mxu0
    %v4701 = vadd.f32 %v4492, %v4700
    %4702 = vmatmul.f32.gmra.mxu0 %v4077
    %v4703 = vpop.f32.mrf.mxu0
    %v4704 = vadd.f32 %v4495, %v4703
    %4705 = vmatmul.f32.gmra.mxu0 %v4080
    %v4706 = vpop.f32.mrf.mxu0
    %v4707 = vadd.f32 %v4498, %v4706
    %4708 = vmatmul.f32.gmra.mxu0 %v4083
    %v4709 = vpop.f32.mrf.mxu0
    %v4710 = vadd.f32 %v4501, %v4709
    %4711 = vmatmul.f32.gmra.mxu0 %v4086
    %v4712 = vpop.f32.mrf.mxu0
    %v4713 = vadd.f32 %v4504, %v4712
    %4714 = vmatmul.f32.gmra.mxu0 %v4089
    %v4715 = vpop.f32.mrf.mxu0
    %v4716 = vadd.f32 %v4507, %v4715
    %4717 = vmatmul.f32.gmra.mxu0 %v4092
    %v4718 = vpop.f32.mrf.mxu0
    %v4719 = vadd.f32 %v4510, %v4718
    %4720 = vmatmul.f32.gmra.mxu0 %v4095
    %v4721 = vpop.f32.mrf.mxu0
    %v4722 = vadd.f32 %v4513, %v4721
    %4723 = vmatmul.f32.gmra.mxu0 %v4098
    %v4724 = vpop.f32.mrf.mxu0
    %v4725 = vadd.f32 %v4516, %v4724
    %4726 = vmatmul.f32.gmra.mxu0 %v4101
    %v4727 = vpop.f32.mrf.mxu0
    %v4728 = vadd.f32 %v4519, %v4727
    %4729 = vdwg.mxu0
    %v4730 = vld [vmem:[%s4] sm:$0x1]
    %v4731 = vld [vmem:[%s5] sm:$0x1]
    %v4732 = vsel %vm74, %v4539, 0.0
    %v4733 = vsel %vm74, %v4542, 0.0
    %v4734 = vadd.f32 %v4732, %v4733
    %v4735 = vsel %vm74, %v4545, 0.0
    %v4736 = vadd.f32 %v4734, %v4735
    %v4737 = vsel %vm74, %v4548, 0.0
    %v4738 = vadd.f32 %v4736, %v4737
    %v4739 = vsel %vm74, %v4551, 0.0
    %v4740 = vadd.f32 %v4738, %v4739
    %v4741 = vsel %vm74, %v4554, 0.0
    %v4742 = vadd.f32 %v4740, %v4741
    %v4743 = vsel %vm74, %v4557, 0.0
    %v4744 = vadd.f32 %v4742, %v4743
    %v4745 = vsel %vm74, %v4560, 0.0
    %v4746 = vadd.f32 %v4744, %v4745
    %v4747 = vsel %vm74, %v4563, 0.0
    %v4748 = vadd.f32 %v4746, %v4747
    %v4749 = vsel %vm74, %v4566, 0.0
    %v4750 = vadd.f32 %v4748, %v4749
    %v4751 = vsel %vm74, %v4569, 0.0
    %v4752 = vadd.f32 %v4750, %v4751
    %v4753 = vsel %vm74, %v4572, 0.0
    %v4754 = vadd.f32 %v4752, %v4753
    %v4755 = vsel %vm74, %v4575, 0.0
    %v4756 = vadd.f32 %v4754, %v4755
    %v4757 = vsel %vm74, %v4578, 0.0
    %v4758 = vadd.f32 %v4756, %v4757
    %v4759 = vsel %vm74, %v4581, 0.0
    %v4760 = vadd.f32 %v4758, %v4759
    %v4761 = vsel %vm74, %v4584, 0.0
    %v4762 = vadd.f32 %v4760, %v4761
    %v4763 = vsel %vm74, %v4587, 0.0
    %v4764 = vadd.f32 %v4762, %v4763
    %v4765 = vsel %vm74, %v4590, 0.0
    %v4766 = vadd.f32 %v4764, %v4765
    %v4767 = vsel %vm74, %v4593, 0.0
    %v4768 = vadd.f32 %v4766, %v4767
    %v4769 = vsel %vm74, %v4596, 0.0
    %v4770 = vadd.f32 %v4768, %v4769
    %v4771 = vsel %vm74, %v4599, 0.0
    %v4772 = vadd.f32 %v4770, %v4771
    %v4773 = vsel %vm74, %v4602, 0.0
    %v4774 = vadd.f32 %v4772, %v4773
    %v4775 = vsel %vm74, %v4605, 0.0
    %v4776 = vadd.f32 %v4774, %v4775
    %v4777 = vsel %vm74, %v4608, 0.0
    %v4778 = vadd.f32 %v4776, %v4777
    %v4779 = vsel %vm74, %v4611, 0.0
    %v4780 = vadd.f32 %v4778, %v4779
    %v4781 = vsel %vm74, %v4614, 0.0
    %v4782 = vadd.f32 %v4780, %v4781
    %v4783 = vsel %vm74, %v4617, 0.0
    %v4784 = vadd.f32 %v4782, %v4783
    %v4785 = vsel %vm74, %v4620, 0.0
    %v4786 = vadd.f32 %v4784, %v4785
    %v4787 = vsel %vm74, %v4623, 0.0
    %v4788 = vadd.f32 %v4786, %v4787
    %v4789 = vsel %vm74, %v4626, 0.0
    %v4790 = vadd.f32 %v4788, %v4789
    %v4791 = vsel %vm74, %v4629, 0.0
    %v4792 = vadd.f32 %v4790, %v4791
    %v4793 = vsel %vm74, %v4632, 0.0
    %v4794 = vadd.f32 %v4792, %v4793
    %v4795 = vsel %vm74, %v4635, 0.0
    %v4796 = vadd.f32 %v4794, %v4795
    %v4797 = vsel %vm74, %v4638, 0.0
    %v4798 = vadd.f32 %v4796, %v4797
    %v4799 = vsel %vm74, %v4641, 0.0
    %v4800 = vadd.f32 %v4798, %v4799
    %v4801 = vsel %vm74, %v4644, 0.0
    %v4802 = vadd.f32 %v4800, %v4801
    %v4803 = vsel %vm74, %v4647, 0.0
    %v4804 = vadd.f32 %v4802, %v4803
    %v4805 = vsel %vm74, %v4650, 0.0
    %v4806 = vadd.f32 %v4804, %v4805
    %v4807 = vsel %vm74, %v4653, 0.0
    %v4808 = vadd.f32 %v4806, %v4807
    %v4809 = vsel %vm74, %v4656, 0.0
    %v4810 = vadd.f32 %v4808, %v4809
    %v4811 = vsel %vm74, %v4659, 0.0
    %v4812 = vadd.f32 %v4810, %v4811
    %v4813 = vsel %vm74, %v4662, 0.0
    %v4814 = vadd.f32 %v4812, %v4813
    %v4815 = vsel %vm74, %v4665, 0.0
    %v4816 = vadd.f32 %v4814, %v4815
    %v4817 = vsel %vm74, %v4668, 0.0
    %v4818 = vadd.f32 %v4816, %v4817
    %v4819 = vsel %vm74, %v4671, 0.0
    %v4820 = vadd.f32 %v4818, %v4819
    %v4821 = vsel %vm74, %v4674, 0.0
    %v4822 = vadd.f32 %v4820, %v4821
    %v4823 = vsel %vm74, %v4677, 0.0
    %v4824 = vadd.f32 %v4822, %v4823
    %v4825 = vsel %vm74, %v4680, 0.0
    %v4826 = vadd.f32 %v4824, %v4825
    %v4827 = vsel %vm74, %v4683, 0.0
    %v4828 = vadd.f32 %v4826, %v4827
    %v4829 = vsel %vm74, %v4686, 0.0
    %v4830 = vadd.f32 %v4828, %v4829
    %v4831 = vsel %vm74, %v4689, 0.0
    %v4832 = vadd.f32 %v4830, %v4831
    %v4833 = vsel %vm74, %v4692, 0.0
    %v4834 = vadd.f32 %v4832, %v4833
    %v4835 = vsel %vm74, %v4695, 0.0
    %v4836 = vadd.f32 %v4834, %v4835
    %v4837 = vsel %vm74, %v4698, 0.0
    %v4838 = vadd.f32 %v4836, %v4837
    %v4839 = vsel %vm74, %v4701, 0.0
    %v4840 = vadd.f32 %v4838, %v4839
    %v4841 = vsel %vm74, %v4704, 0.0
    %v4842 = vadd.f32 %v4840, %v4841
    %v4843 = vsel %vm74, %v4707, 0.0
    %v4844 = vadd.f32 %v4842, %v4843
    %v4845 = vsel %vm74, %v4710, 0.0
    %v4846 = vadd.f32 %v4844, %v4845
    %v4847 = vsel %vm74, %v4713, 0.0
    %v4848 = vadd.f32 %v4846, %v4847
    %v4849 = vsel %vm74, %v4716, 0.0
    %v4850 = vadd.f32 %v4848, %v4849
    %v4851 = vsel %vm74, %v4719, 0.0
    %v4852 = vadd.f32 %v4850, %v4851
    %v4853 = vsel %vm74, %v4722, 0.0
    %v4854 = vadd.f32 %v4852, %v4853
    %v4855 = vsel %vm74, %v4725, 0.0
    %v4856 = vadd.f32 %v4854, %v4855
    %v4857 = vsel %vm74, %v4728, 0.0
    %v4858 = vadd.f32 %v4856, %v4857
    %v4859 = vrot.slane %v4858, 4
    %v4860 = vadd.f32 %v4858, %v4859
    %v4861 = vrot.slane %v4860, 2
    %v4862 = vadd.f32 %v4860, %v4861
    %v4863 = vrot.slane %v4862, 1
    %v4864 = vadd.f32 %v4862, %v4863
    %v4865 = vmul.f32 %v4864, %v389
    %v4866 = vsub.f32 %v4539, %v4865
    %v4867 = vsub.f32 %v4542, %v4865
    %v4868 = vsub.f32 %v4545, %v4865
    %v4869 = vsub.f32 %v4548, %v4865
    %v4870 = vsub.f32 %v4551, %v4865
    %v4871 = vsub.f32 %v4554, %v4865
    %v4872 = vsub.f32 %v4557, %v4865
    %v4873 = vsub.f32 %v4560, %v4865
    %v4874 = vsub.f32 %v4563, %v4865
    %v4875 = vsub.f32 %v4566, %v4865
    %v4876 = vsub.f32 %v4569, %v4865
    %v4877 = vsub.f32 %v4572, %v4865
    %v4878 = vsub.f32 %v4575, %v4865
    %v4879 = vsub.f32 %v4578, %v4865
    %v4880 = vsub.f32 %v4581, %v4865
    %v4881 = vsub.f32 %v4584, %v4865
    %v4882 = vsub.f32 %v4587, %v4865
    %v4883 = vsub.f32 %v4590, %v4865
    %v4884 = vsub.f32 %v4593, %v4865
    %v4885 = vsub.f32 %v4596, %v4865
    %v4886 = vsub.f32 %v4599, %v4865
    %v4887 = vsub.f32 %v4602, %v4865
    %v4888 = vsub.f32 %v4605, %v4865
    %v4889 = vsub.f32 %v4608, %v4865
    %v4890 = vsub.f32 %v4611, %v4865
    %v4891 = vsub.f32 %v4614, %v4865
    %v4892 = vsub.f32 %v4617, %v4865
    %v4893 = vsub.f32 %v4620, %v4865
    %v4894 = vsub.f32 %v4623, %v4865
    %v4895 = vsub.f32 %v4626, %v4865
    %v4896 = vsub.f32 %v4629, %v4865
    %v4897 = vsub.f32 %v4632, %v4865
    %v4898 = vsub.f32 %v4635, %v4865
    %v4899 = vsub.f32 %v4638, %v4865
    %v4900 = vsub.f32 %v4641, %v4865
    %v4901 = vsub.f32 %v4644, %v4865
    %v4902 = vsub.f32 %v4647, %v4865
    %v4903 = vsub.f32 %v4650, %v4865
    %v4904 = vsub.f32 %v4653, %v4865
    %v4905 = vsub.f32 %v4656, %v4865
    %v4906 = vsub.f32 %v4659, %v4865
    %v4907 = vsub.f32 %v4662, %v4865
    %v4908 = vsub.f32 %v4665, %v4865
    %v4909 = vsub.f32 %v4668, %v4865
    %v4910 = vsub.f32 %v4671, %v4865
    %v4911 = vsub.f32 %v4674, %v4865
    %v4912 = vsub.f32 %v4677, %v4865
    %v4913 = vsub.f32 %v4680, %v4865
    %v4914 = vsub.f32 %v4683, %v4865
    %v4915 = vsub.f32 %v4686, %v4865
    %v4916 = vsub.f32 %v4689, %v4865
    %v4917 = vsub.f32 %v4692, %v4865
    %v4918 = vsub.f32 %v4695, %v4865
    %v4919 = vsub.f32 %v4698, %v4865
    %v4920 = vsub.f32 %v4701, %v4865
    %v4921 = vsub.f32 %v4704, %v4865
    %v4922 = vsub.f32 %v4707, %v4865
    %v4923 = vsub.f32 %v4710, %v4865
    %v4924 = vsub.f32 %v4713, %v4865
    %v4925 = vsub.f32 %v4716, %v4865
    %v4926 = vsub.f32 %v4719, %v4865
    %v4927 = vsub.f32 %v4722, %v4865
    %v4928 = vsub.f32 %v4725, %v4865
    %v4929 = vsub.f32 %v4728, %v4865
    %v4930 = vmul.f32 %v4866, %v4866
    %v4931 = vmul.f32 %v4867, %v4867
    %v4932 = vmul.f32 %v4868, %v4868
    %v4933 = vmul.f32 %v4869, %v4869
    %v4934 = vmul.f32 %v4870, %v4870
    %v4935 = vmul.f32 %v4871, %v4871
    %v4936 = vmul.f32 %v4872, %v4872
    %v4937 = vmul.f32 %v4873, %v4873
    %v4938 = vmul.f32 %v4874, %v4874
    %v4939 = vmul.f32 %v4875, %v4875
    %v4940 = vmul.f32 %v4876, %v4876
    %v4941 = vmul.f32 %v4877, %v4877
    %v4942 = vmul.f32 %v4878, %v4878
    %v4943 = vmul.f32 %v4879, %v4879
    %v4944 = vmul.f32 %v4880, %v4880
    %v4945 = vmul.f32 %v4881, %v4881
    %v4946 = vmul.f32 %v4882, %v4882
    %v4947 = vmul.f32 %v4883, %v4883
    %v4948 = vmul.f32 %v4884, %v4884
    %v4949 = vmul.f32 %v4885, %v4885
    %v4950 = vmul.f32 %v4886, %v4886
    %v4951 = vmul.f32 %v4887, %v4887
    %v4952 = vmul.f32 %v4888, %v4888
    %v4953 = vmul.f32 %v4889, %v4889
    %v4954 = vmul.f32 %v4890, %v4890
    %v4955 = vmul.f32 %v4891, %v4891
    %v4956 = vmul.f32 %v4892, %v4892
    %v4957 = vmul.f32 %v4893, %v4893
    %v4958 = vmul.f32 %v4894, %v4894
    %v4959 = vmul.f32 %v4895, %v4895
    %v4960 = vmul.f32 %v4896, %v4896
    %v4961 = vmul.f32 %v4897, %v4897
    %v4962 = vmul.f32 %v4898, %v4898
    %v4963 = vmul.f32 %v4899, %v4899
    %v4964 = vmul.f32 %v4900, %v4900
    %v4965 = vmul.f32 %v4901, %v4901
    %v4966 = vmul.f32 %v4902, %v4902
    %v4967 = vmul.f32 %v4903, %v4903
    %v4968 = vmul.f32 %v4904, %v4904
    %v4969 = vmul.f32 %v4905, %v4905
    %v4970 = vmul.f32 %v4906, %v4906
    %v4971 = vmul.f32 %v4907, %v4907
    %v4972 = vmul.f32 %v4908, %v4908
    %v4973 = vmul.f32 %v4909, %v4909
    %v4974 = vmul.f32 %v4910, %v4910
    %v4975 = vmul.f32 %v4911, %v4911
    %v4976 = vmul.f32 %v4912, %v4912
    %v4977 = vmul.f32 %v4913, %v4913
    %v4978 = vmul.f32 %v4914, %v4914
    %v4979 = vmul.f32 %v4915, %v4915
    %v4980 = vmul.f32 %v4916, %v4916
    %v4981 = vmul.f32 %v4917, %v4917
    %v4982 = vmul.f32 %v4918, %v4918
    %v4983 = vmul.f32 %v4919, %v4919
    %v4984 = vmul.f32 %v4920, %v4920
    %v4985 = vmul.f32 %v4921, %v4921
    %v4986 = vmul.f32 %v4922, %v4922
    %v4987 = vmul.f32 %v4923, %v4923
    %v4988 = vmul.f32 %v4924, %v4924
    %v4989 = vmul.f32 %v4925, %v4925
    %v4990 = vmul.f32 %v4926, %v4926
    %v4991 = vmul.f32 %v4927, %v4927
    %v4992 = vmul.f32 %v4928, %v4928
    %v4993 = vmul.f32 %v4929, %v4929
    %v4994 = vsel %vm74, %v4930, 0.0
    %v4995 = vsel %vm74, %v4931, 0.0
    %v4996 = vadd.f32 %v4994, %v4995
    %v4997 = vsel %vm74, %v4932, 0.0
    %v4998 = vadd.f32 %v4996, %v4997
    %v4999 = vsel %vm74, %v4933, 0.0
    %v5000 = vadd.f32 %v4998, %v4999
    %v5001 = vsel %vm74, %v4934, 0.0
    %v5002 = vadd.f32 %v5000, %v5001
    %v5003 = vsel %vm74, %v4935, 0.0
    %v5004 = vadd.f32 %v5002, %v5003
    %v5005 = vsel %vm74, %v4936, 0.0
    %v5006 = vadd.f32 %v5004, %v5005
    %v5007 = vsel %vm74, %v4937, 0.0
    %v5008 = vadd.f32 %v5006, %v5007
    %v5009 = vsel %vm74, %v4938, 0.0
    %v5010 = vadd.f32 %v5008, %v5009
    %v5011 = vsel %vm74, %v4939, 0.0
    %v5012 = vadd.f32 %v5010, %v5011
    %v5013 = vsel %vm74, %v4940, 0.0
    %v5014 = vadd.f32 %v5012, %v5013
    %v5015 = vsel %vm74, %v4941, 0.0
    %v5016 = vadd.f32 %v5014, %v5015
    %v5017 = vsel %vm74, %v4942, 0.0
    %v5018 = vadd.f32 %v5016, %v5017
    %v5019 = vsel %vm74, %v4943, 0.0
    %v5020 = vadd.f32 %v5018, %v5019
    %v5021 = vsel %vm74, %v4944, 0.0
    %v5022 = vadd.f32 %v5020, %v5021
    %v5023 = vsel %vm74, %v4945, 0.0
    %v5024 = vadd.f32 %v5022, %v5023
    %v5025 = vsel %vm74, %v4946, 0.0
    %v5026 = vadd.f32 %v5024, %v5025
    %v5027 = vsel %vm74, %v4947, 0.0
    %v5028 = vadd.f32 %v5026, %v5027
    %v5029 = vsel %vm74, %v4948, 0.0
    %v5030 = vadd.f32 %v5028, %v5029
    %v5031 = vsel %vm74, %v4949, 0.0
    %v5032 = vadd.f32 %v5030, %v5031
    %v5033 = vsel %vm74, %v4950, 0.0
    %v5034 = vadd.f32 %v5032, %v5033
    %v5035 = vsel %vm74, %v4951, 0.0
    %v5036 = vadd.f32 %v5034, %v5035
    %v5037 = vsel %vm74, %v4952, 0.0
    %v5038 = vadd.f32 %v5036, %v5037
    %v5039 = vsel %vm74, %v4953, 0.0
    %v5040 = vadd.f32 %v5038, %v5039
    %v5041 = vsel %vm74, %v4954, 0.0
    %v5042 = vadd.f32 %v5040, %v5041
    %v5043 = vsel %vm74, %v4955, 0.0
    %v5044 = vadd.f32 %v5042, %v5043
    %v5045 = vsel %vm74, %v4956, 0.0
    %v5046 = vadd.f32 %v5044, %v5045
    %v5047 = vsel %vm74, %v4957, 0.0
    %v5048 = vadd.f32 %v5046, %v5047
    %v5049 = vsel %vm74, %v4958, 0.0
    %v5050 = vadd.f32 %v5048, %v5049
    %v5051 = vsel %vm74, %v4959, 0.0
    %v5052 = vadd.f32 %v5050, %v5051
    %v5053 = vsel %vm74, %v4960, 0.0
    %v5054 = vadd.f32 %v5052, %v5053
    %v5055 = vsel %vm74, %v4961, 0.0
    %v5056 = vadd.f32 %v5054, %v5055
    %v5057 = vsel %vm74, %v4962, 0.0
    %v5058 = vadd.f32 %v5056, %v5057
    %v5059 = vsel %vm74, %v4963, 0.0
    %v5060 = vadd.f32 %v5058, %v5059
    %v5061 = vsel %vm74, %v4964, 0.0
    %v5062 = vadd.f32 %v5060, %v5061
    %v5063 = vsel %vm74, %v4965, 0.0
    %v5064 = vadd.f32 %v5062, %v5063
    %v5065 = vsel %vm74, %v4966, 0.0
    %v5066 = vadd.f32 %v5064, %v5065
    %v5067 = vsel %vm74, %v4967, 0.0
    %v5068 = vadd.f32 %v5066, %v5067
    %v5069 = vsel %vm74, %v4968, 0.0
    %v5070 = vadd.f32 %v5068, %v5069
    %v5071 = vsel %vm74, %v4969, 0.0
    %v5072 = vadd.f32 %v5070, %v5071
    %v5073 = vsel %vm74, %v4970, 0.0
    %v5074 = vadd.f32 %v5072, %v5073
    %v5075 = vsel %vm74, %v4971, 0.0
    %v5076 = vadd.f32 %v5074, %v5075
    %v5077 = vsel %vm74, %v4972, 0.0
    %v5078 = vadd.f32 %v5076, %v5077
    %v5079 = vsel %vm74, %v4973, 0.0
    %v5080 = vadd.f32 %v5078, %v5079
    %v5081 = vsel %vm74, %v4974, 0.0
    %v5082 = vadd.f32 %v5080, %v5081
    %v5083 = vsel %vm74, %v4975, 0.0
    %v5084 = vadd.f32 %v5082, %v5083
    %v5085 = vsel %vm74, %v4976, 0.0
    %v5086 = vadd.f32 %v5084, %v5085
    %v5087 = vsel %vm74, %v4977, 0.0
    %v5088 = vadd.f32 %v5086, %v5087
    %v5089 = vsel %vm74, %v4978, 0.0
    %v5090 = vadd.f32 %v5088, %v5089
    %v5091 = vsel %vm74, %v4979, 0.0
    %v5092 = vadd.f32 %v5090, %v5091
    %v5093 = vsel %vm74, %v4980, 0.0
    %v5094 = vadd.f32 %v5092, %v5093
    %v5095 = vsel %vm74, %v4981, 0.0
    %v5096 = vadd.f32 %v5094, %v5095
    %v5097 = vsel %vm74, %v4982, 0.0
    %v5098 = vadd.f32 %v5096, %v5097
    %v5099 = vsel %vm74, %v4983, 0.0
    %v5100 = vadd.f32 %v5098, %v5099
    %v5101 = vsel %vm74, %v4984, 0.0
    %v5102 = vadd.f32 %v5100, %v5101
    %v5103 = vsel %vm74, %v4985, 0.0
    %v5104 = vadd.f32 %v5102, %v5103
    %v5105 = vsel %vm74, %v4986, 0.0
    %v5106 = vadd.f32 %v5104, %v5105
    %v5107 = vsel %vm74, %v4987, 0.0
    %v5108 = vadd.f32 %v5106, %v5107
    %v5109 = vsel %vm74, %v4988, 0.0
    %v5110 = vadd.f32 %v5108, %v5109
    %v5111 = vsel %vm74, %v4989, 0.0
    %v5112 = vadd.f32 %v5110, %v5111
    %v5113 = vsel %vm74, %v4990, 0.0
    %v5114 = vadd.f32 %v5112, %v5113
    %v5115 = vsel %vm74, %v4991, 0.0
    %v5116 = vadd.f32 %v5114, %v5115
    %v5117 = vsel %vm74, %v4992, 0.0
    %v5118 = vadd.f32 %v5116, %v5117
    %v5119 = vsel %vm74, %v4993, 0.0
    %v5120 = vadd.f32 %v5118, %v5119
    %v5121 = vrot.slane %v5120, 4
    %v5122 = vadd.f32 %v5120, %v5121
    %v5123 = vrot.slane %v5122, 2
    %v5124 = vadd.f32 %v5122, %v5123
    %v5125 = vrot.slane %v5124, 1
    %v5126 = vadd.f32 %v5124, %v5125
    %v5127 = vmul.f32 %v5126, %v389
    %v5128 = vadd.f32 %v5127, 1e-05
    %v5129 = vrsqrt.pop %v5128
    %v5130 = vmul.f32 %v5129, %v5128
    %v5131 = vmul.f32 %v5130, %v5129
    %v5132 = vmul.f32 0.5, %v5131
    %v5133 = vsub.f32 1.5, %v5132
    %v5134 = vmul.f32 %v5129, %v5133
    %vm5135 = vweird.f32 %v5128
    %vm5136 = vweird.f32 %v5129
    %vm5137 = vmor %vm5135, %vm5136
    %v5138 = vsel %vm5137, %v5129, %v5134
    %v5139 = vmul.f32 %v4866, %v5138
    %v5140 = vmul.f32 %v4867, %v5138
    %v5141 = vmul.f32 %v4868, %v5138
    %v5142 = vmul.f32 %v4869, %v5138
    %v5143 = vmul.f32 %v4870, %v5138
    %v5144 = vmul.f32 %v4871, %v5138
    %v5145 = vmul.f32 %v4872, %v5138
    %v5146 = vmul.f32 %v4873, %v5138
    %v5147 = vmul.f32 %v4874, %v5138
    %v5148 = vmul.f32 %v4875, %v5138
    %v5149 = vmul.f32 %v4876, %v5138
    %v5150 = vmul.f32 %v4877, %v5138
    %v5151 = vmul.f32 %v4878, %v5138
    %v5152 = vmul.f32 %v4879, %v5138
    %v5153 = vmul.f32 %v4880, %v5138
    %v5154 = vmul.f32 %v4881, %v5138
    %v5155 = vmul.f32 %v4882, %v5138
    %v5156 = vmul.f32 %v4883, %v5138
    %v5157 = vmul.f32 %v4884, %v5138
    %v5158 = vmul.f32 %v4885, %v5138
    %v5159 = vmul.f32 %v4886, %v5138
    %v5160 = vmul.f32 %v4887, %v5138
    %v5161 = vmul.f32 %v4888, %v5138
    %v5162 = vmul.f32 %v4889, %v5138
    %v5163 = vmul.f32 %v4890, %v5138
    %v5164 = vmul.f32 %v4891, %v5138
    %v5165 = vmul.f32 %v4892, %v5138
    %v5166 = vmul.f32 %v4893, %v5138
    %v5167 = vmul.f32 %v4894, %v5138
    %v5168 = vmul.f32 %v4895, %v5138
    %v5169 = vmul.f32 %v4896, %v5138
    %v5170 = vmul.f32 %v4897, %v5138
    %v5171 = vmul.f32 %v4898, %v5138
    %v5172 = vmul.f32 %v4899, %v5138
    %v5173 = vmul.f32 %v4900, %v5138
    %v5174 = vmul.f32 %v4901, %v5138
    %v5175 = vmul.f32 %v4902, %v5138
    %v5176 = vmul.f32 %v4903, %v5138
    %v5177 = vmul.f32 %v4904, %v5138
    %v5178 = vmul.f32 %v4905, %v5138
    %v5179 = vmul.f32 %v4906, %v5138
    %v5180 = vmul.f32 %v4907, %v5138
    %v5181 = vmul.f32 %v4908, %v5138
    %v5182 = vmul.f32 %v4909, %v5138
    %v5183 = vmul.f32 %v4910, %v5138
    %v5184 = vmul.f32 %v4911, %v5138
    %v5185 = vmul.f32 %v4912, %v5138
    %v5186 = vmul.f32 %v4913, %v5138
    %v5187 = vmul.f32 %v4914, %v5138
    %v5188 = vmul.f32 %v4915, %v5138
    %v5189 = vmul.f32 %v4916, %v5138
    %v5190 = vmul.f32 %v4917, %v5138
    %v5191 = vmul.f32 %v4918, %v5138
    %v5192 = vmul.f32 %v4919, %v5138
    %v5193 = vmul.f32 %v4920, %v5138
    %v5194 = vmul.f32 %v4921, %v5138
    %v5195 = vmul.f32 %v4922, %v5138
    %v5196 = vmul.f32 %v4923, %v5138
    %v5197 = vmul.f32 %v4924, %v5138
    %v5198 = vmul.f32 %v4925, %v5138
    %v5199 = vmul.f32 %v4926, %v5138
    %v5200 = vmul.f32 %v4927, %v5138
    %v5201 = vmul.f32 %v4928, %v5138
    %v5202 = vmul.f32 %v4929, %v5138
    %v5204 = vperm.slane %v4730, 0
    %v5206 = vmul.f32 %v5139, %v5204
    %v5207 = vmul.f32 %v5140, %v5204
    %v5208 = vmul.f32 %v5141, %v5204
    %v5209 = vmul.f32 %v5142, %v5204
    %v5210 = vmul.f32 %v5143, %v5204
    %v5211 = vmul.f32 %v5144, %v5204
    %v5212 = vmul.f32 %v5145, %v5204
    %v5213 = vmul.f32 %v5146, %v5204
    %v5214 = vmul.f32 %v5147, %v5204
    %v5215 = vmul.f32 %v5148, %v5204
    %v5216 = vmul.f32 %v5149, %v5204
    %v5217 = vmul.f32 %v5150, %v5204
    %v5218 = vmul.f32 %v5151, %v5204
    %v5219 = vmul.f32 %v5152, %v5204
    %v5220 = vmul.f32 %v5153, %v5204
    %v5221 = vmul.f32 %v5154, %v5204
    %v5222 = vmul.f32 %v5155, %v5204
    %v5223 = vmul.f32 %v5156, %v5204
    %v5224 = vmul.f32 %v5157, %v5204
    %v5225 = vmul.f32 %v5158, %v5204
    %v5226 = vmul.f32 %v5159, %v5204
    %v5227 = vmul.f32 %v5160, %v5204
    %v5228 = vmul.f32 %v5161, %v5204
    %v5229 = vmul.f32 %v5162, %v5204
    %v5230 = vmul.f32 %v5163, %v5204
    %v5231 = vmul.f32 %v5164, %v5204
    %v5232 = vmul.f32 %v5165, %v5204
    %v5233 = vmul.f32 %v5166, %v5204
    %v5234 = vmul.f32 %v5167, %v5204
    %v5235 = vmul.f32 %v5168, %v5204
    %v5236 = vmul.f32 %v5169, %v5204
    %v5237 = vmul.f32 %v5170, %v5204
    %v5238 = vmul.f32 %v5171, %v5204
    %v5239 = vmul.f32 %v5172, %v5204
    %v5240 = vmul.f32 %v5173, %v5204
    %v5241 = vmul.f32 %v5174, %v5204
    %v5242 = vmul.f32 %v5175, %v5204
    %v5243 = vmul.f32 %v5176, %v5204
    %v5244 = vmul.f32 %v5177, %v5204
    %v5245 = vmul.f32 %v5178, %v5204
    %v5246 = vmul.f32 %v5179, %v5204
    %v5247 = vmul.f32 %v5180, %v5204
    %v5248 = vmul.f32 %v5181, %v5204
    %v5249 = vmul.f32 %v5182, %v5204
    %v5250 = vmul.f32 %v5183, %v5204
    %v5251 = vmul.f32 %v5184, %v5204
    %v5252 = vmul.f32 %v5185, %v5204
    %v5253 = vmul.f32 %v5186, %v5204
    %v5254 = vmul.f32 %v5187, %v5204
    %v5255 = vmul.f32 %v5188, %v5204
    %v5256 = vmul.f32 %v5189, %v5204
    %v5257 = vmul.f32 %v5190, %v5204
    %v5258 = vmul.f32 %v5191, %v5204
    %v5259 = vmul.f32 %v5192, %v5204
    %v5260 = vmul.f32 %v5193, %v5204
    %v5261 = vmul.f32 %v5194, %v5204
    %v5262 = vmul.f32 %v5195, %v5204
    %v5263 = vmul.f32 %v5196, %v5204
    %v5264 = vmul.f32 %v5197, %v5204
    %v5265 = vmul.f32 %v5198, %v5204
    %v5266 = vmul.f32 %v5199, %v5204
    %v5267 = vmul.f32 %v5200, %v5204
    %v5268 = vmul.f32 %v5201, %v5204
    %v5269 = vmul.f32 %v5202, %v5204
    %v5271 = vperm.slane %v4731, 0
    %v5273 = vadd.f32 %v5206, %v5271
    %v5274 = vadd.f32 %v5207, %v5271
    %v5275 = vadd.f32 %v5208, %v5271
    %v5276 = vadd.f32 %v5209, %v5271
    %v5277 = vadd.f32 %v5210, %v5271
    %v5278 = vadd.f32 %v5211, %v5271
    %v5279 = vadd.f32 %v5212, %v5271
    %v5280 = vadd.f32 %v5213, %v5271
    %v5281 = vadd.f32 %v5214, %v5271
    %v5282 = vadd.f32 %v5215, %v5271
    %v5283 = vadd.f32 %v5216, %v5271
    %v5284 = vadd.f32 %v5217, %v5271
    %v5285 = vadd.f32 %v5218, %v5271
    %v5286 = vadd.f32 %v5219, %v5271
    %v5287 = vadd.f32 %v5220, %v5271
    %v5288 = vadd.f32 %v5221, %v5271
    %v5289 = vadd.f32 %v5222, %v5271
    %v5290 = vadd.f32 %v5223, %v5271
    %v5291 = vadd.f32 %v5224, %v5271
    %v5292 = vadd.f32 %v5225, %v5271
    %v5293 = vadd.f32 %v5226, %v5271
    %v5294 = vadd.f32 %v5227, %v5271
    %v5295 = vadd.f32 %v5228, %v5271
    %v5296 = vadd.f32 %v5229, %v5271
    %v5297 = vadd.f32 %v5230, %v5271
    %v5298 = vadd.f32 %v5231, %v5271
    %v5299 = vadd.f32 %v5232, %v5271
    %v5300 = vadd.f32 %v5233, %v5271
    %v5301 = vadd.f32 %v5234, %v5271
    %v5302 = vadd.f32 %v5235, %v5271
    %v5303 = vadd.f32 %v5236, %v5271
    %v5304 = vadd.f32 %v5237, %v5271
    %v5305 = vadd.f32 %v5238, %v5271
    %v5306 = vadd.f32 %v5239, %v5271
    %v5307 = vadd.f32 %v5240, %v5271
    %v5308 = vadd.f32 %v5241, %v5271
    %v5309 = vadd.f32 %v5242, %v5271
    %v5310 = vadd.f32 %v5243, %v5271
    %v5311 = vadd.f32 %v5244, %v5271
    %v5312 = vadd.f32 %v5245, %v5271
    %v5313 = vadd.f32 %v5246, %v5271
    %v5314 = vadd.f32 %v5247, %v5271
    %v5315 = vadd.f32 %v5248, %v5271
    %v5316 = vadd.f32 %v5249, %v5271
    %v5317 = vadd.f32 %v5250, %v5271
    %v5318 = vadd.f32 %v5251, %v5271
    %v5319 = vadd.f32 %v5252, %v5271
    %v5320 = vadd.f32 %v5253, %v5271
    %v5321 = vadd.f32 %v5254, %v5271
    %v5322 = vadd.f32 %v5255, %v5271
    %v5323 = vadd.f32 %v5256, %v5271
    %v5324 = vadd.f32 %v5257, %v5271
    %v5325 = vadd.f32 %v5258, %v5271
    %v5326 = vadd.f32 %v5259, %v5271
    %v5327 = vadd.f32 %v5260, %v5271
    %v5328 = vadd.f32 %v5261, %v5271
    %v5329 = vadd.f32 %v5262, %v5271
    %v5330 = vadd.f32 %v5263, %v5271
    %v5331 = vadd.f32 %v5264, %v5271
    %v5332 = vadd.f32 %v5265, %v5271
    %v5333 = vadd.f32 %v5266, %v5271
    %v5334 = vadd.f32 %v5267, %v5271
    %v5335 = vadd.f32 %v5268, %v5271
    %v5336 = vadd.f32 %v5269, %v5271
    %v5337 = vmax.f32 %v5273, 0.0
    %v5338 = vmax.f32 %v5274, 0.0
    %v5339 = vmax.f32 %v5275, 0.0
    %v5340 = vmax.f32 %v5276, 0.0
    %v5341 = vmax.f32 %v5277, 0.0
    %v5342 = vmax.f32 %v5278, 0.0
    %v5343 = vmax.f32 %v5279, 0.0
    %v5344 = vmax.f32 %v5280, 0.0
    %v5345 = vmax.f32 %v5281, 0.0
    %v5346 = vmax.f32 %v5282, 0.0
    %v5347 = vmax.f32 %v5283, 0.0
    %v5348 = vmax.f32 %v5284, 0.0
    %v5349 = vmax.f32 %v5285, 0.0
    %v5350 = vmax.f32 %v5286, 0.0
    %v5351 = vmax.f32 %v5287, 0.0
    %v5352 = vmax.f32 %v5288, 0.0
    %v5353 = vmax.f32 %v5289, 0.0
    %v5354 = vmax.f32 %v5290, 0.0
    %v5355 = vmax.f32 %v5291, 0.0
    %v5356 = vmax.f32 %v5292, 0.0
    %v5357 = vmax.f32 %v5293, 0.0
    %v5358 = vmax.f32 %v5294, 0.0
    %v5359 = vmax.f32 %v5295, 0.0
    %v5360 = vmax.f32 %v5296, 0.0
    %v5361 = vmax.f32 %v5297, 0.0
    %v5362 = vmax.f32 %v5298, 0.0
    %v5363 = vmax.f32 %v5299, 0.0
    %v5364 = vmax.f32 %v5300, 0.0
    %v5365 = vmax.f32 %v5301, 0.0
    %v5366 = vmax.f32 %v5302, 0.0
    %v5367 = vmax.f32 %v5303, 0.0
    %v5368 = vmax.f32 %v5304, 0.0
    %v5369 = vmax.f32 %v5305, 0.0
    %v5370 = vmax.f32 %v5306, 0.0
    %v5371 = vmax.f32 %v5307, 0.0
    %v5372 = vmax.f32 %v5308, 0.0
    %v5373 = vmax.f32 %v5309, 0.0
    %v5374 = vmax.f32 %v5310, 0.0
    %v5375 = vmax.f32 %v5311, 0.0
    %v5376 = vmax.f32 %v5312, 0.0
    %v5377 = vmax.f32 %v5313, 0.0
    %v5378 = vmax.f32 %v5314, 0.0
    %v5379 = vmax.f32 %v5315, 0.0
    %v5380 = vmax.f32 %v5316, 0.0
    %v5381 = vmax.f32 %v5317, 0.0
    %v5382 = vmax.f32 %v5318, 0.0
    %v5383 = vmax.f32 %v5319, 0.0
    %v5384 = vmax.f32 %v5320, 0.0
    %v5385 = vmax.f32 %v5321, 0.0
    %v5386 = vmax.f32 %v5322, 0.0
    %v5387 = vmax.f32 %v5323, 0.0
    %v5388 = vmax.f32 %v5324, 0.0
    %v5389 = vmax.f32 %v5325, 0.0
    %v5390 = vmax.f32 %v5326, 0.0
    %v5391 = vmax.f32 %v5327, 0.0
    %v5392 = vmax.f32 %v5328, 0.0
    %v5393 = vmax.f32 %v5329, 0.0
    %v5394 = vmax.f32 %v5330, 0.0
    %v5395 = vmax.f32 %v5331, 0.0
    %v5396 = vmax.f32 %v5332, 0.0
    %v5397 = vmax.f32 %v5333, 0.0
    %v5398 = vmax.f32 %v5334, 0.0
    %v5399 = vmax.f32 %v5335, 0.0
    %v5400 = vmax.f32 %v5336, 0.0
    %5401 = vst.msk [vmem:[%s926 + $0x1] sm:$0xff] %vm74, %v5337
    %5402 = vst.msk [vmem:[%s926 + $0x9] sm:$0xff] %vm74, %v5338
    %5403 = vst.msk [vmem:[%s926 + $0x19] sm:$0xff] %vm74, %v5339
    %5404 = vst.msk [vmem:[%s926 + $0x21] sm:$0xff] %vm74, %v5340
    %5405 = vst.msk [vmem:[%s926 + $0x31] sm:$0xff] %vm74, %v5341
    %5406 = vst.msk [vmem:[%s926 + $0x39] sm:$0xff] %vm74, %v5342
    %5407 = vst.msk [vmem:[%s926 + $0x49] sm:$0xff] %vm74, %v5343
    %5408 = vst.msk [vmem:[%s926 + $0x51] sm:$0xff] %vm74, %v5344
    %5409 = vst.msk [vmem:[%s926 + $0x61] sm:$0xff] %vm74, %v5345
    %5410 = vst.msk [vmem:[%s926 + $0x69] sm:$0xff] %vm74, %v5346
    %5411 = vst.msk [vmem:[%s926 + $0x79] sm:$0xff] %vm74, %v5347
    %5412 = vst.msk [vmem:[%s926 + $0x81] sm:$0xff] %vm74, %v5348
    %5413 = vst.msk [vmem:[%s926 + $0x91] sm:$0xff] %vm74, %v5349
    %5414 = vst.msk [vmem:[%s926 + $0x99] sm:$0xff] %vm74, %v5350
    %5415 = vst.msk [vmem:[%s926 + $0xa9] sm:$0xff] %vm74, %v5351
    %5416 = vst.msk [vmem:[%s926 + $0xb1] sm:$0xff] %vm74, %v5352
    %5417 = vst.msk [vmem:[%s926 + $0xc1] sm:$0xff] %vm74, %v5353
    %5418 = vst.msk [vmem:[%s926 + $0xc9] sm:$0xff] %vm74, %v5354
    %5419 = vst.msk [vmem:[%s926 + $0xd9] sm:$0xff] %vm74, %v5355
    %5420 = vst.msk [vmem:[%s926 + $0xe1] sm:$0xff] %vm74, %v5356
    %5421 = vst.msk [vmem:[%s926 + $0xf1] sm:$0xff] %vm74, %v5357
    %5422 = vst.msk [vmem:[%s926 + $0xf9] sm:$0xff] %vm74, %v5358
    %5423 = vst.msk [vmem:[%s926 + $0x109] sm:$0xff] %vm74, %v5359
    %5424 = vst.msk [vmem:[%s926 + $0x111] sm:$0xff] %vm74, %v5360
    %5425 = vst.msk [vmem:[%s926 + $0x121] sm:$0xff] %vm74, %v5361
    %5426 = vst.msk [vmem:[%s926 + $0x129] sm:$0xff] %vm74, %v5362
    %5427 = vst.msk [vmem:[%s926 + $0x139] sm:$0xff] %vm74, %v5363
    %5428 = vst.msk [vmem:[%s926 + $0x141] sm:$0xff] %vm74, %v5364
    %5429 = vst.msk [vmem:[%s926 + $0x151] sm:$0xff] %vm74, %v5365
    %5430 = vst.msk [vmem:[%s926 + $0x159] sm:$0xff] %vm74, %v5366
    %5431 = vst.msk [vmem:[%s926 + $0x169] sm:$0xff] %vm74, %v5367
    %5432 = vst.msk [vmem:[%s926 + $0x171] sm:$0xff] %vm74, %v5368
    %5433 = vst.msk [vmem:[%s926 + $0x1b1] sm:$0xff] %vm74, %v5369
    %5434 = vst.msk [vmem:[%s926 + $0x1b9] sm:$0xff] %vm74, %v5370
    %5435 = vst.msk [vmem:[%s926 + $0x1c9] sm:$0xff] %vm74, %v5371
    %5436 = vst.msk [vmem:[%s926 + $0x1d1] sm:$0xff] %vm74, %v5372
    %5437 = vst.msk [vmem:[%s926 + $0x1e1] sm:$0xff] %vm74, %v5373
    %5438 = vst.msk [vmem:[%s926 + $0x1e9] sm:$0xff] %vm74, %v5374
    %5439 = vst.msk [vmem:[%s926 + $0x1f9] sm:$0xff] %vm74, %v5375
    %5440 = vst.msk [vmem:[%s926 + $0x201] sm:$0xff] %vm74, %v5376
    %5441 = vst.msk [vmem:[%s926 + $0x211] sm:$0xff] %vm74, %v5377
    %5442 = vst.msk [vmem:[%s926 + $0x219] sm:$0xff] %vm74, %v5378
    %5443 = vst.msk [vmem:[%s926 + $0x229] sm:$0xff] %vm74, %v5379
    %5444 = vst.msk [vmem:[%s926 + $0x231] sm:$0xff] %vm74, %v5380
    %5445 = vst.msk [vmem:[%s926 + $0x241] sm:$0xff] %vm74, %v5381
    %5446 = vst.msk [vmem:[%s926 + $0x249] sm:$0xff] %vm74, %v5382
    %5447 = vst.msk [vmem:[%s926 + $0x259] sm:$0xff] %vm74, %v5383
    %5448 = vst.msk [vmem:[%s926 + $0x261] sm:$0xff] %vm74, %v5384
    %5449 = vst.msk [vmem:[%s926 + $0x271] sm:$0xff] %vm74, %v5385
    %5450 = vst.msk [vmem:[%s926 + $0x279] sm:$0xff] %vm74, %v5386
    %5451 = vst.msk [vmem:[%s926 + $0x289] sm:$0xff] %vm74, %v5387
    %5452 = vst.msk [vmem:[%s926 + $0x291] sm:$0xff] %vm74, %v5388
    %5453 = vst.msk [vmem:[%s926 + $0x2a1] sm:$0xff] %vm74, %v5389
    %5454 = vst.msk [vmem:[%s926 + $0x2a9] sm:$0xff] %vm74, %v5390
    %5455 = vst.msk [vmem:[%s926 + $0x2b9] sm:$0xff] %vm74, %v5391
    %5456 = vst.msk [vmem:[%s926 + $0x2c1] sm:$0xff] %vm74, %v5392
    %5457 = vst.msk [vmem:[%s926 + $0x2d1] sm:$0xff] %vm74, %v5393
    %5458 = vst.msk [vmem:[%s926 + $0x2d9] sm:$0xff] %vm74, %v5394
    %5459 = vst.msk [vmem:[%s926 + $0x2e9] sm:$0xff] %vm74, %v5395
    %5460 = vst.msk [vmem:[%s926 + $0x2f1] sm:$0xff] %vm74, %v5396
    %5461 = vst.msk [vmem:[%s926 + $0x301] sm:$0xff] %vm74, %v5397
    %5462 = vst.msk [vmem:[%s926 + $0x309] sm:$0xff] %vm74, %v5398
    %5463 = vst.msk [vmem:[%s926 + $0x319] sm:$0xff] %vm74, %v5399
    %5464 = vst.msk [vmem:[%s926 + $0x321] sm:$0xff] %vm74, %v5400
    %v5465 = vld [vmem:[#allocation2] sm:$0xff]
    %v5466 = vld [vmem:[#allocation2 + $0x8] sm:$0xff]
    %v5467 = vld [vmem:[#allocation2 + $0x18] sm:$0xff]
    %v5468 = vld [vmem:[#allocation2 + $0x20] sm:$0xff]
    %v5469 = vld [vmem:[#allocation2 + $0x30] sm:$0xff]
    %v5470 = vld [vmem:[#allocation2 + $0x38] sm:$0xff]
    %v5471 = vld [vmem:[#allocation2 + $0x48] sm:$0xff]
    %v5472 = vld [vmem:[#allocation2 + $0x50] sm:$0xff]
    %v5473 = vld [vmem:[#allocation2 + $0x60] sm:$0xff]
    %v5474 = vld [vmem:[#allocation2 + $0x68] sm:$0xff]
    %v5475 = vld [vmem:[#allocation2 + $0x78] sm:$0xff]
    %v5476 = vld [vmem:[#allocation2 + $0x80] sm:$0xff]
    %v5477 = vld [vmem:[#allocation2 + $0x90] sm:$0xff]
    %v5478 = vld [vmem:[#allocation2 + $0x98] sm:$0xff]
    %v5479 = vld [vmem:[#allocation2 + $0xa8] sm:$0xff]
    %v5480 = vld [vmem:[#allocation2 + $0xb0] sm:$0xff]
    %v5481 = vld [vmem:[#allocation2 + $0xc0] sm:$0xff]
    %v5482 = vld [vmem:[#allocation2 + $0xc8] sm:$0xff]
    %v5483 = vld [vmem:[#allocation2 + $0xd8] sm:$0xff]
    %v5484 = vld [vmem:[#allocation2 + $0xe0] sm:$0xff]
    %v5485 = vld [vmem:[#allocation2 + $0xf0] sm:$0xff]
    %v5486 = vld [vmem:[#allocation2 + $0xf8] sm:$0xff]
    %v5487 = vld [vmem:[#allocation2 + $0x108] sm:$0xff]
    %v5488 = vld [vmem:[#allocation2 + $0x110] sm:$0xff]
    %v5489 = vld [vmem:[#allocation2 + $0x120] sm:$0xff]
    %v5490 = vld [vmem:[#allocation2 + $0x128] sm:$0xff]
    %v5491 = vld [vmem:[#allocation2 + $0x138] sm:$0xff]
    %v5492 = vld [vmem:[#allocation2 + $0x140] sm:$0xff]
    %v5493 = vld [vmem:[#allocation2 + $0x150] sm:$0xff]
    %v5494 = vld [vmem:[#allocation2 + $0x158] sm:$0xff]
    %v5495 = vld [vmem:[#allocation2 + $0x168] sm:$0xff]
    %v5496 = vld [vmem:[#allocation2 + $0x170] sm:$0xff]
    %v5497 = vld [vmem:[#allocation2 + $0x1b0] sm:$0xff]
    %v5498 = vld [vmem:[#allocation2 + $0x1b8] sm:$0xff]
    %v5499 = vld [vmem:[#allocation2 + $0x1c8] sm:$0xff]
    %v5500 = vld [vmem:[#allocation2 + $0x1d0] sm:$0xff]
    %v5501 = vld [vmem:[#allocation2 + $0x1e0] sm:$0xff]
    %v5502 = vld [vmem:[#allocation2 + $0x1e8] sm:$0xff]
    %v5503 = vld [vmem:[#allocation2 + $0x1f8] sm:$0xff]
    %v5504 = vld [vmem:[#allocation2 + $0x200] sm:$0xff]
    %v5505 = vld [vmem:[#allocation2 + $0x210] sm:$0xff]
    %v5506 = vld [vmem:[#allocation2 + $0x218] sm:$0xff]
    %v5507 = vld [vmem:[#allocation2 + $0x228] sm:$0xff]
    %v5508 = vld [vmem:[#allocation2 + $0x230] sm:$0xff]
    %v5509 = vld [vmem:[#allocation2 + $0x240] sm:$0xff]
    %v5510 = vld [vmem:[#allocation2 + $0x248] sm:$0xff]
    %v5511 = vld [vmem:[#allocation2 + $0x258] sm:$0xff]
    %v5512 = vld [vmem:[#allocation2 + $0x260] sm:$0xff]
    %v5513 = vld [vmem:[#allocation2 + $0x270] sm:$0xff]
    %v5514 = vld [vmem:[#allocation2 + $0x278] sm:$0xff]
    %v5515 = vld [vmem:[#allocation2 + $0x288] sm:$0xff]
    %v5516 = vld [vmem:[#allocation2 + $0x290] sm:$0xff]
    %v5517 = vld [vmem:[#allocation2 + $0x2a0] sm:$0xff]
    %v5518 = vld [vmem:[#allocation2 + $0x2a8] sm:$0xff]
    %v5519 = vld [vmem:[#allocation2 + $0x2b8] sm:$0xff]
    %v5520 = vld [vmem:[#allocation2 + $0x2c0] sm:$0xff]
    %v5521 = vld [vmem:[#allocation2 + $0x2d0] sm:$0xff]
    %v5522 = vld [vmem:[#allocation2 + $0x2d8] sm:$0xff]
    %v5523 = vld [vmem:[#allocation2 + $0x2e8] sm:$0xff]
    %v5524 = vld [vmem:[#allocation2 + $0x2f0] sm:$0xff]
    %v5525 = vld [vmem:[#allocation2 + $0x300] sm:$0xff]
    %v5526 = vld [vmem:[#allocation2 + $0x308] sm:$0xff]
    %v5527 = vld [vmem:[#allocation2 + $0x318] sm:$0xff]
    %v5528 = vld [vmem:[#allocation2 + $0x320] sm:$0xff]
    %5529 = vst.msk [vmem:[#allocation3] sm:$0xff] %vm74, %v5465
    %5530 = vst.msk [vmem:[#allocation3 + $0x18] sm:$0xff] %vm74, %v5466
    %5531 = vst.msk [vmem:[#allocation3 + $0x30] sm:$0xff] %vm74, %v5467
    %5532 = vst.msk [vmem:[#allocation3 + $0x48] sm:$0xff] %vm74, %v5468
    %5533 = vst.msk [vmem:[#allocation3 + $0x60] sm:$0xff] %vm74, %v5469
    %5534 = vst.msk [vmem:[#allocation3 + $0x78] sm:$0xff] %vm74, %v5470
    %5535 = vst.msk [vmem:[#allocation3 + $0x90] sm:$0xff] %vm74, %v5471
    %5536 = vst.msk [vmem:[#allocation3 + $0xa8] sm:$0xff] %vm74, %v5472
    %5537 = vst.msk [vmem:[#allocation3 + $0xc0] sm:$0xff] %vm74, %v5473
    %5538 = vst.msk [vmem:[#allocation3 + $0xd8] sm:$0xff] %vm74, %v5474
    %5539 = vst.msk [vmem:[#allocation3 + $0xf0] sm:$0xff] %vm74, %v5475
    %5540 = vst.msk [vmem:[#allocation3 + $0x108] sm:$0xff] %vm74, %v5476
    %5541 = vst.msk [vmem:[#allocation3 + $0x120] sm:$0xff] %vm74, %v5477
    %5542 = vst.msk [vmem:[#allocation3 + $0x138] sm:$0xff] %vm74, %v5478
    %5543 = vst.msk [vmem:[#allocation3 + $0x150] sm:$0xff] %vm74, %v5479
    %5544 = vst.msk [vmem:[#allocation3 + $0x168] sm:$0xff] %vm74, %v5480
    %5545 = vst.msk [vmem:[#allocation3 + $0x180] sm:$0xff] %vm74, %v5481
    %5546 = vst.msk [vmem:[#allocation3 + $0x198] sm:$0xff] %vm74, %v5482
    %5547 = vst.msk [vmem:[#allocation3 + $0x1b0] sm:$0xff] %vm74, %v5483
    %5548 = vst.msk [vmem:[#allocation3 + $0x1c8] sm:$0xff] %vm74, %v5484
    %5549 = vst.msk [vmem:[#allocation3 + $0x1e0] sm:$0xff] %vm74, %v5485
    %5550 = vst.msk [vmem:[#allocation3 + $0x1f8] sm:$0xff] %vm74, %v5486
    %5551 = vst.msk [vmem:[#allocation3 + $0x210] sm:$0xff] %vm74, %v5487
    %5552 = vst.msk [vmem:[#allocation3 + $0x228] sm:$0xff] %vm74, %v5488
    %5553 = vst.msk [vmem:[#allocation3 + $0x240] sm:$0xff] %vm74, %v5489
    %5554 = vst.msk [vmem:[#allocation3 + $0x258] sm:$0xff] %vm74, %v5490
    %5555 = vst.msk [vmem:[#allocation3 + $0x270] sm:$0xff] %vm74, %v5491
    %5556 = vst.msk [vmem:[#allocation3 + $0x288] sm:$0xff] %vm74, %v5492
    %5557 = vst.msk [vmem:[#allocation3 + $0x2a0] sm:$0xff] %vm74, %v5493
    %5558 = vst.msk [vmem:[#allocation3 + $0x2b8] sm:$0xff] %vm74, %v5494
    %5559 = vst.msk [vmem:[#allocation3 + $0x2d0] sm:$0xff] %vm74, %v5495
    %5560 = vst.msk [vmem:[#allocation3 + $0x2e8] sm:$0xff] %vm74, %v5496
    %5561 = vst.msk [vmem:[#allocation3 + $0x300] sm:$0xff] %vm74, %v5497
    %5562 = vst.msk [vmem:[#allocation3 + $0x318] sm:$0xff] %vm74, %v5498
    %5563 = vst.msk [vmem:[#allocation3 + $0x330] sm:$0xff] %vm74, %v5499
    %5564 = vst.msk [vmem:[#allocation3 + $0x348] sm:$0xff] %vm74, %v5500
    %5565 = vst.msk [vmem:[#allocation3 + $0x360] sm:$0xff] %vm74, %v5501
    %5566 = vst.msk [vmem:[#allocation3 + $0x378] sm:$0xff] %vm74, %v5502
    %5567 = vst.msk [vmem:[#allocation3 + $0x390] sm:$0xff] %vm74, %v5503
    %5568 = vst.msk [vmem:[#allocation3 + $0x3a8] sm:$0xff] %vm74, %v5504
    %5569 = vst.msk [vmem:[#allocation3 + $0x3c0] sm:$0xff] %vm74, %v5505
    %5570 = vst.msk [vmem:[#allocation3 + $0x3d8] sm:$0xff] %vm74, %v5506
    %5571 = vst.msk [vmem:[#allocation3 + $0x3f0] sm:$0xff] %vm74, %v5507
    %5572 = vst.msk [vmem:[#allocation3 + $0x408] sm:$0xff] %vm74, %v5508
    %5573 = vst.msk [vmem:[#allocation3 + $0x420] sm:$0xff] %vm74, %v5509
    %5574 = vst.msk [vmem:[#allocation3 + $0x438] sm:$0xff] %vm74, %v5510
    %5575 = vst.msk [vmem:[#allocation3 + $0x450] sm:$0xff] %vm74, %v5511
    %5576 = vst.msk [vmem:[#allocation3 + $0x468] sm:$0xff] %vm74, %v5512
    %5577 = vst.msk [vmem:[#allocation3 + $0x480] sm:$0xff] %vm74, %v5513
    %5578 = vst.msk [vmem:[#allocation3 + $0x498] sm:$0xff] %vm74, %v5514
    %5579 = vst.msk [vmem:[#allocation3 + $0x4b0] sm:$0xff] %vm74, %v5515
    %5580 = vst.msk [vmem:[#allocation3 + $0x4c8] sm:$0xff] %vm74, %v5516
    %5581 = vst.msk [vmem:[#allocation3 + $0x4e0] sm:$0xff] %vm74, %v5517
    %5582 = vst.msk [vmem:[#allocation3 + $0x4f8] sm:$0xff] %vm74, %v5518
    %5583 = vst.msk [vmem:[#allocation3 + $0x510] sm:$0xff] %vm74, %v5519
    %5584 = vst.msk [vmem:[#allocation3 + $0x528] sm:$0xff] %vm74, %v5520
    %5585 = vst.msk [vmem:[#allocation3 + $0x540] sm:$0xff] %vm74, %v5521
    %5586 = vst.msk [vmem:[#allocation3 + $0x558] sm:$0xff] %vm74, %v5522
    %5587 = vst.msk [vmem:[#allocation3 + $0x570] sm:$0xff] %vm74, %v5523
    %5588 = vst.msk [vmem:[#allocation3 + $0x588] sm:$0xff] %vm74, %v5524
    %5589 = vst.msk [vmem:[#allocation3 + $0x5a0] sm:$0xff] %vm74, %v5525
    %5590 = vst.msk [vmem:[#allocation3 + $0x5b8] sm:$0xff] %vm74, %v5526
    %5591 = vst.msk [vmem:[#allocation3 + $0x5d0] sm:$0xff] %vm74, %v5527
    %5592 = vst.msk [vmem:[#allocation3 + $0x5e8] sm:$0xff] %vm74, %v5528
    %v5593 = vld [vmem:[#allocation2 + $0x1] sm:$0xff]
    %v5594 = vld [vmem:[#allocation2 + $0x9] sm:$0xff]
    %v5595 = vld [vmem:[#allocation2 + $0x19] sm:$0xff]
    %v5596 = vld [vmem:[#allocation2 + $0x21] sm:$0xff]
    %v5597 = vld [vmem:[#allocation2 + $0x31] sm:$0xff]
    %v5598 = vld [vmem:[#allocation2 + $0x39] sm:$0xff]
    %v5599 = vld [vmem:[#allocation2 + $0x49] sm:$0xff]
    %v5600 = vld [vmem:[#allocation2 + $0x51] sm:$0xff]
    %v5601 = vld [vmem:[#allocation2 + $0x61] sm:$0xff]
    %v5602 = vld [vmem:[#allocation2 + $0x69] sm:$0xff]
    %v5603 = vld [vmem:[#allocation2 + $0x79] sm:$0xff]
    %v5604 = vld [vmem:[#allocation2 + $0x81] sm:$0xff]
    %v5605 = vld [vmem:[#allocation2 + $0x91] sm:$0xff]
    %v5606 = vld [vmem:[#allocation2 + $0x99] sm:$0xff]
    %v5607 = vld [vmem:[#allocation2 + $0xa9] sm:$0xff]
    %v5608 = vld [vmem:[#allocation2 + $0xb1] sm:$0xff]
    %v5609 = vld [vmem:[#allocation2 + $0xc1] sm:$0xff]
    %v5610 = vld [vmem:[#allocation2 + $0xc9] sm:$0xff]
    %v5611 = vld [vmem:[#allocation2 + $0xd9] sm:$0xff]
    %v5612 = vld [vmem:[#allocation2 + $0xe1] sm:$0xff]
    %v5613 = vld [vmem:[#allocation2 + $0xf1] sm:$0xff]
    %v5614 = vld [vmem:[#allocation2 + $0xf9] sm:$0xff]
    %v5615 = vld [vmem:[#allocation2 + $0x109] sm:$0xff]
    %v5616 = vld [vmem:[#allocation2 + $0x111] sm:$0xff]
    %v5617 = vld [vmem:[#allocation2 + $0x121] sm:$0xff]
    %v5618 = vld [vmem:[#allocation2 + $0x129] sm:$0xff]
    %v5619 = vld [vmem:[#allocation2 + $0x139] sm:$0xff]
    %v5620 = vld [vmem:[#allocation2 + $0x141] sm:$0xff]
    %v5621 = vld [vmem:[#allocation2 + $0x151] sm:$0xff]
    %v5622 = vld [vmem:[#allocation2 + $0x159] sm:$0xff]
    %v5623 = vld [vmem:[#allocation2 + $0x169] sm:$0xff]
    %v5624 = vld [vmem:[#allocation2 + $0x171] sm:$0xff]
    %v5625 = vld [vmem:[#allocation2 + $0x1b1] sm:$0xff]
    %v5626 = vld [vmem:[#allocation2 + $0x1b9] sm:$0xff]
    %v5627 = vld [vmem:[#allocation2 + $0x1c9] sm:$0xff]
    %v5628 = vld [vmem:[#allocation2 + $0x1d1] sm:$0xff]
    %v5629 = vld [vmem:[#allocation2 + $0x1e1] sm:$0xff]
    %v5630 = vld [vmem:[#allocation2 + $0x1e9] sm:$0xff]
    %v5631 = vld [vmem:[#allocation2 + $0x1f9] sm:$0xff]
    %v5632 = vld [vmem:[#allocation2 + $0x201] sm:$0xff]
    %v5633 = vld [vmem:[#allocation2 + $0x211] sm:$0xff]
    %v5634 = vld [vmem:[#allocation2 + $0x219] sm:$0xff]
    %v5635 = vld [vmem:[#allocation2 + $0x229] sm:$0xff]
    %v5636 = vld [vmem:[#allocation2 + $0x231] sm:$0xff]
    %v5637 = vld [vmem:[#allocation2 + $0x241] sm:$0xff]
    %v5638 = vld [vmem:[#allocation2 + $0x249] sm:$0xff]
    %v5639 = vld [vmem:[#allocation2 + $0x259] sm:$0xff]
    %v5640 = vld [vmem:[#allocation2 + $0x261] sm:$0xff]
    %v5641 = vld [vmem:[#allocation2 + $0x271] sm:$0xff]
    %v5642 = vld [vmem:[#allocation2 + $0x279] sm:$0xff]
    %v5643 = vld [vmem:[#allocation2 + $0x289] sm:$0xff]
    %v5644 = vld [vmem:[#allocation2 + $0x291] sm:$0xff]
    %v5645 = vld [vmem:[#allocation2 + $0x2a1] sm:$0xff]
    %v5646 = vld [vmem:[#allocation2 + $0x2a9] sm:$0xff]
    %v5647 = vld [vmem:[#allocation2 + $0x2b9] sm:$0xff]
    %v5648 = vld [vmem:[#allocation2 + $0x2c1] sm:$0xff]
    %v5649 = vld [vmem:[#allocation2 + $0x2d1] sm:$0xff]
    %v5650 = vld [vmem:[#allocation2 + $0x2d9] sm:$0xff]
    %v5651 = vld [vmem:[#allocation2 + $0x2e9] sm:$0xff]
    %v5652 = vld [vmem:[#allocation2 + $0x2f1] sm:$0xff]
    %v5653 = vld [vmem:[#allocation2 + $0x301] sm:$0xff]
    %v5654 = vld [vmem:[#allocation2 + $0x309] sm:$0xff]
    %v5655 = vld [vmem:[#allocation2 + $0x319] sm:$0xff]
    %v5656 = vld [vmem:[#allocation2 + $0x321] sm:$0xff]
    %5721 = vrot.lane.b32.xlu0 %v5593, 32
    %v5722 = vpop.permute.xlu0 %5721
    %5723 = vrot.lane.b32.xlu0 %v5594, 32
    %v5724 = vpop.permute.xlu0 %5723
    %5725 = vrot.lane.b32.xlu0 %v5595, 32
    %v5726 = vpop.permute.xlu0 %5725
    %5727 = vrot.lane.b32.xlu0 %v5596, 32
    %v5728 = vpop.permute.xlu0 %5727
    %5729 = vrot.lane.b32.xlu0 %v5597, 32
    %v5730 = vpop.permute.xlu0 %5729
    %5731 = vrot.lane.b32.xlu0 %v5598, 32
    %v5732 = vpop.permute.xlu0 %5731
    %5733 = vrot.lane.b32.xlu0 %v5599, 32
    %v5734 = vpop.permute.xlu0 %5733
    %5735 = vrot.lane.b32.xlu0 %v5600, 32
    %v5736 = vpop.permute.xlu0 %5735
    %5737 = vrot.lane.b32.xlu0 %v5601, 32
    %v5738 = vpop.permute.xlu0 %5737
    %5739 = vrot.lane.b32.xlu0 %v5602, 32
    %v5740 = vpop.permute.xlu0 %5739
    %5741 = vrot.lane.b32.xlu0 %v5603, 32
    %v5742 = vpop.permute.xlu0 %5741
    %5743 = vrot.lane.b32.xlu0 %v5604, 32
    %v5744 = vpop.permute.xlu0 %5743
    %5745 = vrot.lane.b32.xlu0 %v5605, 32
    %v5746 = vpop.permute.xlu0 %5745
    %5747 = vrot.lane.b32.xlu0 %v5606, 32
    %v5748 = vpop.permute.xlu0 %5747
    %5749 = vrot.lane.b32.xlu0 %v5607, 32
    %v5750 = vpop.permute.xlu0 %5749
    %5751 = vrot.lane.b32.xlu0 %v5608, 32
    %v5752 = vpop.permute.xlu0 %5751
    %5753 = vrot.lane.b32.xlu0 %v5609, 32
    %v5754 = vpop.permute.xlu0 %5753
    %5755 = vrot.lane.b32.xlu0 %v5610, 32
    %v5756 = vpop.permute.xlu0 %5755
    %5757 = vrot.lane.b32.xlu0 %v5611, 32
    %v5758 = vpop.permute.xlu0 %5757
    %5759 = vrot.lane.b32.xlu0 %v5612, 32
    %v5760 = vpop.permute.xlu0 %5759
    %5761 = vrot.lane.b32.xlu0 %v5613, 32
    %v5762 = vpop.permute.xlu0 %5761
    %5763 = vrot.lane.b32.xlu0 %v5614, 32
    %v5764 = vpop.permute.xlu0 %5763
    %5765 = vrot.lane.b32.xlu0 %v5615, 32
    %v5766 = vpop.permute.xlu0 %5765
    %5767 = vrot.lane.b32.xlu0 %v5616, 32
    %v5768 = vpop.permute.xlu0 %5767
    %5769 = vrot.lane.b32.xlu0 %v5617, 32
    %v5770 = vpop.permute.xlu0 %5769
    %5771 = vrot.lane.b32.xlu0 %v5618, 32
    %v5772 = vpop.permute.xlu0 %5771
    %5773 = vrot.lane.b32.xlu0 %v5619, 32
    %v5774 = vpop.permute.xlu0 %5773
    %5775 = vrot.lane.b32.xlu0 %v5620, 32
    %v5776 = vpop.permute.xlu0 %5775
    %5777 = vrot.lane.b32.xlu0 %v5621, 32
    %v5778 = vpop.permute.xlu0 %5777
    %5779 = vrot.lane.b32.xlu0 %v5622, 32
    %v5780 = vpop.permute.xlu0 %5779
    %5781 = vrot.lane.b32.xlu0 %v5623, 32
    %v5782 = vpop.permute.xlu0 %5781
    %5783 = vrot.lane.b32.xlu0 %v5624, 32
    %v5784 = vpop.permute.xlu0 %5783
    %5785 = vrot.lane.b32.xlu0 %v5625, 32
    %v5786 = vpop.permute.xlu0 %5785
    %5787 = vrot.lane.b32.xlu0 %v5626, 32
    %v5788 = vpop.permute.xlu0 %5787
    %5789 = vrot.lane.b32.xlu0 %v5627, 32
    %v5790 = vpop.permute.xlu0 %5789
    %5791 = vrot.lane.b32.xlu0 %v5628, 32
    %v5792 = vpop.permute.xlu0 %5791
    %5793 = vrot.lane.b32.xlu0 %v5629, 32
    %v5794 = vpop.permute.xlu0 %5793
    %5795 = vrot.lane.b32.xlu0 %v5630, 32
    %v5796 = vpop.permute.xlu0 %5795
    %5797 = vrot.lane.b32.xlu0 %v5631, 32
    %v5798 = vpop.permute.xlu0 %5797
    %5799 = vrot.lane.b32.xlu0 %v5632, 32
    %v5800 = vpop.permute.xlu0 %5799
    %5801 = vrot.lane.b32.xlu0 %v5633, 32
    %v5802 = vpop.permute.xlu0 %5801
    %5803 = vrot.lane.b32.xlu0 %v5634, 32
    %v5804 = vpop.permute.xlu0 %5803
    %5805 = vrot.lane.b32.xlu0 %v5635, 32
    %v5806 = vpop.permute.xlu0 %5805
    %5807 = vrot.lane.b32.xlu0 %v5636, 32
    %v5808 = vpop.permute.xlu0 %5807
    %5809 = vrot.lane.b32.xlu0 %v5637, 32
    %v5810 = vpop.permute.xlu0 %5809
    %5811 = vrot.lane.b32.xlu0 %v5638, 32
    %v5812 = vpop.permute.xlu0 %5811
    %5813 = vrot.lane.b32.xlu0 %v5639, 32
    %v5814 = vpop.permute.xlu0 %5813
    %5815 = vrot.lane.b32.xlu0 %v5640, 32
    %v5816 = vpop.permute.xlu0 %5815
    %5817 = vrot.lane.b32.xlu0 %v5641, 32
    %v5818 = vpop.permute.xlu0 %5817
    %5819 = vrot.lane.b32.xlu0 %v5642, 32
    %v5820 = vpop.permute.xlu0 %5819
    %5821 = vrot.lane.b32.xlu0 %v5643, 32
    %v5822 = vpop.permute.xlu0 %5821
    %5823 = vrot.lane.b32.xlu0 %v5644, 32
    %v5824 = vpop.permute.xlu0 %5823
    %5825 = vrot.lane.b32.xlu0 %v5645, 32
    %v5826 = vpop.permute.xlu0 %5825
    %5827 = vrot.lane.b32.xlu0 %v5646, 32
    %v5828 = vpop.permute.xlu0 %5827
    %5829 = vrot.lane.b32.xlu0 %v5647, 32
    %v5830 = vpop.permute.xlu0 %5829
    %5831 = vrot.lane.b32.xlu0 %v5648, 32
    %v5832 = vpop.permute.xlu0 %5831
    %5833 = vrot.lane.b32.xlu0 %v5649, 32
    %v5834 = vpop.permute.xlu0 %5833
    %5835 = vrot.lane.b32.xlu0 %v5650, 32
    %v5836 = vpop.permute.xlu0 %5835
    %5837 = vrot.lane.b32.xlu0 %v5651, 32
    %v5838 = vpop.permute.xlu0 %5837
    %5839 = vrot.lane.b32.xlu0 %v5652, 32
    %v5840 = vpop.permute.xlu0 %5839
    %5841 = vrot.lane.b32.xlu0 %v5653, 32
    %v5842 = vpop.permute.xlu0 %5841
    %5843 = vrot.lane.b32.xlu0 %v5654, 32
    %v5844 = vpop.permute.xlu0 %5843
    %5845 = vrot.lane.b32.xlu0 %v5655, 32
    %v5846 = vpop.permute.xlu0 %5845
    %5847 = vrot.lane.b32.xlu0 %v5656, 32
    %v5848 = vpop.permute.xlu0 %5847
    %5913 = vst.msk [vmem:[#allocation3] sm:$0xff] %vm1439, %v5722
    %5914 = vst.msk [vmem:[#allocation3 + $0x18] sm:$0xff] %vm1439, %v5724
    %5915 = vst.msk [vmem:[#allocation3 + $0x30] sm:$0xff] %vm1439, %v5726
    %5916 = vst.msk [vmem:[#allocation3 + $0x48] sm:$0xff] %vm1439, %v5728
    %5917 = vst.msk [vmem:[#allocation3 + $0x60] sm:$0xff] %vm1439, %v5730
    %5918 = vst.msk [vmem:[#allocation3 + $0x78] sm:$0xff] %vm1439, %v5732
    %5919 = vst.msk [vmem:[#allocation3 + $0x90] sm:$0xff] %vm1439, %v5734
    %5920 = vst.msk [vmem:[#allocation3 + $0xa8] sm:$0xff] %vm1439, %v5736
    %5921 = vst.msk [vmem:[#allocation3 + $0xc0] sm:$0xff] %vm1439, %v5738
    %5922 = vst.msk [vmem:[#allocation3 + $0xd8] sm:$0xff] %vm1439, %v5740
    %5923 = vst.msk [vmem:[#allocation3 + $0xf0] sm:$0xff] %vm1439, %v5742
    %5924 = vst.msk [vmem:[#allocation3 + $0x108] sm:$0xff] %vm1439, %v5744
    %5925 = vst.msk [vmem:[#allocation3 + $0x120] sm:$0xff] %vm1439, %v5746
    %5926 = vst.msk [vmem:[#allocation3 + $0x138] sm:$0xff] %vm1439, %v5748
    %5927 = vst.msk [vmem:[#allocation3 + $0x150] sm:$0xff] %vm1439, %v5750
    %5928 = vst.msk [vmem:[#allocation3 + $0x168] sm:$0xff] %vm1439, %v5752
    %5929 = vst.msk [vmem:[#allocation3 + $0x180] sm:$0xff] %vm1439, %v5754
    %5930 = vst.msk [vmem:[#allocation3 + $0x198] sm:$0xff] %vm1439, %v5756
    %5931 = vst.msk [vmem:[#allocation3 + $0x1b0] sm:$0xff] %vm1439, %v5758
    %5932 = vst.msk [vmem:[#allocation3 + $0x1c8] sm:$0xff] %vm1439, %v5760
    %5933 = vst.msk [vmem:[#allocation3 + $0x1e0] sm:$0xff] %vm1439, %v5762
    %5934 = vst.msk [vmem:[#allocation3 + $0x1f8] sm:$0xff] %vm1439, %v5764
    %5935 = vst.msk [vmem:[#allocation3 + $0x210] sm:$0xff] %vm1439, %v5766
    %5936 = vst.msk [vmem:[#allocation3 + $0x228] sm:$0xff] %vm1439, %v5768
    %5937 = vst.msk [vmem:[#allocation3 + $0x240] sm:$0xff] %vm1439, %v5770
    %5938 = vst.msk [vmem:[#allocation3 + $0x258] sm:$0xff] %vm1439, %v5772
    %5939 = vst.msk [vmem:[#allocation3 + $0x270] sm:$0xff] %vm1439, %v5774
    %5940 = vst.msk [vmem:[#allocation3 + $0x288] sm:$0xff] %vm1439, %v5776
    %5941 = vst.msk [vmem:[#allocation3 + $0x2a0] sm:$0xff] %vm1439, %v5778
    %5942 = vst.msk [vmem:[#allocation3 + $0x2b8] sm:$0xff] %vm1439, %v5780
    %5943 = vst.msk [vmem:[#allocation3 + $0x2d0] sm:$0xff] %vm1439, %v5782
    %5944 = vst.msk [vmem:[#allocation3 + $0x2e8] sm:$0xff] %vm1439, %v5784
    %5945 = vst.msk [vmem:[#allocation3 + $0x300] sm:$0xff] %vm1439, %v5786
    %5946 = vst.msk [vmem:[#allocation3 + $0x318] sm:$0xff] %vm1439, %v5788
    %5947 = vst.msk [vmem:[#allocation3 + $0x330] sm:$0xff] %vm1439, %v5790
    %5948 = vst.msk [vmem:[#allocation3 + $0x348] sm:$0xff] %vm1439, %v5792
    %5949 = vst.msk [vmem:[#allocation3 + $0x360] sm:$0xff] %vm1439, %v5794
    %5950 = vst.msk [vmem:[#allocation3 + $0x378] sm:$0xff] %vm1439, %v5796
    %5951 = vst.msk [vmem:[#allocation3 + $0x390] sm:$0xff] %vm1439, %v5798
    %5952 = vst.msk [vmem:[#allocation3 + $0x3a8] sm:$0xff] %vm1439, %v5800
    %5953 = vst.msk [vmem:[#allocation3 + $0x3c0] sm:$0xff] %vm1439, %v5802
    %5954 = vst.msk [vmem:[#allocation3 + $0x3d8] sm:$0xff] %vm1439, %v5804
    %5955 = vst.msk [vmem:[#allocation3 + $0x3f0] sm:$0xff] %vm1439, %v5806
    %5956 = vst.msk [vmem:[#allocation3 + $0x408] sm:$0xff] %vm1439, %v5808
    %5957 = vst.msk [vmem:[#allocation3 + $0x420] sm:$0xff] %vm1439, %v5810
    %5958 = vst.msk [vmem:[#allocation3 + $0x438] sm:$0xff] %vm1439, %v5812
    %5959 = vst.msk [vmem:[#allocation3 + $0x450] sm:$0xff] %vm1439, %v5814
    %5960 = vst.msk [vmem:[#allocation3 + $0x468] sm:$0xff] %vm1439, %v5816
    %5961 = vst.msk [vmem:[#allocation3 + $0x480] sm:$0xff] %vm1439, %v5818
    %5962 = vst.msk [vmem:[#allocation3 + $0x498] sm:$0xff] %vm1439, %v5820
    %5963 = vst.msk [vmem:[#allocation3 + $0x4b0] sm:$0xff] %vm1439, %v5822
    %5964 = vst.msk [vmem:[#allocation3 + $0x4c8] sm:$0xff] %vm1439, %v5824
    %5965 = vst.msk [vmem:[#allocation3 + $0x4e0] sm:$0xff] %vm1439, %v5826
    %5966 = vst.msk [vmem:[#allocation3 + $0x4f8] sm:$0xff] %vm1439, %v5828
    %5967 = vst.msk [vmem:[#allocation3 + $0x510] sm:$0xff] %vm1439, %v5830
    %5968 = vst.msk [vmem:[#allocation3 + $0x528] sm:$0xff] %vm1439, %v5832
    %5969 = vst.msk [vmem:[#allocation3 + $0x540] sm:$0xff] %vm1439, %v5834
    %5970 = vst.msk [vmem:[#allocation3 + $0x558] sm:$0xff] %vm1439, %v5836
    %5971 = vst.msk [vmem:[#allocation3 + $0x570] sm:$0xff] %vm1439, %v5838
    %5972 = vst.msk [vmem:[#allocation3 + $0x588] sm:$0xff] %vm1439, %v5840
    %5973 = vst.msk [vmem:[#allocation3 + $0x5a0] sm:$0xff] %vm1439, %v5842
    %5974 = vst.msk [vmem:[#allocation3 + $0x5b8] sm:$0xff] %vm1439, %v5844
    %5975 = vst.msk [vmem:[#allocation3 + $0x5d0] sm:$0xff] %vm1439, %v5846
    %5976 = vst.msk [vmem:[#allocation3 + $0x5e8] sm:$0xff] %vm1439, %v5848
    %v5977 = vld [vmem:[#allocation2 + $0x2] sm:$0xff]
    %v5978 = vld [vmem:[#allocation2 + $0xa] sm:$0xff]
    %v5979 = vld [vmem:[#allocation2 + $0x1a] sm:$0xff]
    %v5980 = vld [vmem:[#allocation2 + $0x22] sm:$0xff]
    %v5981 = vld [vmem:[#allocation2 + $0x32] sm:$0xff]
    %v5982 = vld [vmem:[#allocation2 + $0x3a] sm:$0xff]
    %v5983 = vld [vmem:[#allocation2 + $0x4a] sm:$0xff]
    %v5984 = vld [vmem:[#allocation2 + $0x52] sm:$0xff]
    %v5985 = vld [vmem:[#allocation2 + $0x62] sm:$0xff]
    %v5986 = vld [vmem:[#allocation2 + $0x6a] sm:$0xff]
    %v5987 = vld [vmem:[#allocation2 + $0x7a] sm:$0xff]
    %v5988 = vld [vmem:[#allocation2 + $0x82] sm:$0xff]
    %v5989 = vld [vmem:[#allocation2 + $0x92] sm:$0xff]
    %v5990 = vld [vmem:[#allocation2 + $0x9a] sm:$0xff]
    %v5991 = vld [vmem:[#allocation2 + $0xaa] sm:$0xff]
    %v5992 = vld [vmem:[#allocation2 + $0xb2] sm:$0xff]
    %v5993 = vld [vmem:[#allocation2 + $0xc2] sm:$0xff]
    %v5994 = vld [vmem:[#allocation2 + $0xca] sm:$0xff]
    %v5995 = vld [vmem:[#allocation2 + $0xda] sm:$0xff]
    %v5996 = vld [vmem:[#allocation2 + $0xe2] sm:$0xff]
    %v5997 = vld [vmem:[#allocation2 + $0xf2] sm:$0xff]
    %v5998 = vld [vmem:[#allocation2 + $0xfa] sm:$0xff]
    %v5999 = vld [vmem:[#allocation2 + $0x10a] sm:$0xff]
    %v6000 = vld [vmem:[#allocation2 + $0x112] sm:$0xff]
    %v6001 = vld [vmem:[#allocation2 + $0x122] sm:$0xff]
    %v6002 = vld [vmem:[#allocation2 + $0x12a] sm:$0xff]
    %v6003 = vld [vmem:[#allocation2 + $0x13a] sm:$0xff]
    %v6004 = vld [vmem:[#allocation2 + $0x142] sm:$0xff]
    %v6005 = vld [vmem:[#allocation2 + $0x152] sm:$0xff]
    %v6006 = vld [vmem:[#allocation2 + $0x15a] sm:$0xff]
    %v6007 = vld [vmem:[#allocation2 + $0x16a] sm:$0xff]
    %v6008 = vld [vmem:[#allocation2 + $0x172] sm:$0xff]
    %v6009 = vld [vmem:[#allocation2 + $0x1b2] sm:$0xff]
    %v6010 = vld [vmem:[#allocation2 + $0x1ba] sm:$0xff]
    %v6011 = vld [vmem:[#allocation2 + $0x1ca] sm:$0xff]
    %v6012 = vld [vmem:[#allocation2 + $0x1d2] sm:$0xff]
    %v6013 = vld [vmem:[#allocation2 + $0x1e2] sm:$0xff]
    %v6014 = vld [vmem:[#allocation2 + $0x1ea] sm:$0xff]
    %v6015 = vld [vmem:[#allocation2 + $0x1fa] sm:$0xff]
    %v6016 = vld [vmem:[#allocation2 + $0x202] sm:$0xff]
    %v6017 = vld [vmem:[#allocation2 + $0x212] sm:$0xff]
    %v6018 = vld [vmem:[#allocation2 + $0x21a] sm:$0xff]
    %v6019 = vld [vmem:[#allocation2 + $0x22a] sm:$0xff]
    %v6020 = vld [vmem:[#allocation2 + $0x232] sm:$0xff]
    %v6021 = vld [vmem:[#allocation2 + $0x242] sm:$0xff]
    %v6022 = vld [vmem:[#allocation2 + $0x24a] sm:$0xff]
    %v6023 = vld [vmem:[#allocation2 + $0x25a] sm:$0xff]
    %v6024 = vld [vmem:[#allocation2 + $0x262] sm:$0xff]
    %v6025 = vld [vmem:[#allocation2 + $0x272] sm:$0xff]
    %v6026 = vld [vmem:[#allocation2 + $0x27a] sm:$0xff]
    %v6027 = vld [vmem:[#allocation2 + $0x28a] sm:$0xff]
    %v6028 = vld [vmem:[#allocation2 + $0x292] sm:$0xff]
    %v6029 = vld [vmem:[#allocation2 + $0x2a2] sm:$0xff]
    %v6030 = vld [vmem:[#allocation2 + $0x2aa] sm:$0xff]
    %v6031 = vld [vmem:[#allocation2 + $0x2ba] sm:$0xff]
    %v6032 = vld [vmem:[#allocation2 + $0x2c2] sm:$0xff]
    %v6033 = vld [vmem:[#allocation2 + $0x2d2] sm:$0xff]
    %v6034 = vld [vmem:[#allocation2 + $0x2da] sm:$0xff]
    %v6035 = vld [vmem:[#allocation2 + $0x2ea] sm:$0xff]
    %v6036 = vld [vmem:[#allocation2 + $0x2f2] sm:$0xff]
    %v6037 = vld [vmem:[#allocation2 + $0x302] sm:$0xff]
    %v6038 = vld [vmem:[#allocation2 + $0x30a] sm:$0xff]
    %v6039 = vld [vmem:[#allocation2 + $0x31a] sm:$0xff]
    %v6040 = vld [vmem:[#allocation2 + $0x322] sm:$0xff]
    %6105 = vrot.lane.b32.xlu0 %v5977, 64
    %v6106 = vpop.permute.xlu0 %6105
    %6107 = vrot.lane.b32.xlu0 %v5978, 64
    %v6108 = vpop.permute.xlu0 %6107
    %6109 = vrot.lane.b32.xlu0 %v5979, 64
    %v6110 = vpop.permute.xlu0 %6109
    %6111 = vrot.lane.b32.xlu0 %v5980, 64
    %v6112 = vpop.permute.xlu0 %6111
    %6113 = vrot.lane.b32.xlu0 %v5981, 64
    %v6114 = vpop.permute.xlu0 %6113
    %6115 = vrot.lane.b32.xlu0 %v5982, 64
    %v6116 = vpop.permute.xlu0 %6115
    %6117 = vrot.lane.b32.xlu0 %v5983, 64
    %v6118 = vpop.permute.xlu0 %6117
    %6119 = vrot.lane.b32.xlu0 %v5984, 64
    %v6120 = vpop.permute.xlu0 %6119
    %6121 = vrot.lane.b32.xlu0 %v5985, 64
    %v6122 = vpop.permute.xlu0 %6121
    %6123 = vrot.lane.b32.xlu0 %v5986, 64
    %v6124 = vpop.permute.xlu0 %6123
    %6125 = vrot.lane.b32.xlu0 %v5987, 64
    %v6126 = vpop.permute.xlu0 %6125
    %6127 = vrot.lane.b32.xlu0 %v5988, 64
    %v6128 = vpop.permute.xlu0 %6127
    %6129 = vrot.lane.b32.xlu0 %v5989, 64
    %v6130 = vpop.permute.xlu0 %6129
    %6131 = vrot.lane.b32.xlu0 %v5990, 64
    %v6132 = vpop.permute.xlu0 %6131
    %6133 = vrot.lane.b32.xlu0 %v5991, 64
    %v6134 = vpop.permute.xlu0 %6133
    %6135 = vrot.lane.b32.xlu0 %v5992, 64
    %v6136 = vpop.permute.xlu0 %6135
    %6137 = vrot.lane.b32.xlu0 %v5993, 64
    %v6138 = vpop.permute.xlu0 %6137
    %6139 = vrot.lane.b32.xlu0 %v5994, 64
    %v6140 = vpop.permute.xlu0 %6139
    %6141 = vrot.lane.b32.xlu0 %v5995, 64
    %v6142 = vpop.permute.xlu0 %6141
    %6143 = vrot.lane.b32.xlu0 %v5996, 64
    %v6144 = vpop.permute.xlu0 %6143
    %6145 = vrot.lane.b32.xlu0 %v5997, 64
    %v6146 = vpop.permute.xlu0 %6145
    %6147 = vrot.lane.b32.xlu0 %v5998, 64
    %v6148 = vpop.permute.xlu0 %6147
    %6149 = vrot.lane.b32.xlu0 %v5999, 64
    %v6150 = vpop.permute.xlu0 %6149
    %6151 = vrot.lane.b32.xlu0 %v6000, 64
    %v6152 = vpop.permute.xlu0 %6151
    %6153 = vrot.lane.b32.xlu0 %v6001, 64
    %v6154 = vpop.permute.xlu0 %6153
    %6155 = vrot.lane.b32.xlu0 %v6002, 64
    %v6156 = vpop.permute.xlu0 %6155
    %6157 = vrot.lane.b32.xlu0 %v6003, 64
    %v6158 = vpop.permute.xlu0 %6157
    %6159 = vrot.lane.b32.xlu0 %v6004, 64
    %v6160 = vpop.permute.xlu0 %6159
    %6161 = vrot.lane.b32.xlu0 %v6005, 64
    %v6162 = vpop.permute.xlu0 %6161
    %6163 = vrot.lane.b32.xlu0 %v6006, 64
    %v6164 = vpop.permute.xlu0 %6163
    %6165 = vrot.lane.b32.xlu0 %v6007, 64
    %v6166 = vpop.permute.xlu0 %6165
    %6167 = vrot.lane.b32.xlu0 %v6008, 64
    %v6168 = vpop.permute.xlu0 %6167
    %6169 = vrot.lane.b32.xlu0 %v6009, 64
    %v6170 = vpop.permute.xlu0 %6169
    %6171 = vrot.lane.b32.xlu0 %v6010, 64
    %v6172 = vpop.permute.xlu0 %6171
    %6173 = vrot.lane.b32.xlu0 %v6011, 64
    %v6174 = vpop.permute.xlu0 %6173
    %6175 = vrot.lane.b32.xlu0 %v6012, 64
    %v6176 = vpop.permute.xlu0 %6175
    %6177 = vrot.lane.b32.xlu0 %v6013, 64
    %v6178 = vpop.permute.xlu0 %6177
    %6179 = vrot.lane.b32.xlu0 %v6014, 64
    %v6180 = vpop.permute.xlu0 %6179
    %6181 = vrot.lane.b32.xlu0 %v6015, 64
    %v6182 = vpop.permute.xlu0 %6181
    %6183 = vrot.lane.b32.xlu0 %v6016, 64
    %v6184 = vpop.permute.xlu0 %6183
    %6185 = vrot.lane.b32.xlu0 %v6017, 64
    %v6186 = vpop.permute.xlu0 %6185
    %6187 = vrot.lane.b32.xlu0 %v6018, 64
    %v6188 = vpop.permute.xlu0 %6187
    %6189 = vrot.lane.b32.xlu0 %v6019, 64
    %v6190 = vpop.permute.xlu0 %6189
    %6191 = vrot.lane.b32.xlu0 %v6020, 64
    %v6192 = vpop.permute.xlu0 %6191
    %6193 = vrot.lane.b32.xlu0 %v6021, 64
    %v6194 = vpop.permute.xlu0 %6193
    %6195 = vrot.lane.b32.xlu0 %v6022, 64
    %v6196 = vpop.permute.xlu0 %6195
    %6197 = vrot.lane.b32.xlu0 %v6023, 64
    %v6198 = vpop.permute.xlu0 %6197
    %6199 = vrot.lane.b32.xlu0 %v6024, 64
    %v6200 = vpop.permute.xlu0 %6199
    %6201 = vrot.lane.b32.xlu0 %v6025, 64
    %v6202 = vpop.permute.xlu0 %6201
    %6203 = vrot.lane.b32.xlu0 %v6026, 64
    %v6204 = vpop.permute.xlu0 %6203
    %6205 = vrot.lane.b32.xlu0 %v6027, 64
    %v6206 = vpop.permute.xlu0 %6205
    %6207 = vrot.lane.b32.xlu0 %v6028, 64
    %v6208 = vpop.permute.xlu0 %6207
    %6209 = vrot.lane.b32.xlu0 %v6029, 64
    %v6210 = vpop.permute.xlu0 %6209
    %6211 = vrot.lane.b32.xlu0 %v6030, 64
    %v6212 = vpop.permute.xlu0 %6211
    %6213 = vrot.lane.b32.xlu0 %v6031, 64
    %v6214 = vpop.permute.xlu0 %6213
    %6215 = vrot.lane.b32.xlu0 %v6032, 64
    %v6216 = vpop.permute.xlu0 %6215
    %6217 = vrot.lane.b32.xlu0 %v6033, 64
    %v6218 = vpop.permute.xlu0 %6217
    %6219 = vrot.lane.b32.xlu0 %v6034, 64
    %v6220 = vpop.permute.xlu0 %6219
    %6221 = vrot.lane.b32.xlu0 %v6035, 64
    %v6222 = vpop.permute.xlu0 %6221
    %6223 = vrot.lane.b32.xlu0 %v6036, 64
    %v6224 = vpop.permute.xlu0 %6223
    %6225 = vrot.lane.b32.xlu0 %v6037, 64
    %v6226 = vpop.permute.xlu0 %6225
    %6227 = vrot.lane.b32.xlu0 %v6038, 64
    %v6228 = vpop.permute.xlu0 %6227
    %6229 = vrot.lane.b32.xlu0 %v6039, 64
    %v6230 = vpop.permute.xlu0 %6229
    %6231 = vrot.lane.b32.xlu0 %v6040, 64
    %v6232 = vpop.permute.xlu0 %6231
    %6297 = vst.msk [vmem:[#allocation3] sm:$0xff] %vm1824, %v6106
    %6298 = vst.msk [vmem:[#allocation3 + $0x18] sm:$0xff] %vm1824, %v6108
    %6299 = vst.msk [vmem:[#allocation3 + $0x30] sm:$0xff] %vm1824, %v6110
    %6300 = vst.msk [vmem:[#allocation3 + $0x48] sm:$0xff] %vm1824, %v6112
    %6301 = vst.msk [vmem:[#allocation3 + $0x60] sm:$0xff] %vm1824, %v6114
    %6302 = vst.msk [vmem:[#allocation3 + $0x78] sm:$0xff] %vm1824, %v6116
    %6303 = vst.msk [vmem:[#allocation3 + $0x90] sm:$0xff] %vm1824, %v6118
    %6304 = vst.msk [vmem:[#allocation3 + $0xa8] sm:$0xff] %vm1824, %v6120
    %6305 = vst.msk [vmem:[#allocation3 + $0xc0] sm:$0xff] %vm1824, %v6122
    %6306 = vst.msk [vmem:[#allocation3 + $0xd8] sm:$0xff] %vm1824, %v6124
    %6307 = vst.msk [vmem:[#allocation3 + $0xf0] sm:$0xff] %vm1824, %v6126
    %6308 = vst.msk [vmem:[#allocation3 + $0x108] sm:$0xff] %vm1824, %v6128
    %6309 = vst.msk [vmem:[#allocation3 + $0x120] sm:$0xff] %vm1824, %v6130
    %6310 = vst.msk [vmem:[#allocation3 + $0x138] sm:$0xff] %vm1824, %v6132
    %6311 = vst.msk [vmem:[#allocation3 + $0x150] sm:$0xff] %vm1824, %v6134
    %6312 = vst.msk [vmem:[#allocation3 + $0x168] sm:$0xff] %vm1824, %v6136
    %6313 = vst.msk [vmem:[#allocation3 + $0x180] sm:$0xff] %vm1824, %v6138
    %6314 = vst.msk [vmem:[#allocation3 + $0x198] sm:$0xff] %vm1824, %v6140
    %6315 = vst.msk [vmem:[#allocation3 + $0x1b0] sm:$0xff] %vm1824, %v6142
    %6316 = vst.msk [vmem:[#allocation3 + $0x1c8] sm:$0xff] %vm1824, %v6144
    %6317 = vst.msk [vmem:[#allocation3 + $0x1e0] sm:$0xff] %vm1824, %v6146
    %6318 = vst.msk [vmem:[#allocation3 + $0x1f8] sm:$0xff] %vm1824, %v6148
    %6319 = vst.msk [vmem:[#allocation3 + $0x210] sm:$0xff] %vm1824, %v6150
    %6320 = vst.msk [vmem:[#allocation3 + $0x228] sm:$0xff] %vm1824, %v6152
    %6321 = vst.msk [vmem:[#allocation3 + $0x240] sm:$0xff] %vm1824, %v6154
    %6322 = vst.msk [vmem:[#allocation3 + $0x258] sm:$0xff] %vm1824, %v6156
    %6323 = vst.msk [vmem:[#allocation3 + $0x270] sm:$0xff] %vm1824, %v6158
    %6324 = vst.msk [vmem:[#allocation3 + $0x288] sm:$0xff] %vm1824, %v6160
    %6325 = vst.msk [vmem:[#allocation3 + $0x2a0] sm:$0xff] %vm1824, %v6162
    %6326 = vst.msk [vmem:[#allocation3 + $0x2b8] sm:$0xff] %vm1824, %v6164
    %6327 = vst.msk [vmem:[#allocation3 + $0x2d0] sm:$0xff] %vm1824, %v6166
    %6328 = vst.msk [vmem:[#allocation3 + $0x2e8] sm:$0xff] %vm1824, %v6168
    %6329 = vst.msk [vmem:[#allocation3 + $0x300] sm:$0xff] %vm1824, %v6170
    %6330 = vst.msk [vmem:[#allocation3 + $0x318] sm:$0xff] %vm1824, %v6172
    %6331 = vst.msk [vmem:[#allocation3 + $0x330] sm:$0xff] %vm1824, %v6174
    %6332 = vst.msk [vmem:[#allocation3 + $0x348] sm:$0xff] %vm1824, %v6176
    %6333 = vst.msk [vmem:[#allocation3 + $0x360] sm:$0xff] %vm1824, %v6178
    %6334 = vst.msk [vmem:[#allocation3 + $0x378] sm:$0xff] %vm1824, %v6180
    %6335 = vst.msk [vmem:[#allocation3 + $0x390] sm:$0xff] %vm1824, %v6182
    %6336 = vst.msk [vmem:[#allocation3 + $0x3a8] sm:$0xff] %vm1824, %v6184
    %6337 = vst.msk [vmem:[#allocation3 + $0x3c0] sm:$0xff] %vm1824, %v6186
    %6338 = vst.msk [vmem:[#allocation3 + $0x3d8] sm:$0xff] %vm1824, %v6188
    %6339 = vst.msk [vmem:[#allocation3 + $0x3f0] sm:$0xff] %vm1824, %v6190
    %6340 = vst.msk [vmem:[#allocation3 + $0x408] sm:$0xff] %vm1824, %v6192
    %6341 = vst.msk [vmem:[#allocation3 + $0x420] sm:$0xff] %vm1824, %v6194
    %6342 = vst.msk [vmem:[#allocation3 + $0x438] sm:$0xff] %vm1824, %v6196
    %6343 = vst.msk [vmem:[#allocation3 + $0x450] sm:$0xff] %vm1824, %v6198
    %6344 = vst.msk [vmem:[#allocation3 + $0x468] sm:$0xff] %vm1824, %v6200
    %6345 = vst.msk [vmem:[#allocation3 + $0x480] sm:$0xff] %vm1824, %v6202
    %6346 = vst.msk [vmem:[#allocation3 + $0x498] sm:$0xff] %vm1824, %v6204
    %6347 = vst.msk [vmem:[#allocation3 + $0x4b0] sm:$0xff] %vm1824, %v6206
    %6348 = vst.msk [vmem:[#allocation3 + $0x4c8] sm:$0xff] %vm1824, %v6208
    %6349 = vst.msk [vmem:[#allocation3 + $0x4e0] sm:$0xff] %vm1824, %v6210
    %6350 = vst.msk [vmem:[#allocation3 + $0x4f8] sm:$0xff] %vm1824, %v6212
    %6351 = vst.msk [vmem:[#allocation3 + $0x510] sm:$0xff] %vm1824, %v6214
    %6352 = vst.msk [vmem:[#allocation3 + $0x528] sm:$0xff] %vm1824, %v6216
    %6353 = vst.msk [vmem:[#allocation3 + $0x540] sm:$0xff] %vm1824, %v6218
    %6354 = vst.msk [vmem:[#allocation3 + $0x558] sm:$0xff] %vm1824, %v6220
    %6355 = vst.msk [vmem:[#allocation3 + $0x570] sm:$0xff] %vm1824, %v6222
    %6356 = vst.msk [vmem:[#allocation3 + $0x588] sm:$0xff] %vm1824, %v6224
    %6357 = vst.msk [vmem:[#allocation3 + $0x5a0] sm:$0xff] %vm1824, %v6226
    %6358 = vst.msk [vmem:[#allocation3 + $0x5b8] sm:$0xff] %vm1824, %v6228
    %6359 = vst.msk [vmem:[#allocation3 + $0x5d0] sm:$0xff] %vm1824, %v6230
    %6360 = vst.msk [vmem:[#allocation3 + $0x5e8] sm:$0xff] %vm1824, %v6232
    %v6361 = vld [vmem:[%s926] sm:$0xff]
    %v6362 = vld [vmem:[%s926 + $0x8] sm:$0xff]
    %v6363 = vld [vmem:[%s926 + $0x18] sm:$0xff]
    %v6364 = vld [vmem:[%s926 + $0x20] sm:$0xff]
    %v6365 = vld [vmem:[%s926 + $0x30] sm:$0xff]
    %v6366 = vld [vmem:[%s926 + $0x38] sm:$0xff]
    %v6367 = vld [vmem:[%s926 + $0x48] sm:$0xff]
    %v6368 = vld [vmem:[%s926 + $0x50] sm:$0xff]
    %v6369 = vld [vmem:[%s926 + $0x60] sm:$0xff]
    %v6370 = vld [vmem:[%s926 + $0x68] sm:$0xff]
    %v6371 = vld [vmem:[%s926 + $0x78] sm:$0xff]
    %v6372 = vld [vmem:[%s926 + $0x80] sm:$0xff]
    %v6373 = vld [vmem:[%s926 + $0x90] sm:$0xff]
    %v6374 = vld [vmem:[%s926 + $0x98] sm:$0xff]
    %v6375 = vld [vmem:[%s926 + $0xa8] sm:$0xff]
    %v6376 = vld [vmem:[%s926 + $0xb0] sm:$0xff]
    %v6377 = vld [vmem:[%s926 + $0xc0] sm:$0xff]
    %v6378 = vld [vmem:[%s926 + $0xc8] sm:$0xff]
    %v6379 = vld [vmem:[%s926 + $0xd8] sm:$0xff]
    %v6380 = vld [vmem:[%s926 + $0xe0] sm:$0xff]
    %v6381 = vld [vmem:[%s926 + $0xf0] sm:$0xff]
    %v6382 = vld [vmem:[%s926 + $0xf8] sm:$0xff]
    %v6383 = vld [vmem:[%s926 + $0x108] sm:$0xff]
    %v6384 = vld [vmem:[%s926 + $0x110] sm:$0xff]
    %v6385 = vld [vmem:[%s926 + $0x120] sm:$0xff]
    %v6386 = vld [vmem:[%s926 + $0x128] sm:$0xff]
    %v6387 = vld [vmem:[%s926 + $0x138] sm:$0xff]
    %v6388 = vld [vmem:[%s926 + $0x140] sm:$0xff]
    %v6389 = vld [vmem:[%s926 + $0x150] sm:$0xff]
    %v6390 = vld [vmem:[%s926 + $0x158] sm:$0xff]
    %v6391 = vld [vmem:[%s926 + $0x168] sm:$0xff]
    %v6392 = vld [vmem:[%s926 + $0x170] sm:$0xff]
    %v6393 = vld [vmem:[%s926 + $0x1b0] sm:$0xff]
    %v6394 = vld [vmem:[%s926 + $0x1b8] sm:$0xff]
    %v6395 = vld [vmem:[%s926 + $0x1c8] sm:$0xff]
    %v6396 = vld [vmem:[%s926 + $0x1d0] sm:$0xff]
    %v6397 = vld [vmem:[%s926 + $0x1e0] sm:$0xff]
    %v6398 = vld [vmem:[%s926 + $0x1e8] sm:$0xff]
    %v6399 = vld [vmem:[%s926 + $0x1f8] sm:$0xff]
    %v6400 = vld [vmem:[%s926 + $0x200] sm:$0xff]
    %v6401 = vld [vmem:[%s926 + $0x210] sm:$0xff]
    %v6402 = vld [vmem:[%s926 + $0x218] sm:$0xff]
    %v6403 = vld [vmem:[%s926 + $0x228] sm:$0xff]
    %v6404 = vld [vmem:[%s926 + $0x230] sm:$0xff]
    %v6405 = vld [vmem:[%s926 + $0x240] sm:$0xff]
    %v6406 = vld [vmem:[%s926 + $0x248] sm:$0xff]
    %v6407 = vld [vmem:[%s926 + $0x258] sm:$0xff]
    %v6408 = vld [vmem:[%s926 + $0x260] sm:$0xff]
    %v6409 = vld [vmem:[%s926 + $0x270] sm:$0xff]
    %v6410 = vld [vmem:[%s926 + $0x278] sm:$0xff]
    %v6411 = vld [vmem:[%s926 + $0x288] sm:$0xff]
    %v6412 = vld [vmem:[%s926 + $0x290] sm:$0xff]
    %v6413 = vld [vmem:[%s926 + $0x2a0] sm:$0xff]
    %v6414 = vld [vmem:[%s926 + $0x2a8] sm:$0xff]
    %v6415 = vld [vmem:[%s926 + $0x2b8] sm:$0xff]
    %v6416 = vld [vmem:[%s926 + $0x2c0] sm:$0xff]
    %v6417 = vld [vmem:[%s926 + $0x2d0] sm:$0xff]
    %v6418 = vld [vmem:[%s926 + $0x2d8] sm:$0xff]
    %v6419 = vld [vmem:[%s926 + $0x2e8] sm:$0xff]
    %v6420 = vld [vmem:[%s926 + $0x2f0] sm:$0xff]
    %v6421 = vld [vmem:[%s926 + $0x300] sm:$0xff]
    %v6422 = vld [vmem:[%s926 + $0x308] sm:$0xff]
    %v6423 = vld [vmem:[%s926 + $0x318] sm:$0xff]
    %v6424 = vld [vmem:[%s926 + $0x320] sm:$0xff]
    %6489 = vrot.lane.b32.xlu0 %v6361, 96
    %v6490 = vpop.permute.xlu0 %6489
    %6491 = vrot.lane.b32.xlu0 %v6362, 96
    %v6492 = vpop.permute.xlu0 %6491
    %6493 = vrot.lane.b32.xlu0 %v6363, 96
    %v6494 = vpop.permute.xlu0 %6493
    %6495 = vrot.lane.b32.xlu0 %v6364, 96
    %v6496 = vpop.permute.xlu0 %6495
    %6497 = vrot.lane.b32.xlu0 %v6365, 96
    %v6498 = vpop.permute.xlu0 %6497
    %6499 = vrot.lane.b32.xlu0 %v6366, 96
    %v6500 = vpop.permute.xlu0 %6499
    %6501 = vrot.lane.b32.xlu0 %v6367, 96
    %v6502 = vpop.permute.xlu0 %6501
    %6503 = vrot.lane.b32.xlu0 %v6368, 96
    %v6504 = vpop.permute.xlu0 %6503
    %6505 = vrot.lane.b32.xlu0 %v6369, 96
    %v6506 = vpop.permute.xlu0 %6505
    %6507 = vrot.lane.b32.xlu0 %v6370, 96
    %v6508 = vpop.permute.xlu0 %6507
    %6509 = vrot.lane.b32.xlu0 %v6371, 96
    %v6510 = vpop.permute.xlu0 %6509
    %6511 = vrot.lane.b32.xlu0 %v6372, 96
    %v6512 = vpop.permute.xlu0 %6511
    %6513 = vrot.lane.b32.xlu0 %v6373, 96
    %v6514 = vpop.permute.xlu0 %6513
    %6515 = vrot.lane.b32.xlu0 %v6374, 96
    %v6516 = vpop.permute.xlu0 %6515
    %6517 = vrot.lane.b32.xlu0 %v6375, 96
    %v6518 = vpop.permute.xlu0 %6517
    %6519 = vrot.lane.b32.xlu0 %v6376, 96
    %v6520 = vpop.permute.xlu0 %6519
    %6521 = vrot.lane.b32.xlu0 %v6377, 96
    %v6522 = vpop.permute.xlu0 %6521
    %6523 = vrot.lane.b32.xlu0 %v6378, 96
    %v6524 = vpop.permute.xlu0 %6523
    %6525 = vrot.lane.b32.xlu0 %v6379, 96
    %v6526 = vpop.permute.xlu0 %6525
    %6527 = vrot.lane.b32.xlu0 %v6380, 96
    %v6528 = vpop.permute.xlu0 %6527
    %6529 = vrot.lane.b32.xlu0 %v6381, 96
    %v6530 = vpop.permute.xlu0 %6529
    %6531 = vrot.lane.b32.xlu0 %v6382, 96
    %v6532 = vpop.permute.xlu0 %6531
    %6533 = vrot.lane.b32.xlu0 %v6383, 96
    %v6534 = vpop.permute.xlu0 %6533
    %6535 = vrot.lane.b32.xlu0 %v6384, 96
    %v6536 = vpop.permute.xlu0 %6535
    %6537 = vrot.lane.b32.xlu0 %v6385, 96
    %v6538 = vpop.permute.xlu0 %6537
    %6539 = vrot.lane.b32.xlu0 %v6386, 96
    %v6540 = vpop.permute.xlu0 %6539
    %6541 = vrot.lane.b32.xlu0 %v6387, 96
    %v6542 = vpop.permute.xlu0 %6541
    %6543 = vrot.lane.b32.xlu0 %v6388, 96
    %v6544 = vpop.permute.xlu0 %6543
    %6545 = vrot.lane.b32.xlu0 %v6389, 96
    %v6546 = vpop.permute.xlu0 %6545
    %6547 = vrot.lane.b32.xlu0 %v6390, 96
    %v6548 = vpop.permute.xlu0 %6547
    %6549 = vrot.lane.b32.xlu0 %v6391, 96
    %v6550 = vpop.permute.xlu0 %6549
    %6551 = vrot.lane.b32.xlu0 %v6392, 96
    %v6552 = vpop.permute.xlu0 %6551
    %6553 = vrot.lane.b32.xlu0 %v6393, 96
    %v6554 = vpop.permute.xlu0 %6553
    %6555 = vrot.lane.b32.xlu0 %v6394, 96
    %v6556 = vpop.permute.xlu0 %6555
    %6557 = vrot.lane.b32.xlu0 %v6395, 96
    %v6558 = vpop.permute.xlu0 %6557
    %6559 = vrot.lane.b32.xlu0 %v6396, 96
    %v6560 = vpop.permute.xlu0 %6559
    %6561 = vrot.lane.b32.xlu0 %v6397, 96
    %v6562 = vpop.permute.xlu0 %6561
    %6563 = vrot.lane.b32.xlu0 %v6398, 96
    %v6564 = vpop.permute.xlu0 %6563
    %6565 = vrot.lane.b32.xlu0 %v6399, 96
    %v6566 = vpop.permute.xlu0 %6565
    %6567 = vrot.lane.b32.xlu0 %v6400, 96
    %v6568 = vpop.permute.xlu0 %6567
    %6569 = vrot.lane.b32.xlu0 %v6401, 96
    %v6570 = vpop.permute.xlu0 %6569
    %6571 = vrot.lane.b32.xlu0 %v6402, 96
    %v6572 = vpop.permute.xlu0 %6571
    %6573 = vrot.lane.b32.xlu0 %v6403, 96
    %v6574 = vpop.permute.xlu0 %6573
    %6575 = vrot.lane.b32.xlu0 %v6404, 96
    %v6576 = vpop.permute.xlu0 %6575
    %6577 = vrot.lane.b32.xlu0 %v6405, 96
    %v6578 = vpop.permute.xlu0 %6577
    %6579 = vrot.lane.b32.xlu0 %v6406, 96
    %v6580 = vpop.permute.xlu0 %6579
    %6581 = vrot.lane.b32.xlu0 %v6407, 96
    %v6582 = vpop.permute.xlu0 %6581
    %6583 = vrot.lane.b32.xlu0 %v6408, 96
    %v6584 = vpop.permute.xlu0 %6583
    %6585 = vrot.lane.b32.xlu0 %v6409, 96
    %v6586 = vpop.permute.xlu0 %6585
    %6587 = vrot.lane.b32.xlu0 %v6410, 96
    %v6588 = vpop.permute.xlu0 %6587
    %6589 = vrot.lane.b32.xlu0 %v6411, 96
    %v6590 = vpop.permute.xlu0 %6589
    %6591 = vrot.lane.b32.xlu0 %v6412, 96
    %v6592 = vpop.permute.xlu0 %6591
    %6593 = vrot.lane.b32.xlu0 %v6413, 96
    %v6594 = vpop.permute.xlu0 %6593
    %6595 = vrot.lane.b32.xlu0 %v6414, 96
    %v6596 = vpop.permute.xlu0 %6595
    %6597 = vrot.lane.b32.xlu0 %v6415, 96
    %v6598 = vpop.permute.xlu0 %6597
    %6599 = vrot.lane.b32.xlu0 %v6416, 96
    %v6600 = vpop.permute.xlu0 %6599
    %6601 = vrot.lane.b32.xlu0 %v6417, 96
    %v6602 = vpop.permute.xlu0 %6601
    %6603 = vrot.lane.b32.xlu0 %v6418, 96
    %v6604 = vpop.permute.xlu0 %6603
    %6605 = vrot.lane.b32.xlu0 %v6419, 96
    %v6606 = vpop.permute.xlu0 %6605
    %6607 = vrot.lane.b32.xlu0 %v6420, 96
    %v6608 = vpop.permute.xlu0 %6607
    %6609 = vrot.lane.b32.xlu0 %v6421, 96
    %v6610 = vpop.permute.xlu0 %6609
    %6611 = vrot.lane.b32.xlu0 %v6422, 96
    %v6612 = vpop.permute.xlu0 %6611
    %6613 = vrot.lane.b32.xlu0 %v6423, 96
    %v6614 = vpop.permute.xlu0 %6613
    %6615 = vrot.lane.b32.xlu0 %v6424, 96
    %v6616 = vpop.permute.xlu0 %6615
    %6681 = vst.msk [vmem:[#allocation3] sm:$0xff] %vm2209, %v6490
    %6682 = vst.msk [vmem:[#allocation3 + $0x18] sm:$0xff] %vm2209, %v6492
    %6683 = vst.msk [vmem:[#allocation3 + $0x30] sm:$0xff] %vm2209, %v6494
    %6684 = vst.msk [vmem:[#allocation3 + $0x48] sm:$0xff] %vm2209, %v6496
    %6685 = vst.msk [vmem:[#allocation3 + $0x60] sm:$0xff] %vm2209, %v6498
    %6686 = vst.msk [vmem:[#allocation3 + $0x78] sm:$0xff] %vm2209, %v6500
    %6687 = vst.msk [vmem:[#allocation3 + $0x90] sm:$0xff] %vm2209, %v6502
    %6688 = vst.msk [vmem:[#allocation3 + $0xa8] sm:$0xff] %vm2209, %v6504
    %6689 = vst.msk [vmem:[#allocation3 + $0xc0] sm:$0xff] %vm2209, %v6506
    %6690 = vst.msk [vmem:[#allocation3 + $0xd8] sm:$0xff] %vm2209, %v6508
    %6691 = vst.msk [vmem:[#allocation3 + $0xf0] sm:$0xff] %vm2209, %v6510
    %6692 = vst.msk [vmem:[#allocation3 + $0x108] sm:$0xff] %vm2209, %v6512
    %6693 = vst.msk [vmem:[#allocation3 + $0x120] sm:$0xff] %vm2209, %v6514
    %6694 = vst.msk [vmem:[#allocation3 + $0x138] sm:$0xff] %vm2209, %v6516
    %6695 = vst.msk [vmem:[#allocation3 + $0x150] sm:$0xff] %vm2209, %v6518
    %6696 = vst.msk [vmem:[#allocation3 + $0x168] sm:$0xff] %vm2209, %v6520
    %6697 = vst.msk [vmem:[#allocation3 + $0x180] sm:$0xff] %vm2209, %v6522
    %6698 = vst.msk [vmem:[#allocation3 + $0x198] sm:$0xff] %vm2209, %v6524
    %6699 = vst.msk [vmem:[#allocation3 + $0x1b0] sm:$0xff] %vm2209, %v6526
    %6700 = vst.msk [vmem:[#allocation3 + $0x1c8] sm:$0xff] %vm2209, %v6528
    %6701 = vst.msk [vmem:[#allocation3 + $0x1e0] sm:$0xff] %vm2209, %v6530
    %6702 = vst.msk [vmem:[#allocation3 + $0x1f8] sm:$0xff] %vm2209, %v6532
    %6703 = vst.msk [vmem:[#allocation3 + $0x210] sm:$0xff] %vm2209, %v6534
    %6704 = vst.msk [vmem:[#allocation3 + $0x228] sm:$0xff] %vm2209, %v6536
    %6705 = vst.msk [vmem:[#allocation3 + $0x240] sm:$0xff] %vm2209, %v6538
    %6706 = vst.msk [vmem:[#allocation3 + $0x258] sm:$0xff] %vm2209, %v6540
    %6707 = vst.msk [vmem:[#allocation3 + $0x270] sm:$0xff] %vm2209, %v6542
    %6708 = vst.msk [vmem:[#allocation3 + $0x288] sm:$0xff] %vm2209, %v6544
    %6709 = vst.msk [vmem:[#allocation3 + $0x2a0] sm:$0xff] %vm2209, %v6546
    %6710 = vst.msk [vmem:[#allocation3 + $0x2b8] sm:$0xff] %vm2209, %v6548
    %6711 = vst.msk [vmem:[#allocation3 + $0x2d0] sm:$0xff] %vm2209, %v6550
    %6712 = vst.msk [vmem:[#allocation3 + $0x2e8] sm:$0xff] %vm2209, %v6552
    %6713 = vst.msk [vmem:[#allocation3 + $0x300] sm:$0xff] %vm2209, %v6554
    %6714 = vst.msk [vmem:[#allocation3 + $0x318] sm:$0xff] %vm2209, %v6556
    %6715 = vst.msk [vmem:[#allocation3 + $0x330] sm:$0xff] %vm2209, %v6558
    %6716 = vst.msk [vmem:[#allocation3 + $0x348] sm:$0xff] %vm2209, %v6560
    %6717 = vst.msk [vmem:[#allocation3 + $0x360] sm:$0xff] %vm2209, %v6562
    %6718 = vst.msk [vmem:[#allocation3 + $0x378] sm:$0xff] %vm2209, %v6564
    %6719 = vst.msk [vmem:[#allocation3 + $0x390] sm:$0xff] %vm2209, %v6566
    %6720 = vst.msk [vmem:[#allocation3 + $0x3a8] sm:$0xff] %vm2209, %v6568
    %6721 = vst.msk [vmem:[#allocation3 + $0x3c0] sm:$0xff] %vm2209, %v6570
    %6722 = vst.msk [vmem:[#allocation3 + $0x3d8] sm:$0xff] %vm2209, %v6572
    %6723 = vst.msk [vmem:[#allocation3 + $0x3f0] sm:$0xff] %vm2209, %v6574
    %6724 = vst.msk [vmem:[#allocation3 + $0x408] sm:$0xff] %vm2209, %v6576
    %6725 = vst.msk [vmem:[#allocation3 + $0x420] sm:$0xff] %vm2209, %v6578
    %6726 = vst.msk [vmem:[#allocation3 + $0x438] sm:$0xff] %vm2209, %v6580
    %6727 = vst.msk [vmem:[#allocation3 + $0x450] sm:$0xff] %vm2209, %v6582
    %6728 = vst.msk [vmem:[#allocation3 + $0x468] sm:$0xff] %vm2209, %v6584
    %6729 = vst.msk [vmem:[#allocation3 + $0x480] sm:$0xff] %vm2209, %v6586
    %6730 = vst.msk [vmem:[#allocation3 + $0x498] sm:$0xff] %vm2209, %v6588
    %6731 = vst.msk [vmem:[#allocation3 + $0x4b0] sm:$0xff] %vm2209, %v6590
    %6732 = vst.msk [vmem:[#allocation3 + $0x4c8] sm:$0xff] %vm2209, %v6592
    %6733 = vst.msk [vmem:[#allocation3 + $0x4e0] sm:$0xff] %vm2209, %v6594
    %6734 = vst.msk [vmem:[#allocation3 + $0x4f8] sm:$0xff] %vm2209, %v6596
    %6735 = vst.msk [vmem:[#allocation3 + $0x510] sm:$0xff] %vm2209, %v6598
    %6736 = vst.msk [vmem:[#allocation3 + $0x528] sm:$0xff] %vm2209, %v6600
    %6737 = vst.msk [vmem:[#allocation3 + $0x540] sm:$0xff] %vm2209, %v6602
    %6738 = vst.msk [vmem:[#allocation3 + $0x558] sm:$0xff] %vm2209, %v6604
    %6739 = vst.msk [vmem:[#allocation3 + $0x570] sm:$0xff] %vm2209, %v6606
    %6740 = vst.msk [vmem:[#allocation3 + $0x588] sm:$0xff] %vm2209, %v6608
    %6741 = vst.msk [vmem:[#allocation3 + $0x5a0] sm:$0xff] %vm2209, %v6610
    %6742 = vst.msk [vmem:[#allocation3 + $0x5b8] sm:$0xff] %vm2209, %v6612
    %6743 = vst.msk [vmem:[#allocation3 + $0x5d0] sm:$0xff] %vm2209, %v6614
    %6744 = vst.msk [vmem:[#allocation3 + $0x5e8] sm:$0xff] %vm2209, %v6616
    %v6745 = vld [vmem:[%s926 + $0x1] sm:$0xff]
    %v6746 = vld [vmem:[%s926 + $0x9] sm:$0xff]
    %v6747 = vld [vmem:[%s926 + $0x19] sm:$0xff]
    %v6748 = vld [vmem:[%s926 + $0x21] sm:$0xff]
    %v6749 = vld [vmem:[%s926 + $0x31] sm:$0xff]
    %v6750 = vld [vmem:[%s926 + $0x39] sm:$0xff]
    %v6751 = vld [vmem:[%s926 + $0x49] sm:$0xff]
    %v6752 = vld [vmem:[%s926 + $0x51] sm:$0xff]
    %v6753 = vld [vmem:[%s926 + $0x61] sm:$0xff]
    %v6754 = vld [vmem:[%s926 + $0x69] sm:$0xff]
    %v6755 = vld [vmem:[%s926 + $0x79] sm:$0xff]
    %v6756 = vld [vmem:[%s926 + $0x81] sm:$0xff]
    %v6757 = vld [vmem:[%s926 + $0x91] sm:$0xff]
    %v6758 = vld [vmem:[%s926 + $0x99] sm:$0xff]
    %v6759 = vld [vmem:[%s926 + $0xa9] sm:$0xff]
    %v6760 = vld [vmem:[%s926 + $0xb1] sm:$0xff]
    %v6761 = vld [vmem:[%s926 + $0xc1] sm:$0xff]
    %v6762 = vld [vmem:[%s926 + $0xc9] sm:$0xff]
    %v6763 = vld [vmem:[%s926 + $0xd9] sm:$0xff]
    %v6764 = vld [vmem:[%s926 + $0xe1] sm:$0xff]
    %v6765 = vld [vmem:[%s926 + $0xf1] sm:$0xff]
    %v6766 = vld [vmem:[%s926 + $0xf9] sm:$0xff]
    %v6767 = vld [vmem:[%s926 + $0x109] sm:$0xff]
    %v6768 = vld [vmem:[%s926 + $0x111] sm:$0xff]
    %v6769 = vld [vmem:[%s926 + $0x121] sm:$0xff]
    %v6770 = vld [vmem:[%s926 + $0x129] sm:$0xff]
    %v6771 = vld [vmem:[%s926 + $0x139] sm:$0xff]
    %v6772 = vld [vmem:[%s926 + $0x141] sm:$0xff]
    %v6773 = vld [vmem:[%s926 + $0x151] sm:$0xff]
    %v6774 = vld [vmem:[%s926 + $0x159] sm:$0xff]
    %v6775 = vld [vmem:[%s926 + $0x169] sm:$0xff]
    %v6776 = vld [vmem:[%s926 + $0x171] sm:$0xff]
    %v6777 = vld [vmem:[%s926 + $0x1b1] sm:$0xff]
    %v6778 = vld [vmem:[%s926 + $0x1b9] sm:$0xff]
    %v6779 = vld [vmem:[%s926 + $0x1c9] sm:$0xff]
    %v6780 = vld [vmem:[%s926 + $0x1d1] sm:$0xff]
    %v6781 = vld [vmem:[%s926 + $0x1e1] sm:$0xff]
    %v6782 = vld [vmem:[%s926 + $0x1e9] sm:$0xff]
    %v6783 = vld [vmem:[%s926 + $0x1f9] sm:$0xff]
    %v6784 = vld [vmem:[%s926 + $0x201] sm:$0xff]
    %v6785 = vld [vmem:[%s926 + $0x211] sm:$0xff]
    %v6786 = vld [vmem:[%s926 + $0x219] sm:$0xff]
    %v6787 = vld [vmem:[%s926 + $0x229] sm:$0xff]
    %v6788 = vld [vmem:[%s926 + $0x231] sm:$0xff]
    %v6789 = vld [vmem:[%s926 + $0x241] sm:$0xff]
    %v6790 = vld [vmem:[%s926 + $0x249] sm:$0xff]
    %v6791 = vld [vmem:[%s926 + $0x259] sm:$0xff]
    %v6792 = vld [vmem:[%s926 + $0x261] sm:$0xff]
    %v6793 = vld [vmem:[%s926 + $0x271] sm:$0xff]
    %v6794 = vld [vmem:[%s926 + $0x279] sm:$0xff]
    %v6795 = vld [vmem:[%s926 + $0x289] sm:$0xff]
    %v6796 = vld [vmem:[%s926 + $0x291] sm:$0xff]
    %v6797 = vld [vmem:[%s926 + $0x2a1] sm:$0xff]
    %v6798 = vld [vmem:[%s926 + $0x2a9] sm:$0xff]
    %v6799 = vld [vmem:[%s926 + $0x2b9] sm:$0xff]
    %v6800 = vld [vmem:[%s926 + $0x2c1] sm:$0xff]
    %v6801 = vld [vmem:[%s926 + $0x2d1] sm:$0xff]
    %v6802 = vld [vmem:[%s926 + $0x2d9] sm:$0xff]
    %v6803 = vld [vmem:[%s926 + $0x2e9] sm:$0xff]
    %v6804 = vld [vmem:[%s926 + $0x2f1] sm:$0xff]
    %v6805 = vld [vmem:[%s926 + $0x301] sm:$0xff]
    %v6806 = vld [vmem:[%s926 + $0x309] sm:$0xff]
    %v6807 = vld [vmem:[%s926 + $0x319] sm:$0xff]
    %v6808 = vld [vmem:[%s926 + $0x321] sm:$0xff]
    %6809 = vst.msk [vmem:[#allocation3 + $0x8] sm:$0xff] %vm74, %v6745
    %6810 = vst.msk [vmem:[#allocation3 + $0x20] sm:$0xff] %vm74, %v6746
    %6811 = vst.msk [vmem:[#allocation3 + $0x38] sm:$0xff] %vm74, %v6747
    %6812 = vst.msk [vmem:[#allocation3 + $0x50] sm:$0xff] %vm74, %v6748
    %6813 = vst.msk [vmem:[#allocation3 + $0x68] sm:$0xff] %vm74, %v6749
    %6814 = vst.msk [vmem:[#allocation3 + $0x80] sm:$0xff] %vm74, %v6750
    %6815 = vst.msk [vmem:[#allocation3 + $0x98] sm:$0xff] %vm74, %v6751
    %6816 = vst.msk [vmem:[#allocation3 + $0xb0] sm:$0xff] %vm74, %v6752
    %6817 = vst.msk [vmem:[#allocation3 + $0xc8] sm:$0xff] %vm74, %v6753
    %6818 = vst.msk [vmem:[#allocation3 + $0xe0] sm:$0xff] %vm74, %v6754
    %6819 = vst.msk [vmem:[#allocation3 + $0xf8] sm:$0xff] %vm74, %v6755
    %6820 = vst.msk [vmem:[#allocation3 + $0x110] sm:$0xff] %vm74, %v6756
    %6821 = vst.msk [vmem:[#allocation3 + $0x128] sm:$0xff] %vm74, %v6757
    %6822 = vst.msk [vmem:[#allocation3 + $0x140] sm:$0xff] %vm74, %v6758
    %6823 = vst.msk [vmem:[#allocation3 + $0x158] sm:$0xff] %vm74, %v6759
    %6824 = vst.msk [vmem:[#allocation3 + $0x170] sm:$0xff] %vm74, %v6760
    %6825 = vst.msk [vmem:[#allocation3 + $0x188] sm:$0xff] %vm74, %v6761
    %6826 = vst.msk [vmem:[#allocation3 + $0x1a0] sm:$0xff] %vm74, %v6762
    %6827 = vst.msk [vmem:[#allocation3 + $0x1b8] sm:$0xff] %vm74, %v6763
    %6828 = vst.msk [vmem:[#allocation3 + $0x1d0] sm:$0xff] %vm74, %v6764
    %6829 = vst.msk [vmem:[#allocation3 + $0x1e8] sm:$0xff] %vm74, %v6765
    %6830 = vst.msk [vmem:[#allocation3 + $0x200] sm:$0xff] %vm74, %v6766
    %6831 = vst.msk [vmem:[#allocation3 + $0x218] sm:$0xff] %vm74, %v6767
    %6832 = vst.msk [vmem:[#allocation3 + $0x230] sm:$0xff] %vm74, %v6768
    %6833 = vst.msk [vmem:[#allocation3 + $0x248] sm:$0xff] %vm74, %v6769
    %6834 = vst.msk [vmem:[#allocation3 + $0x260] sm:$0xff] %vm74, %v6770
    %6835 = vst.msk [vmem:[#allocation3 + $0x278] sm:$0xff] %vm74, %v6771
    %6836 = vst.msk [vmem:[#allocation3 + $0x290] sm:$0xff] %vm74, %v6772
    %6837 = vst.msk [vmem:[#allocation3 + $0x2a8] sm:$0xff] %vm74, %v6773
    %6838 = vst.msk [vmem:[#allocation3 + $0x2c0] sm:$0xff] %vm74, %v6774
    %6839 = vst.msk [vmem:[#allocation3 + $0x2d8] sm:$0xff] %vm74, %v6775
    %6840 = vst.msk [vmem:[#allocation3 + $0x2f0] sm:$0xff] %vm74, %v6776
    %6841 = vst.msk [vmem:[#allocation3 + $0x308] sm:$0xff] %vm74, %v6777
    %6842 = vst.msk [vmem:[#allocation3 + $0x320] sm:$0xff] %vm74, %v6778
    %6843 = vst.msk [vmem:[#allocation3 + $0x338] sm:$0xff] %vm74, %v6779
    %6844 = vst.msk [vmem:[#allocation3 + $0x350] sm:$0xff] %vm74, %v6780
    %6845 = vst.msk [vmem:[#allocation3 + $0x368] sm:$0xff] %vm74, %v6781
    %6846 = vst.msk [vmem:[#allocation3 + $0x380] sm:$0xff] %vm74, %v6782
    %6847 = vst.msk [vmem:[#allocation3 + $0x398] sm:$0xff] %vm74, %v6783
    %6848 = vst.msk [vmem:[#allocation3 + $0x3b0] sm:$0xff] %vm74, %v6784
    %6849 = vst.msk [vmem:[#allocation3 + $0x3c8] sm:$0xff] %vm74, %v6785
    %6850 = vst.msk [vmem:[#allocation3 + $0x3e0] sm:$0xff] %vm74, %v6786
    %6851 = vst.msk [vmem:[#allocation3 + $0x3f8] sm:$0xff] %vm74, %v6787
    %6852 = vst.msk [vmem:[#allocation3 + $0x410] sm:$0xff] %vm74, %v6788
    %6853 = vst.msk [vmem:[#allocation3 + $0x428] sm:$0xff] %vm74, %v6789
    %6854 = vst.msk [vmem:[#allocation3 + $0x440] sm:$0xff] %vm74, %v6790
    %6855 = vst.msk [vmem:[#allocation3 + $0x458] sm:$0xff] %vm74, %v6791
    %6856 = vst.msk [vmem:[#allocation3 + $0x470] sm:$0xff] %vm74, %v6792
    %6857 = vst.msk [vmem:[#allocation3 + $0x488] sm:$0xff] %vm74, %v6793
    %6858 = vst.msk [vmem:[#allocation3 + $0x4a0] sm:$0xff] %vm74, %v6794
    %6859 = vst.msk [vmem:[#allocation3 + $0x4b8] sm:$0xff] %vm74, %v6795
    %6860 = vst.msk [vmem:[#allocation3 + $0x4d0] sm:$0xff] %vm74, %v6796
    %6861 = vst.msk [vmem:[#allocation3 + $0x4e8] sm:$0xff] %vm74, %v6797
    %6862 = vst.msk [vmem:[#allocation3 + $0x500] sm:$0xff] %vm74, %v6798
    %6863 = vst.msk [vmem:[#allocation3 + $0x518] sm:$0xff] %vm74, %v6799
    %6864 = vst.msk [vmem:[#allocation3 + $0x530] sm:$0xff] %vm74, %v6800
    %6865 = vst.msk [vmem:[#allocation3 + $0x548] sm:$0xff] %vm74, %v6801
    %6866 = vst.msk [vmem:[#allocation3 + $0x560] sm:$0xff] %vm74, %v6802
    %6867 = vst.msk [vmem:[#allocation3 + $0x578] sm:$0xff] %vm74, %v6803
    %6868 = vst.msk [vmem:[#allocation3 + $0x590] sm:$0xff] %vm74, %v6804
    %6869 = vst.msk [vmem:[#allocation3 + $0x5a8] sm:$0xff] %vm74, %v6805
    %6870 = vst.msk [vmem:[#allocation3 + $0x5c0] sm:$0xff] %vm74, %v6806
    %6871 = vst.msk [vmem:[#allocation3 + $0x5d8] sm:$0xff] %vm74, %v6807
    %6872 = vst.msk [vmem:[#allocation3 + $0x5f0] sm:$0xff] %vm74, %v6808
    %v6873 = vld [vmem:[%s926 + $0x2] sm:$0xff]
    %v6874 = vld [vmem:[%s926 + $0xa] sm:$0xff]
    %v6875 = vld [vmem:[%s926 + $0x1a] sm:$0xff]
    %v6876 = vld [vmem:[%s926 + $0x22] sm:$0xff]
    %v6877 = vld [vmem:[%s926 + $0x32] sm:$0xff]
    %v6878 = vld [vmem:[%s926 + $0x3a] sm:$0xff]
    %v6879 = vld [vmem:[%s926 + $0x4a] sm:$0xff]
    %v6880 = vld [vmem:[%s926 + $0x52] sm:$0xff]
    %v6881 = vld [vmem:[%s926 + $0x62] sm:$0xff]
    %v6882 = vld [vmem:[%s926 + $0x6a] sm:$0xff]
    %v6883 = vld [vmem:[%s926 + $0x7a] sm:$0xff]
    %v6884 = vld [vmem:[%s926 + $0x82] sm:$0xff]
    %v6885 = vld [vmem:[%s926 + $0x92] sm:$0xff]
    %v6886 = vld [vmem:[%s926 + $0x9a] sm:$0xff]
    %v6887 = vld [vmem:[%s926 + $0xaa] sm:$0xff]
    %v6888 = vld [vmem:[%s926 + $0xb2] sm:$0xff]
    %v6889 = vld [vmem:[%s926 + $0xc2] sm:$0xff]
    %v6890 = vld [vmem:[%s926 + $0xca] sm:$0xff]
    %v6891 = vld [vmem:[%s926 + $0xda] sm:$0xff]
    %v6892 = vld [vmem:[%s926 + $0xe2] sm:$0xff]
    %v6893 = vld [vmem:[%s926 + $0xf2] sm:$0xff]
    %v6894 = vld [vmem:[%s926 + $0xfa] sm:$0xff]
    %v6895 = vld [vmem:[%s926 + $0x10a] sm:$0xff]
    %v6896 = vld [vmem:[%s926 + $0x112] sm:$0xff]
    %v6897 = vld [vmem:[%s926 + $0x122] sm:$0xff]
    %v6898 = vld [vmem:[%s926 + $0x12a] sm:$0xff]
    %v6899 = vld [vmem:[%s926 + $0x13a] sm:$0xff]
    %v6900 = vld [vmem:[%s926 + $0x142] sm:$0xff]
    %v6901 = vld [vmem:[%s926 + $0x152] sm:$0xff]
    %v6902 = vld [vmem:[%s926 + $0x15a] sm:$0xff]
    %v6903 = vld [vmem:[%s926 + $0x16a] sm:$0xff]
    %v6904 = vld [vmem:[%s926 + $0x172] sm:$0xff]
    %v6905 = vld [vmem:[%s926 + $0x1b2] sm:$0xff]
    %v6906 = vld [vmem:[%s926 + $0x1ba] sm:$0xff]
    %v6907 = vld [vmem:[%s926 + $0x1ca] sm:$0xff]
    %v6908 = vld [vmem:[%s926 + $0x1d2] sm:$0xff]
    %v6909 = vld [vmem:[%s926 + $0x1e2] sm:$0xff]
    %v6910 = vld [vmem:[%s926 + $0x1ea] sm:$0xff]
    %v6911 = vld [vmem:[%s926 + $0x1fa] sm:$0xff]
    %v6912 = vld [vmem:[%s926 + $0x202] sm:$0xff]
    %v6913 = vld [vmem:[%s926 + $0x212] sm:$0xff]
    %v6914 = vld [vmem:[%s926 + $0x21a] sm:$0xff]
    %v6915 = vld [vmem:[%s926 + $0x22a] sm:$0xff]
    %v6916 = vld [vmem:[%s926 + $0x232] sm:$0xff]
    %v6917 = vld [vmem:[%s926 + $0x242] sm:$0xff]
    %v6918 = vld [vmem:[%s926 + $0x24a] sm:$0xff]
    %v6919 = vld [vmem:[%s926 + $0x25a] sm:$0xff]
    %v6920 = vld [vmem:[%s926 + $0x262] sm:$0xff]
    %v6921 = vld [vmem:[%s926 + $0x272] sm:$0xff]
    %v6922 = vld [vmem:[%s926 + $0x27a] sm:$0xff]
    %v6923 = vld [vmem:[%s926 + $0x28a] sm:$0xff]
    %v6924 = vld [vmem:[%s926 + $0x292] sm:$0xff]
    %v6925 = vld [vmem:[%s926 + $0x2a2] sm:$0xff]
    %v6926 = vld [vmem:[%s926 + $0x2aa] sm:$0xff]
    %v6927 = vld [vmem:[%s926 + $0x2ba] sm:$0xff]
    %v6928 = vld [vmem:[%s926 + $0x2c2] sm:$0xff]
    %v6929 = vld [vmem:[%s926 + $0x2d2] sm:$0xff]
    %v6930 = vld [vmem:[%s926 + $0x2da] sm:$0xff]
    %v6931 = vld [vmem:[%s926 + $0x2ea] sm:$0xff]
    %v6932 = vld [vmem:[%s926 + $0x2f2] sm:$0xff]
    %v6933 = vld [vmem:[%s926 + $0x302] sm:$0xff]
    %v6934 = vld [vmem:[%s926 + $0x30a] sm:$0xff]
    %v6935 = vld [vmem:[%s926 + $0x31a] sm:$0xff]
    %v6936 = vld [vmem:[%s926 + $0x322] sm:$0xff]
    %7001 = vrot.lane.b32.xlu0 %v6873, 32
    %v7002 = vpop.permute.xlu0 %7001
    %7003 = vrot.lane.b32.xlu0 %v6874, 32
    %v7004 = vpop.permute.xlu0 %7003
    %7005 = vrot.lane.b32.xlu0 %v6875, 32
    %v7006 = vpop.permute.xlu0 %7005
    %7007 = vrot.lane.b32.xlu0 %v6876, 32
    %v7008 = vpop.permute.xlu0 %7007
    %7009 = vrot.lane.b32.xlu0 %v6877, 32
    %v7010 = vpop.permute.xlu0 %7009
    %7011 = vrot.lane.b32.xlu0 %v6878, 32
    %v7012 = vpop.permute.xlu0 %7011
    %7013 = vrot.lane.b32.xlu0 %v6879, 32
    %v7014 = vpop.permute.xlu0 %7013
    %7015 = vrot.lane.b32.xlu0 %v6880, 32
    %v7016 = vpop.permute.xlu0 %7015
    %7017 = vrot.lane.b32.xlu0 %v6881, 32
    %v7018 = vpop.permute.xlu0 %7017
    %7019 = vrot.lane.b32.xlu0 %v6882, 32
    %v7020 = vpop.permute.xlu0 %7019
    %7021 = vrot.lane.b32.xlu0 %v6883, 32
    %v7022 = vpop.permute.xlu0 %7021
    %7023 = vrot.lane.b32.xlu0 %v6884, 32
    %v7024 = vpop.permute.xlu0 %7023
    %7025 = vrot.lane.b32.xlu0 %v6885, 32
    %v7026 = vpop.permute.xlu0 %7025
    %7027 = vrot.lane.b32.xlu0 %v6886, 32
    %v7028 = vpop.permute.xlu0 %7027
    %7029 = vrot.lane.b32.xlu0 %v6887, 32
    %v7030 = vpop.permute.xlu0 %7029
    %7031 = vrot.lane.b32.xlu0 %v6888, 32
    %v7032 = vpop.permute.xlu0 %7031
    %7033 = vrot.lane.b32.xlu0 %v6889, 32
    %v7034 = vpop.permute.xlu0 %7033
    %7035 = vrot.lane.b32.xlu0 %v6890, 32
    %v7036 = vpop.permute.xlu0 %7035
    %7037 = vrot.lane.b32.xlu0 %v6891, 32
    %v7038 = vpop.permute.xlu0 %7037
    %7039 = vrot.lane.b32.xlu0 %v6892, 32
    %v7040 = vpop.permute.xlu0 %7039
    %7041 = vrot.lane.b32.xlu0 %v6893, 32
    %v7042 = vpop.permute.xlu0 %7041
    %7043 = vrot.lane.b32.xlu0 %v6894, 32
    %v7044 = vpop.permute.xlu0 %7043
    %7045 = vrot.lane.b32.xlu0 %v6895, 32
    %v7046 = vpop.permute.xlu0 %7045
    %7047 = vrot.lane.b32.xlu0 %v6896, 32
    %v7048 = vpop.permute.xlu0 %7047
    %7049 = vrot.lane.b32.xlu0 %v6897, 32
    %v7050 = vpop.permute.xlu0 %7049
    %7051 = vrot.lane.b32.xlu0 %v6898, 32
    %v7052 = vpop.permute.xlu0 %7051
    %7053 = vrot.lane.b32.xlu0 %v6899, 32
    %v7054 = vpop.permute.xlu0 %7053
    %7055 = vrot.lane.b32.xlu0 %v6900, 32
    %v7056 = vpop.permute.xlu0 %7055
    %7057 = vrot.lane.b32.xlu0 %v6901, 32
    %v7058 = vpop.permute.xlu0 %7057
    %7059 = vrot.lane.b32.xlu0 %v6902, 32
    %v7060 = vpop.permute.xlu0 %7059
    %7061 = vrot.lane.b32.xlu0 %v6903, 32
    %v7062 = vpop.permute.xlu0 %7061
    %7063 = vrot.lane.b32.xlu0 %v6904, 32
    %v7064 = vpop.permute.xlu0 %7063
    %7065 = vrot.lane.b32.xlu0 %v6905, 32
    %v7066 = vpop.permute.xlu0 %7065
    %7067 = vrot.lane.b32.xlu0 %v6906, 32
    %v7068 = vpop.permute.xlu0 %7067
    %7069 = vrot.lane.b32.xlu0 %v6907, 32
    %v7070 = vpop.permute.xlu0 %7069
    %7071 = vrot.lane.b32.xlu0 %v6908, 32
    %v7072 = vpop.permute.xlu0 %7071
    %7073 = vrot.lane.b32.xlu0 %v6909, 32
    %v7074 = vpop.permute.xlu0 %7073
    %7075 = vrot.lane.b32.xlu0 %v6910, 32
    %v7076 = vpop.permute.xlu0 %7075
    %7077 = vrot.lane.b32.xlu0 %v6911, 32
    %v7078 = vpop.permute.xlu0 %7077
    %7079 = vrot.lane.b32.xlu0 %v6912, 32
    %v7080 = vpop.permute.xlu0 %7079
    %7081 = vrot.lane.b32.xlu0 %v6913, 32
    %v7082 = vpop.permute.xlu0 %7081
    %7083 = vrot.lane.b32.xlu0 %v6914, 32
    %v7084 = vpop.permute.xlu0 %7083
    %7085 = vrot.lane.b32.xlu0 %v6915, 32
    %v7086 = vpop.permute.xlu0 %7085
    %7087 = vrot.lane.b32.xlu0 %v6916, 32
    %v7088 = vpop.permute.xlu0 %7087
    %7089 = vrot.lane.b32.xlu0 %v6917, 32
    %v7090 = vpop.permute.xlu0 %7089
    %7091 = vrot.lane.b32.xlu0 %v6918, 32
    %v7092 = vpop.permute.xlu0 %7091
    %7093 = vrot.lane.b32.xlu0 %v6919, 32
    %v7094 = vpop.permute.xlu0 %7093
    %7095 = vrot.lane.b32.xlu0 %v6920, 32
    %v7096 = vpop.permute.xlu0 %7095
    %7097 = vrot.lane.b32.xlu0 %v6921, 32
    %v7098 = vpop.permute.xlu0 %7097
    %7099 = vrot.lane.b32.xlu0 %v6922, 32
    %v7100 = vpop.permute.xlu0 %7099
    %7101 = vrot.lane.b32.xlu0 %v6923, 32
    %v7102 = vpop.permute.xlu0 %7101
    %7103 = vrot.lane.b32.xlu0 %v6924, 32
    %v7104 = vpop.permute.xlu0 %7103
    %7105 = vrot.lane.b32.xlu0 %v6925, 32
    %v7106 = vpop.permute.xlu0 %7105
    %7107 = vrot.lane.b32.xlu0 %v6926, 32
    %v7108 = vpop.permute.xlu0 %7107
    %7109 = vrot.lane.b32.xlu0 %v6927, 32
    %v7110 = vpop.permute.xlu0 %7109
    %7111 = vrot.lane.b32.xlu0 %v6928, 32
    %v7112 = vpop.permute.xlu0 %7111
    %7113 = vrot.lane.b32.xlu0 %v6929, 32
    %v7114 = vpop.permute.xlu0 %7113
    %7115 = vrot.lane.b32.xlu0 %v6930, 32
    %v7116 = vpop.permute.xlu0 %7115
    %7117 = vrot.lane.b32.xlu0 %v6931, 32
    %v7118 = vpop.permute.xlu0 %7117
    %7119 = vrot.lane.b32.xlu0 %v6932, 32
    %v7120 = vpop.permute.xlu0 %7119
    %7121 = vrot.lane.b32.xlu0 %v6933, 32
    %v7122 = vpop.permute.xlu0 %7121
    %7123 = vrot.lane.b32.xlu0 %v6934, 32
    %v7124 = vpop.permute.xlu0 %7123
    %7125 = vrot.lane.b32.xlu0 %v6935, 32
    %v7126 = vpop.permute.xlu0 %7125
    %7127 = vrot.lane.b32.xlu0 %v6936, 32
    %v7128 = vpop.permute.xlu0 %7127
    %7193 = vst.msk [vmem:[#allocation3 + $0x8] sm:$0xff] %vm1439, %v7002
    %7194 = vst.msk [vmem:[#allocation3 + $0x20] sm:$0xff] %vm1439, %v7004
    %7195 = vst.msk [vmem:[#allocation3 + $0x38] sm:$0xff] %vm1439, %v7006
    %7196 = vst.msk [vmem:[#allocation3 + $0x50] sm:$0xff] %vm1439, %v7008
    %7197 = vst.msk [vmem:[#allocation3 + $0x68] sm:$0xff] %vm1439, %v7010
    %7198 = vst.msk [vmem:[#allocation3 + $0x80] sm:$0xff] %vm1439, %v7012
    %7199 = vst.msk [vmem:[#allocation3 + $0x98] sm:$0xff] %vm1439, %v7014
    %7200 = vst.msk [vmem:[#allocation3 + $0xb0] sm:$0xff] %vm1439, %v7016
    %7201 = vst.msk [vmem:[#allocation3 + $0xc8] sm:$0xff] %vm1439, %v7018
    %7202 = vst.msk [vmem:[#allocation3 + $0xe0] sm:$0xff] %vm1439, %v7020
    %7203 = vst.msk [vmem:[#allocation3 + $0xf8] sm:$0xff] %vm1439, %v7022
    %7204 = vst.msk [vmem:[#allocation3 + $0x110] sm:$0xff] %vm1439, %v7024
    %7205 = vst.msk [vmem:[#allocation3 + $0x128] sm:$0xff] %vm1439, %v7026
    %7206 = vst.msk [vmem:[#allocation3 + $0x140] sm:$0xff] %vm1439, %v7028
    %7207 = vst.msk [vmem:[#allocation3 + $0x158] sm:$0xff] %vm1439, %v7030
    %7208 = vst.msk [vmem:[#allocation3 + $0x170] sm:$0xff] %vm1439, %v7032
    %7209 = vst.msk [vmem:[#allocation3 + $0x188] sm:$0xff] %vm1439, %v7034
    %7210 = vst.msk [vmem:[#allocation3 + $0x1a0] sm:$0xff] %vm1439, %v7036
    %7211 = vst.msk [vmem:[#allocation3 + $0x1b8] sm:$0xff] %vm1439, %v7038
    %7212 = vst.msk [vmem:[#allocation3 + $0x1d0] sm:$0xff] %vm1439, %v7040
    %7213 = vst.msk [vmem:[#allocation3 + $0x1e8] sm:$0xff] %vm1439, %v7042
    %7214 = vst.msk [vmem:[#allocation3 + $0x200] sm:$0xff] %vm1439, %v7044
    %7215 = vst.msk [vmem:[#allocation3 + $0x218] sm:$0xff] %vm1439, %v7046
    %7216 = vst.msk [vmem:[#allocation3 + $0x230] sm:$0xff] %vm1439, %v7048
    %7217 = vst.msk [vmem:[#allocation3 + $0x248] sm:$0xff] %vm1439, %v7050
    %7218 = vst.msk [vmem:[#allocation3 + $0x260] sm:$0xff] %vm1439, %v7052
    %7219 = vst.msk [vmem:[#allocation3 + $0x278] sm:$0xff] %vm1439, %v7054
    %7220 = vst.msk [vmem:[#allocation3 + $0x290] sm:$0xff] %vm1439, %v7056
    %7221 = vst.msk [vmem:[#allocation3 + $0x2a8] sm:$0xff] %vm1439, %v7058
    %7222 = vst.msk [vmem:[#allocation3 + $0x2c0] sm:$0xff] %vm1439, %v7060
    %7223 = vst.msk [vmem:[#allocation3 + $0x2d8] sm:$0xff] %vm1439, %v7062
    %7224 = vst.msk [vmem:[#allocation3 + $0x2f0] sm:$0xff] %vm1439, %v7064
    %7225 = vst.msk [vmem:[#allocation3 + $0x308] sm:$0xff] %vm1439, %v7066
    %7226 = vst.msk [vmem:[#allocation3 + $0x320] sm:$0xff] %vm1439, %v7068
    %7227 = vst.msk [vmem:[#allocation3 + $0x338] sm:$0xff] %vm1439, %v7070
    %7228 = vst.msk [vmem:[#allocation3 + $0x350] sm:$0xff] %vm1439, %v7072
    %7229 = vst.msk [vmem:[#allocation3 + $0x368] sm:$0xff] %vm1439, %v7074
    %7230 = vst.msk [vmem:[#allocation3 + $0x380] sm:$0xff] %vm1439, %v7076
    %7231 = vst.msk [vmem:[#allocation3 + $0x398] sm:$0xff] %vm1439, %v7078
    %7232 = vst.msk [vmem:[#allocation3 + $0x3b0] sm:$0xff] %vm1439, %v7080
    %7233 = vst.msk [vmem:[#allocation3 + $0x3c8] sm:$0xff] %vm1439, %v7082
    %7234 = vst.msk [vmem:[#allocation3 + $0x3e0] sm:$0xff] %vm1439, %v7084
    %7235 = vst.msk [vmem:[#allocation3 + $0x3f8] sm:$0xff] %vm1439, %v7086
    %7236 = vst.msk [vmem:[#allocation3 + $0x410] sm:$0xff] %vm1439, %v7088
    %7237 = vst.msk [vmem:[#allocation3 + $0x428] sm:$0xff] %vm1439, %v7090
    %7238 = vst.msk [vmem:[#allocation3 + $0x440] sm:$0xff] %vm1439, %v7092
    %7239 = vst.msk [vmem:[#allocation3 + $0x458] sm:$0xff] %vm1439, %v7094
    %7240 = vst.msk [vmem:[#allocation3 + $0x470] sm:$0xff] %vm1439, %v7096
    %7241 = vst.msk [vmem:[#allocation3 + $0x488] sm:$0xff] %vm1439, %v7098
    %7242 = vst.msk [vmem:[#allocation3 + $0x4a0] sm:$0xff] %vm1439, %v7100
    %7243 = vst.msk [vmem:[#allocation3 + $0x4b8] sm:$0xff] %vm1439, %v7102
    %7244 = vst.msk [vmem:[#allocation3 + $0x4d0] sm:$0xff] %vm1439, %v7104
    %7245 = vst.msk [vmem:[#allocation3 + $0x4e8] sm:$0xff] %vm1439, %v7106
    %7246 = vst.msk [vmem:[#allocation3 + $0x500] sm:$0xff] %vm1439, %v7108
    %7247 = vst.msk [vmem:[#allocation3 + $0x518] sm:$0xff] %vm1439, %v7110
    %7248 = vst.msk [vmem:[#allocation3 + $0x530] sm:$0xff] %vm1439, %v7112
    %7249 = vst.msk [vmem:[#allocation3 + $0x548] sm:$0xff] %vm1439, %v7114
    %7250 = vst.msk [vmem:[#allocation3 + $0x560] sm:$0xff] %vm1439, %v7116
    %7251 = vst.msk [vmem:[#allocation3 + $0x578] sm:$0xff] %vm1439, %v7118
    %7252 = vst.msk [vmem:[#allocation3 + $0x590] sm:$0xff] %vm1439, %v7120
    %7253 = vst.msk [vmem:[#allocation3 + $0x5a8] sm:$0xff] %vm1439, %v7122
    %7254 = vst.msk [vmem:[#allocation3 + $0x5c0] sm:$0xff] %vm1439, %v7124
    %7255 = vst.msk [vmem:[#allocation3 + $0x5d8] sm:$0xff] %vm1439, %v7126
    %7256 = vst.msk [vmem:[#allocation3 + $0x5f0] sm:$0xff] %vm1439, %v7128
    %v7257 = vld [vmem:[%s2786] sm:$0xff]
    %v7258 = vld [vmem:[%s2786 + $0x8] sm:$0xff]
    %v7259 = vld [vmem:[%s2786 + $0x18] sm:$0xff]
    %v7260 = vld [vmem:[%s2786 + $0x20] sm:$0xff]
    %v7261 = vld [vmem:[%s2786 + $0x30] sm:$0xff]
    %v7262 = vld [vmem:[%s2786 + $0x38] sm:$0xff]
    %v7263 = vld [vmem:[%s2786 + $0x48] sm:$0xff]
    %v7264 = vld [vmem:[%s2786 + $0x50] sm:$0xff]
    %v7265 = vld [vmem:[%s2786 + $0x60] sm:$0xff]
    %v7266 = vld [vmem:[%s2786 + $0x68] sm:$0xff]
    %v7267 = vld [vmem:[%s2786 + $0x78] sm:$0xff]
    %v7268 = vld [vmem:[%s2786 + $0x80] sm:$0xff]
    %v7269 = vld [vmem:[%s2786 + $0x90] sm:$0xff]
    %v7270 = vld [vmem:[%s2786 + $0x98] sm:$0xff]
    %v7271 = vld [vmem:[%s2786 + $0xa8] sm:$0xff]
    %v7272 = vld [vmem:[%s2786 + $0xb0] sm:$0xff]
    %v7273 = vld [vmem:[%s2786 + $0xc0] sm:$0xff]
    %v7274 = vld [vmem:[%s2786 + $0xc8] sm:$0xff]
    %v7275 = vld [vmem:[%s2786 + $0xd8] sm:$0xff]
    %v7276 = vld [vmem:[%s2786 + $0xe0] sm:$0xff]
    %v7277 = vld [vmem:[%s2786 + $0xf0] sm:$0xff]
    %v7278 = vld [vmem:[%s2786 + $0xf8] sm:$0xff]
    %v7279 = vld [vmem:[%s2786 + $0x108] sm:$0xff]
    %v7280 = vld [vmem:[%s2786 + $0x110] sm:$0xff]
    %v7281 = vld [vmem:[%s2786 + $0x120] sm:$0xff]
    %v7282 = vld [vmem:[%s2786 + $0x128] sm:$0xff]
    %v7283 = vld [vmem:[%s2786 + $0x138] sm:$0xff]
    %v7284 = vld [vmem:[%s2786 + $0x140] sm:$0xff]
    %v7285 = vld [vmem:[%s2786 + $0x150] sm:$0xff]
    %v7286 = vld [vmem:[%s2786 + $0x158] sm:$0xff]
    %v7287 = vld [vmem:[%s2786 + $0x168] sm:$0xff]
    %v7288 = vld [vmem:[%s2786 + $0x170] sm:$0xff]
    %v7289 = vld [vmem:[%s2786 + $0x1b0] sm:$0xff]
    %v7290 = vld [vmem:[%s2786 + $0x1b8] sm:$0xff]
    %v7291 = vld [vmem:[%s2786 + $0x1c8] sm:$0xff]
    %v7292 = vld [vmem:[%s2786 + $0x1d0] sm:$0xff]
    %v7293 = vld [vmem:[%s2786 + $0x1e0] sm:$0xff]
    %v7294 = vld [vmem:[%s2786 + $0x1e8] sm:$0xff]
    %v7295 = vld [vmem:[%s2786 + $0x1f8] sm:$0xff]
    %v7296 = vld [vmem:[%s2786 + $0x200] sm:$0xff]
    %v7297 = vld [vmem:[%s2786 + $0x210] sm:$0xff]
    %v7298 = vld [vmem:[%s2786 + $0x218] sm:$0xff]
    %v7299 = vld [vmem:[%s2786 + $0x228] sm:$0xff]
    %v7300 = vld [vmem:[%s2786 + $0x230] sm:$0xff]
    %v7301 = vld [vmem:[%s2786 + $0x240] sm:$0xff]
    %v7302 = vld [vmem:[%s2786 + $0x248] sm:$0xff]
    %v7303 = vld [vmem:[%s2786 + $0x258] sm:$0xff]
    %v7304 = vld [vmem:[%s2786 + $0x260] sm:$0xff]
    %v7305 = vld [vmem:[%s2786 + $0x270] sm:$0xff]
    %v7306 = vld [vmem:[%s2786 + $0x278] sm:$0xff]
    %v7307 = vld [vmem:[%s2786 + $0x288] sm:$0xff]
    %v7308 = vld [vmem:[%s2786 + $0x290] sm:$0xff]
    %v7309 = vld [vmem:[%s2786 + $0x2a0] sm:$0xff]
    %v7310 = vld [vmem:[%s2786 + $0x2a8] sm:$0xff]
    %v7311 = vld [vmem:[%s2786 + $0x2b8] sm:$0xff]
    %v7312 = vld [vmem:[%s2786 + $0x2c0] sm:$0xff]
    %v7313 = vld [vmem:[%s2786 + $0x2d0] sm:$0xff]
    %v7314 = vld [vmem:[%s2786 + $0x2d8] sm:$0xff]
    %v7315 = vld [vmem:[%s2786 + $0x2e8] sm:$0xff]
    %v7316 = vld [vmem:[%s2786 + $0x2f0] sm:$0xff]
    %v7317 = vld [vmem:[%s2786 + $0x300] sm:$0xff]
    %v7318 = vld [vmem:[%s2786 + $0x308] sm:$0xff]
    %v7319 = vld [vmem:[%s2786 + $0x318] sm:$0xff]
    %v7320 = vld [vmem:[%s2786 + $0x320] sm:$0xff]
    %7385 = vrot.lane.b32.xlu0 %v7257, 64
    %v7386 = vpop.permute.xlu0 %7385
    %7387 = vrot.lane.b32.xlu0 %v7258, 64
    %v7388 = vpop.permute.xlu0 %7387
    %7389 = vrot.lane.b32.xlu0 %v7259, 64
    %v7390 = vpop.permute.xlu0 %7389
    %7391 = vrot.lane.b32.xlu0 %v7260, 64
    %v7392 = vpop.permute.xlu0 %7391
    %7393 = vrot.lane.b32.xlu0 %v7261, 64
    %v7394 = vpop.permute.xlu0 %7393
    %7395 = vrot.lane.b32.xlu0 %v7262, 64
    %v7396 = vpop.permute.xlu0 %7395
    %7397 = vrot.lane.b32.xlu0 %v7263, 64
    %v7398 = vpop.permute.xlu0 %7397
    %7399 = vrot.lane.b32.xlu0 %v7264, 64
    %v7400 = vpop.permute.xlu0 %7399
    %7401 = vrot.lane.b32.xlu0 %v7265, 64
    %v7402 = vpop.permute.xlu0 %7401
    %7403 = vrot.lane.b32.xlu0 %v7266, 64
    %v7404 = vpop.permute.xlu0 %7403
    %7405 = vrot.lane.b32.xlu0 %v7267, 64
    %v7406 = vpop.permute.xlu0 %7405
    %7407 = vrot.lane.b32.xlu0 %v7268, 64
    %v7408 = vpop.permute.xlu0 %7407
    %7409 = vrot.lane.b32.xlu0 %v7269, 64
    %v7410 = vpop.permute.xlu0 %7409
    %7411 = vrot.lane.b32.xlu0 %v7270, 64
    %v7412 = vpop.permute.xlu0 %7411
    %7413 = vrot.lane.b32.xlu0 %v7271, 64
    %v7414 = vpop.permute.xlu0 %7413
    %7415 = vrot.lane.b32.xlu0 %v7272, 64
    %v7416 = vpop.permute.xlu0 %7415
    %7417 = vrot.lane.b32.xlu0 %v7273, 64
    %v7418 = vpop.permute.xlu0 %7417
    %7419 = vrot.lane.b32.xlu0 %v7274, 64
    %v7420 = vpop.permute.xlu0 %7419
    %7421 = vrot.lane.b32.xlu0 %v7275, 64
    %v7422 = vpop.permute.xlu0 %7421
    %7423 = vrot.lane.b32.xlu0 %v7276, 64
    %v7424 = vpop.permute.xlu0 %7423
    %7425 = vrot.lane.b32.xlu0 %v7277, 64
    %v7426 = vpop.permute.xlu0 %7425
    %7427 = vrot.lane.b32.xlu0 %v7278, 64
    %v7428 = vpop.permute.xlu0 %7427
    %7429 = vrot.lane.b32.xlu0 %v7279, 64
    %v7430 = vpop.permute.xlu0 %7429
    %7431 = vrot.lane.b32.xlu0 %v7280, 64
    %v7432 = vpop.permute.xlu0 %7431
    %7433 = vrot.lane.b32.xlu0 %v7281, 64
    %v7434 = vpop.permute.xlu0 %7433
    %7435 = vrot.lane.b32.xlu0 %v7282, 64
    %v7436 = vpop.permute.xlu0 %7435
    %7437 = vrot.lane.b32.xlu0 %v7283, 64
    %v7438 = vpop.permute.xlu0 %7437
    %7439 = vrot.lane.b32.xlu0 %v7284, 64
    %v7440 = vpop.permute.xlu0 %7439
    %7441 = vrot.lane.b32.xlu0 %v7285, 64
    %v7442 = vpop.permute.xlu0 %7441
    %7443 = vrot.lane.b32.xlu0 %v7286, 64
    %v7444 = vpop.permute.xlu0 %7443
    %7445 = vrot.lane.b32.xlu0 %v7287, 64
    %v7446 = vpop.permute.xlu0 %7445
    %7447 = vrot.lane.b32.xlu0 %v7288, 64
    %v7448 = vpop.permute.xlu0 %7447
    %7449 = vrot.lane.b32.xlu0 %v7289, 64
    %v7450 = vpop.permute.xlu0 %7449
    %7451 = vrot.lane.b32.xlu0 %v7290, 64
    %v7452 = vpop.permute.xlu0 %7451
    %7453 = vrot.lane.b32.xlu0 %v7291, 64
    %v7454 = vpop.permute.xlu0 %7453
    %7455 = vrot.lane.b32.xlu0 %v7292, 64
    %v7456 = vpop.permute.xlu0 %7455
    %7457 = vrot.lane.b32.xlu0 %v7293, 64
    %v7458 = vpop.permute.xlu0 %7457
    %7459 = vrot.lane.b32.xlu0 %v7294, 64
    %v7460 = vpop.permute.xlu0 %7459
    %7461 = vrot.lane.b32.xlu0 %v7295, 64
    %v7462 = vpop.permute.xlu0 %7461
    %7463 = vrot.lane.b32.xlu0 %v7296, 64
    %v7464 = vpop.permute.xlu0 %7463
    %7465 = vrot.lane.b32.xlu0 %v7297, 64
    %v7466 = vpop.permute.xlu0 %7465
    %7467 = vrot.lane.b32.xlu0 %v7298, 64
    %v7468 = vpop.permute.xlu0 %7467
    %7469 = vrot.lane.b32.xlu0 %v7299, 64
    %v7470 = vpop.permute.xlu0 %7469
    %7471 = vrot.lane.b32.xlu0 %v7300, 64
    %v7472 = vpop.permute.xlu0 %7471
    %7473 = vrot.lane.b32.xlu0 %v7301, 64
    %v7474 = vpop.permute.xlu0 %7473
    %7475 = vrot.lane.b32.xlu0 %v7302, 64
    %v7476 = vpop.permute.xlu0 %7475
    %7477 = vrot.lane.b32.xlu0 %v7303, 64
    %v7478 = vpop.permute.xlu0 %7477
    %7479 = vrot.lane.b32.xlu0 %v7304, 64
    %v7480 = vpop.permute.xlu0 %7479
    %7481 = vrot.lane.b32.xlu0 %v7305, 64
    %v7482 = vpop.permute.xlu0 %7481
    %7483 = vrot.lane.b32.xlu0 %v7306, 64
    %v7484 = vpop.permute.xlu0 %7483
    %7485 = vrot.lane.b32.xlu0 %v7307, 64
    %v7486 = vpop.permute.xlu0 %7485
    %7487 = vrot.lane.b32.xlu0 %v7308, 64
    %v7488 = vpop.permute.xlu0 %7487
    %7489 = vrot.lane.b32.xlu0 %v7309, 64
    %v7490 = vpop.permute.xlu0 %7489
    %7491 = vrot.lane.b32.xlu0 %v7310, 64
    %v7492 = vpop.permute.xlu0 %7491
    %7493 = vrot.lane.b32.xlu0 %v7311, 64
    %v7494 = vpop.permute.xlu0 %7493
    %7495 = vrot.lane.b32.xlu0 %v7312, 64
    %v7496 = vpop.permute.xlu0 %7495
    %7497 = vrot.lane.b32.xlu0 %v7313, 64
    %v7498 = vpop.permute.xlu0 %7497
    %7499 = vrot.lane.b32.xlu0 %v7314, 64
    %v7500 = vpop.permute.xlu0 %7499
    %7501 = vrot.lane.b32.xlu0 %v7315, 64
    %v7502 = vpop.permute.xlu0 %7501
    %7503 = vrot.lane.b32.xlu0 %v7316, 64
    %v7504 = vpop.permute.xlu0 %7503
    %7505 = vrot.lane.b32.xlu0 %v7317, 64
    %v7506 = vpop.permute.xlu0 %7505
    %7507 = vrot.lane.b32.xlu0 %v7318, 64
    %v7508 = vpop.permute.xlu0 %7507
    %7509 = vrot.lane.b32.xlu0 %v7319, 64
    %v7510 = vpop.permute.xlu0 %7509
    %7511 = vrot.lane.b32.xlu0 %v7320, 64
    %v7512 = vpop.permute.xlu0 %7511
    %7577 = vst.msk [vmem:[#allocation3 + $0x8] sm:$0xff] %vm1824, %v7386
    %7578 = vst.msk [vmem:[#allocation3 + $0x20] sm:$0xff] %vm1824, %v7388
    %7579 = vst.msk [vmem:[#allocation3 + $0x38] sm:$0xff] %vm1824, %v7390
    %7580 = vst.msk [vmem:[#allocation3 + $0x50] sm:$0xff] %vm1824, %v7392
    %7581 = vst.msk [vmem:[#allocation3 + $0x68] sm:$0xff] %vm1824, %v7394
    %7582 = vst.msk [vmem:[#allocation3 + $0x80] sm:$0xff] %vm1824, %v7396
    %7583 = vst.msk [vmem:[#allocation3 + $0x98] sm:$0xff] %vm1824, %v7398
    %7584 = vst.msk [vmem:[#allocation3 + $0xb0] sm:$0xff] %vm1824, %v7400
    %7585 = vst.msk [vmem:[#allocation3 + $0xc8] sm:$0xff] %vm1824, %v7402
    %7586 = vst.msk [vmem:[#allocation3 + $0xe0] sm:$0xff] %vm1824, %v7404
    %7587 = vst.msk [vmem:[#allocation3 + $0xf8] sm:$0xff] %vm1824, %v7406
    %7588 = vst.msk [vmem:[#allocation3 + $0x110] sm:$0xff] %vm1824, %v7408
    %7589 = vst.msk [vmem:[#allocation3 + $0x128] sm:$0xff] %vm1824, %v7410
    %7590 = vst.msk [vmem:[#allocation3 + $0x140] sm:$0xff] %vm1824, %v7412
    %7591 = vst.msk [vmem:[#allocation3 + $0x158] sm:$0xff] %vm1824, %v7414
    %7592 = vst.msk [vmem:[#allocation3 + $0x170] sm:$0xff] %vm1824, %v7416
    %7593 = vst.msk [vmem:[#allocation3 + $0x188] sm:$0xff] %vm1824, %v7418
    %7594 = vst.msk [vmem:[#allocation3 + $0x1a0] sm:$0xff] %vm1824, %v7420
    %7595 = vst.msk [vmem:[#allocation3 + $0x1b8] sm:$0xff] %vm1824, %v7422
    %7596 = vst.msk [vmem:[#allocation3 + $0x1d0] sm:$0xff] %vm1824, %v7424
    %7597 = vst.msk [vmem:[#allocation3 + $0x1e8] sm:$0xff] %vm1824, %v7426
    %7598 = vst.msk [vmem:[#allocation3 + $0x200] sm:$0xff] %vm1824, %v7428
    %7599 = vst.msk [vmem:[#allocation3 + $0x218] sm:$0xff] %vm1824, %v7430
    %7600 = vst.msk [vmem:[#allocation3 + $0x230] sm:$0xff] %vm1824, %v7432
    %7601 = vst.msk [vmem:[#allocation3 + $0x248] sm:$0xff] %vm1824, %v7434
    %7602 = vst.msk [vmem:[#allocation3 + $0x260] sm:$0xff] %vm1824, %v7436
    %7603 = vst.msk [vmem:[#allocation3 + $0x278] sm:$0xff] %vm1824, %v7438
    %7604 = vst.msk [vmem:[#allocation3 + $0x290] sm:$0xff] %vm1824, %v7440
    %7605 = vst.msk [vmem:[#allocation3 + $0x2a8] sm:$0xff] %vm1824, %v7442
    %7606 = vst.msk [vmem:[#allocation3 + $0x2c0] sm:$0xff] %vm1824, %v7444
    %7607 = vst.msk [vmem:[#allocation3 + $0x2d8] sm:$0xff] %vm1824, %v7446
    %7608 = vst.msk [vmem:[#allocation3 + $0x2f0] sm:$0xff] %vm1824, %v7448
    %7609 = vst.msk [vmem:[#allocation3 + $0x308] sm:$0xff] %vm1824, %v7450
    %7610 = vst.msk [vmem:[#allocation3 + $0x320] sm:$0xff] %vm1824, %v7452
    %7611 = vst.msk [vmem:[#allocation3 + $0x338] sm:$0xff] %vm1824, %v7454
    %7612 = vst.msk [vmem:[#allocation3 + $0x350] sm:$0xff] %vm1824, %v7456
    %7613 = vst.msk [vmem:[#allocation3 + $0x368] sm:$0xff] %vm1824, %v7458
    %7614 = vst.msk [vmem:[#allocation3 + $0x380] sm:$0xff] %vm1824, %v7460
    %7615 = vst.msk [vmem:[#allocation3 + $0x398] sm:$0xff] %vm1824, %v7462
    %7616 = vst.msk [vmem:[#allocation3 + $0x3b0] sm:$0xff] %vm1824, %v7464
    %7617 = vst.msk [vmem:[#allocation3 + $0x3c8] sm:$0xff] %vm1824, %v7466
    %7618 = vst.msk [vmem:[#allocation3 + $0x3e0] sm:$0xff] %vm1824, %v7468
    %7619 = vst.msk [vmem:[#allocation3 + $0x3f8] sm:$0xff] %vm1824, %v7470
    %7620 = vst.msk [vmem:[#allocation3 + $0x410] sm:$0xff] %vm1824, %v7472
    %7621 = vst.msk [vmem:[#allocation3 + $0x428] sm:$0xff] %vm1824, %v7474
    %7622 = vst.msk [vmem:[#allocation3 + $0x440] sm:$0xff] %vm1824, %v7476
    %7623 = vst.msk [vmem:[#allocation3 + $0x458] sm:$0xff] %vm1824, %v7478
    %7624 = vst.msk [vmem:[#allocation3 + $0x470] sm:$0xff] %vm1824, %v7480
    %7625 = vst.msk [vmem:[#allocation3 + $0x488] sm:$0xff] %vm1824, %v7482
    %7626 = vst.msk [vmem:[#allocation3 + $0x4a0] sm:$0xff] %vm1824, %v7484
    %7627 = vst.msk [vmem:[#allocation3 + $0x4b8] sm:$0xff] %vm1824, %v7486
    %7628 = vst.msk [vmem:[#allocation3 + $0x4d0] sm:$0xff] %vm1824, %v7488
    %7629 = vst.msk [vmem:[#allocation3 + $0x4e8] sm:$0xff] %vm1824, %v7490
    %7630 = vst.msk [vmem:[#allocation3 + $0x500] sm:$0xff] %vm1824, %v7492
    %7631 = vst.msk [vmem:[#allocation3 + $0x518] sm:$0xff] %vm1824, %v7494
    %7632 = vst.msk [vmem:[#allocation3 + $0x530] sm:$0xff] %vm1824, %v7496
    %7633 = vst.msk [vmem:[#allocation3 + $0x548] sm:$0xff] %vm1824, %v7498
    %7634 = vst.msk [vmem:[#allocation3 + $0x560] sm:$0xff] %vm1824, %v7500
    %7635 = vst.msk [vmem:[#allocation3 + $0x578] sm:$0xff] %vm1824, %v7502
    %7636 = vst.msk [vmem:[#allocation3 + $0x590] sm:$0xff] %vm1824, %v7504
    %7637 = vst.msk [vmem:[#allocation3 + $0x5a8] sm:$0xff] %vm1824, %v7506
    %7638 = vst.msk [vmem:[#allocation3 + $0x5c0] sm:$0xff] %vm1824, %v7508
    %7639 = vst.msk [vmem:[#allocation3 + $0x5d8] sm:$0xff] %vm1824, %v7510
    %7640 = vst.msk [vmem:[#allocation3 + $0x5f0] sm:$0xff] %vm1824, %v7512
    %v7641 = vld [vmem:[%s2786 + $0x1] sm:$0xff]
    %v7642 = vld [vmem:[%s2786 + $0x9] sm:$0xff]
    %v7643 = vld [vmem:[%s2786 + $0x19] sm:$0xff]
    %v7644 = vld [vmem:[%s2786 + $0x21] sm:$0xff]
    %v7645 = vld [vmem:[%s2786 + $0x31] sm:$0xff]
    %v7646 = vld [vmem:[%s2786 + $0x39] sm:$0xff]
    %v7647 = vld [vmem:[%s2786 + $0x49] sm:$0xff]
    %v7648 = vld [vmem:[%s2786 + $0x51] sm:$0xff]
    %v7649 = vld [vmem:[%s2786 + $0x61] sm:$0xff]
    %v7650 = vld [vmem:[%s2786 + $0x69] sm:$0xff]
    %v7651 = vld [vmem:[%s2786 + $0x79] sm:$0xff]
    %v7652 = vld [vmem:[%s2786 + $0x81] sm:$0xff]
    %v7653 = vld [vmem:[%s2786 + $0x91] sm:$0xff]
    %v7654 = vld [vmem:[%s2786 + $0x99] sm:$0xff]
    %v7655 = vld [vmem:[%s2786 + $0xa9] sm:$0xff]
    %v7656 = vld [vmem:[%s2786 + $0xb1] sm:$0xff]
    %v7657 = vld [vmem:[%s2786 + $0xc1] sm:$0xff]
    %v7658 = vld [vmem:[%s2786 + $0xc9] sm:$0xff]
    %v7659 = vld [vmem:[%s2786 + $0xd9] sm:$0xff]
    %v7660 = vld [vmem:[%s2786 + $0xe1] sm:$0xff]
    %v7661 = vld [vmem:[%s2786 + $0xf1] sm:$0xff]
    %v7662 = vld [vmem:[%s2786 + $0xf9] sm:$0xff]
    %v7663 = vld [vmem:[%s2786 + $0x109] sm:$0xff]
    %v7664 = vld [vmem:[%s2786 + $0x111] sm:$0xff]
    %v7665 = vld [vmem:[%s2786 + $0x121] sm:$0xff]
    %v7666 = vld [vmem:[%s2786 + $0x129] sm:$0xff]
    %v7667 = vld [vmem:[%s2786 + $0x139] sm:$0xff]
    %v7668 = vld [vmem:[%s2786 + $0x141] sm:$0xff]
    %v7669 = vld [vmem:[%s2786 + $0x151] sm:$0xff]
    %v7670 = vld [vmem:[%s2786 + $0x159] sm:$0xff]
    %v7671 = vld [vmem:[%s2786 + $0x169] sm:$0xff]
    %v7672 = vld [vmem:[%s2786 + $0x171] sm:$0xff]
    %v7673 = vld [vmem:[%s2786 + $0x1b1] sm:$0xff]
    %v7674 = vld [vmem:[%s2786 + $0x1b9] sm:$0xff]
    %v7675 = vld [vmem:[%s2786 + $0x1c9] sm:$0xff]
    %v7676 = vld [vmem:[%s2786 + $0x1d1] sm:$0xff]
    %v7677 = vld [vmem:[%s2786 + $0x1e1] sm:$0xff]
    %v7678 = vld [vmem:[%s2786 + $0x1e9] sm:$0xff]
    %v7679 = vld [vmem:[%s2786 + $0x1f9] sm:$0xff]
    %v7680 = vld [vmem:[%s2786 + $0x201] sm:$0xff]
    %v7681 = vld [vmem:[%s2786 + $0x211] sm:$0xff]
    %v7682 = vld [vmem:[%s2786 + $0x219] sm:$0xff]
    %v7683 = vld [vmem:[%s2786 + $0x229] sm:$0xff]
    %v7684 = vld [vmem:[%s2786 + $0x231] sm:$0xff]
    %v7685 = vld [vmem:[%s2786 + $0x241] sm:$0xff]
    %v7686 = vld [vmem:[%s2786 + $0x249] sm:$0xff]
    %v7687 = vld [vmem:[%s2786 + $0x259] sm:$0xff]
    %v7688 = vld [vmem:[%s2786 + $0x261] sm:$0xff]
    %v7689 = vld [vmem:[%s2786 + $0x271] sm:$0xff]
    %v7690 = vld [vmem:[%s2786 + $0x279] sm:$0xff]
    %v7691 = vld [vmem:[%s2786 + $0x289] sm:$0xff]
    %v7692 = vld [vmem:[%s2786 + $0x291] sm:$0xff]
    %v7693 = vld [vmem:[%s2786 + $0x2a1] sm:$0xff]
    %v7694 = vld [vmem:[%s2786 + $0x2a9] sm:$0xff]
    %v7695 = vld [vmem:[%s2786 + $0x2b9] sm:$0xff]
    %v7696 = vld [vmem:[%s2786 + $0x2c1] sm:$0xff]
    %v7697 = vld [vmem:[%s2786 + $0x2d1] sm:$0xff]
    %v7698 = vld [vmem:[%s2786 + $0x2d9] sm:$0xff]
    %v7699 = vld [vmem:[%s2786 + $0x2e9] sm:$0xff]
    %v7700 = vld [vmem:[%s2786 + $0x2f1] sm:$0xff]
    %v7701 = vld [vmem:[%s2786 + $0x301] sm:$0xff]
    %v7702 = vld [vmem:[%s2786 + $0x309] sm:$0xff]
    %v7703 = vld [vmem:[%s2786 + $0x319] sm:$0xff]
    %v7704 = vld [vmem:[%s2786 + $0x321] sm:$0xff]
    %7769 = vrot.lane.b32.xlu0 %v7641, 96
    %v7770 = vpop.permute.xlu0 %7769
    %7771 = vrot.lane.b32.xlu0 %v7642, 96
    %v7772 = vpop.permute.xlu0 %7771
    %7773 = vrot.lane.b32.xlu0 %v7643, 96
    %v7774 = vpop.permute.xlu0 %7773
    %7775 = vrot.lane.b32.xlu0 %v7644, 96
    %v7776 = vpop.permute.xlu0 %7775
    %7777 = vrot.lane.b32.xlu0 %v7645, 96
    %v7778 = vpop.permute.xlu0 %7777
    %7779 = vrot.lane.b32.xlu0 %v7646, 96
    %v7780 = vpop.permute.xlu0 %7779
    %7781 = vrot.lane.b32.xlu0 %v7647, 96
    %v7782 = vpop.permute.xlu0 %7781
    %7783 = vrot.lane.b32.xlu0 %v7648, 96
    %v7784 = vpop.permute.xlu0 %7783
    %7785 = vrot.lane.b32.xlu0 %v7649, 96
    %v7786 = vpop.permute.xlu0 %7785
    %7787 = vrot.lane.b32.xlu0 %v7650, 96
    %v7788 = vpop.permute.xlu0 %7787
    %7789 = vrot.lane.b32.xlu0 %v7651, 96
    %v7790 = vpop.permute.xlu0 %7789
    %7791 = vrot.lane.b32.xlu0 %v7652, 96
    %v7792 = vpop.permute.xlu0 %7791
    %7793 = vrot.lane.b32.xlu0 %v7653, 96
    %v7794 = vpop.permute.xlu0 %7793
    %7795 = vrot.lane.b32.xlu0 %v7654, 96
    %v7796 = vpop.permute.xlu0 %7795
    %7797 = vrot.lane.b32.xlu0 %v7655, 96
    %v7798 = vpop.permute.xlu0 %7797
    %7799 = vrot.lane.b32.xlu0 %v7656, 96
    %v7800 = vpop.permute.xlu0 %7799
    %7801 = vrot.lane.b32.xlu0 %v7657, 96
    %v7802 = vpop.permute.xlu0 %7801
    %7803 = vrot.lane.b32.xlu0 %v7658, 96
    %v7804 = vpop.permute.xlu0 %7803
    %7805 = vrot.lane.b32.xlu0 %v7659, 96
    %v7806 = vpop.permute.xlu0 %7805
    %7807 = vrot.lane.b32.xlu0 %v7660, 96
    %v7808 = vpop.permute.xlu0 %7807
    %7809 = vrot.lane.b32.xlu0 %v7661, 96
    %v7810 = vpop.permute.xlu0 %7809
    %7811 = vrot.lane.b32.xlu0 %v7662, 96
    %v7812 = vpop.permute.xlu0 %7811
    %7813 = vrot.lane.b32.xlu0 %v7663, 96
    %v7814 = vpop.permute.xlu0 %7813
    %7815 = vrot.lane.b32.xlu0 %v7664, 96
    %v7816 = vpop.permute.xlu0 %7815
    %7817 = vrot.lane.b32.xlu0 %v7665, 96
    %v7818 = vpop.permute.xlu0 %7817
    %7819 = vrot.lane.b32.xlu0 %v7666, 96
    %v7820 = vpop.permute.xlu0 %7819
    %7821 = vrot.lane.b32.xlu0 %v7667, 96
    %v7822 = vpop.permute.xlu0 %7821
    %7823 = vrot.lane.b32.xlu0 %v7668, 96
    %v7824 = vpop.permute.xlu0 %7823
    %7825 = vrot.lane.b32.xlu0 %v7669, 96
    %v7826 = vpop.permute.xlu0 %7825
    %7827 = vrot.lane.b32.xlu0 %v7670, 96
    %v7828 = vpop.permute.xlu0 %7827
    %7829 = vrot.lane.b32.xlu0 %v7671, 96
    %v7830 = vpop.permute.xlu0 %7829
    %7831 = vrot.lane.b32.xlu0 %v7672, 96
    %v7832 = vpop.permute.xlu0 %7831
    %7833 = vrot.lane.b32.xlu0 %v7673, 96
    %v7834 = vpop.permute.xlu0 %7833
    %7835 = vrot.lane.b32.xlu0 %v7674, 96
    %v7836 = vpop.permute.xlu0 %7835
    %7837 = vrot.lane.b32.xlu0 %v7675, 96
    %v7838 = vpop.permute.xlu0 %7837
    %7839 = vrot.lane.b32.xlu0 %v7676, 96
    %v7840 = vpop.permute.xlu0 %7839
    %7841 = vrot.lane.b32.xlu0 %v7677, 96
    %v7842 = vpop.permute.xlu0 %7841
    %7843 = vrot.lane.b32.xlu0 %v7678, 96
    %v7844 = vpop.permute.xlu0 %7843
    %7845 = vrot.lane.b32.xlu0 %v7679, 96
    %v7846 = vpop.permute.xlu0 %7845
    %7847 = vrot.lane.b32.xlu0 %v7680, 96
    %v7848 = vpop.permute.xlu0 %7847
    %7849 = vrot.lane.b32.xlu0 %v7681, 96
    %v7850 = vpop.permute.xlu0 %7849
    %7851 = vrot.lane.b32.xlu0 %v7682, 96
    %v7852 = vpop.permute.xlu0 %7851
    %7853 = vrot.lane.b32.xlu0 %v7683, 96
    %v7854 = vpop.permute.xlu0 %7853
    %7855 = vrot.lane.b32.xlu0 %v7684, 96
    %v7856 = vpop.permute.xlu0 %7855
    %7857 = vrot.lane.b32.xlu0 %v7685, 96
    %v7858 = vpop.permute.xlu0 %7857
    %7859 = vrot.lane.b32.xlu0 %v7686, 96
    %v7860 = vpop.permute.xlu0 %7859
    %7861 = vrot.lane.b32.xlu0 %v7687, 96
    %v7862 = vpop.permute.xlu0 %7861
    %7863 = vrot.lane.b32.xlu0 %v7688, 96
    %v7864 = vpop.permute.xlu0 %7863
    %7865 = vrot.lane.b32.xlu0 %v7689, 96
    %v7866 = vpop.permute.xlu0 %7865
    %7867 = vrot.lane.b32.xlu0 %v7690, 96
    %v7868 = vpop.permute.xlu0 %7867
    %7869 = vrot.lane.b32.xlu0 %v7691, 96
    %v7870 = vpop.permute.xlu0 %7869
    %7871 = vrot.lane.b32.xlu0 %v7692, 96
    %v7872 = vpop.permute.xlu0 %7871
    %7873 = vrot.lane.b32.xlu0 %v7693, 96
    %v7874 = vpop.permute.xlu0 %7873
    %7875 = vrot.lane.b32.xlu0 %v7694, 96
    %v7876 = vpop.permute.xlu0 %7875
    %7877 = vrot.lane.b32.xlu0 %v7695, 96
    %v7878 = vpop.permute.xlu0 %7877
    %7879 = vrot.lane.b32.xlu0 %v7696, 96
    %v7880 = vpop.permute.xlu0 %7879
    %7881 = vrot.lane.b32.xlu0 %v7697, 96
    %v7882 = vpop.permute.xlu0 %7881
    %7883 = vrot.lane.b32.xlu0 %v7698, 96
    %v7884 = vpop.permute.xlu0 %7883
    %7885 = vrot.lane.b32.xlu0 %v7699, 96
    %v7886 = vpop.permute.xlu0 %7885
    %7887 = vrot.lane.b32.xlu0 %v7700, 96
    %v7888 = vpop.permute.xlu0 %7887
    %7889 = vrot.lane.b32.xlu0 %v7701, 96
    %v7890 = vpop.permute.xlu0 %7889
    %7891 = vrot.lane.b32.xlu0 %v7702, 96
    %v7892 = vpop.permute.xlu0 %7891
    %7893 = vrot.lane.b32.xlu0 %v7703, 96
    %v7894 = vpop.permute.xlu0 %7893
    %7895 = vrot.lane.b32.xlu0 %v7704, 96
    %v7896 = vpop.permute.xlu0 %7895
    %7961 = vst.msk [vmem:[#allocation3 + $0x8] sm:$0xff] %vm2209, %v7770
    %7962 = vst.msk [vmem:[#allocation3 + $0x20] sm:$0xff] %vm2209, %v7772
    %7963 = vst.msk [vmem:[#allocation3 + $0x38] sm:$0xff] %vm2209, %v7774
    %7964 = vst.msk [vmem:[#allocation3 + $0x50] sm:$0xff] %vm2209, %v7776
    %7965 = vst.msk [vmem:[#allocation3 + $0x68] sm:$0xff] %vm2209, %v7778
    %7966 = vst.msk [vmem:[#allocation3 + $0x80] sm:$0xff] %vm2209, %v7780
    %7967 = vst.msk [vmem:[#allocation3 + $0x98] sm:$0xff] %vm2209, %v7782
    %7968 = vst.msk [vmem:[#allocation3 + $0xb0] sm:$0xff] %vm2209, %v7784
    %7969 = vst.msk [vmem:[#allocation3 + $0xc8] sm:$0xff] %vm2209, %v7786
    %7970 = vst.msk [vmem:[#allocation3 + $0xe0] sm:$0xff] %vm2209, %v7788
    %7971 = vst.msk [vmem:[#allocation3 + $0xf8] sm:$0xff] %vm2209, %v7790
    %7972 = vst.msk [vmem:[#allocation3 + $0x110] sm:$0xff] %vm2209, %v7792
    %7973 = vst.msk [vmem:[#allocation3 + $0x128] sm:$0xff] %vm2209, %v7794
    %7974 = vst.msk [vmem:[#allocation3 + $0x140] sm:$0xff] %vm2209, %v7796
    %7975 = vst.msk [vmem:[#allocation3 + $0x158] sm:$0xff] %vm2209, %v7798
    %7976 = vst.msk [vmem:[#allocation3 + $0x170] sm:$0xff] %vm2209, %v7800
    %7977 = vst.msk [vmem:[#allocation3 + $0x188] sm:$0xff] %vm2209, %v7802
    %7978 = vst.msk [vmem:[#allocation3 + $0x1a0] sm:$0xff] %vm2209, %v7804
    %7979 = vst.msk [vmem:[#allocation3 + $0x1b8] sm:$0xff] %vm2209, %v7806
    %7980 = vst.msk [vmem:[#allocation3 + $0x1d0] sm:$0xff] %vm2209, %v7808
    %7981 = vst.msk [vmem:[#allocation3 + $0x1e8] sm:$0xff] %vm2209, %v7810
    %7982 = vst.msk [vmem:[#allocation3 + $0x200] sm:$0xff] %vm2209, %v7812
    %7983 = vst.msk [vmem:[#allocation3 + $0x218] sm:$0xff] %vm2209, %v7814
    %7984 = vst.msk [vmem:[#allocation3 + $0x230] sm:$0xff] %vm2209, %v7816
    %7985 = vst.msk [vmem:[#allocation3 + $0x248] sm:$0xff] %vm2209, %v7818
    %7986 = vst.msk [vmem:[#allocation3 + $0x260] sm:$0xff] %vm2209, %v7820
    %7987 = vst.msk [vmem:[#allocation3 + $0x278] sm:$0xff] %vm2209, %v7822
    %7988 = vst.msk [vmem:[#allocation3 + $0x290] sm:$0xff] %vm2209, %v7824
    %7989 = vst.msk [vmem:[#allocation3 + $0x2a8] sm:$0xff] %vm2209, %v7826
    %7990 = vst.msk [vmem:[#allocation3 + $0x2c0] sm:$0xff] %vm2209, %v7828
    %7991 = vst.msk [vmem:[#allocation3 + $0x2d8] sm:$0xff] %vm2209, %v7830
    %7992 = vst.msk [vmem:[#allocation3 + $0x2f0] sm:$0xff] %vm2209, %v7832
    %7993 = vst.msk [vmem:[#allocation3 + $0x308] sm:$0xff] %vm2209, %v7834
    %7994 = vst.msk [vmem:[#allocation3 + $0x320] sm:$0xff] %vm2209, %v7836
    %7995 = vst.msk [vmem:[#allocation3 + $0x338] sm:$0xff] %vm2209, %v7838
    %7996 = vst.msk [vmem:[#allocation3 + $0x350] sm:$0xff] %vm2209, %v7840
    %7997 = vst.msk [vmem:[#allocation3 + $0x368] sm:$0xff] %vm2209, %v7842
    %7998 = vst.msk [vmem:[#allocation3 + $0x380] sm:$0xff] %vm2209, %v7844
    %7999 = vst.msk [vmem:[#allocation3 + $0x398] sm:$0xff] %vm2209, %v7846
    %8000 = vst.msk [vmem:[#allocation3 + $0x3b0] sm:$0xff] %vm2209, %v7848
    %8001 = vst.msk [vmem:[#allocation3 + $0x3c8] sm:$0xff] %vm2209, %v7850
    %8002 = vst.msk [vmem:[#allocation3 + $0x3e0] sm:$0xff] %vm2209, %v7852
    %8003 = vst.msk [vmem:[#allocation3 + $0x3f8] sm:$0xff] %vm2209, %v7854
    %8004 = vst.msk [vmem:[#allocation3 + $0x410] sm:$0xff] %vm2209, %v7856
    %8005 = vst.msk [vmem:[#allocation3 + $0x428] sm:$0xff] %vm2209, %v7858
    %8006 = vst.msk [vmem:[#allocation3 + $0x440] sm:$0xff] %vm2209, %v7860
    %8007 = vst.msk [vmem:[#allocation3 + $0x458] sm:$0xff] %vm2209, %v7862
    %8008 = vst.msk [vmem:[#allocation3 + $0x470] sm:$0xff] %vm2209, %v7864
    %8009 = vst.msk [vmem:[#allocation3 + $0x488] sm:$0xff] %vm2209, %v7866
    %8010 = vst.msk [vmem:[#allocation3 + $0x4a0] sm:$0xff] %vm2209, %v7868
    %8011 = vst.msk [vmem:[#allocation3 + $0x4b8] sm:$0xff] %vm2209, %v7870
    %8012 = vst.msk [vmem:[#allocation3 + $0x4d0] sm:$0xff] %vm2209, %v7872
    %8013 = vst.msk [vmem:[#allocation3 + $0x4e8] sm:$0xff] %vm2209, %v7874
    %8014 = vst.msk [vmem:[#allocation3 + $0x500] sm:$0xff] %vm2209, %v7876
    %8015 = vst.msk [vmem:[#allocation3 + $0x518] sm:$0xff] %vm2209, %v7878
    %8016 = vst.msk [vmem:[#allocation3 + $0x530] sm:$0xff] %vm2209, %v7880
    %8017 = vst.msk [vmem:[#allocation3 + $0x548] sm:$0xff] %vm2209, %v7882
    %8018 = vst.msk [vmem:[#allocation3 + $0x560] sm:$0xff] %vm2209, %v7884
    %8019 = vst.msk [vmem:[#allocation3 + $0x578] sm:$0xff] %vm2209, %v7886
    %8020 = vst.msk [vmem:[#allocation3 + $0x590] sm:$0xff] %vm2209, %v7888
    %8021 = vst.msk [vmem:[#allocation3 + $0x5a8] sm:$0xff] %vm2209, %v7890
    %8022 = vst.msk [vmem:[#allocation3 + $0x5c0] sm:$0xff] %vm2209, %v7892
    %8023 = vst.msk [vmem:[#allocation3 + $0x5d8] sm:$0xff] %vm2209, %v7894
    %8024 = vst.msk [vmem:[#allocation3 + $0x5f0] sm:$0xff] %vm2209, %v7896
    %v8025 = vld [vmem:[%s2786 + $0x2] sm:$0xff]
    %v8026 = vld [vmem:[%s2786 + $0xa] sm:$0xff]
    %v8027 = vld [vmem:[%s2786 + $0x1a] sm:$0xff]
    %v8028 = vld [vmem:[%s2786 + $0x22] sm:$0xff]
    %v8029 = vld [vmem:[%s2786 + $0x32] sm:$0xff]
    %v8030 = vld [vmem:[%s2786 + $0x3a] sm:$0xff]
    %v8031 = vld [vmem:[%s2786 + $0x4a] sm:$0xff]
    %v8032 = vld [vmem:[%s2786 + $0x52] sm:$0xff]
    %v8033 = vld [vmem:[%s2786 + $0x62] sm:$0xff]
    %v8034 = vld [vmem:[%s2786 + $0x6a] sm:$0xff]
    %v8035 = vld [vmem:[%s2786 + $0x7a] sm:$0xff]
    %v8036 = vld [vmem:[%s2786 + $0x82] sm:$0xff]
    %v8037 = vld [vmem:[%s2786 + $0x92] sm:$0xff]
    %v8038 = vld [vmem:[%s2786 + $0x9a] sm:$0xff]
    %v8039 = vld [vmem:[%s2786 + $0xaa] sm:$0xff]
    %v8040 = vld [vmem:[%s2786 + $0xb2] sm:$0xff]
    %v8041 = vld [vmem:[%s2786 + $0xc2] sm:$0xff]
    %v8042 = vld [vmem:[%s2786 + $0xca] sm:$0xff]
    %v8043 = vld [vmem:[%s2786 + $0xda] sm:$0xff]
    %v8044 = vld [vmem:[%s2786 + $0xe2] sm:$0xff]
    %v8045 = vld [vmem:[%s2786 + $0xf2] sm:$0xff]
    %v8046 = vld [vmem:[%s2786 + $0xfa] sm:$0xff]
    %v8047 = vld [vmem:[%s2786 + $0x10a] sm:$0xff]
    %v8048 = vld [vmem:[%s2786 + $0x112] sm:$0xff]
    %v8049 = vld [vmem:[%s2786 + $0x122] sm:$0xff]
    %v8050 = vld [vmem:[%s2786 + $0x12a] sm:$0xff]
    %v8051 = vld [vmem:[%s2786 + $0x13a] sm:$0xff]
    %v8052 = vld [vmem:[%s2786 + $0x142] sm:$0xff]
    %v8053 = vld [vmem:[%s2786 + $0x152] sm:$0xff]
    %v8054 = vld [vmem:[%s2786 + $0x15a] sm:$0xff]
    %v8055 = vld [vmem:[%s2786 + $0x16a] sm:$0xff]
    %v8056 = vld [vmem:[%s2786 + $0x172] sm:$0xff]
    %v8057 = vld [vmem:[%s2786 + $0x1b2] sm:$0xff]
    %v8058 = vld [vmem:[%s2786 + $0x1ba] sm:$0xff]
    %v8059 = vld [vmem:[%s2786 + $0x1ca] sm:$0xff]
    %v8060 = vld [vmem:[%s2786 + $0x1d2] sm:$0xff]
    %v8061 = vld [vmem:[%s2786 + $0x1e2] sm:$0xff]
    %v8062 = vld [vmem:[%s2786 + $0x1ea] sm:$0xff]
    %v8063 = vld [vmem:[%s2786 + $0x1fa] sm:$0xff]
    %v8064 = vld [vmem:[%s2786 + $0x202] sm:$0xff]
    %v8065 = vld [vmem:[%s2786 + $0x212] sm:$0xff]
    %v8066 = vld [vmem:[%s2786 + $0x21a] sm:$0xff]
    %v8067 = vld [vmem:[%s2786 + $0x22a] sm:$0xff]
    %v8068 = vld [vmem:[%s2786 + $0x232] sm:$0xff]
    %v8069 = vld [vmem:[%s2786 + $0x242] sm:$0xff]
    %v8070 = vld [vmem:[%s2786 + $0x24a] sm:$0xff]
    %v8071 = vld [vmem:[%s2786 + $0x25a] sm:$0xff]
    %v8072 = vld [vmem:[%s2786 + $0x262] sm:$0xff]
    %v8073 = vld [vmem:[%s2786 + $0x272] sm:$0xff]
    %v8074 = vld [vmem:[%s2786 + $0x27a] sm:$0xff]
    %v8075 = vld [vmem:[%s2786 + $0x28a] sm:$0xff]
    %v8076 = vld [vmem:[%s2786 + $0x292] sm:$0xff]
    %v8077 = vld [vmem:[%s2786 + $0x2a2] sm:$0xff]
    %v8078 = vld [vmem:[%s2786 + $0x2aa] sm:$0xff]
    %v8079 = vld [vmem:[%s2786 + $0x2ba] sm:$0xff]
    %v8080 = vld [vmem:[%s2786 + $0x2c2] sm:$0xff]
    %v8081 = vld [vmem:[%s2786 + $0x2d2] sm:$0xff]
    %v8082 = vld [vmem:[%s2786 + $0x2da] sm:$0xff]
    %v8083 = vld [vmem:[%s2786 + $0x2ea] sm:$0xff]
    %v8084 = vld [vmem:[%s2786 + $0x2f2] sm:$0xff]
    %v8085 = vld [vmem:[%s2786 + $0x302] sm:$0xff]
    %v8086 = vld [vmem:[%s2786 + $0x30a] sm:$0xff]
    %v8087 = vld [vmem:[%s2786 + $0x31a] sm:$0xff]
    %v8088 = vld [vmem:[%s2786 + $0x322] sm:$0xff]
    %8089 = vst.msk [vmem:[#allocation3 + $0x10] sm:$0xff] %vm74, %v8025
    %8090 = vst.msk [vmem:[#allocation3 + $0x28] sm:$0xff] %vm74, %v8026
    %8091 = vst.msk [vmem:[#allocation3 + $0x40] sm:$0xff] %vm74, %v8027
    %8092 = vst.msk [vmem:[#allocation3 + $0x58] sm:$0xff] %vm74, %v8028
    %8093 = vst.msk [vmem:[#allocation3 + $0x70] sm:$0xff] %vm74, %v8029
    %8094 = vst.msk [vmem:[#allocation3 + $0x88] sm:$0xff] %vm74, %v8030
    %8095 = vst.msk [vmem:[#allocation3 + $0xa0] sm:$0xff] %vm74, %v8031
    %8096 = vst.msk [vmem:[#allocation3 + $0xb8] sm:$0xff] %vm74, %v8032
    %8097 = vst.msk [vmem:[#allocation3 + $0xd0] sm:$0xff] %vm74, %v8033
    %8098 = vst.msk [vmem:[#allocation3 + $0xe8] sm:$0xff] %vm74, %v8034
    %8099 = vst.msk [vmem:[#allocation3 + $0x100] sm:$0xff] %vm74, %v8035
    %8100 = vst.msk [vmem:[#allocation3 + $0x118] sm:$0xff] %vm74, %v8036
    %8101 = vst.msk [vmem:[#allocation3 + $0x130] sm:$0xff] %vm74, %v8037
    %8102 = vst.msk [vmem:[#allocation3 + $0x148] sm:$0xff] %vm74, %v8038
    %8103 = vst.msk [vmem:[#allocation3 + $0x160] sm:$0xff] %vm74, %v8039
    %8104 = vst.msk [vmem:[#allocation3 + $0x178] sm:$0xff] %vm74, %v8040
    %8105 = vst.msk [vmem:[#allocation3 + $0x190] sm:$0xff] %vm74, %v8041
    %8106 = vst.msk [vmem:[#allocation3 + $0x1a8] sm:$0xff] %vm74, %v8042
    %8107 = vst.msk [vmem:[#allocation3 + $0x1c0] sm:$0xff] %vm74, %v8043
    %8108 = vst.msk [vmem:[#allocation3 + $0x1d8] sm:$0xff] %vm74, %v8044
    %8109 = vst.msk [vmem:[#allocation3 + $0x1f0] sm:$0xff] %vm74, %v8045
    %8110 = vst.msk [vmem:[#allocation3 + $0x208] sm:$0xff] %vm74, %v8046
    %8111 = vst.msk [vmem:[#allocation3 + $0x220] sm:$0xff] %vm74, %v8047
    %8112 = vst.msk [vmem:[#allocation3 + $0x238] sm:$0xff] %vm74, %v8048
    %8113 = vst.msk [vmem:[#allocation3 + $0x250] sm:$0xff] %vm74, %v8049
    %8114 = vst.msk [vmem:[#allocation3 + $0x268] sm:$0xff] %vm74, %v8050
    %8115 = vst.msk [vmem:[#allocation3 + $0x280] sm:$0xff] %vm74, %v8051
    %8116 = vst.msk [vmem:[#allocation3 + $0x298] sm:$0xff] %vm74, %v8052
    %8117 = vst.msk [vmem:[#allocation3 + $0x2b0] sm:$0xff] %vm74, %v8053
    %8118 = vst.msk [vmem:[#allocation3 + $0x2c8] sm:$0xff] %vm74, %v8054
    %8119 = vst.msk [vmem:[#allocation3 + $0x2e0] sm:$0xff] %vm74, %v8055
    %8120 = vst.msk [vmem:[#allocation3 + $0x2f8] sm:$0xff] %vm74, %v8056
    %8121 = vst.msk [vmem:[#allocation3 + $0x310] sm:$0xff] %vm74, %v8057
    %8122 = vst.msk [vmem:[#allocation3 + $0x328] sm:$0xff] %vm74, %v8058
    %8123 = vst.msk [vmem:[#allocation3 + $0x340] sm:$0xff] %vm74, %v8059
    %8124 = vst.msk [vmem:[#allocation3 + $0x358] sm:$0xff] %vm74, %v8060
    %8125 = vst.msk [vmem:[#allocation3 + $0x370] sm:$0xff] %vm74, %v8061
    %8126 = vst.msk [vmem:[#allocation3 + $0x388] sm:$0xff] %vm74, %v8062
    %8127 = vst.msk [vmem:[#allocation3 + $0x3a0] sm:$0xff] %vm74, %v8063
    %8128 = vst.msk [vmem:[#allocation3 + $0x3b8] sm:$0xff] %vm74, %v8064
    %8129 = vst.msk [vmem:[#allocation3 + $0x3d0] sm:$0xff] %vm74, %v8065
    %8130 = vst.msk [vmem:[#allocation3 + $0x3e8] sm:$0xff] %vm74, %v8066
    %8131 = vst.msk [vmem:[#allocation3 + $0x400] sm:$0xff] %vm74, %v8067
    %8132 = vst.msk [vmem:[#allocation3 + $0x418] sm:$0xff] %vm74, %v8068
    %8133 = vst.msk [vmem:[#allocation3 + $0x430] sm:$0xff] %vm74, %v8069
    %8134 = vst.msk [vmem:[#allocation3 + $0x448] sm:$0xff] %vm74, %v8070
    %8135 = vst.msk [vmem:[#allocation3 + $0x460] sm:$0xff] %vm74, %v8071
    %8136 = vst.msk [vmem:[#allocation3 + $0x478] sm:$0xff] %vm74, %v8072
    %8137 = vst.msk [vmem:[#allocation3 + $0x490] sm:$0xff] %vm74, %v8073
    %8138 = vst.msk [vmem:[#allocation3 + $0x4a8] sm:$0xff] %vm74, %v8074
    %8139 = vst.msk [vmem:[#allocation3 + $0x4c0] sm:$0xff] %vm74, %v8075
    %8140 = vst.msk [vmem:[#allocation3 + $0x4d8] sm:$0xff] %vm74, %v8076
    %8141 = vst.msk [vmem:[#allocation3 + $0x4f0] sm:$0xff] %vm74, %v8077
    %8142 = vst.msk [vmem:[#allocation3 + $0x508] sm:$0xff] %vm74, %v8078
    %8143 = vst.msk [vmem:[#allocation3 + $0x520] sm:$0xff] %vm74, %v8079
    %8144 = vst.msk [vmem:[#allocation3 + $0x538] sm:$0xff] %vm74, %v8080
    %8145 = vst.msk [vmem:[#allocation3 + $0x550] sm:$0xff] %vm74, %v8081
    %8146 = vst.msk [vmem:[#allocation3 + $0x568] sm:$0xff] %vm74, %v8082
    %8147 = vst.msk [vmem:[#allocation3 + $0x580] sm:$0xff] %vm74, %v8083
    %8148 = vst.msk [vmem:[#allocation3 + $0x598] sm:$0xff] %vm74, %v8084
    %8149 = vst.msk [vmem:[#allocation3 + $0x5b0] sm:$0xff] %vm74, %v8085
    %8150 = vst.msk [vmem:[#allocation3 + $0x5c8] sm:$0xff] %vm74, %v8086
    %8151 = vst.msk [vmem:[#allocation3 + $0x5e0] sm:$0xff] %vm74, %v8087
    %8152 = vst.msk [vmem:[#allocation3 + $0x5f8] sm:$0xff] %vm74, %v8088
    %v8153 = vld [vmem:[#allocation3] sm:$0xff]
    %v8154 = vld [vmem:[#allocation3 + $0x8] sm:$0xff]
    %v8155 = vld [vmem:[#allocation3 + $0x10] sm:$0xff]
    %v8156 = vld [vmem:[#allocation3 + $0x18] sm:$0xff]
    %v8157 = vld [vmem:[#allocation3 + $0x20] sm:$0xff]
    %v8158 = vld [vmem:[#allocation3 + $0x28] sm:$0xff]
    %v8159 = vld [vmem:[#allocation3 + $0x30] sm:$0xff]
    %v8160 = vld [vmem:[#allocation3 + $0x38] sm:$0xff]
    %v8161 = vld [vmem:[#allocation3 + $0x40] sm:$0xff]
    %v8162 = vld [vmem:[#allocation3 + $0x48] sm:$0xff]
    %v8163 = vld [vmem:[#allocation3 + $0x50] sm:$0xff]
    %v8164 = vld [vmem:[#allocation3 + $0x58] sm:$0xff]
    %v8165 = vld [vmem:[#allocation3 + $0x60] sm:$0xff]
    %v8166 = vld [vmem:[#allocation3 + $0x68] sm:$0xff]
    %v8167 = vld [vmem:[#allocation3 + $0x70] sm:$0xff]
    %v8168 = vld [vmem:[#allocation3 + $0x78] sm:$0xff]
    %v8169 = vld [vmem:[#allocation3 + $0x80] sm:$0xff]
    %v8170 = vld [vmem:[#allocation3 + $0x88] sm:$0xff]
    %v8171 = vld [vmem:[#allocation3 + $0x90] sm:$0xff]
    %v8172 = vld [vmem:[#allocation3 + $0x98] sm:$0xff]
    %v8173 = vld [vmem:[#allocation3 + $0xa0] sm:$0xff]
    %v8174 = vld [vmem:[#allocation3 + $0xa8] sm:$0xff]
    %v8175 = vld [vmem:[#allocation3 + $0xb0] sm:$0xff]
    %v8176 = vld [vmem:[#allocation3 + $0xb8] sm:$0xff]
    %v8177 = vld [vmem:[#allocation3 + $0xc0] sm:$0xff]
    %v8178 = vld [vmem:[#allocation3 + $0xc8] sm:$0xff]
    %v8179 = vld [vmem:[#allocation3 + $0xd0] sm:$0xff]
    %v8180 = vld [vmem:[#allocation3 + $0xd8] sm:$0xff]
    %v8181 = vld [vmem:[#allocation3 + $0xe0] sm:$0xff]
    %v8182 = vld [vmem:[#allocation3 + $0xe8] sm:$0xff]
    %v8183 = vld [vmem:[#allocation3 + $0xf0] sm:$0xff]
    %v8184 = vld [vmem:[#allocation3 + $0xf8] sm:$0xff]
    %v8185 = vld [vmem:[#allocation3 + $0x100] sm:$0xff]
    %v8186 = vld [vmem:[#allocation3 + $0x108] sm:$0xff]
    %v8187 = vld [vmem:[#allocation3 + $0x110] sm:$0xff]
    %v8188 = vld [vmem:[#allocation3 + $0x118] sm:$0xff]
    %v8189 = vld [vmem:[#allocation3 + $0x120] sm:$0xff]
    %v8190 = vld [vmem:[#allocation3 + $0x128] sm:$0xff]
    %v8191 = vld [vmem:[#allocation3 + $0x130] sm:$0xff]
    %v8192 = vld [vmem:[#allocation3 + $0x138] sm:$0xff]
    %v8193 = vld [vmem:[#allocation3 + $0x140] sm:$0xff]
    %v8194 = vld [vmem:[#allocation3 + $0x148] sm:$0xff]
    %v8195 = vld [vmem:[#allocation3 + $0x150] sm:$0xff]
    %v8196 = vld [vmem:[#allocation3 + $0x158] sm:$0xff]
    %v8197 = vld [vmem:[#allocation3 + $0x160] sm:$0xff]
    %v8198 = vld [vmem:[#allocation3 + $0x168] sm:$0xff]
    %v8199 = vld [vmem:[#allocation3 + $0x170] sm:$0xff]
    %v8200 = vld [vmem:[#allocation3 + $0x178] sm:$0xff]
    %v8201 = vld [vmem:[#allocation3 + $0x180] sm:$0xff]
    %v8202 = vld [vmem:[#allocation3 + $0x188] sm:$0xff]
    %v8203 = vld [vmem:[#allocation3 + $0x190] sm:$0xff]
    %v8204 = vld [vmem:[#allocation3 + $0x198] sm:$0xff]
    %v8205 = vld [vmem:[#allocation3 + $0x1a0] sm:$0xff]
    %v8206 = vld [vmem:[#allocation3 + $0x1a8] sm:$0xff]
    %v8207 = vld [vmem:[#allocation3 + $0x1b0] sm:$0xff]
    %v8208 = vld [vmem:[#allocation3 + $0x1b8] sm:$0xff]
    %v8209 = vld [vmem:[#allocation3 + $0x1c0] sm:$0xff]
    %v8210 = vld [vmem:[#allocation3 + $0x1c8] sm:$0xff]
    %v8211 = vld [vmem:[#allocation3 + $0x1d0] sm:$0xff]
    %v8212 = vld [vmem:[#allocation3 + $0x1d8] sm:$0xff]
    %v8213 = vld [vmem:[#allocation3 + $0x1e0] sm:$0xff]
    %v8214 = vld [vmem:[#allocation3 + $0x1e8] sm:$0xff]
    %v8215 = vld [vmem:[#allocation3 + $0x1f0] sm:$0xff]
    %v8216 = vld [vmem:[#allocation3 + $0x1f8] sm:$0xff]
    %v8217 = vld [vmem:[#allocation3 + $0x200] sm:$0xff]
    %v8218 = vld [vmem:[#allocation3 + $0x208] sm:$0xff]
    %v8219 = vld [vmem:[#allocation3 + $0x210] sm:$0xff]
    %v8220 = vld [vmem:[#allocation3 + $0x218] sm:$0xff]
    %v8221 = vld [vmem:[#allocation3 + $0x220] sm:$0xff]
    %v8222 = vld [vmem:[#allocation3 + $0x228] sm:$0xff]
    %v8223 = vld [vmem:[#allocation3 + $0x230] sm:$0xff]
    %v8224 = vld [vmem:[#allocation3 + $0x238] sm:$0xff]
    %v8225 = vld [vmem:[#allocation3 + $0x240] sm:$0xff]
    %v8226 = vld [vmem:[#allocation3 + $0x248] sm:$0xff]
    %v8227 = vld [vmem:[#allocation3 + $0x250] sm:$0xff]
    %v8228 = vld [vmem:[#allocation3 + $0x258] sm:$0xff]
    %v8229 = vld [vmem:[#allocation3 + $0x260] sm:$0xff]
    %v8230 = vld [vmem:[#allocation3 + $0x268] sm:$0xff]
    %v8231 = vld [vmem:[#allocation3 + $0x270] sm:$0xff]
    %v8232 = vld [vmem:[#allocation3 + $0x278] sm:$0xff]
    %v8233 = vld [vmem:[#allocation3 + $0x280] sm:$0xff]
    %v8234 = vld [vmem:[#allocation3 + $0x288] sm:$0xff]
    %v8235 = vld [vmem:[#allocation3 + $0x290] sm:$0xff]
    %v8236 = vld [vmem:[#allocation3 + $0x298] sm:$0xff]
    %v8237 = vld [vmem:[#allocation3 + $0x2a0] sm:$0xff]
    %v8238 = vld [vmem:[#allocation3 + $0x2a8] sm:$0xff]
    %v8239 = vld [vmem:[#allocation3 + $0x2b0] sm:$0xff]
    %v8240 = vld [vmem:[#allocation3 + $0x2b8] sm:$0xff]
    %v8241 = vld [vmem:[#allocation3 + $0x2c0] sm:$0xff]
    %v8242 = vld [vmem:[#allocation3 + $0x2c8] sm:$0xff]
    %v8243 = vld [vmem:[#allocation3 + $0x2d0] sm:$0xff]
    %v8244 = vld [vmem:[#allocation3 + $0x2d8] sm:$0xff]
    %v8245 = vld [vmem:[#allocation3 + $0x2e0] sm:$0xff]
    %v8246 = vld [vmem:[#allocation3 + $0x2e8] sm:$0xff]
    %v8247 = vld [vmem:[#allocation3 + $0x2f0] sm:$0xff]
    %v8248 = vld [vmem:[#allocation3 + $0x2f8] sm:$0xff]
    %v8249 = vld [vmem:[#allocation3 + $0x300] sm:$0xff]
    %v8250 = vld [vmem:[#allocation3 + $0x308] sm:$0xff]
    %v8251 = vld [vmem:[#allocation3 + $0x310] sm:$0xff]
    %v8252 = vld [vmem:[#allocation3 + $0x318] sm:$0xff]
    %v8253 = vld [vmem:[#allocation3 + $0x320] sm:$0xff]
    %v8254 = vld [vmem:[#allocation3 + $0x328] sm:$0xff]
    %v8255 = vld [vmem:[#allocation3 + $0x330] sm:$0xff]
    %v8256 = vld [vmem:[#allocation3 + $0x338] sm:$0xff]
    %v8257 = vld [vmem:[#allocation3 + $0x340] sm:$0xff]
    %v8258 = vld [vmem:[#allocation3 + $0x348] sm:$0xff]
    %v8259 = vld [vmem:[#allocation3 + $0x350] sm:$0xff]
    %v8260 = vld [vmem:[#allocation3 + $0x358] sm:$0xff]
    %v8261 = vld [vmem:[#allocation3 + $0x360] sm:$0xff]
    %v8262 = vld [vmem:[#allocation3 + $0x368] sm:$0xff]
    %v8263 = vld [vmem:[#allocation3 + $0x370] sm:$0xff]
    %v8264 = vld [vmem:[#allocation3 + $0x378] sm:$0xff]
    %v8265 = vld [vmem:[#allocation3 + $0x380] sm:$0xff]
    %v8266 = vld [vmem:[#allocation3 + $0x388] sm:$0xff]
    %v8267 = vld [vmem:[#allocation3 + $0x390] sm:$0xff]
    %v8268 = vld [vmem:[#allocation3 + $0x398] sm:$0xff]
    %v8269 = vld [vmem:[#allocation3 + $0x3a0] sm:$0xff]
    %v8270 = vld [vmem:[#allocation3 + $0x3a8] sm:$0xff]
    %v8271 = vld [vmem:[#allocation3 + $0x3b0] sm:$0xff]
    %v8272 = vld [vmem:[#allocation3 + $0x3b8] sm:$0xff]
    %v8273 = vld [vmem:[#allocation3 + $0x3c0] sm:$0xff]
    %v8274 = vld [vmem:[#allocation3 + $0x3c8] sm:$0xff]
    %v8275 = vld [vmem:[#allocation3 + $0x3d0] sm:$0xff]
    %v8276 = vld [vmem:[#allocation3 + $0x3d8] sm:$0xff]
    %v8277 = vld [vmem:[#allocation3 + $0x3e0] sm:$0xff]
    %v8278 = vld [vmem:[#allocation3 + $0x3e8] sm:$0xff]
    %v8279 = vld [vmem:[#allocation3 + $0x3f0] sm:$0xff]
    %v8280 = vld [vmem:[#allocation3 + $0x3f8] sm:$0xff]
    %v8281 = vld [vmem:[#allocation3 + $0x400] sm:$0xff]
    %v8282 = vld [vmem:[#allocation3 + $0x408] sm:$0xff]
    %v8283 = vld [vmem:[#allocation3 + $0x410] sm:$0xff]
    %v8284 = vld [vmem:[#allocation3 + $0x418] sm:$0xff]
    %v8285 = vld [vmem:[#allocation3 + $0x420] sm:$0xff]
    %v8286 = vld [vmem:[#allocation3 + $0x428] sm:$0xff]
    %v8287 = vld [vmem:[#allocation3 + $0x430] sm:$0xff]
    %v8288 = vld [vmem:[#allocation3 + $0x438] sm:$0xff]
    %v8289 = vld [vmem:[#allocation3 + $0x440] sm:$0xff]
    %v8290 = vld [vmem:[#allocation3 + $0x448] sm:$0xff]
    %v8291 = vld [vmem:[#allocation3 + $0x450] sm:$0xff]
    %v8292 = vld [vmem:[#allocation3 + $0x458] sm:$0xff]
    %v8293 = vld [vmem:[#allocation3 + $0x460] sm:$0xff]
    %v8294 = vld [vmem:[#allocation3 + $0x468] sm:$0xff]
    %v8295 = vld [vmem:[#allocation3 + $0x470] sm:$0xff]
    %v8296 = vld [vmem:[#allocation3 + $0x478] sm:$0xff]
    %v8297 = vld [vmem:[#allocation3 + $0x480] sm:$0xff]
    %v8298 = vld [vmem:[#allocation3 + $0x488] sm:$0xff]
    %v8299 = vld [vmem:[#allocation3 + $0x490] sm:$0xff]
    %v8300 = vld [vmem:[#allocation3 + $0x498] sm:$0xff]
    %v8301 = vld [vmem:[#allocation3 + $0x4a0] sm:$0xff]
    %v8302 = vld [vmem:[#allocation3 + $0x4a8] sm:$0xff]
    %v8303 = vld [vmem:[#allocation3 + $0x4b0] sm:$0xff]
    %v8304 = vld [vmem:[#allocation3 + $0x4b8] sm:$0xff]
    %v8305 = vld [vmem:[#allocation3 + $0x4c0] sm:$0xff]
    %v8306 = vld [vmem:[#allocation3 + $0x4c8] sm:$0xff]
    %v8307 = vld [vmem:[#allocation3 + $0x4d0] sm:$0xff]
    %v8308 = vld [vmem:[#allocation3 + $0x4d8] sm:$0xff]
    %v8309 = vld [vmem:[#allocation3 + $0x4e0] sm:$0xff]
    %v8310 = vld [vmem:[#allocation3 + $0x4e8] sm:$0xff]
    %v8311 = vld [vmem:[#allocation3 + $0x4f0] sm:$0xff]
    %v8312 = vld [vmem:[#allocation3 + $0x4f8] sm:$0xff]
    %v8313 = vld [vmem:[#allocation3 + $0x500] sm:$0xff]
    %v8314 = vld [vmem:[#allocation3 + $0x508] sm:$0xff]
    %v8315 = vld [vmem:[#allocation3 + $0x510] sm:$0xff]
    %v8316 = vld [vmem:[#allocation3 + $0x518] sm:$0xff]
    %v8317 = vld [vmem:[#allocation3 + $0x520] sm:$0xff]
    %v8318 = vld [vmem:[#allocation3 + $0x528] sm:$0xff]
    %v8319 = vld [vmem:[#allocation3 + $0x530] sm:$0xff]
    %v8320 = vld [vmem:[#allocation3 + $0x538] sm:$0xff]
    %v8321 = vld [vmem:[#allocation3 + $0x540] sm:$0xff]
    %v8322 = vld [vmem:[#allocation3 + $0x548] sm:$0xff]
    %v8323 = vld [vmem:[#allocation3 + $0x550] sm:$0xff]
    %v8324 = vld [vmem:[#allocation3 + $0x558] sm:$0xff]
    %v8325 = vld [vmem:[#allocation3 + $0x560] sm:$0xff]
    %v8326 = vld [vmem:[#allocation3 + $0x568] sm:$0xff]
    %v8327 = vld [vmem:[#allocation3 + $0x570] sm:$0xff]
    %v8328 = vld [vmem:[#allocation3 + $0x578] sm:$0xff]
    %v8329 = vld [vmem:[#allocation3 + $0x580] sm:$0xff]
    %v8330 = vld [vmem:[#allocation3 + $0x588] sm:$0xff]
    %v8331 = vld [vmem:[#allocation3 + $0x590] sm:$0xff]
    %v8332 = vld [vmem:[#allocation3 + $0x598] sm:$0xff]
    %v8333 = vld [vmem:[#allocation3 + $0x5a0] sm:$0xff]
    %v8334 = vld [vmem:[#allocation3 + $0x5a8] sm:$0xff]
    %v8335 = vld [vmem:[#allocation3 + $0x5b0] sm:$0xff]
    %v8336 = vld [vmem:[#allocation3 + $0x5b8] sm:$0xff]
    %v8337 = vld [vmem:[#allocation3 + $0x5c0] sm:$0xff]
    %v8338 = vld [vmem:[#allocation3 + $0x5c8] sm:$0xff]
    %v8339 = vld [vmem:[#allocation3 + $0x5d0] sm:$0xff]
    %v8340 = vld [vmem:[#allocation3 + $0x5d8] sm:$0xff]
    %v8341 = vld [vmem:[#allocation3 + $0x5e0] sm:$0xff]
    %v8342 = vld [vmem:[#allocation3 + $0x5e8] sm:$0xff]
    %v8343 = vld [vmem:[#allocation3 + $0x5f0] sm:$0xff]
    %v8344 = vld [vmem:[#allocation3 + $0x5f8] sm:$0xff]
    %v8345 = vld [vmem:[#allocation9] sm:$0xff]
    %v8346 = vld [vmem:[#allocation9 + $0x8] sm:$0xff]
    %v8347 = vld [vmem:[#allocation9 + $0x10] sm:$0xff]
    %v8348 = vld [vmem:[#allocation9 + $0x18] sm:$0xff]
    %v8349 = vld [vmem:[#allocation9 + $0x20] sm:$0xff]
    %v8350 = vld [vmem:[#allocation9 + $0x28] sm:$0xff]
    %v8351 = vld [vmem:[#allocation9 + $0x30] sm:$0xff]
    %v8352 = vld [vmem:[#allocation9 + $0x38] sm:$0xff]
    %v8353 = vld [vmem:[#allocation9 + $0x40] sm:$0xff]
    %v8354 = vld [vmem:[#allocation9 + $0x48] sm:$0xff]
    %v8355 = vld [vmem:[#allocation9 + $0x50] sm:$0xff]
    %v8356 = vld [vmem:[#allocation9 + $0x58] sm:$0xff]
    %v8357 = vld [vmem:[#allocation9 + $0x60] sm:$0xff]
    %v8358 = vld [vmem:[#allocation9 + $0x68] sm:$0xff]
    %v8359 = vld [vmem:[#allocation9 + $0x70] sm:$0xff]
    %v8360 = vld [vmem:[#allocation9 + $0x78] sm:$0xff]
    %v8361 = vld [vmem:[#allocation9 + $0x80] sm:$0xff]
    %v8362 = vld [vmem:[#allocation9 + $0x88] sm:$0xff]
    %v8363 = vld [vmem:[#allocation9 + $0x90] sm:$0xff]
    %v8364 = vld [vmem:[#allocation9 + $0x98] sm:$0xff]
    %v8365 = vld [vmem:[#allocation9 + $0xa0] sm:$0xff]
    %v8366 = vld [vmem:[#allocation9 + $0xa8] sm:$0xff]
    %v8367 = vld [vmem:[#allocation9 + $0xb0] sm:$0xff]
    %v8368 = vld [vmem:[#allocation9 + $0xb8] sm:$0xff]
    %v8369 = vld [vmem:[#allocation9 + $0xc0] sm:$0xff]
    %v8370 = vld [vmem:[#allocation9 + $0xc8] sm:$0xff]
    %v8371 = vld [vmem:[#allocation9 + $0xd0] sm:$0xff]
    %v8372 = vld [vmem:[#allocation9 + $0xd8] sm:$0xff]
    %v8373 = vld [vmem:[#allocation9 + $0xe0] sm:$0xff]
    %v8374 = vld [vmem:[#allocation9 + $0xe8] sm:$0xff]
    %v8375 = vld [vmem:[#allocation9 + $0xf0] sm:$0xff]
    %v8376 = vld [vmem:[#allocation9 + $0xf8] sm:$0xff]
    %v8377 = vld [vmem:[#allocation9 + $0x100] sm:$0xff]
    %v8378 = vld [vmem:[#allocation9 + $0x108] sm:$0xff]
    %v8379 = vld [vmem:[#allocation9 + $0x110] sm:$0xff]
    %v8380 = vld [vmem:[#allocation9 + $0x118] sm:$0xff]
    %v8382 = vsel %vm74, %v8155, 0
    %v8385 = vsel %vm74, %v8158, 0
    %v8388 = vsel %vm74, %v8161, 0
    %v8391 = vsel %vm74, %v8164, 0
    %v8394 = vsel %vm74, %v8167, 0
    %v8397 = vsel %vm74, %v8170, 0
    %v8400 = vsel %vm74, %v8173, 0
    %v8403 = vsel %vm74, %v8176, 0
    %v8406 = vsel %vm74, %v8179, 0
    %v8409 = vsel %vm74, %v8182, 0
    %v8412 = vsel %vm74, %v8185, 0
    %v8415 = vsel %vm74, %v8188, 0
    %v8418 = vsel %vm74, %v8191, 0
    %v8421 = vsel %vm74, %v8194, 0
    %v8424 = vsel %vm74, %v8197, 0
    %v8427 = vsel %vm74, %v8200, 0
    %v8430 = vsel %vm74, %v8203, 0
    %v8433 = vsel %vm74, %v8206, 0
    %v8436 = vsel %vm74, %v8209, 0
    %v8439 = vsel %vm74, %v8212, 0
    %v8442 = vsel %vm74, %v8215, 0
    %v8445 = vsel %vm74, %v8218, 0
    %v8448 = vsel %vm74, %v8221, 0
    %v8451 = vsel %vm74, %v8224, 0
    %v8454 = vsel %vm74, %v8227, 0
    %v8457 = vsel %vm74, %v8230, 0
    %v8460 = vsel %vm74, %v8233, 0
    %v8463 = vsel %vm74, %v8236, 0
    %v8466 = vsel %vm74, %v8239, 0
    %v8469 = vsel %vm74, %v8242, 0
    %v8472 = vsel %vm74, %v8245, 0
    %v8475 = vsel %vm74, %v8248, 0
    %v8478 = vsel %vm74, %v8251, 0
    %v8481 = vsel %vm74, %v8254, 0
    %v8484 = vsel %vm74, %v8257, 0
    %v8487 = vsel %vm74, %v8260, 0
    %v8490 = vsel %vm74, %v8263, 0
    %v8493 = vsel %vm74, %v8266, 0
    %v8496 = vsel %vm74, %v8269, 0
    %v8499 = vsel %vm74, %v8272, 0
    %v8502 = vsel %vm74, %v8275, 0
    %v8505 = vsel %vm74, %v8278, 0
    %v8508 = vsel %vm74, %v8281, 0
    %v8511 = vsel %vm74, %v8284, 0
    %v8514 = vsel %vm74, %v8287, 0
    %v8517 = vsel %vm74, %v8290, 0
    %v8520 = vsel %vm74, %v8293, 0
    %v8523 = vsel %vm74, %v8296, 0
    %v8526 = vsel %vm74, %v8299, 0
    %v8529 = vsel %vm74, %v8302, 0
    %v8532 = vsel %vm74, %v8305, 0
    %v8535 = vsel %vm74, %v8308, 0
    %v8538 = vsel %vm74, %v8311, 0
    %v8541 = vsel %vm74, %v8314, 0
    %v8544 = vsel %vm74, %v8317, 0
    %v8547 = vsel %vm74, %v8320, 0
    %v8550 = vsel %vm74, %v8323, 0
    %v8553 = vsel %vm74, %v8326, 0
    %v8556 = vsel %vm74, %v8329, 0
    %v8559 = vsel %vm74, %v8332, 0
    %v8562 = vsel %vm74, %v8335, 0
    %v8565 = vsel %vm74, %v8338, 0
    %v8568 = vsel %vm74, %v8341, 0
    %v8571 = vsel %vm74, %v8344, 0
    %8573 = vmatpush.msra.mxu0 %v8360
    %8574 = vmatpush.msra.mxu0 %v8359
    %8575 = vmatpush.msra.mxu0 %v8358
    %8576 = vmatpush.msra.mxu0 %v8357
    %8577 = vmatpush.msra.mxu0 %v8356
    %8578 = vmatpush.msra.mxu0 %v8355
    %8579 = vmatpush.msra.mxu0 %v8354
    %8580 = vmatpush.msra.mxu0 %v8353
    %8581 = vmatpush.msra.mxu0 %v8352
    %8582 = vmatpush.msra.mxu0 %v8351
    %8583 = vmatpush.msra.mxu0 %v8350
    %8584 = vmatpush.msra.mxu0 %v8349
    %8585 = vmatpush.msra.mxu0 %v8348
    %8586 = vmatpush.msra.mxu0 %v8347
    %8587 = vmatpush.msra.mxu0 %v8346
    %8588 = vmatpush.msra.mxu0 %v8345
    %8589 = vmatmul.f32.gmra.mxu0 %v8153
    %v8590 = vpop.f32.mrf.mxu0
    %v8591 = vadd.f32 0.0, %v8590
    %8592 = vmatmul.f32.gmra.mxu0 %v8156
    %v8593 = vpop.f32.mrf.mxu0
    %v8594 = vadd.f32 0.0, %v8593
    %8595 = vmatmul.f32.gmra.mxu0 %v8159
    %v8596 = vpop.f32.mrf.mxu0
    %v8597 = vadd.f32 0.0, %v8596
    %8598 = vmatmul.f32.gmra.mxu0 %v8162
    %v8599 = vpop.f32.mrf.mxu0
    %v8600 = vadd.f32 0.0, %v8599
    %8601 = vmatmul.f32.gmra.mxu0 %v8165
    %v8602 = vpop.f32.mrf.mxu0
    %v8603 = vadd.f32 0.0, %v8602
    %8604 = vmatmul.f32.gmra.mxu0 %v8168
    %v8605 = vpop.f32.mrf.mxu0
    %v8606 = vadd.f32 0.0, %v8605
    %8607 = vmatmul.f32.gmra.mxu0 %v8171
    %v8608 = vpop.f32.mrf.mxu0
    %v8609 = vadd.f32 0.0, %v8608
    %8610 = vmatmul.f32.gmra.mxu0 %v8174
    %v8611 = vpop.f32.mrf.mxu0
    %v8612 = vadd.f32 0.0, %v8611
    %8613 = vmatmul.f32.gmra.mxu0 %v8177
    %v8614 = vpop.f32.mrf.mxu0
    %v8615 = vadd.f32 0.0, %v8614
    %8616 = vmatmul.f32.gmra.mxu0 %v8180
    %v8617 = vpop.f32.mrf.mxu0
    %v8618 = vadd.f32 0.0, %v8617
    %8619 = vmatmul.f32.gmra.mxu0 %v8183
    %v8620 = vpop.f32.mrf.mxu0
    %v8621 = vadd.f32 0.0, %v8620
    %8622 = vmatmul.f32.gmra.mxu0 %v8186
    %v8623 = vpop.f32.mrf.mxu0
    %v8624 = vadd.f32 0.0, %v8623
    %8625 = vmatmul.f32.gmra.mxu0 %v8189
    %v8626 = vpop.f32.mrf.mxu0
    %v8627 = vadd.f32 0.0, %v8626
    %8628 = vmatmul.f32.gmra.mxu0 %v8192
    %v8629 = vpop.f32.mrf.mxu0
    %v8630 = vadd.f32 0.0, %v8629
    %8631 = vmatmul.f32.gmra.mxu0 %v8195
    %v8632 = vpop.f32.mrf.mxu0
    %v8633 = vadd.f32 0.0, %v8632
    %8634 = vmatmul.f32.gmra.mxu0 %v8198
    %v8635 = vpop.f32.mrf.mxu0
    %v8636 = vadd.f32 0.0, %v8635
    %8637 = vmatmul.f32.gmra.mxu0 %v8201
    %v8638 = vpop.f32.mrf.mxu0
    %v8639 = vadd.f32 0.0, %v8638
    %8640 = vmatmul.f32.gmra.mxu0 %v8204
    %v8641 = vpop.f32.mrf.mxu0
    %v8642 = vadd.f32 0.0, %v8641
    %8643 = vmatmul.f32.gmra.mxu0 %v8207
    %v8644 = vpop.f32.mrf.mxu0
    %v8645 = vadd.f32 0.0, %v8644
    %8646 = vmatmul.f32.gmra.mxu0 %v8210
    %v8647 = vpop.f32.mrf.mxu0
    %v8648 = vadd.f32 0.0, %v8647
    %8649 = vmatmul.f32.gmra.mxu0 %v8213
    %v8650 = vpop.f32.mrf.mxu0
    %v8651 = vadd.f32 0.0, %v8650
    %8652 = vmatmul.f32.gmra.mxu0 %v8216
    %v8653 = vpop.f32.mrf.mxu0
    %v8654 = vadd.f32 0.0, %v8653
    %8655 = vmatmul.f32.gmra.mxu0 %v8219
    %v8656 = vpop.f32.mrf.mxu0
    %v8657 = vadd.f32 0.0, %v8656
    %8658 = vmatmul.f32.gmra.mxu0 %v8222
    %v8659 = vpop.f32.mrf.mxu0
    %v8660 = vadd.f32 0.0, %v8659
    %8661 = vmatmul.f32.gmra.mxu0 %v8225
    %v8662 = vpop.f32.mrf.mxu0
    %v8663 = vadd.f32 0.0, %v8662
    %8664 = vmatmul.f32.gmra.mxu0 %v8228
    %v8665 = vpop.f32.mrf.mxu0
    %v8666 = vadd.f32 0.0, %v8665
    %8667 = vmatmul.f32.gmra.mxu0 %v8231
    %v8668 = vpop.f32.mrf.mxu0
    %v8669 = vadd.f32 0.0, %v8668
    %8670 = vmatmul.f32.gmra.mxu0 %v8234
    %v8671 = vpop.f32.mrf.mxu0
    %v8672 = vadd.f32 0.0, %v8671
    %8673 = vmatmul.f32.gmra.mxu0 %v8237
    %v8674 = vpop.f32.mrf.mxu0
    %v8675 = vadd.f32 0.0, %v8674
    %8676 = vmatmul.f32.gmra.mxu0 %v8240
    %v8677 = vpop.f32.mrf.mxu0
    %v8678 = vadd.f32 0.0, %v8677
    %8679 = vmatmul.f32.gmra.mxu0 %v8243
    %v8680 = vpop.f32.mrf.mxu0
    %v8681 = vadd.f32 0.0, %v8680
    %8682 = vmatmul.f32.gmra.mxu0 %v8246
    %v8683 = vpop.f32.mrf.mxu0
    %v8684 = vadd.f32 0.0, %v8683
    %8685 = vmatmul.f32.gmra.mxu0 %v8249
    %v8686 = vpop.f32.mrf.mxu0
    %v8687 = vadd.f32 0.0, %v8686
    %8688 = vmatmul.f32.gmra.mxu0 %v8252
    %v8689 = vpop.f32.mrf.mxu0
    %v8690 = vadd.f32 0.0, %v8689
    %8691 = vmatmul.f32.gmra.mxu0 %v8255
    %v8692 = vpop.f32.mrf.mxu0
    %v8693 = vadd.f32 0.0, %v8692
    %8694 = vmatmul.f32.gmra.mxu0 %v8258
    %v8695 = vpop.f32.mrf.mxu0
    %v8696 = vadd.f32 0.0, %v8695
    %8697 = vmatmul.f32.gmra.mxu0 %v8261
    %v8698 = vpop.f32.mrf.mxu0
    %v8699 = vadd.f32 0.0, %v8698
    %8700 = vmatmul.f32.gmra.mxu0 %v8264
    %v8701 = vpop.f32.mrf.mxu0
    %v8702 = vadd.f32 0.0, %v8701
    %8703 = vmatmul.f32.gmra.mxu0 %v8267
    %v8704 = vpop.f32.mrf.mxu0
    %v8705 = vadd.f32 0.0, %v8704
    %8706 = vmatmul.f32.gmra.mxu0 %v8270
    %v8707 = vpop.f32.mrf.mxu0
    %v8708 = vadd.f32 0.0, %v8707
    %8709 = vmatmul.f32.gmra.mxu0 %v8273
    %v8710 = vpop.f32.mrf.mxu0
    %v8711 = vadd.f32 0.0, %v8710
    %8712 = vmatmul.f32.gmra.mxu0 %v8276
    %v8713 = vpop.f32.mrf.mxu0
    %v8714 = vadd.f32 0.0, %v8713
    %8715 = vmatmul.f32.gmra.mxu0 %v8279
    %v8716 = vpop.f32.mrf.mxu0
    %v8717 = vadd.f32 0.0, %v8716
    %8718 = vmatmul.f32.gmra.mxu0 %v8282
    %v8719 = vpop.f32.mrf.mxu0
    %v8720 = vadd.f32 0.0, %v8719
    %8721 = vmatmul.f32.gmra.mxu0 %v8285
    %v8722 = vpop.f32.mrf.mxu0
    %v8723 = vadd.f32 0.0, %v8722
    %8724 = vmatmul.f32.gmra.mxu0 %v8288
    %v8725 = vpop.f32.mrf.mxu0
    %v8726 = vadd.f32 0.0, %v8725
    %8727 = vmatmul.f32.gmra.mxu0 %v8291
    %v8728 = vpop.f32.mrf.mxu0
    %v8729 = vadd.f32 0.0, %v8728
    %8730 = vmatmul.f32.gmra.mxu0 %v8294
    %v8731 = vpop.f32.mrf.mxu0
    %v8732 = vadd.f32 0.0, %v8731
    %8733 = vmatmul.f32.gmra.mxu0 %v8297
    %v8734 = vpop.f32.mrf.mxu0
    %v8735 = vadd.f32 0.0, %v8734
    %8736 = vmatmul.f32.gmra.mxu0 %v8300
    %v8737 = vpop.f32.mrf.mxu0
    %v8738 = vadd.f32 0.0, %v8737
    %8739 = vmatmul.f32.gmra.mxu0 %v8303
    %v8740 = vpop.f32.mrf.mxu0
    %v8741 = vadd.f32 0.0, %v8740
    %8742 = vmatmul.f32.gmra.mxu0 %v8306
    %v8743 = vpop.f32.mrf.mxu0
    %v8744 = vadd.f32 0.0, %v8743
    %8745 = vmatmul.f32.gmra.mxu0 %v8309
    %v8746 = vpop.f32.mrf.mxu0
    %v8747 = vadd.f32 0.0, %v8746
    %8748 = vmatmul.f32.gmra.mxu0 %v8312
    %v8749 = vpop.f32.mrf.mxu0
    %v8750 = vadd.f32 0.0, %v8749
    %8751 = vmatmul.f32.gmra.mxu0 %v8315
    %v8752 = vpop.f32.mrf.mxu0
    %v8753 = vadd.f32 0.0, %v8752
    %8754 = vmatmul.f32.gmra.mxu0 %v8318
    %v8755 = vpop.f32.mrf.mxu0
    %v8756 = vadd.f32 0.0, %v8755
    %8757 = vmatmul.f32.gmra.mxu0 %v8321
    %v8758 = vpop.f32.mrf.mxu0
    %v8759 = vadd.f32 0.0, %v8758
    %8760 = vmatmul.f32.gmra.mxu0 %v8324
    %v8761 = vpop.f32.mrf.mxu0
    %v8762 = vadd.f32 0.0, %v8761
    %8763 = vmatmul.f32.gmra.mxu0 %v8327
    %v8764 = vpop.f32.mrf.mxu0
    %v8765 = vadd.f32 0.0, %v8764
    %8766 = vmatmul.f32.gmra.mxu0 %v8330
    %v8767 = vpop.f32.mrf.mxu0
    %v8768 = vadd.f32 0.0, %v8767
    %8769 = vmatmul.f32.gmra.mxu0 %v8333
    %v8770 = vpop.f32.mrf.mxu0
    %v8771 = vadd.f32 0.0, %v8770
    %8772 = vmatmul.f32.gmra.mxu0 %v8336
    %v8773 = vpop.f32.mrf.mxu0
    %v8774 = vadd.f32 0.0, %v8773
    %8775 = vmatmul.f32.gmra.mxu0 %v8339
    %v8776 = vpop.f32.mrf.mxu0
    %v8777 = vadd.f32 0.0, %v8776
    %8778 = vmatmul.f32.gmra.mxu0 %v8342
    %v8779 = vpop.f32.mrf.mxu0
    %v8780 = vadd.f32 0.0, %v8779
    %8781 = vdwg.mxu0
    %8782 = vmatpush.msra.mxu0 %v8376
    %8783 = vmatpush.msra.mxu0 %v8375
    %8784 = vmatpush.msra.mxu0 %v8374
    %8785 = vmatpush.msra.mxu0 %v8373
    %8786 = vmatpush.msra.mxu0 %v8372
    %8787 = vmatpush.msra.mxu0 %v8371
    %8788 = vmatpush.msra.mxu0 %v8370
    %8789 = vmatpush.msra.mxu0 %v8369
    %8790 = vmatpush.msra.mxu0 %v8368
    %8791 = vmatpush.msra.mxu0 %v8367
    %8792 = vmatpush.msra.mxu0 %v8366
    %8793 = vmatpush.msra.mxu0 %v8365
    %8794 = vmatpush.msra.mxu0 %v8364
    %8795 = vmatpush.msra.mxu0 %v8363
    %8796 = vmatpush.msra.mxu0 %v8362
    %8797 = vmatpush.msra.mxu0 %v8361
    %8798 = vmatmul.f32.gmra.mxu0 %v8154
    %v8799 = vpop.f32.mrf.mxu0
    %v8800 = vadd.f32 %v8591, %v8799
    %8801 = vmatmul.f32.gmra.mxu0 %v8157
    %v8802 = vpop.f32.mrf.mxu0
    %v8803 = vadd.f32 %v8594, %v8802
    %8804 = vmatmul.f32.gmra.mxu0 %v8160
    %v8805 = vpop.f32.mrf.mxu0
    %v8806 = vadd.f32 %v8597, %v8805
    %8807 = vmatmul.f32.gmra.mxu0 %v8163
    %v8808 = vpop.f32.mrf.mxu0
    %v8809 = vadd.f32 %v8600, %v8808
    %8810 = vmatmul.f32.gmra.mxu0 %v8166
    %v8811 = vpop.f32.mrf.mxu0
    %v8812 = vadd.f32 %v8603, %v8811
    %8813 = vmatmul.f32.gmra.mxu0 %v8169
    %v8814 = vpop.f32.mrf.mxu0
    %v8815 = vadd.f32 %v8606, %v8814
    %8816 = vmatmul.f32.gmra.mxu0 %v8172
    %v8817 = vpop.f32.mrf.mxu0
    %v8818 = vadd.f32 %v8609, %v8817
    %8819 = vmatmul.f32.gmra.mxu0 %v8175
    %v8820 = vpop.f32.mrf.mxu0
    %v8821 = vadd.f32 %v8612, %v8820
    %8822 = vmatmul.f32.gmra.mxu0 %v8178
    %v8823 = vpop.f32.mrf.mxu0
    %v8824 = vadd.f32 %v8615, %v8823
    %8825 = vmatmul.f32.gmra.mxu0 %v8181
    %v8826 = vpop.f32.mrf.mxu0
    %v8827 = vadd.f32 %v8618, %v8826
    %8828 = vmatmul.f32.gmra.mxu0 %v8184
    %v8829 = vpop.f32.mrf.mxu0
    %v8830 = vadd.f32 %v8621, %v8829
    %8831 = vmatmul.f32.gmra.mxu0 %v8187
    %v8832 = vpop.f32.mrf.mxu0
    %v8833 = vadd.f32 %v8624, %v8832
    %8834 = vmatmul.f32.gmra.mxu0 %v8190
    %v8835 = vpop.f32.mrf.mxu0
    %v8836 = vadd.f32 %v8627, %v8835
    %8837 = vmatmul.f32.gmra.mxu0 %v8193
    %v8838 = vpop.f32.mrf.mxu0
    %v8839 = vadd.f32 %v8630, %v8838
    %8840 = vmatmul.f32.gmra.mxu0 %v8196
    %v8841 = vpop.f32.mrf.mxu0
    %v8842 = vadd.f32 %v8633, %v8841
    %8843 = vmatmul.f32.gmra.mxu0 %v8199
    %v8844 = vpop.f32.mrf.mxu0
    %v8845 = vadd.f32 %v8636, %v8844
    %8846 = vmatmul.f32.gmra.mxu0 %v8202
    %v8847 = vpop.f32.mrf.mxu0
    %v8848 = vadd.f32 %v8639, %v8847
    %8849 = vmatmul.f32.gmra.mxu0 %v8205
    %v8850 = vpop.f32.mrf.mxu0
    %v8851 = vadd.f32 %v8642, %v8850
    %8852 = vmatmul.f32.gmra.mxu0 %v8208
    %v8853 = vpop.f32.mrf.mxu0
    %v8854 = vadd.f32 %v8645, %v8853
    %8855 = vmatmul.f32.gmra.mxu0 %v8211
    %v8856 = vpop.f32.mrf.mxu0
    %v8857 = vadd.f32 %v8648, %v8856
    %8858 = vmatmul.f32.gmra.mxu0 %v8214
    %v8859 = vpop.f32.mrf.mxu0
    %v8860 = vadd.f32 %v8651, %v8859
    %8861 = vmatmul.f32.gmra.mxu0 %v8217
    %v8862 = vpop.f32.mrf.mxu0
    %v8863 = vadd.f32 %v8654, %v8862
    %8864 = vmatmul.f32.gmra.mxu0 %v8220
    %v8865 = vpop.f32.mrf.mxu0
    %v8866 = vadd.f32 %v8657, %v8865
    %8867 = vmatmul.f32.gmra.mxu0 %v8223
    %v8868 = vpop.f32.mrf.mxu0
    %v8869 = vadd.f32 %v8660, %v8868
    %8870 = vmatmul.f32.gmra.mxu0 %v8226
    %v8871 = vpop.f32.mrf.mxu0
    %v8872 = vadd.f32 %v8663, %v8871
    %8873 = vmatmul.f32.gmra.mxu0 %v8229
    %v8874 = vpop.f32.mrf.mxu0
    %v8875 = vadd.f32 %v8666, %v8874
    %8876 = vmatmul.f32.gmra.mxu0 %v8232
    %v8877 = vpop.f32.mrf.mxu0
    %v8878 = vadd.f32 %v8669, %v8877
    %8879 = vmatmul.f32.gmra.mxu0 %v8235
    %v8880 = vpop.f32.mrf.mxu0
    %v8881 = vadd.f32 %v8672, %v8880
    %8882 = vmatmul.f32.gmra.mxu0 %v8238
    %v8883 = vpop.f32.mrf.mxu0
    %v8884 = vadd.f32 %v8675, %v8883
    %8885 = vmatmul.f32.gmra.mxu0 %v8241
    %v8886 = vpop.f32.mrf.mxu0
    %v8887 = vadd.f32 %v8678, %v8886
    %8888 = vmatmul.f32.gmra.mxu0 %v8244
    %v8889 = vpop.f32.mrf.mxu0
    %v8890 = vadd.f32 %v8681, %v8889
    %8891 = vmatmul.f32.gmra.mxu0 %v8247
    %v8892 = vpop.f32.mrf.mxu0
    %v8893 = vadd.f32 %v8684, %v8892
    %8894 = vmatmul.f32.gmra.mxu0 %v8250
    %v8895 = vpop.f32.mrf.mxu0
    %v8896 = vadd.f32 %v8687, %v8895
    %8897 = vmatmul.f32.gmra.mxu0 %v8253
    %v8898 = vpop.f32.mrf.mxu0
    %v8899 = vadd.f32 %v8690, %v8898
    %8900 = vmatmul.f32.gmra.mxu0 %v8256
    %v8901 = vpop.f32.mrf.mxu0
    %v8902 = vadd.f32 %v8693, %v8901
    %8903 = vmatmul.f32.gmra.mxu0 %v8259
    %v8904 = vpop.f32.mrf.mxu0
    %v8905 = vadd.f32 %v8696, %v8904
    %8906 = vmatmul.f32.gmra.mxu0 %v8262
    %v8907 = vpop.f32.mrf.mxu0
    %v8908 = vadd.f32 %v8699, %v8907
    %8909 = vmatmul.f32.gmra.mxu0 %v8265
    %v8910 = vpop.f32.mrf.mxu0
    %v8911 = vadd.f32 %v8702, %v8910
    %8912 = vmatmul.f32.gmra.mxu0 %v8268
    %v8913 = vpop.f32.mrf.mxu0
    %v8914 = vadd.f32 %v8705, %v8913
    %8915 = vmatmul.f32.gmra.mxu0 %v8271
    %v8916 = vpop.f32.mrf.mxu0
    %v8917 = vadd.f32 %v8708, %v8916
    %8918 = vmatmul.f32.gmra.mxu0 %v8274
    %v8919 = vpop.f32.mrf.mxu0
    %v8920 = vadd.f32 %v8711, %v8919
    %8921 = vmatmul.f32.gmra.mxu0 %v8277
    %v8922 = vpop.f32.mrf.mxu0
    %v8923 = vadd.f32 %v8714, %v8922
    %8924 = vmatmul.f32.gmra.mxu0 %v8280
    %v8925 = vpop.f32.mrf.mxu0
    %v8926 = vadd.f32 %v8717, %v8925
    %8927 = vmatmul.f32.gmra.mxu0 %v8283
    %v8928 = vpop.f32.mrf.mxu0
    %v8929 = vadd.f32 %v8720, %v8928
    %8930 = vmatmul.f32.gmra.mxu0 %v8286
    %v8931 = vpop.f32.mrf.mxu0
    %v8932 = vadd.f32 %v8723, %v8931
    %8933 = vmatmul.f32.gmra.mxu0 %v8289
    %v8934 = vpop.f32.mrf.mxu0
    %v8935 = vadd.f32 %v8726, %v8934
    %8936 = vmatmul.f32.gmra.mxu0 %v8292
    %v8937 = vpop.f32.mrf.mxu0
    %v8938 = vadd.f32 %v8729, %v8937
    %8939 = vmatmul.f32.gmra.mxu0 %v8295
    %v8940 = vpop.f32.mrf.mxu0
    %v8941 = vadd.f32 %v8732, %v8940
    %8942 = vmatmul.f32.gmra.mxu0 %v8298
    %v8943 = vpop.f32.mrf.mxu0
    %v8944 = vadd.f32 %v8735, %v8943
    %8945 = vmatmul.f32.gmra.mxu0 %v8301
    %v8946 = vpop.f32.mrf.mxu0
    %v8947 = vadd.f32 %v8738, %v8946
    %8948 = vmatmul.f32.gmra.mxu0 %v8304
    %v8949 = vpop.f32.mrf.mxu0
    %v8950 = vadd.f32 %v8741, %v8949
    %8951 = vmatmul.f32.gmra.mxu0 %v8307
    %v8952 = vpop.f32.mrf.mxu0
    %v8953 = vadd.f32 %v8744, %v8952
    %8954 = vmatmul.f32.gmra.mxu0 %v8310
    %v8955 = vpop.f32.mrf.mxu0
    %v8956 = vadd.f32 %v8747, %v8955
    %8957 = vmatmul.f32.gmra.mxu0 %v8313
    %v8958 = vpop.f32.mrf.mxu0
    %v8959 = vadd.f32 %v8750, %v8958
    %8960 = vmatmul.f32.gmra.mxu0 %v8316
    %v8961 = vpop.f32.mrf.mxu0
    %v8962 = vadd.f32 %v8753, %v8961
    %8963 = vmatmul.f32.gmra.mxu0 %v8319
    %v8964 = vpop.f32.mrf.mxu0
    %v8965 = vadd.f32 %v8756, %v8964
    %8966 = vmatmul.f32.gmra.mxu0 %v8322
    %v8967 = vpop.f32.mrf.mxu0
    %v8968 = vadd.f32 %v8759, %v8967
    %8969 = vmatmul.f32.gmra.mxu0 %v8325
    %v8970 = vpop.f32.mrf.mxu0
    %v8971 = vadd.f32 %v8762, %v8970
    %8972 = vmatmul.f32.gmra.mxu0 %v8328
    %v8973 = vpop.f32.mrf.mxu0
    %v8974 = vadd.f32 %v8765, %v8973
    %8975 = vmatmul.f32.gmra.mxu0 %v8331
    %v8976 = vpop.f32.mrf.mxu0
    %v8977 = vadd.f32 %v8768, %v8976
    %8978 = vmatmul.f32.gmra.mxu0 %v8334
    %v8979 = vpop.f32.mrf.mxu0
    %v8980 = vadd.f32 %v8771, %v8979
    %8981 = vmatmul.f32.gmra.mxu0 %v8337
    %v8982 = vpop.f32.mrf.mxu0
    %v8983 = vadd.f32 %v8774, %v8982
    %8984 = vmatmul.f32.gmra.mxu0 %v8340
    %v8985 = vpop.f32.mrf.mxu0
    %v8986 = vadd.f32 %v8777, %v8985
    %8987 = vmatmul.f32.gmra.mxu0 %v8343
    %v8988 = vpop.f32.mrf.mxu0
    %v8989 = vadd.f32 %v8780, %v8988
    %8990 = vdwg.mxu0
    %8991 = vmatpush.msra.mxu0 0.0
    %8992 = vmatpush.msra.mxu0 0.0
    %8993 = vmatpush.msra.mxu0 0.0
    %8994 = vmatpush.msra.mxu0 0.0
    %8995 = vmatpush.msra.mxu0 0.0
    %8996 = vmatpush.msra.mxu0 0.0
    %8997 = vmatpush.msra.mxu0 0.0
    %8998 = vmatpush.msra.mxu0 0.0
    %8999 = vmatpush.msra.mxu0 0.0
    %9000 = vmatpush.msra.mxu0 0.0
    %9001 = vmatpush.msra.mxu0 0.0
    %9002 = vmatpush.msra.mxu0 0.0
    %9003 = vmatpush.msra.mxu0 %v8380
    %9004 = vmatpush.msra.mxu0 %v8379
    %9005 = vmatpush.msra.mxu0 %v8378
    %9006 = vmatpush.msra.mxu0 %v8377
    %9007 = vmatmul.f32.gmra.mxu0 %v8382
    %v9008 = vpop.f32.mrf.mxu0
    %v9009 = vadd.f32 %v8800, %v9008
    %9010 = vmatmul.f32.gmra.mxu0 %v8385
    %v9011 = vpop.f32.mrf.mxu0
    %v9012 = vadd.f32 %v8803, %v9011
    %9013 = vmatmul.f32.gmra.mxu0 %v8388
    %v9014 = vpop.f32.mrf.mxu0
    %v9015 = vadd.f32 %v8806, %v9014
    %9016 = vmatmul.f32.gmra.mxu0 %v8391
    %v9017 = vpop.f32.mrf.mxu0
    %v9018 = vadd.f32 %v8809, %v9017
    %9019 = vmatmul.f32.gmra.mxu0 %v8394
    %v9020 = vpop.f32.mrf.mxu0
    %v9021 = vadd.f32 %v8812, %v9020
    %9022 = vmatmul.f32.gmra.mxu0 %v8397
    %v9023 = vpop.f32.mrf.mxu0
    %v9024 = vadd.f32 %v8815, %v9023
    %9025 = vmatmul.f32.gmra.mxu0 %v8400
    %v9026 = vpop.f32.mrf.mxu0
    %v9027 = vadd.f32 %v8818, %v9026
    %9028 = vmatmul.f32.gmra.mxu0 %v8403
    %v9029 = vpop.f32.mrf.mxu0
    %v9030 = vadd.f32 %v8821, %v9029
    %9031 = vmatmul.f32.gmra.mxu0 %v8406
    %v9032 = vpop.f32.mrf.mxu0
    %v9033 = vadd.f32 %v8824, %v9032
    %9034 = vmatmul.f32.gmra.mxu0 %v8409
    %v9035 = vpop.f32.mrf.mxu0
    %v9036 = vadd.f32 %v8827, %v9035
    %9037 = vmatmul.f32.gmra.mxu0 %v8412
    %v9038 = vpop.f32.mrf.mxu0
    %v9039 = vadd.f32 %v8830, %v9038
    %9040 = vmatmul.f32.gmra.mxu0 %v8415
    %v9041 = vpop.f32.mrf.mxu0
    %v9042 = vadd.f32 %v8833, %v9041
    %9043 = vmatmul.f32.gmra.mxu0 %v8418
    %v9044 = vpop.f32.mrf.mxu0
    %v9045 = vadd.f32 %v8836, %v9044
    %9046 = vmatmul.f32.gmra.mxu0 %v8421
    %v9047 = vpop.f32.mrf.mxu0
    %v9048 = vadd.f32 %v8839, %v9047
    %9049 = vmatmul.f32.gmra.mxu0 %v8424
    %v9050 = vpop.f32.mrf.mxu0
    %v9051 = vadd.f32 %v8842, %v9050
    %9052 = vmatmul.f32.gmra.mxu0 %v8427
    %v9053 = vpop.f32.mrf.mxu0
    %v9054 = vadd.f32 %v8845, %v9053
    %9055 = vmatmul.f32.gmra.mxu0 %v8430
    %v9056 = vpop.f32.mrf.mxu0
    %v9057 = vadd.f32 %v8848, %v9056
    %9058 = vmatmul.f32.gmra.mxu0 %v8433
    %v9059 = vpop.f32.mrf.mxu0
    %v9060 = vadd.f32 %v8851, %v9059
    %9061 = vmatmul.f32.gmra.mxu0 %v8436
    %v9062 = vpop.f32.mrf.mxu0
    %v9063 = vadd.f32 %v8854, %v9062
    %9064 = vmatmul.f32.gmra.mxu0 %v8439
    %v9065 = vpop.f32.mrf.mxu0
    %v9066 = vadd.f32 %v8857, %v9065
    %9067 = vmatmul.f32.gmra.mxu0 %v8442
    %v9068 = vpop.f32.mrf.mxu0
    %v9069 = vadd.f32 %v8860, %v9068
    %9070 = vmatmul.f32.gmra.mxu0 %v8445
    %v9071 = vpop.f32.mrf.mxu0
    %v9072 = vadd.f32 %v8863, %v9071
    %9073 = vmatmul.f32.gmra.mxu0 %v8448
    %v9074 = vpop.f32.mrf.mxu0
    %v9075 = vadd.f32 %v8866, %v9074
    %9076 = vmatmul.f32.gmra.mxu0 %v8451
    %v9077 = vpop.f32.mrf.mxu0
    %v9078 = vadd.f32 %v8869, %v9077
    %9079 = vmatmul.f32.gmra.mxu0 %v8454
    %v9080 = vpop.f32.mrf.mxu0
    %v9081 = vadd.f32 %v8872, %v9080
    %9082 = vmatmul.f32.gmra.mxu0 %v8457
    %v9083 = vpop.f32.mrf.mxu0
    %v9084 = vadd.f32 %v8875, %v9083
    %9085 = vmatmul.f32.gmra.mxu0 %v8460
    %v9086 = vpop.f32.mrf.mxu0
    %v9087 = vadd.f32 %v8878, %v9086
    %9088 = vmatmul.f32.gmra.mxu0 %v8463
    %v9089 = vpop.f32.mrf.mxu0
    %v9090 = vadd.f32 %v8881, %v9089
    %9091 = vmatmul.f32.gmra.mxu0 %v8466
    %v9092 = vpop.f32.mrf.mxu0
    %v9093 = vadd.f32 %v8884, %v9092
    %9094 = vmatmul.f32.gmra.mxu0 %v8469
    %v9095 = vpop.f32.mrf.mxu0
    %v9096 = vadd.f32 %v8887, %v9095
    %9097 = vmatmul.f32.gmra.mxu0 %v8472
    %v9098 = vpop.f32.mrf.mxu0
    %v9099 = vadd.f32 %v8890, %v9098
    %9100 = vmatmul.f32.gmra.mxu0 %v8475
    %v9101 = vpop.f32.mrf.mxu0
    %v9102 = vadd.f32 %v8893, %v9101
    %9103 = vmatmul.f32.gmra.mxu0 %v8478
    %v9104 = vpop.f32.mrf.mxu0
    %v9105 = vadd.f32 %v8896, %v9104
    %9106 = vmatmul.f32.gmra.mxu0 %v8481
    %v9107 = vpop.f32.mrf.mxu0
    %v9108 = vadd.f32 %v8899, %v9107
    %9109 = vmatmul.f32.gmra.mxu0 %v8484
    %v9110 = vpop.f32.mrf.mxu0
    %v9111 = vadd.f32 %v8902, %v9110
    %9112 = vmatmul.f32.gmra.mxu0 %v8487
    %v9113 = vpop.f32.mrf.mxu0
    %v9114 = vadd.f32 %v8905, %v9113
    %9115 = vmatmul.f32.gmra.mxu0 %v8490
    %v9116 = vpop.f32.mrf.mxu0
    %v9117 = vadd.f32 %v8908, %v9116
    %9118 = vmatmul.f32.gmra.mxu0 %v8493
    %v9119 = vpop.f32.mrf.mxu0
    %v9120 = vadd.f32 %v8911, %v9119
    %9121 = vmatmul.f32.gmra.mxu0 %v8496
    %v9122 = vpop.f32.mrf.mxu0
    %v9123 = vadd.f32 %v8914, %v9122
    %9124 = vmatmul.f32.gmra.mxu0 %v8499
    %v9125 = vpop.f32.mrf.mxu0
    %v9126 = vadd.f32 %v8917, %v9125
    %9127 = vmatmul.f32.gmra.mxu0 %v8502
    %v9128 = vpop.f32.mrf.mxu0
    %v9129 = vadd.f32 %v8920, %v9128
    %9130 = vmatmul.f32.gmra.mxu0 %v8505
    %v9131 = vpop.f32.mrf.mxu0
    %v9132 = vadd.f32 %v8923, %v9131
    %9133 = vmatmul.f32.gmra.mxu0 %v8508
    %v9134 = vpop.f32.mrf.mxu0
    %v9135 = vadd.f32 %v8926, %v9134
    %9136 = vmatmul.f32.gmra.mxu0 %v8511
    %v9137 = vpop.f32.mrf.mxu0
    %v9138 = vadd.f32 %v8929, %v9137
    %9139 = vmatmul.f32.gmra.mxu0 %v8514
    %v9140 = vpop.f32.mrf.mxu0
    %v9141 = vadd.f32 %v8932, %v9140
    %9142 = vmatmul.f32.gmra.mxu0 %v8517
    %v9143 = vpop.f32.mrf.mxu0
    %v9144 = vadd.f32 %v8935, %v9143
    %9145 = vmatmul.f32.gmra.mxu0 %v8520
    %v9146 = vpop.f32.mrf.mxu0
    %v9147 = vadd.f32 %v8938, %v9146
    %9148 = vmatmul.f32.gmra.mxu0 %v8523
    %v9149 = vpop.f32.mrf.mxu0
    %v9150 = vadd.f32 %v8941, %v9149
    %9151 = vmatmul.f32.gmra.mxu0 %v8526
    %v9152 = vpop.f32.mrf.mxu0
    %v9153 = vadd.f32 %v8944, %v9152
    %9154 = vmatmul.f32.gmra.mxu0 %v8529
    %v9155 = vpop.f32.mrf.mxu0
    %v9156 = vadd.f32 %v8947, %v9155
    %9157 = vmatmul.f32.gmra.mxu0 %v8532
    %v9158 = vpop.f32.mrf.mxu0
    %v9159 = vadd.f32 %v8950, %v9158
    %9160 = vmatmul.f32.gmra.mxu0 %v8535
    %v9161 = vpop.f32.mrf.mxu0
    %v9162 = vadd.f32 %v8953, %v9161
    %9163 = vmatmul.f32.gmra.mxu0 %v8538
    %v9164 = vpop.f32.mrf.mxu0
    %v9165 = vadd.f32 %v8956, %v9164
    %9166 = vmatmul.f32.gmra.mxu0 %v8541
    %v9167 = vpop.f32.mrf.mxu0
    %v9168 = vadd.f32 %v8959, %v9167
    %9169 = vmatmul.f32.gmra.mxu0 %v8544
    %v9170 = vpop.f32.mrf.mxu0
    %v9171 = vadd.f32 %v8962, %v9170
    %9172 = vmatmul.f32.gmra.mxu0 %v8547
    %v9173 = vpop.f32.mrf.mxu0
    %v9174 = vadd.f32 %v8965, %v9173
    %9175 = vmatmul.f32.gmra.mxu0 %v8550
    %v9176 = vpop.f32.mrf.mxu0
    %v9177 = vadd.f32 %v8968, %v9176
    %9178 = vmatmul.f32.gmra.mxu0 %v8553
    %v9179 = vpop.f32.mrf.mxu0
    %v9180 = vadd.f32 %v8971, %v9179
    %9181 = vmatmul.f32.gmra.mxu0 %v8556
    %v9182 = vpop.f32.mrf.mxu0
    %v9183 = vadd.f32 %v8974, %v9182
    %9184 = vmatmul.f32.gmra.mxu0 %v8559
    %v9185 = vpop.f32.mrf.mxu0
    %v9186 = vadd.f32 %v8977, %v9185
    %9187 = vmatmul.f32.gmra.mxu0 %v8562
    %v9188 = vpop.f32.mrf.mxu0
    %v9189 = vadd.f32 %v8980, %v9188
    %9190 = vmatmul.f32.gmra.mxu0 %v8565
    %v9191 = vpop.f32.mrf.mxu0
    %v9192 = vadd.f32 %v8983, %v9191
    %9193 = vmatmul.f32.gmra.mxu0 %v8568
    %v9194 = vpop.f32.mrf.mxu0
    %v9195 = vadd.f32 %v8986, %v9194
    %9196 = vmatmul.f32.gmra.mxu0 %v8571
    %v9197 = vpop.f32.mrf.mxu0
    %v9198 = vadd.f32 %v8989, %v9197
    %9199 = vdwg.mxu0
    %v9200 = vadd.f32 %v184, %v9009
    %v9201 = vadd.f32 %v185, %v9012
    %v9202 = vadd.f32 %v186, %v9015
    %v9203 = vadd.f32 %v187, %v9018
    %v9204 = vadd.f32 %v188, %v9021
    %v9205 = vadd.f32 %v189, %v9024
    %v9206 = vadd.f32 %v190, %v9027
    %v9207 = vadd.f32 %v191, %v9030
    %v9208 = vadd.f32 %v192, %v9033
    %v9209 = vadd.f32 %v193, %v9036
    %v9210 = vadd.f32 %v194, %v9039
    %v9211 = vadd.f32 %v195, %v9042
    %v9212 = vadd.f32 %v196, %v9045
    %v9213 = vadd.f32 %v197, %v9048
    %v9214 = vadd.f32 %v198, %v9051
    %v9215 = vadd.f32 %v199, %v9054
    %v9216 = vadd.f32 %v200, %v9057
    %v9217 = vadd.f32 %v201, %v9060
    %v9218 = vadd.f32 %v202, %v9063
    %v9219 = vadd.f32 %v203, %v9066
    %v9220 = vadd.f32 %v204, %v9069
    %v9221 = vadd.f32 %v205, %v9072
    %v9222 = vadd.f32 %v206, %v9075
    %v9223 = vadd.f32 %v207, %v9078
    %v9224 = vadd.f32 %v208, %v9081
    %v9225 = vadd.f32 %v209, %v9084
    %v9226 = vadd.f32 %v210, %v9087
    %v9227 = vadd.f32 %v211, %v9090
    %v9228 = vadd.f32 %v212, %v9093
    %v9229 = vadd.f32 %v213, %v9096
    %v9230 = vadd.f32 %v214, %v9099
    %v9231 = vadd.f32 %v215, %v9102
    %v9232 = vadd.f32 %v216, %v9105
    %v9233 = vadd.f32 %v217, %v9108
    %v9234 = vadd.f32 %v218, %v9111
    %v9235 = vadd.f32 %v219, %v9114
    %v9236 = vadd.f32 %v220, %v9117
    %v9237 = vadd.f32 %v221, %v9120
    %v9238 = vadd.f32 %v222, %v9123
    %v9239 = vadd.f32 %v223, %v9126
    %v9240 = vadd.f32 %v224, %v9129
    %v9241 = vadd.f32 %v225, %v9132
    %v9242 = vadd.f32 %v226, %v9135
    %v9243 = vadd.f32 %v227, %v9138
    %v9244 = vadd.f32 %v228, %v9141
    %v9245 = vadd.f32 %v229, %v9144
    %v9246 = vadd.f32 %v230, %v9147
    %v9247 = vadd.f32 %v231, %v9150
    %v9248 = vadd.f32 %v232, %v9153
    %v9249 = vadd.f32 %v233, %v9156
    %v9250 = vadd.f32 %v234, %v9159
    %v9251 = vadd.f32 %v235, %v9162
    %v9252 = vadd.f32 %v236, %v9165
    %v9253 = vadd.f32 %v237, %v9168
    %v9254 = vadd.f32 %v238, %v9171
    %v9255 = vadd.f32 %v239, %v9174
    %v9256 = vadd.f32 %v240, %v9177
    %v9257 = vadd.f32 %v241, %v9180
    %v9258 = vadd.f32 %v242, %v9183
    %v9259 = vadd.f32 %v243, %v9186
    %v9260 = vadd.f32 %v244, %v9189
    %v9261 = vadd.f32 %v245, %v9192
    %v9262 = vadd.f32 %v246, %v9195
    %v9263 = vadd.f32 %v247, %v9198
    %9264 = vst.msk [vmem:[#allocation10] sm:$0xff] %vm74, %v9200
    %9265 = vst.msk [vmem:[#allocation10 + $0x8] sm:$0xff] %vm74, %v9201
    %9266 = vst.msk [vmem:[#allocation10 + $0x10] sm:$0xff] %vm74, %v9202
    %9267 = vst.msk [vmem:[#allocation10 + $0x18] sm:$0xff] %vm74, %v9203
    %9268 = vst.msk [vmem:[#allocation10 + $0x20] sm:$0xff] %vm74, %v9204
    %9269 = vst.msk [vmem:[#allocation10 + $0x28] sm:$0xff] %vm74, %v9205
    %9270 = vst.msk [vmem:[#allocation10 + $0x30] sm:$0xff] %vm74, %v9206
    %9271 = vst.msk [vmem:[#allocation10 + $0x38] sm:$0xff] %vm74, %v9207
    %9272 = vst.msk [vmem:[#allocation10 + $0x40] sm:$0xff] %vm74, %v9208
    %9273 = vst.msk [vmem:[#allocation10 + $0x48] sm:$0xff] %vm74, %v9209
    %9274 = vst.msk [vmem:[#allocation10 + $0x50] sm:$0xff] %vm74, %v9210
    %9275 = vst.msk [vmem:[#allocation10 + $0x58] sm:$0xff] %vm74, %v9211
    %9276 = vst.msk [vmem:[#allocation10 + $0x60] sm:$0xff] %vm74, %v9212
    %9277 = vst.msk [vmem:[#allocation10 + $0x68] sm:$0xff] %vm74, %v9213
    %9278 = vst.msk [vmem:[#allocation10 + $0x70] sm:$0xff] %vm74, %v9214
    %9279 = vst.msk [vmem:[#allocation10 + $0x78] sm:$0xff] %vm74, %v9215
    %9280 = vst.msk [vmem:[#allocation10 + $0x80] sm:$0xff] %vm74, %v9216
    %9281 = vst.msk [vmem:[#allocation10 + $0x88] sm:$0xff] %vm74, %v9217
    %9282 = vst.msk [vmem:[#allocation10 + $0x90] sm:$0xff] %vm74, %v9218
    %9283 = vst.msk [vmem:[#allocation10 + $0x98] sm:$0xff] %vm74, %v9219
    %9284 = vst.msk [vmem:[#allocation10 + $0xa0] sm:$0xff] %vm74, %v9220
    %9285 = vst.msk [vmem:[#allocation10 + $0xa8] sm:$0xff] %vm74, %v9221
    %9286 = vst.msk [vmem:[#allocation10 + $0xb0] sm:$0xff] %vm74, %v9222
    %9287 = vst.msk [vmem:[#allocation10 + $0xb8] sm:$0xff] %vm74, %v9223
    %9288 = vst.msk [vmem:[#allocation10 + $0xc0] sm:$0xff] %vm74, %v9224
    %9289 = vst.msk [vmem:[#allocation10 + $0xc8] sm:$0xff] %vm74, %v9225
    %9290 = vst.msk [vmem:[#allocation10 + $0xd0] sm:$0xff] %vm74, %v9226
    %9291 = vst.msk [vmem:[#allocation10 + $0xd8] sm:$0xff] %vm74, %v9227
    %9292 = vst.msk [vmem:[#allocation10 + $0xe0] sm:$0xff] %vm74, %v9228
    %9293 = vst.msk [vmem:[#allocation10 + $0xe8] sm:$0xff] %vm74, %v9229
    %9294 = vst.msk [vmem:[#allocation10 + $0xf0] sm:$0xff] %vm74, %v9230
    %9295 = vst.msk [vmem:[#allocation10 + $0xf8] sm:$0xff] %vm74, %v9231
    %9296 = vst.msk [vmem:[#allocation10 + $0x100] sm:$0xff] %vm74, %v9232
    %9297 = vst.msk [vmem:[#allocation10 + $0x108] sm:$0xff] %vm74, %v9233
    %9298 = vst.msk [vmem:[#allocation10 + $0x110] sm:$0xff] %vm74, %v9234
    %9299 = vst.msk [vmem:[#allocation10 + $0x118] sm:$0xff] %vm74, %v9235
    %9300 = vst.msk [vmem:[#allocation10 + $0x120] sm:$0xff] %vm74, %v9236
    %9301 = vst.msk [vmem:[#allocation10 + $0x128] sm:$0xff] %vm74, %v9237
    %9302 = vst.msk [vmem:[#allocation10 + $0x130] sm:$0xff] %vm74, %v9238
    %9303 = vst.msk [vmem:[#allocation10 + $0x138] sm:$0xff] %vm74, %v9239
    %9304 = vst.msk [vmem:[#allocation10 + $0x140] sm:$0xff] %vm74, %v9240
    %9305 = vst.msk [vmem:[#allocation10 + $0x148] sm:$0xff] %vm74, %v9241
    %9306 = vst.msk [vmem:[#allocation10 + $0x150] sm:$0xff] %vm74, %v9242
    %9307 = vst.msk [vmem:[#allocation10 + $0x158] sm:$0xff] %vm74, %v9243
    %9308 = vst.msk [vmem:[#allocation10 + $0x160] sm:$0xff] %vm74, %v9244
    %9309 = vst.msk [vmem:[#allocation10 + $0x168] sm:$0xff] %vm74, %v9245
    %9310 = vst.msk [vmem:[#allocation10 + $0x170] sm:$0xff] %vm74, %v9246
    %9311 = vst.msk [vmem:[#allocation10 + $0x178] sm:$0xff] %vm74, %v9247
    %9312 = vst.msk [vmem:[#allocation10 + $0x180] sm:$0xff] %vm74, %v9248
    %9313 = vst.msk [vmem:[#allocation10 + $0x188] sm:$0xff] %vm74, %v9249
    %9314 = vst.msk [vmem:[#allocation10 + $0x190] sm:$0xff] %vm74, %v9250
    %9315 = vst.msk [vmem:[#allocation10 + $0x198] sm:$0xff] %vm74, %v9251
    %9316 = vst.msk [vmem:[#allocation10 + $0x1a0] sm:$0xff] %vm74, %v9252
    %9317 = vst.msk [vmem:[#allocation10 + $0x1a8] sm:$0xff] %vm74, %v9253
    %9318 = vst.msk [vmem:[#allocation10 + $0x1b0] sm:$0xff] %vm74, %v9254
    %9319 = vst.msk [vmem:[#allocation10 + $0x1b8] sm:$0xff] %vm74, %v9255
    %9320 = vst.msk [vmem:[#allocation10 + $0x1c0] sm:$0xff] %vm74, %v9256
    %9321 = vst.msk [vmem:[#allocation10 + $0x1c8] sm:$0xff] %vm74, %v9257
    %9322 = vst.msk [vmem:[#allocation10 + $0x1d0] sm:$0xff] %vm74, %v9258
    %9323 = vst.msk [vmem:[#allocation10 + $0x1d8] sm:$0xff] %vm74, %v9259
    %9324 = vst.msk [vmem:[#allocation10 + $0x1e0] sm:$0xff] %vm74, %v9260
    %9325 = vst.msk [vmem:[#allocation10 + $0x1e8] sm:$0xff] %vm74, %v9261
    %9326 = vst.msk [vmem:[#allocation10 + $0x1f0] sm:$0xff] %vm74, %v9262
    %9327 = vst.msk [vmem:[#allocation10 + $0x1f8] sm:$0xff] %vm74, %v9263
    // Predicated region
    $region42: #{brm_forward.1} parent=1 // pred_check
      _
    $region43: #{brm_forward.1} parent=1 // pred_check_branch
      %9329 = sbr.rel (0) target = $region45
    $region44: #{brm_forward.1} parent=1 // pred_region
      %9331 = vsyncadd [#allocation6], 0
      %s9332 = sshll.u32 [#allocation10], 4
      %s9333 = int_to_ptr.vmem [resolvable:$true] %s9332
      %s9334 = sshll.u32 %s7, 4
      %s9335 = int_to_ptr.hbm [resolvable:$true] %s9334
      %9340 = dma.vmem_to_hbm [thread:$0]  %s9333, 8192, %s9335, [#allocation6], 128, 128, 8
    $region45: #{brm_forward.1} parent=1 // pred_fallthru
      _
    // Predicated region
    $region46: #{brm_forward.1} parent=1 // pred_check
      _
    $region47: #{brm_forward.1} parent=1 // pred_check_branch
      %9342 = sbr.rel (0) target = $region49
    $region48: #{brm_forward.1} parent=1 // pred_region
      %9344 = dma.done [#allocation6], 8192
    $region49: #{brm_forward.1} parent=1 // pred_fallthru
      _
    %9345 = vsyncpa [#allocation5], 1
    %9346 = vsyncpa [#allocation8], 1
    %9347 = vsyncpa [#allocation6], 1

</llo_original>
